<compile_context>
chip_gen: v7x
topology: tpu7x:2x2x1
jax: 0.10.0
libtpu: 0.0.40
codegen_flags: <defaults>
</compile_context>

<pallas_src>
import functools

import jax
import jax.numpy as jnp
from jax.experimental import pallas as pl
from jax.experimental.pallas import tpu as pltpu

LANES = 128  # TPU lane width; channel dims are zero-padded to this.


# --------------------------------------------------------------------------
# Fused kernel: whole features+conv stack for one image, entirely in VMEM.
# --------------------------------------------------------------------------
def _fused_feature_kernel(x_ref, *refs, layer_meta, num_outputs, h, w):
    """x_ref: (1, H, W, 128) bf16 NHWC block (channels pre-padded to 128).

    refs layout:
      w_0, b_0, ..., w_{L-1}, b_{L-1}   per-tap bf16 weights / f32 bias
      out_0 ... out_{num_outputs-1}     (1, Cout, H*W) f32 outputs (NCHW-flat)
      act_ref                           (H+2, W, 128) bf16 VMEM scratch
    layer_meta: static tuple of (kh, kw, cout, act, out_idx) per layer.
    """
    n_layers = len(layer_meta)
    w_refs = [refs[2 * i] for i in range(n_layers)]
    b_refs = [refs[2 * i + 1] for i in range(n_layers)]
    out_refs = refs[2 * n_layers:2 * n_layers + num_outputs]
    act_ref = refs[2 * n_layers + num_outputs]

    m = h * w

    # Zero only the two halo rows; the interior is fully overwritten below.
    zero_row = jnp.zeros((1, w, LANES), jnp.bfloat16)
    act_ref[0:1] = zero_row
    act_ref[h + 1:h + 2] = zero_row
    # Aligned, lane-dense write of this image's (pre-padded, bf16) input.
    act_ref[1:1 + h] = x_ref[0]

    for li, (kh, kw, cout, act, out_idx) in enumerate(layer_meta):
        pad = kh // 2
        full = act_ref[...]                                   # one aligned load
        zero_col = jnp.zeros((h + 2, 1, LANES), jnp.bfloat16)

        acc = jnp.zeros((m, LANES), jnp.float32)
        for dj in range(kw):
            # Column shift built once per dj on the in-register value; border
            # zeros come from the concatenated zero column.
            if dj == pad:
                shifted = full
            elif dj < pad:   # tap needs x[:, j-1]: shift right, zero col 0
                shifted = jnp.concatenate([zero_col, full[:, :w - 1, :]], axis=1)
            else:            # tap needs x[:, j+1]: shift left, zero col w-1
                shifted = jnp.concatenate([full[:, 1:, :], zero_col], axis=1)
            for di in range(kh):
                t = di * kw + dj
                r0 = di - pad + 1        # row shift: free major-axis slice
                lhs = shifted[r0:r0 + h].reshape(m, LANES)
                # bf16 operands, f32 accumulation on the MXU; BN scale is
                # pre-folded into the weights.
                acc = acc + jnp.dot(lhs, w_refs[li][t],
                                    preferred_element_type=jnp.float32)

        y = acc + b_refs[li][...]
        if act == "hardswish":
            y = y * jnp.clip(y + 3.0, 0.0, 6.0) * (1.0 / 6.0)
        elif act == "relu":
            y = jnp.maximum(y, 0.0)

        if out_idx >= 0:
            # Emit NCHW-flat; transpose only the channels we keep.  The store
            # is lane-dense (last dim = H*W).
            out_refs[out_idx][0] = y[:, 0:cout].T

        if li + 1 < n_layers:
            # Aligned writeback of the next layer's input (bf16, full lanes;
            # padded lanes are exactly 0 because weights/bias are zero-padded
            # and act(0) == 0).
            act_ref[1:1 + h] = y.astype(jnp.bfloat16).reshape(h, w, LANES)


# --------------------------------------------------------------------------
# Packing + builder (all strings / layer names handled OUTSIDE of jit).
# --------------------------------------------------------------------------
def _pack_layer(p):
    """Fold BN scale into the conv weight and pack per-tap (kh*kw, 128, 128)
    bf16 weight slabs plus a (1, 128) f32 bias, zero padded."""
    kh, kw, cin, cout = p["w"].shape
    w_folded = p["w"].astype(jnp.float32) * p["scale"][None, None, None, :]
    w_taps = jnp.zeros((kh * kw, LANES, LANES), jnp.float32)
    w_taps = w_taps.at[:, :cin, :cout].set(w_folded.reshape(kh * kw, cin, cout))
    w_taps = w_taps.astype(jnp.bfloat16)
    b_col = jnp.pad(p["bias"].astype(jnp.float32), (0, LANES - cout)).reshape(1, LANES)
    return w_taps, b_col


def build_feature_extractor(params, extracted_layers, *, n, cin0, h, w):
    """Mirrors FeatureExtractor.forward: iterate 'features', then 'conv'.
    Returns a jitted forward(x_nchw) -> list of NCHW feature maps."""
    assert w % 8 == 0 and (h * w) % LANES == 0, "spatial dims must be tile-friendly"
    layer_items = list(params["features"].items()) + [("conv", params["conv"])]
    m = h * w

    packed, layer_meta, out_couts = [], [], []
    flops = 0
    for name, p in layer_items:
        kh, kw, cin, cout = p["w"].shape
        assert kh == kw and kh in (1, 3) and cin <= LANES and cout <= LANES
        assert p["padding"] == kh // 2      # stride-1 "same" convs only
        w_taps, b_col = _pack_layer(p)
        packed += [w_taps, b_col]
        out_idx = -1
        if name in extracted_layers:
            out_idx = len(out_couts)
            out_couts.append(cout)
        layer_meta.append((kh, kw, cout, p["act"], out_idx))
        flops += 2 * n * m * kh * kw * cin * cout

    num_outputs = len(out_couts)
    if num_outputs == 0:
        return jax.jit(lambda x: [])

    kernel = functools.partial(
        _fused_feature_kernel, layer_meta=tuple(layer_meta),
        num_outputs=num_outputs, h=h, w=w)

    in_specs = [pl.BlockSpec((1, h, w, LANES), lambda i: (i, 0, 0, 0))]
    for wt, bc in zip(packed[0::2], packed[1::2]):
        in_specs.append(pl.BlockSpec(wt.shape, lambda i: (0, 0, 0)))
        in_specs.append(pl.BlockSpec(bc.shape, lambda i: (0, 0)))
    out_shapes = tuple(jax.ShapeDtypeStruct((n, c, m), jnp.float32) for c in out_couts)
    out_specs = tuple(pl.BlockSpec((1, c, m), lambda i: (i, 0, 0)) for c in out_couts)

    bytes_accessed = (n * h * w * LANES * 2
                      + sum(int(a.size) * a.dtype.itemsize for a in packed)
                      + sum(n * c * m * 4 for c in out_couts))
    cost = pl.CostEstimate(flops=int(flops), transcendentals=0,
                           bytes_accessed=int(bytes_accessed))

    fused = pl.pallas_call(
        kernel,
        out_shape=out_shapes,
        grid=(n,),
        in_specs=in_specs,
        out_specs=out_specs,
        scratch_shapes=[pltpu.VMEM((h + 2, w, LANES), jnp.bfloat16)],
        compiler_params=pltpu.CompilerParams(
            dimension_semantics=("parallel",),      # images -> 2 TCs on v7x
            vmem_limit_bytes=8 * 1024 * 1024,
        ),
        cost_estimate=cost,
    )

    packed = tuple(packed)

    def forward(x_nchw):
        # NHWC, channels zero-padded to 128 lanes, bf16 (matches reference).
        x = jnp.transpose(x_nchw, (0, 2, 3, 1)).astype(jnp.float32)
        x = jnp.pad(x, ((0, 0), (0, 0), (0, 0), (0, LANES - cin0)))
        x = x.astype(jnp.bfloat16)
        outs = fused(x, *packed)
        if not isinstance(outs, (tuple, list)):
            outs = (outs,)
        # (N, C, H*W) -> (N, C, H, W) is a free reshape.
        return [o.reshape(n, o.shape[1], h, w) for o in outs]

    return jax.jit(forward)


# ---------------- synthetic MobileNetV3-style submodule (deterministic) ------
def _fold_bn(gamma, beta, mean, var, eps=1e-5):
    scale = gamma / jnp.sqrt(var + eps)
    bias = beta - mean * scale
    return scale, bias


def _conv_block_params(key, cin, cout, k, act):
    k1, k2, k3, k4, k5 = jax.random.split(key, 5)
    fan_in = k * k * cin
    w = jax.random.normal(k1, (k, k, cin, cout), jnp.float32) / jnp.sqrt(fan_in)
    gamma = 1.0 + 0.1 * jax.random.normal(k2, (cout,), jnp.float32)
    beta = 0.1 * jax.random.normal(k3, (cout,), jnp.float32)
    mean = 0.1 * jax.random.normal(k4, (cout,), jnp.float32)
    var = jnp.abs(jax.random.normal(k5, (cout,), jnp.float32)) + 0.5
    scale, bias = _fold_bn(gamma, beta, mean, var)
    return {"w": w, "scale": scale, "bias": bias, "padding": k // 2, "act": act}


def make_submodule_params():
    """features: three conv-bn-act blocks; conv: final 1x1 conv-bn-hswish."""
    key = jax.random.PRNGKey(42)
    k0, k1, k2, k3 = jax.random.split(key, 4)
    features = {
        "0": _conv_block_params(k0, 4, 8, 3, "hardswish"),
        "1": _conv_block_params(k1, 8, 8, 3, "relu"),
        "2": _conv_block_params(k2, 8, 16, 3, "hardswish"),
    }
    conv = _conv_block_params(k3, 16, 32, 1, "hardswish")
    return {"features": features, "conv": conv}


# ---------------- pure-JAX reference (mirrors the kernel's bf16 operands) ----
def _reference_forward(x_nchw, params, extracted_layers):
    x = jnp.transpose(x_nchw, (0, 2, 3, 1)).astype(jnp.float32)
    outs = []
    layer_items = list(params["features"].items()) + [("conv", params["conv"])]
    for name, p in layer_items:
        kh, _, _, _ = p["w"].shape
        pad = kh // 2
        w_q = (p["w"] * p["scale"][None, None, None, :]
               ).astype(jnp.bfloat16).astype(jnp.float32)
        x_q = x.astype(jnp.bfloat16).astype(jnp.float32)
        y = jax.lax.conv_general_dilated(
            x_q, w_q, window_strides=(1, 1),
            padding=[(pad, pad), (pad, pad)],
            dimension_numbers=("NHWC", "HWIO", "NHWC"),
            precision=jax.lax.Precision.HIGHEST)
        y = y + p["bias"][None, None, None, :]
        if p["act"] == "hardswish":
            y = y * jnp.clip(y + 3.0, 0.0, 6.0) / 6.0
        elif p["act"] == "relu":
            y = jnp.maximum(y, 0.0)
        x = y
        if name in extracted_layers:
            outs.append(jnp.transpose(y, (0, 3, 1, 2)))
    return outs


if __name__ == "__main__":
    x = jax.random.normal(jax.random.PRNGKey(0), (2, 4, 16, 16), jnp.float32)
    params = make_submodule_params()
    extracted_layers = ("1", "2", "conv")

    n, cin0, h, w = x.shape
    fwd = build_feature_extractor(params, extracted_layers, n=n, cin0=cin0, h=h, w=w)
    outs = fwd(x)
    outs = [jax.block_until_ready(o) for o in outs]

    expected_shapes = [(2, 8, 16, 16), (2, 16, 16, 16), (2, 32, 16, 16)]
    assert [tuple(o.shape) for o in outs] == expected_shapes, \
        [tuple(o.shape) for o in outs]
    assert all(bool(jnp.all(jnp.isfinite(o))) for o in outs)

    refs = _reference_forward(x, params, extracted_layers)
    for o, r in zip(outs, refs):
        assert bool(jnp.allclose(o, r, rtol=2e-2, atol=2e-2)), \
            float(jnp.max(jnp.abs(o - r)))

    print("KERNEL_OK")
</pallas_src>

<mosaic_0001>
module attributes {stable_mosaic.version = 11 : i64} {
  func.func @_fused_feature_kernel(%arg0: i32, %arg1: memref<1x16x16x128xbf16, #tpu.memory_space<vmem>>, %arg2: memref<9x128x128xbf16, #tpu.memory_space<vmem>>, %arg3: memref<1x128xf32, #tpu.memory_space<vmem>>, %arg4: memref<9x128x128xbf16, #tpu.memory_space<vmem>>, %arg5: memref<1x128xf32, #tpu.memory_space<vmem>>, %arg6: memref<9x128x128xbf16, #tpu.memory_space<vmem>>, %arg7: memref<1x128xf32, #tpu.memory_space<vmem>>, %arg8: memref<1x128x128xbf16, #tpu.memory_space<vmem>>, %arg9: memref<1x128xf32, #tpu.memory_space<vmem>>, %arg10: memref<1x8x256xf32, #tpu.memory_space<vmem>>, %arg11: memref<1x16x256xf32, #tpu.memory_space<vmem>>, %arg12: memref<1x32x256xf32, #tpu.memory_space<vmem>>, %arg13: memref<18x16x128xbf16, #tpu.memory_space<vmem>>) attributes {dimension_semantics = [#tpu.dimension_semantics<parallel>], iteration_bounds = array<i64: 2>, scalar_prefetch = 0 : i64, scratch_operands = 1 : i64, tpu.core_type = #tpu.core_type<tc>, window_params = [{transform_indices = @transform_0, window_bounds = array<i64: 1, 16, 16, 128>}, {pipeline_mode = #tpu.pipeline_mode<synchronous>, transform_indices = @transform_1, window_bounds = array<i64: 9, 128, 128>}, {pipeline_mode = #tpu.pipeline_mode<synchronous>, transform_indices = @transform_2, window_bounds = array<i64: 1, 128>}, {pipeline_mode = #tpu.pipeline_mode<synchronous>, transform_indices = @transform_3, window_bounds = array<i64: 9, 128, 128>}, {pipeline_mode = #tpu.pipeline_mode<synchronous>, transform_indices = @transform_4, window_bounds = array<i64: 1, 128>}, {pipeline_mode = #tpu.pipeline_mode<synchronous>, transform_indices = @transform_5, window_bounds = array<i64: 9, 128, 128>}, {pipeline_mode = #tpu.pipeline_mode<synchronous>, transform_indices = @transform_6, window_bounds = array<i64: 1, 128>}, {pipeline_mode = #tpu.pipeline_mode<synchronous>, transform_indices = @transform_7, window_bounds = array<i64: 1, 128, 128>}, {pipeline_mode = #tpu.pipeline_mode<synchronous>, transform_indices = @transform_8, window_bounds = array<i64: 1, 128>}, {transform_indices = @transform_9, window_bounds = array<i64: 1, 8, 256>}, {transform_indices = @transform_10, window_bounds = array<i64: 1, 16, 256>}, {transform_indices = @transform_11, window_bounds = array<i64: 1, 32, 256>}]} {
    %cst = arith.constant 0.000000e+00 : bf16
    %0 = vector.broadcast %cst : bf16 to vector<1x16x128xbf16>
    %c0 = arith.constant 0 : index
    %c0_0 = arith.constant 0 : index
    %c0_1 = arith.constant 0 : index
    %1 = vector.load %arg13[%c0, %c0_0, %c0_1] : memref<18x16x128xbf16, #tpu.memory_space<vmem>>, vector<1x16x128xbf16>
    tpu.vector_store %arg13[%c0, %c0_0, %c0_1], %0 {strides = array<i32>} : memref<18x16x128xbf16, #tpu.memory_space<vmem>>, vector<1x16x128xbf16>,
    %c17 = arith.constant 17 : index
    %c0_2 = arith.constant 0 : index
    %c0_3 = arith.constant 0 : index
    %2 = vector.load %arg13[%c17, %c0_2, %c0_3] : memref<18x16x128xbf16, #tpu.memory_space<vmem>>, vector<1x16x128xbf16>
    tpu.vector_store %arg13[%c17, %c0_2, %c0_3], %0 {strides = array<i32>} : memref<18x16x128xbf16, #tpu.memory_space<vmem>>, vector<1x16x128xbf16>,
    %c0_4 = arith.constant 0 : index
    %c0_5 = arith.constant 0 : index
    %c0_6 = arith.constant 0 : index
    %c0_7 = arith.constant 0 : index
    %3 = vector.load %arg1[%c0_4, %c0_5, %c0_6, %c0_7] : memref<1x16x16x128xbf16, #tpu.memory_space<vmem>>, vector<1x16x16x128xbf16>
    %4 = vector.shape_cast %3 : vector<1x16x16x128xbf16> to vector<16x16x128xbf16>
    %c1 = arith.constant 1 : index
    %c0_8 = arith.constant 0 : index
    %c0_9 = arith.constant 0 : index
    %5 = vector.load %arg13[%c1, %c0_8, %c0_9] : memref<18x16x128xbf16, #tpu.memory_space<vmem>>, vector<16x16x128xbf16>
    tpu.vector_store %arg13[%c1, %c0_8, %c0_9], %4 {strides = array<i32>} : memref<18x16x128xbf16, #tpu.memory_space<vmem>>, vector<16x16x128xbf16>,
    %c0_10 = arith.constant 0 : index
    %c0_11 = arith.constant 0 : index
    %c0_12 = arith.constant 0 : index
    %6 = vector.load %arg13[%c0_10, %c0_11, %c0_12] : memref<18x16x128xbf16, #tpu.memory_space<vmem>>, vector<18x16x128xbf16>
    %cst_13 = arith.constant 0.000000e+00 : bf16
    %7 = vector.broadcast %cst_13 : bf16 to vector<18x1x128xbf16>
    %cst_14 = arith.constant 0.000000e+00 : f32
    %8 = vector.broadcast %cst_14 : f32 to vector<256x128xf32>
    %9 = vector.extract_strided_slice %6 {offsets = [0, 0, 0], sizes = [18, 15, 128], strides = [1, 1, 1]} : vector<18x16x128xbf16> to vector<18x15x128xbf16>
    %10 = tpu.concatenate %7, %9 in 1 : vector<18x1x128xbf16>, vector<18x15x128xbf16> -> vector<18x16x128xbf16>
    %11 = vector.extract_strided_slice %10 {offsets = [0, 0, 0], sizes = [16, 16, 128], strides = [1, 1, 1]} : vector<18x16x128xbf16> to vector<16x16x128xbf16>
    %12 = vector.shape_cast %11 : vector<16x16x128xbf16> to vector<256x128xbf16>
    %c0_15 = arith.constant 0 : index
    %c0_16 = arith.constant 0 : index
    %c0_17 = arith.constant 0 : index
    %13 = vector.load %arg2[%c0_15, %c0_16, %c0_17] : memref<9x128x128xbf16, #tpu.memory_space<vmem>>, vector<1x128x128xbf16>
    %14 = vector.shape_cast %13 : vector<1x128x128xbf16> to vector<128x128xbf16>
    %cst_18 = arith.constant dense<0.000000e+00> : vector<256x128xf32>
    %15 = tpu.matmul %12, %14, %cst_18 {dimension_numbers = #tpu.dot_dimension_numbers<[1], [0], [0], [1], [0, 0, 1, 1], [], []>} : vector<256x128xbf16>, vector<128x128xbf16>, vector<256x128xf32> -> vector<256x128xf32>
    %16 = arith.addf %8, %15 : vector<256x128xf32>
    %17 = vector.extract_strided_slice %10 {offsets = [1, 0, 0], sizes = [16, 16, 128], strides = [1, 1, 1]} : vector<18x16x128xbf16> to vector<16x16x128xbf16>
    %18 = vector.shape_cast %17 : vector<16x16x128xbf16> to vector<256x128xbf16>
    %c3 = arith.constant 3 : index
    %c0_19 = arith.constant 0 : index
    %c0_20 = arith.constant 0 : index
    %19 = vector.load %arg2[%c3, %c0_19, %c0_20] : memref<9x128x128xbf16, #tpu.memory_space<vmem>>, vector<1x128x128xbf16>
    %20 = vector.shape_cast %19 : vector<1x128x128xbf16> to vector<128x128xbf16>
    %cst_21 = arith.constant dense<0.000000e+00> : vector<256x128xf32>
    %21 = tpu.matmul %18, %20, %cst_21 {dimension_numbers = #tpu.dot_dimension_numbers<[1], [0], [0], [1], [0, 0, 1, 1], [], []>} : vector<256x128xbf16>, vector<128x128xbf16>, vector<256x128xf32> -> vector<256x128xf32>
    %22 = arith.addf %16, %21 : vector<256x128xf32>
    %23 = vector.extract_strided_slice %10 {offsets = [2, 0, 0], sizes = [16, 16, 128], strides = [1, 1, 1]} : vector<18x16x128xbf16> to vector<16x16x128xbf16>
    %24 = vector.shape_cast %23 : vector<16x16x128xbf16> to vector<256x128xbf16>
    %c6 = arith.constant 6 : index
    %c0_22 = arith.constant 0 : index
    %c0_23 = arith.constant 0 : index
    %25 = vector.load %arg2[%c6, %c0_22, %c0_23] : memref<9x128x128xbf16, #tpu.memory_space<vmem>>, vector<1x128x128xbf16>
    %26 = vector.shape_cast %25 : vector<1x128x128xbf16> to vector<128x128xbf16>
    %cst_24 = arith.constant dense<0.000000e+00> : vector<256x128xf32>
    %27 = tpu.matmul %24, %26, %cst_24 {dimension_numbers = #tpu.dot_dimension_numbers<[1], [0], [0], [1], [0, 0, 1, 1], [], []>} : vector<256x128xbf16>, vector<128x128xbf16>, vector<256x128xf32> -> vector<256x128xf32>
    %28 = arith.addf %22, %27 : vector<256x128xf32>
    %29 = vector.extract_strided_slice %6 {offsets = [0, 0, 0], sizes = [16, 16, 128], strides = [1, 1, 1]} : vector<18x16x128xbf16> to vector<16x16x128xbf16>
    %30 = vector.shape_cast %29 : vector<16x16x128xbf16> to vector<256x128xbf16>
    %c1_25 = arith.constant 1 : index
    %c0_26 = arith.constant 0 : index
    %c0_27 = arith.constant 0 : index
    %31 = vector.load %arg2[%c1_25, %c0_26, %c0_27] : memref<9x128x128xbf16, #tpu.memory_space<vmem>>, vector<1x128x128xbf16>
    %32 = vector.shape_cast %31 : vector<1x128x128xbf16> to vector<128x128xbf16>
    %cst_28 = arith.constant dense<0.000000e+00> : vector<256x128xf32>
    %33 = tpu.matmul %30, %32, %cst_28 {dimension_numbers = #tpu.dot_dimension_numbers<[1], [0], [0], [1], [0, 0, 1, 1], [], []>} : vector<256x128xbf16>, vector<128x128xbf16>, vector<256x128xf32> -> vector<256x128xf32>
    %34 = arith.addf %28, %33 : vector<256x128xf32>
    %35 = vector.extract_strided_slice %6 {offsets = [1, 0, 0], sizes = [16, 16, 128], strides = [1, 1, 1]} : vector<18x16x128xbf16> to vector<16x16x128xbf16>
    %36 = vector.shape_cast %35 : vector<16x16x128xbf16> to vector<256x128xbf16>
    %c4 = arith.constant 4 : index
    %c0_29 = arith.constant 0 : index
    %c0_30 = arith.constant 0 : index
    %37 = vector.load %arg2[%c4, %c0_29, %c0_30] : memref<9x128x128xbf16, #tpu.memory_space<vmem>>, vector<1x128x128xbf16>
    %38 = vector.shape_cast %37 : vector<1x128x128xbf16> to vector<128x128xbf16>
    %cst_31 = arith.constant dense<0.000000e+00> : vector<256x128xf32>
    %39 = tpu.matmul %36, %38, %cst_31 {dimension_numbers = #tpu.dot_dimension_numbers<[1], [0], [0], [1], [0, 0, 1, 1], [], []>} : vector<256x128xbf16>, vector<128x128xbf16>, vector<256x128xf32> -> vector<256x128xf32>
    %40 = arith.addf %34, %39 : vector<256x128xf32>
    %41 = vector.extract_strided_slice %6 {offsets = [2, 0, 0], sizes = [16, 16, 128], strides = [1, 1, 1]} : vector<18x16x128xbf16> to vector<16x16x128xbf16>
    %42 = vector.shape_cast %41 : vector<16x16x128xbf16> to vector<256x128xbf16>
    %c7 = arith.constant 7 : index
    %c0_32 = arith.constant 0 : index
    %c0_33 = arith.constant 0 : index
    %43 = vector.load %arg2[%c7, %c0_32, %c0_33] : memref<9x128x128xbf16, #tpu.memory_space<vmem>>, vector<1x128x128xbf16>
    %44 = vector.shape_cast %43 : vector<1x128x128xbf16> to vector<128x128xbf16>
    %cst_34 = arith.constant dense<0.000000e+00> : vector<256x128xf32>
    %45 = tpu.matmul %42, %44, %cst_34 {dimension_numbers = #tpu.dot_dimension_numbers<[1], [0], [0], [1], [0, 0, 1, 1], [], []>} : vector<256x128xbf16>, vector<128x128xbf16>, vector<256x128xf32> -> vector<256x128xf32>
    %46 = arith.addf %40, %45 : vector<256x128xf32>
    %47 = vector.extract_strided_slice %6 {offsets = [0, 1, 0], sizes = [18, 15, 128], strides = [1, 1, 1]} : vector<18x16x128xbf16> to vector<18x15x128xbf16>
    %48 = tpu.concatenate %47, %7 in 1 : vector<18x15x128xbf16>, vector<18x1x128xbf16> -> vector<18x16x128xbf16>
    %49 = vector.extract_strided_slice %48 {offsets = [0, 0, 0], sizes = [16, 16, 128], strides = [1, 1, 1]} : vector<18x16x128xbf16> to vector<16x16x128xbf16>
    %50 = vector.shape_cast %49 : vector<16x16x128xbf16> to vector<256x128xbf16>
    %c2 = arith.constant 2 : index
    %c0_35 = arith.constant 0 : index
    %c0_36 = arith.constant 0 : index
    %51 = vector.load %arg2[%c2, %c0_35, %c0_36] : memref<9x128x128xbf16, #tpu.memory_space<vmem>>, vector<1x128x128xbf16>
    %52 = vector.shape_cast %51 : vector<1x128x128xbf16> to vector<128x128xbf16>
    %cst_37 = arith.constant dense<0.000000e+00> : vector<256x128xf32>
    %53 = tpu.matmul %50, %52, %cst_37 {dimension_numbers = #tpu.dot_dimension_numbers<[1], [0], [0], [1], [0, 0, 1, 1], [], []>} : vector<256x128xbf16>, vector<128x128xbf16>, vector<256x128xf32> -> vector<256x128xf32>
    %54 = arith.addf %46, %53 : vector<256x128xf32>
    %55 = vector.extract_strided_slice %48 {offsets = [1, 0, 0], sizes = [16, 16, 128], strides = [1, 1, 1]} : vector<18x16x128xbf16> to vector<16x16x128xbf16>
    %56 = vector.shape_cast %55 : vector<16x16x128xbf16> to vector<256x128xbf16>
    %c5 = arith.constant 5 : index
    %c0_38 = arith.constant 0 : index
    %c0_39 = arith.constant 0 : index
    %57 = vector.load %arg2[%c5, %c0_38, %c0_39] : memref<9x128x128xbf16, #tpu.memory_space<vmem>>, vector<1x128x128xbf16>
    %58 = vector.shape_cast %57 : vector<1x128x128xbf16> to vector<128x128xbf16>
    %cst_40 = arith.constant dense<0.000000e+00> : vector<256x128xf32>
    %59 = tpu.matmul %56, %58, %cst_40 {dimension_numbers = #tpu.dot_dimension_numbers<[1], [0], [0], [1], [0, 0, 1, 1], [], []>} : vector<256x128xbf16>, vector<128x128xbf16>, vector<256x128xf32> -> vector<256x128xf32>
    %60 = arith.addf %54, %59 : vector<256x128xf32>
    %61 = vector.extract_strided_slice %48 {offsets = [2, 0, 0], sizes = [16, 16, 128], strides = [1, 1, 1]} : vector<18x16x128xbf16> to vector<16x16x128xbf16>
    %62 = vector.shape_cast %61 : vector<16x16x128xbf16> to vector<256x128xbf16>
    %c8 = arith.constant 8 : index
    %c0_41 = arith.constant 0 : index
    %c0_42 = arith.constant 0 : index
    %63 = vector.load %arg2[%c8, %c0_41, %c0_42] : memref<9x128x128xbf16, #tpu.memory_space<vmem>>, vector<1x128x128xbf16>
    %64 = vector.shape_cast %63 : vector<1x128x128xbf16> to vector<128x128xbf16>
    %cst_43 = arith.constant dense<0.000000e+00> : vector<256x128xf32>
    %65 = tpu.matmul %62, %64, %cst_43 {dimension_numbers = #tpu.dot_dimension_numbers<[1], [0], [0], [1], [0, 0, 1, 1], [], []>} : vector<256x128xbf16>, vector<128x128xbf16>, vector<256x128xf32> -> vector<256x128xf32>
    %66 = arith.addf %60, %65 : vector<256x128xf32>
    %c0_44 = arith.constant 0 : index
    %c0_45 = arith.constant 0 : index
    %67 = vector.load %arg3[%c0_44, %c0_45] : memref<1x128xf32, #tpu.memory_space<vmem>>, vector<1x128xf32>
    %68 = vector.broadcast %67 : vector<1x128xf32> to vector<256x128xf32>
    %69 = arith.addf %66, %68 : vector<256x128xf32>
    %cst_46 = arith.constant 3.000000e+00 : f32
    %70 = vector.broadcast %cst_46 : f32 to vector<256x128xf32>
    %71 = arith.addf %69, %70 : vector<256x128xf32>
    %cst_47 = arith.constant 0.000000e+00 : f32
    %cst_48 = arith.constant 6.000000e+00 : f32
    %72 = vector.broadcast %cst_47 : f32 to vector<256x128xf32>
    %73 = arith.maximumf %72, %71 : vector<256x128xf32>
    %74 = vector.broadcast %cst_48 : f32 to vector<256x128xf32>
    %75 = arith.minimumf %74, %73 : vector<256x128xf32>
    %76 = arith.mulf %69, %75 : vector<256x128xf32>
    %cst_49 = arith.constant 0.166666672 : f32
    %77 = vector.broadcast %cst_49 : f32 to vector<256x128xf32>
    %78 = arith.mulf %76, %77 : vector<256x128xf32>
    %79 = arith.truncf %78 : vector<256x128xf32> to vector<256x128xbf16>
    %80 = vector.shape_cast %79 : vector<256x128xbf16> to vector<16x16x128xbf16>
    %c1_50 = arith.constant 1 : index
    %c0_51 = arith.constant 0 : index
    %c0_52 = arith.constant 0 : index
    %81 = vector.load %arg13[%c1_50, %c0_51, %c0_52] : memref<18x16x128xbf16, #tpu.memory_space<vmem>>, vector<16x16x128xbf16>
    tpu.vector_store %arg13[%c1_50, %c0_51, %c0_52], %80 {strides = array<i32>} : memref<18x16x128xbf16, #tpu.memory_space<vmem>>, vector<16x16x128xbf16>,
    %c0_53 = arith.constant 0 : index
    %c0_54 = arith.constant 0 : index
    %c0_55 = arith.constant 0 : index
    %82 = vector.load %arg13[%c0_53, %c0_54, %c0_55] : memref<18x16x128xbf16, #tpu.memory_space<vmem>>, vector<18x16x128xbf16>
    %cst_56 = arith.constant 0.000000e+00 : bf16
    %83 = vector.broadcast %cst_56 : bf16 to vector<18x1x128xbf16>
    %cst_57 = arith.constant 0.000000e+00 : f32
    %84 = vector.broadcast %cst_57 : f32 to vector<256x128xf32>
    %85 = vector.extract_strided_slice %82 {offsets = [0, 0, 0], sizes = [18, 15, 128], strides = [1, 1, 1]} : vector<18x16x128xbf16> to vector<18x15x128xbf16>
    %86 = tpu.concatenate %83, %85 in 1 : vector<18x1x128xbf16>, vector<18x15x128xbf16> -> vector<18x16x128xbf16>
    %87 = vector.extract_strided_slice %86 {offsets = [0, 0, 0], sizes = [16, 16, 128], strides = [1, 1, 1]} : vector<18x16x128xbf16> to vector<16x16x128xbf16>
    %88 = vector.shape_cast %87 : vector<16x16x128xbf16> to vector<256x128xbf16>
    %c0_58 = arith.constant 0 : index
    %c0_59 = arith.constant 0 : index
    %c0_60 = arith.constant 0 : index
    %89 = vector.load %arg4[%c0_58, %c0_59, %c0_60] : memref<9x128x128xbf16, #tpu.memory_space<vmem>>, vector<1x128x128xbf16>
    %90 = vector.shape_cast %89 : vector<1x128x128xbf16> to vector<128x128xbf16>
    %cst_61 = arith.constant dense<0.000000e+00> : vector<256x128xf32>
    %91 = tpu.matmul %88, %90, %cst_61 {dimension_numbers = #tpu.dot_dimension_numbers<[1], [0], [0], [1], [0, 0, 1, 1], [], []>} : vector<256x128xbf16>, vector<128x128xbf16>, vector<256x128xf32> -> vector<256x128xf32>
    %92 = arith.addf %84, %91 : vector<256x128xf32>
    %93 = vector.extract_strided_slice %86 {offsets = [1, 0, 0], sizes = [16, 16, 128], strides = [1, 1, 1]} : vector<18x16x128xbf16> to vector<16x16x128xbf16>
    %94 = vector.shape_cast %93 : vector<16x16x128xbf16> to vector<256x128xbf16>
    %c3_62 = arith.constant 3 : index
    %c0_63 = arith.constant 0 : index
    %c0_64 = arith.constant 0 : index
    %95 = vector.load %arg4[%c3_62, %c0_63, %c0_64] : memref<9x128x128xbf16, #tpu.memory_space<vmem>>, vector<1x128x128xbf16>
    %96 = vector.shape_cast %95 : vector<1x128x128xbf16> to vector<128x128xbf16>
    %cst_65 = arith.constant dense<0.000000e+00> : vector<256x128xf32>
    %97 = tpu.matmul %94, %96, %cst_65 {dimension_numbers = #tpu.dot_dimension_numbers<[1], [0], [0], [1], [0, 0, 1, 1], [], []>} : vector<256x128xbf16>, vector<128x128xbf16>, vector<256x128xf32> -> vector<256x128xf32>
    %98 = arith.addf %92, %97 : vector<256x128xf32>
    %99 = vector.extract_strided_slice %86 {offsets = [2, 0, 0], sizes = [16, 16, 128], strides = [1, 1, 1]} : vector<18x16x128xbf16> to vector<16x16x128xbf16>
    %100 = vector.shape_cast %99 : vector<16x16x128xbf16> to vector<256x128xbf16>
    %c6_66 = arith.constant 6 : index
    %c0_67 = arith.constant 0 : index
    %c0_68 = arith.constant 0 : index
    %101 = vector.load %arg4[%c6_66, %c0_67, %c0_68] : memref<9x128x128xbf16, #tpu.memory_space<vmem>>, vector<1x128x128xbf16>
    %102 = vector.shape_cast %101 : vector<1x128x128xbf16> to vector<128x128xbf16>
    %cst_69 = arith.constant dense<0.000000e+00> : vector<256x128xf32>
    %103 = tpu.matmul %100, %102, %cst_69 {dimension_numbers = #tpu.dot_dimension_numbers<[1], [0], [0], [1], [0, 0, 1, 1], [], []>} : vector<256x128xbf16>, vector<128x128xbf16>, vector<256x128xf32> -> vector<256x128xf32>
    %104 = arith.addf %98, %103 : vector<256x128xf32>
    %105 = vector.extract_strided_slice %82 {offsets = [0, 0, 0], sizes = [16, 16, 128], strides = [1, 1, 1]} : vector<18x16x128xbf16> to vector<16x16x128xbf16>
    %106 = vector.shape_cast %105 : vector<16x16x128xbf16> to vector<256x128xbf16>
    %c1_70 = arith.constant 1 : index
    %c0_71 = arith.constant 0 : index
    %c0_72 = arith.constant 0 : index
    %107 = vector.load %arg4[%c1_70, %c0_71, %c0_72] : memref<9x128x128xbf16, #tpu.memory_space<vmem>>, vector<1x128x128xbf16>
    %108 = vector.shape_cast %107 : vector<1x128x128xbf16> to vector<128x128xbf16>
    %cst_73 = arith.constant dense<0.000000e+00> : vector<256x128xf32>
    %109 = tpu.matmul %106, %108, %cst_73 {dimension_numbers = #tpu.dot_dimension_numbers<[1], [0], [0], [1], [0, 0, 1, 1], [], []>} : vector<256x128xbf16>, vector<128x128xbf16>, vector<256x128xf32> -> vector<256x128xf32>
    %110 = arith.addf %104, %109 : vector<256x128xf32>
    %111 = vector.extract_strided_slice %82 {offsets = [1, 0, 0], sizes = [16, 16, 128], strides = [1, 1, 1]} : vector<18x16x128xbf16> to vector<16x16x128xbf16>
    %112 = vector.shape_cast %111 : vector<16x16x128xbf16> to vector<256x128xbf16>
    %c4_74 = arith.constant 4 : index
    %c0_75 = arith.constant 0 : index
    %c0_76 = arith.constant 0 : index
    %113 = vector.load %arg4[%c4_74, %c0_75, %c0_76] : memref<9x128x128xbf16, #tpu.memory_space<vmem>>, vector<1x128x128xbf16>
    %114 = vector.shape_cast %113 : vector<1x128x128xbf16> to vector<128x128xbf16>
    %cst_77 = arith.constant dense<0.000000e+00> : vector<256x128xf32>
    %115 = tpu.matmul %112, %114, %cst_77 {dimension_numbers = #tpu.dot_dimension_numbers<[1], [0], [0], [1], [0, 0, 1, 1], [], []>} : vector<256x128xbf16>, vector<128x128xbf16>, vector<256x128xf32> -> vector<256x128xf32>
    %116 = arith.addf %110, %115 : vector<256x128xf32>
    %117 = vector.extract_strided_slice %82 {offsets = [2, 0, 0], sizes = [16, 16, 128], strides = [1, 1, 1]} : vector<18x16x128xbf16> to vector<16x16x128xbf16>
    %118 = vector.shape_cast %117 : vector<16x16x128xbf16> to vector<256x128xbf16>
    %c7_78 = arith.constant 7 : index
    %c0_79 = arith.constant 0 : index
    %c0_80 = arith.constant 0 : index
    %119 = vector.load %arg4[%c7_78, %c0_79, %c0_80] : memref<9x128x128xbf16, #tpu.memory_space<vmem>>, vector<1x128x128xbf16>
    %120 = vector.shape_cast %119 : vector<1x128x128xbf16> to vector<128x128xbf16>
    %cst_81 = arith.constant dense<0.000000e+00> : vector<256x128xf32>
    %121 = tpu.matmul %118, %120, %cst_81 {dimension_numbers = #tpu.dot_dimension_numbers<[1], [0], [0], [1], [0, 0, 1, 1], [], []>} : vector<256x128xbf16>, vector<128x128xbf16>, vector<256x128xf32> -> vector<256x128xf32>
    %122 = arith.addf %116, %121 : vector<256x128xf32>
    %123 = vector.extract_strided_slice %82 {offsets = [0, 1, 0], sizes = [18, 15, 128], strides = [1, 1, 1]} : vector<18x16x128xbf16> to vector<18x15x128xbf16>
    %124 = tpu.concatenate %123, %83 in 1 : vector<18x15x128xbf16>, vector<18x1x128xbf16> -> vector<18x16x128xbf16>
    %125 = vector.extract_strided_slice %124 {offsets = [0, 0, 0], sizes = [16, 16, 128], strides = [1, 1, 1]} : vector<18x16x128xbf16> to vector<16x16x128xbf16>
    %126 = vector.shape_cast %125 : vector<16x16x128xbf16> to vector<256x128xbf16>
    %c2_82 = arith.constant 2 : index
    %c0_83 = arith.constant 0 : index
    %c0_84 = arith.constant 0 : index
    %127 = vector.load %arg4[%c2_82, %c0_83, %c0_84] : memref<9x128x128xbf16, #tpu.memory_space<vmem>>, vector<1x128x128xbf16>
    %128 = vector.shape_cast %127 : vector<1x128x128xbf16> to vector<128x128xbf16>
    %cst_85 = arith.constant dense<0.000000e+00> : vector<256x128xf32>
    %129 = tpu.matmul %126, %128, %cst_85 {dimension_numbers = #tpu.dot_dimension_numbers<[1], [0], [0], [1], [0, 0, 1, 1], [], []>} : vector<256x128xbf16>, vector<128x128xbf16>, vector<256x128xf32> -> vector<256x128xf32>
    %130 = arith.addf %122, %129 : vector<256x128xf32>
    %131 = vector.extract_strided_slice %124 {offsets = [1, 0, 0], sizes = [16, 16, 128], strides = [1, 1, 1]} : vector<18x16x128xbf16> to vector<16x16x128xbf16>
    %132 = vector.shape_cast %131 : vector<16x16x128xbf16> to vector<256x128xbf16>
    %c5_86 = arith.constant 5 : index
    %c0_87 = arith.constant 0 : index
    %c0_88 = arith.constant 0 : index
    %133 = vector.load %arg4[%c5_86, %c0_87, %c0_88] : memref<9x128x128xbf16, #tpu.memory_space<vmem>>, vector<1x128x128xbf16>
    %134 = vector.shape_cast %133 : vector<1x128x128xbf16> to vector<128x128xbf16>
    %cst_89 = arith.constant dense<0.000000e+00> : vector<256x128xf32>
    %135 = tpu.matmul %132, %134, %cst_89 {dimension_numbers = #tpu.dot_dimension_numbers<[1], [0], [0], [1], [0, 0, 1, 1], [], []>} : vector<256x128xbf16>, vector<128x128xbf16>, vector<256x128xf32> -> vector<256x128xf32>
    %136 = arith.addf %130, %135 : vector<256x128xf32>
    %137 = vector.extract_strided_slice %124 {offsets = [2, 0, 0], sizes = [16, 16, 128], strides = [1, 1, 1]} : vector<18x16x128xbf16> to vector<16x16x128xbf16>
    %138 = vector.shape_cast %137 : vector<16x16x128xbf16> to vector<256x128xbf16>
    %c8_90 = arith.constant 8 : index
    %c0_91 = arith.constant 0 : index
    %c0_92 = arith.constant 0 : index
    %139 = vector.load %arg4[%c8_90, %c0_91, %c0_92] : memref<9x128x128xbf16, #tpu.memory_space<vmem>>, vector<1x128x128xbf16>
    %140 = vector.shape_cast %139 : vector<1x128x128xbf16> to vector<128x128xbf16>
    %cst_93 = arith.constant dense<0.000000e+00> : vector<256x128xf32>
    %141 = tpu.matmul %138, %140, %cst_93 {dimension_numbers = #tpu.dot_dimension_numbers<[1], [0], [0], [1], [0, 0, 1, 1], [], []>} : vector<256x128xbf16>, vector<128x128xbf16>, vector<256x128xf32> -> vector<256x128xf32>
    %142 = arith.addf %136, %141 : vector<256x128xf32>
    %c0_94 = arith.constant 0 : index
    %c0_95 = arith.constant 0 : index
    %143 = vector.load %arg5[%c0_94, %c0_95] : memref<1x128xf32, #tpu.memory_space<vmem>>, vector<1x128xf32>
    %144 = vector.broadcast %143 : vector<1x128xf32> to vector<256x128xf32>
    %145 = arith.addf %142, %144 : vector<256x128xf32>
    %cst_96 = arith.constant 0.000000e+00 : f32
    %146 = vector.broadcast %cst_96 : f32 to vector<256x128xf32>
    %147 = arith.maximumf %145, %146 : vector<256x128xf32>
    %148 = vector.extract_strided_slice %147 {offsets = [0, 0], sizes = [256, 8], strides = [1, 1]} : vector<256x128xf32> to vector<256x8xf32>
    %149 = tpu.transpose %148, [1, 0] : vector<256x8xf32> -> vector<8x256xf32>
    %c0_97 = arith.constant 0 : index
    %c0_98 = arith.constant 0 : index
    %c0_99 = arith.constant 0 : index
    %150 = vector.load %arg10[%c0_97, %c0_98, %c0_99] : memref<1x8x256xf32, #tpu.memory_space<vmem>>, vector<1x8x256xf32>
    %151 = vector.shape_cast %150 : vector<1x8x256xf32> to vector<8x256xf32>
    %152 = vector.shape_cast %149 : vector<8x256xf32> to vector<1x8x256xf32>
    tpu.vector_store %arg10[%c0_97, %c0_98, %c0_99], %152 {strides = array<i32>} : memref<1x8x256xf32, #tpu.memory_space<vmem>>, vector<1x8x256xf32>,
    %153 = arith.truncf %147 : vector<256x128xf32> to vector<256x128xbf16>
    %154 = vector.shape_cast %153 : vector<256x128xbf16> to vector<16x16x128xbf16>
    %c1_100 = arith.constant 1 : index
    %c0_101 = arith.constant 0 : index
    %c0_102 = arith.constant 0 : index
    %155 = vector.load %arg13[%c1_100, %c0_101, %c0_102] : memref<18x16x128xbf16, #tpu.memory_space<vmem>>, vector<16x16x128xbf16>
    tpu.vector_store %arg13[%c1_100, %c0_101, %c0_102], %154 {strides = array<i32>} : memref<18x16x128xbf16, #tpu.memory_space<vmem>>, vector<16x16x128xbf16>,
    %c0_103 = arith.constant 0 : index
    %c0_104 = arith.constant 0 : index
    %c0_105 = arith.constant 0 : index
    %156 = vector.load %arg13[%c0_103, %c0_104, %c0_105] : memref<18x16x128xbf16, #tpu.memory_space<vmem>>, vector<18x16x128xbf16>
    %cst_106 = arith.constant 0.000000e+00 : bf16
    %157 = vector.broadcast %cst_106 : bf16 to vector<18x1x128xbf16>
    %cst_107 = arith.constant 0.000000e+00 : f32
    %158 = vector.broadcast %cst_107 : f32 to vector<256x128xf32>
    %159 = vector.extract_strided_slice %156 {offsets = [0, 0, 0], sizes = [18, 15, 128], strides = [1, 1, 1]} : vector<18x16x128xbf16> to vector<18x15x128xbf16>
    %160 = tpu.concatenate %157, %159 in 1 : vector<18x1x128xbf16>, vector<18x15x128xbf16> -> vector<18x16x128xbf16>
    %161 = vector.extract_strided_slice %160 {offsets = [0, 0, 0], sizes = [16, 16, 128], strides = [1, 1, 1]} : vector<18x16x128xbf16> to vector<16x16x128xbf16>
    %162 = vector.shape_cast %161 : vector<16x16x128xbf16> to vector<256x128xbf16>
    %c0_108 = arith.constant 0 : index
    %c0_109 = arith.constant 0 : index
    %c0_110 = arith.constant 0 : index
    %163 = vector.load %arg6[%c0_108, %c0_109, %c0_110] : memref<9x128x128xbf16, #tpu.memory_space<vmem>>, vector<1x128x128xbf16>
    %164 = vector.shape_cast %163 : vector<1x128x128xbf16> to vector<128x128xbf16>
    %cst_111 = arith.constant dense<0.000000e+00> : vector<256x128xf32>
    %165 = tpu.matmul %162, %164, %cst_111 {dimension_numbers = #tpu.dot_dimension_numbers<[1], [0], [0], [1], [0, 0, 1, 1], [], []>} : vector<256x128xbf16>, vector<128x128xbf16>, vector<256x128xf32> -> vector<256x128xf32>
    %166 = arith.addf %158, %165 : vector<256x128xf32>
    %167 = vector.extract_strided_slice %160 {offsets = [1, 0, 0], sizes = [16, 16, 128], strides = [1, 1, 1]} : vector<18x16x128xbf16> to vector<16x16x128xbf16>
    %168 = vector.shape_cast %167 : vector<16x16x128xbf16> to vector<256x128xbf16>
    %c3_112 = arith.constant 3 : index
    %c0_113 = arith.constant 0 : index
    %c0_114 = arith.constant 0 : index
    %169 = vector.load %arg6[%c3_112, %c0_113, %c0_114] : memref<9x128x128xbf16, #tpu.memory_space<vmem>>, vector<1x128x128xbf16>
    %170 = vector.shape_cast %169 : vector<1x128x128xbf16> to vector<128x128xbf16>
    %cst_115 = arith.constant dense<0.000000e+00> : vector<256x128xf32>
    %171 = tpu.matmul %168, %170, %cst_115 {dimension_numbers = #tpu.dot_dimension_numbers<[1], [0], [0], [1], [0, 0, 1, 1], [], []>} : vector<256x128xbf16>, vector<128x128xbf16>, vector<256x128xf32> -> vector<256x128xf32>
    %172 = arith.addf %166, %171 : vector<256x128xf32>
    %173 = vector.extract_strided_slice %160 {offsets = [2, 0, 0], sizes = [16, 16, 128], strides = [1, 1, 1]} : vector<18x16x128xbf16> to vector<16x16x128xbf16>
    %174 = vector.shape_cast %173 : vector<16x16x128xbf16> to vector<256x128xbf16>
    %c6_116 = arith.constant 6 : index
    %c0_117 = arith.constant 0 : index
    %c0_118 = arith.constant 0 : index
    %175 = vector.load %arg6[%c6_116, %c0_117, %c0_118] : memref<9x128x128xbf16, #tpu.memory_space<vmem>>, vector<1x128x128xbf16>
    %176 = vector.shape_cast %175 : vector<1x128x128xbf16> to vector<128x128xbf16>
    %cst_119 = arith.constant dense<0.000000e+00> : vector<256x128xf32>
    %177 = tpu.matmul %174, %176, %cst_119 {dimension_numbers = #tpu.dot_dimension_numbers<[1], [0], [0], [1], [0, 0, 1, 1], [], []>} : vector<256x128xbf16>, vector<128x128xbf16>, vector<256x128xf32> -> vector<256x128xf32>
    %178 = arith.addf %172, %177 : vector<256x128xf32>
    %179 = vector.extract_strided_slice %156 {offsets = [0, 0, 0], sizes = [16, 16, 128], strides = [1, 1, 1]} : vector<18x16x128xbf16> to vector<16x16x128xbf16>
    %180 = vector.shape_cast %179 : vector<16x16x128xbf16> to vector<256x128xbf16>
    %c1_120 = arith.constant 1 : index
    %c0_121 = arith.constant 0 : index
    %c0_122 = arith.constant 0 : index
    %181 = vector.load %arg6[%c1_120, %c0_121, %c0_122] : memref<9x128x128xbf16, #tpu.memory_space<vmem>>, vector<1x128x128xbf16>
    %182 = vector.shape_cast %181 : vector<1x128x128xbf16> to vector<128x128xbf16>
    %cst_123 = arith.constant dense<0.000000e+00> : vector<256x128xf32>
    %183 = tpu.matmul %180, %182, %cst_123 {dimension_numbers = #tpu.dot_dimension_numbers<[1], [0], [0], [1], [0, 0, 1, 1], [], []>} : vector<256x128xbf16>, vector<128x128xbf16>, vector<256x128xf32> -> vector<256x128xf32>
    %184 = arith.addf %178, %183 : vector<256x128xf32>
    %185 = vector.extract_strided_slice %156 {offsets = [1, 0, 0], sizes = [16, 16, 128], strides = [1, 1, 1]} : vector<18x16x128xbf16> to vector<16x16x128xbf16>
    %186 = vector.shape_cast %185 : vector<16x16x128xbf16> to vector<256x128xbf16>
    %c4_124 = arith.constant 4 : index
    %c0_125 = arith.constant 0 : index
    %c0_126 = arith.constant 0 : index
    %187 = vector.load %arg6[%c4_124, %c0_125, %c0_126] : memref<9x128x128xbf16, #tpu.memory_space<vmem>>, vector<1x128x128xbf16>
    %188 = vector.shape_cast %187 : vector<1x128x128xbf16> to vector<128x128xbf16>
    %cst_127 = arith.constant dense<0.000000e+00> : vector<256x128xf32>
    %189 = tpu.matmul %186, %188, %cst_127 {dimension_numbers = #tpu.dot_dimension_numbers<[1], [0], [0], [1], [0, 0, 1, 1], [], []>} : vector<256x128xbf16>, vector<128x128xbf16>, vector<256x128xf32> -> vector<256x128xf32>
    %190 = arith.addf %184, %189 : vector<256x128xf32>
    %191 = vector.extract_strided_slice %156 {offsets = [2, 0, 0], sizes = [16, 16, 128], strides = [1, 1, 1]} : vector<18x16x128xbf16> to vector<16x16x128xbf16>
    %192 = vector.shape_cast %191 : vector<16x16x128xbf16> to vector<256x128xbf16>
    %c7_128 = arith.constant 7 : index
    %c0_129 = arith.constant 0 : index
    %c0_130 = arith.constant 0 : index
    %193 = vector.load %arg6[%c7_128, %c0_129, %c0_130] : memref<9x128x128xbf16, #tpu.memory_space<vmem>>, vector<1x128x128xbf16>
    %194 = vector.shape_cast %193 : vector<1x128x128xbf16> to vector<128x128xbf16>
    %cst_131 = arith.constant dense<0.000000e+00> : vector<256x128xf32>
    %195 = tpu.matmul %192, %194, %cst_131 {dimension_numbers = #tpu.dot_dimension_numbers<[1], [0], [0], [1], [0, 0, 1, 1], [], []>} : vector<256x128xbf16>, vector<128x128xbf16>, vector<256x128xf32> -> vector<256x128xf32>
    %196 = arith.addf %190, %195 : vector<256x128xf32>
    %197 = vector.extract_strided_slice %156 {offsets = [0, 1, 0], sizes = [18, 15, 128], strides = [1, 1, 1]} : vector<18x16x128xbf16> to vector<18x15x128xbf16>
    %198 = tpu.concatenate %197, %157 in 1 : vector<18x15x128xbf16>, vector<18x1x128xbf16> -> vector<18x16x128xbf16>
    %199 = vector.extract_strided_slice %198 {offsets = [0, 0, 0], sizes = [16, 16, 128], strides = [1, 1, 1]} : vector<18x16x128xbf16> to vector<16x16x128xbf16>
    %200 = vector.shape_cast %199 : vector<16x16x128xbf16> to vector<256x128xbf16>
    %c2_132 = arith.constant 2 : index
    %c0_133 = arith.constant 0 : index
    %c0_134 = arith.constant 0 : index
    %201 = vector.load %arg6[%c2_132, %c0_133, %c0_134] : memref<9x128x128xbf16, #tpu.memory_space<vmem>>, vector<1x128x128xbf16>
    %202 = vector.shape_cast %201 : vector<1x128x128xbf16> to vector<128x128xbf16>
    %cst_135 = arith.constant dense<0.000000e+00> : vector<256x128xf32>
    %203 = tpu.matmul %200, %202, %cst_135 {dimension_numbers = #tpu.dot_dimension_numbers<[1], [0], [0], [1], [0, 0, 1, 1], [], []>} : vector<256x128xbf16>, vector<128x128xbf16>, vector<256x128xf32> -> vector<256x128xf32>
    %204 = arith.addf %196, %203 : vector<256x128xf32>
    %205 = vector.extract_strided_slice %198 {offsets = [1, 0, 0], sizes = [16, 16, 128], strides = [1, 1, 1]} : vector<18x16x128xbf16> to vector<16x16x128xbf16>
    %206 = vector.shape_cast %205 : vector<16x16x128xbf16> to vector<256x128xbf16>
    %c5_136 = arith.constant 5 : index
    %c0_137 = arith.constant 0 : index
    %c0_138 = arith.constant 0 : index
    %207 = vector.load %arg6[%c5_136, %c0_137, %c0_138] : memref<9x128x128xbf16, #tpu.memory_space<vmem>>, vector<1x128x128xbf16>
    %208 = vector.shape_cast %207 : vector<1x128x128xbf16> to vector<128x128xbf16>
    %cst_139 = arith.constant dense<0.000000e+00> : vector<256x128xf32>
    %209 = tpu.matmul %206, %208, %cst_139 {dimension_numbers = #tpu.dot_dimension_numbers<[1], [0], [0], [1], [0, 0, 1, 1], [], []>} : vector<256x128xbf16>, vector<128x128xbf16>, vector<256x128xf32> -> vector<256x128xf32>
    %210 = arith.addf %204, %209 : vector<256x128xf32>
    %211 = vector.extract_strided_slice %198 {offsets = [2, 0, 0], sizes = [16, 16, 128], strides = [1, 1, 1]} : vector<18x16x128xbf16> to vector<16x16x128xbf16>
    %212 = vector.shape_cast %211 : vector<16x16x128xbf16> to vector<256x128xbf16>
    %c8_140 = arith.constant 8 : index
    %c0_141 = arith.constant 0 : index
    %c0_142 = arith.constant 0 : index
    %213 = vector.load %arg6[%c8_140, %c0_141, %c0_142] : memref<9x128x128xbf16, #tpu.memory_space<vmem>>, vector<1x128x128xbf16>
    %214 = vector.shape_cast %213 : vector<1x128x128xbf16> to vector<128x128xbf16>
    %cst_143 = arith.constant dense<0.000000e+00> : vector<256x128xf32>
    %215 = tpu.matmul %212, %214, %cst_143 {dimension_numbers = #tpu.dot_dimension_numbers<[1], [0], [0], [1], [0, 0, 1, 1], [], []>} : vector<256x128xbf16>, vector<128x128xbf16>, vector<256x128xf32> -> vector<256x128xf32>
    %216 = arith.addf %210, %215 : vector<256x128xf32>
    %c0_144 = arith.constant 0 : index
    %c0_145 = arith.constant 0 : index
    %217 = vector.load %arg7[%c0_144, %c0_145] : memref<1x128xf32, #tpu.memory_space<vmem>>, vector<1x128xf32>
    %218 = vector.broadcast %217 : vector<1x128xf32> to vector<256x128xf32>
    %219 = arith.addf %216, %218 : vector<256x128xf32>
    %cst_146 = arith.constant 3.000000e+00 : f32
    %220 = vector.broadcast %cst_146 : f32 to vector<256x128xf32>
    %221 = arith.addf %219, %220 : vector<256x128xf32>
    %cst_147 = arith.constant 0.000000e+00 : f32
    %cst_148 = arith.constant 6.000000e+00 : f32
    %222 = vector.broadcast %cst_147 : f32 to vector<256x128xf32>
    %223 = arith.maximumf %222, %221 : vector<256x128xf32>
    %224 = vector.broadcast %cst_148 : f32 to vector<256x128xf32>
    %225 = arith.minimumf %224, %223 : vector<256x128xf32>
    %226 = arith.mulf %219, %225 : vector<256x128xf32>
    %cst_149 = arith.constant 0.166666672 : f32
    %227 = vector.broadcast %cst_149 : f32 to vector<256x128xf32>
    %228 = arith.mulf %226, %227 : vector<256x128xf32>
    %229 = vector.extract_strided_slice %228 {offsets = [0, 0], sizes = [256, 16], strides = [1, 1]} : vector<256x128xf32> to vector<256x16xf32>
    %230 = tpu.transpose %229, [1, 0] : vector<256x16xf32> -> vector<16x256xf32>
    %c0_150 = arith.constant 0 : index
    %c0_151 = arith.constant 0 : index
    %c0_152 = arith.constant 0 : index
    %231 = vector.load %arg11[%c0_150, %c0_151, %c0_152] : memref<1x16x256xf32, #tpu.memory_space<vmem>>, vector<1x16x256xf32>
    %232 = vector.shape_cast %231 : vector<1x16x256xf32> to vector<16x256xf32>
    %233 = vector.shape_cast %230 : vector<16x256xf32> to vector<1x16x256xf32>
    tpu.vector_store %arg11[%c0_150, %c0_151, %c0_152], %233 {strides = array<i32>} : memref<1x16x256xf32, #tpu.memory_space<vmem>>, vector<1x16x256xf32>,
    %234 = arith.truncf %228 : vector<256x128xf32> to vector<256x128xbf16>
    %235 = vector.shape_cast %234 : vector<256x128xbf16> to vector<16x16x128xbf16>
    %c1_153 = arith.constant 1 : index
    %c0_154 = arith.constant 0 : index
    %c0_155 = arith.constant 0 : index
    %236 = vector.load %arg13[%c1_153, %c0_154, %c0_155] : memref<18x16x128xbf16, #tpu.memory_space<vmem>>, vector<16x16x128xbf16>
    tpu.vector_store %arg13[%c1_153, %c0_154, %c0_155], %235 {strides = array<i32>} : memref<18x16x128xbf16, #tpu.memory_space<vmem>>, vector<16x16x128xbf16>,
    %c0_156 = arith.constant 0 : index
    %c0_157 = arith.constant 0 : index
    %c0_158 = arith.constant 0 : index
    %237 = vector.load %arg13[%c0_156, %c0_157, %c0_158] : memref<18x16x128xbf16, #tpu.memory_space<vmem>>, vector<18x16x128xbf16>
    %cst_159 = arith.constant 0.000000e+00 : f32
    %238 = vector.broadcast %cst_159 : f32 to vector<256x128xf32>
    %239 = vector.extract_strided_slice %237 {offsets = [1, 0, 0], sizes = [16, 16, 128], strides = [1, 1, 1]} : vector<18x16x128xbf16> to vector<16x16x128xbf16>
    %240 = vector.shape_cast %239 : vector<16x16x128xbf16> to vector<256x128xbf16>
    %c0_160 = arith.constant 0 : index
    %c0_161 = arith.constant 0 : index
    %c0_162 = arith.constant 0 : index
    %241 = vector.load %arg8[%c0_160, %c0_161, %c0_162] : memref<1x128x128xbf16, #tpu.memory_space<vmem>>, vector<1x128x128xbf16>
    %242 = vector.shape_cast %241 : vector<1x128x128xbf16> to vector<128x128xbf16>
    %cst_163 = arith.constant dense<0.000000e+00> : vector<256x128xf32>
    %243 = tpu.matmul %240, %242, %cst_163 {dimension_numbers = #tpu.dot_dimension_numbers<[1], [0], [0], [1], [0, 0, 1, 1], [], []>} : vector<256x128xbf16>, vector<128x128xbf16>, vector<256x128xf32> -> vector<256x128xf32>
    %244 = arith.addf %238, %243 : vector<256x128xf32>
    %c0_164 = arith.constant 0 : index
    %c0_165 = arith.constant 0 : index
    %245 = vector.load %arg9[%c0_164, %c0_165] : memref<1x128xf32, #tpu.memory_space<vmem>>, vector<1x128xf32>
    %246 = vector.broadcast %245 : vector<1x128xf32> to vector<256x128xf32>
    %247 = arith.addf %244, %246 : vector<256x128xf32>
    %cst_166 = arith.constant 3.000000e+00 : f32
    %248 = vector.broadcast %cst_166 : f32 to vector<256x128xf32>
    %249 = arith.addf %247, %248 : vector<256x128xf32>
    %cst_167 = arith.constant 0.000000e+00 : f32
    %cst_168 = arith.constant 6.000000e+00 : f32
    %250 = vector.broadcast %cst_167 : f32 to vector<256x128xf32>
    %251 = arith.maximumf %250, %249 : vector<256x128xf32>
    %252 = vector.broadcast %cst_168 : f32 to vector<256x128xf32>
    %253 = arith.minimumf %252, %251 : vector<256x128xf32>
    %254 = arith.mulf %247, %253 : vector<256x128xf32>
    %cst_169 = arith.constant 0.166666672 : f32
    %255 = vector.broadcast %cst_169 : f32 to vector<256x128xf32>
    %256 = arith.mulf %254, %255 : vector<256x128xf32>
    %257 = vector.extract_strided_slice %256 {offsets = [0, 0], sizes = [256, 32], strides = [1, 1]} : vector<256x128xf32> to vector<256x32xf32>
    %258 = tpu.transpose %257, [1, 0] : vector<256x32xf32> -> vector<32x256xf32>
    %c0_170 = arith.constant 0 : index
    %c0_171 = arith.constant 0 : index
    %c0_172 = arith.constant 0 : index
    %259 = vector.load %arg12[%c0_170, %c0_171, %c0_172] : memref<1x32x256xf32, #tpu.memory_space<vmem>>, vector<1x32x256xf32>
    %260 = vector.shape_cast %259 : vector<1x32x256xf32> to vector<32x256xf32>
    %261 = vector.shape_cast %258 : vector<32x256xf32> to vector<1x32x256xf32>
    tpu.vector_store %arg12[%c0_170, %c0_171, %c0_172], %261 {strides = array<i32>} : memref<1x32x256xf32, #tpu.memory_space<vmem>>, vector<1x32x256xf32>,
    return
  }
  func.func @transform_0(%arg0: i32) -> (i32, i32, i32, i32) {
    %c0_i32 = arith.constant 0 : i32
    %c0_i32_0 = arith.constant 0 : i32
    %c0_i32_1 = arith.constant 0 : i32
    %c0_i32_2 = arith.constant 0 : i32
    return %arg0, %c0_i32, %c0_i32_0, %c0_i32_1 : i32, i32, i32, i32
  }
  func.func @transform_1(%arg0: i32) -> (i32, i32, i32) {
    %c0_i32 = arith.constant 0 : i32
    %c0_i32_0 = arith.constant 0 : i32
    %c0_i32_1 = arith.constant 0 : i32
    %c0_i32_2 = arith.constant 0 : i32
    return %c0_i32, %c0_i32_0, %c0_i32_1 : i32, i32, i32
  }
  func.func @transform_2(%arg0: i32) -> (i32, i32) {
    %c0_i32 = arith.constant 0 : i32
    %c0_i32_0 = arith.constant 0 : i32
    %c0_i32_1 = arith.constant 0 : i32
    return %c0_i32, %c0_i32_0 : i32, i32
  }
  func.func @transform_3(%arg0: i32) -> (i32, i32, i32) {
    %c0_i32 = arith.constant 0 : i32
    %c0_i32_0 = arith.constant 0 : i32
    %c0_i32_1 = arith.constant 0 : i32
    %c0_i32_2 = arith.constant 0 : i32
    return %c0_i32, %c0_i32_0, %c0_i32_1 : i32, i32, i32
  }
  func.func @transform_4(%arg0: i32) -> (i32, i32) {
    %c0_i32 = arith.constant 0 : i32
    %c0_i32_0 = arith.constant 0 : i32
    %c0_i32_1 = arith.constant 0 : i32
    return %c0_i32, %c0_i32_0 : i32, i32
  }
  func.func @transform_5(%arg0: i32) -> (i32, i32, i32) {
    %c0_i32 = arith.constant 0 : i32
    %c0_i32_0 = arith.constant 0 : i32
    %c0_i32_1 = arith.constant 0 : i32
    %c0_i32_2 = arith.constant 0 : i32
    return %c0_i32, %c0_i32_0, %c0_i32_1 : i32, i32, i32
  }
  func.func @transform_6(%arg0: i32) -> (i32, i32) {
    %c0_i32 = arith.constant 0 : i32
    %c0_i32_0 = arith.constant 0 : i32
    %c0_i32_1 = arith.constant 0 : i32
    return %c0_i32, %c0_i32_0 : i32, i32
  }
  func.func @transform_7(%arg0: i32) -> (i32, i32, i32) {
    %c0_i32 = arith.constant 0 : i32
    %c0_i32_0 = arith.constant 0 : i32
    %c0_i32_1 = arith.constant 0 : i32
    %c0_i32_2 = arith.constant 0 : i32
    return %c0_i32, %c0_i32_0, %c0_i32_1 : i32, i32, i32
  }
  func.func @transform_8(%arg0: i32) -> (i32, i32) {
    %c0_i32 = arith.constant 0 : i32
    %c0_i32_0 = arith.constant 0 : i32
    %c0_i32_1 = arith.constant 0 : i32
    return %c0_i32, %c0_i32_0 : i32, i32
  }
  func.func @transform_9(%arg0: i32) -> (i32, i32, i32) {
    %c0_i32 = arith.constant 0 : i32
    %c0_i32_0 = arith.constant 0 : i32
    %c0_i32_1 = arith.constant 0 : i32
    return %arg0, %c0_i32, %c0_i32_0 : i32, i32, i32
  }
  func.func @transform_10(%arg0: i32) -> (i32, i32, i32) {
    %c0_i32 = arith.constant 0 : i32
    %c0_i32_0 = arith.constant 0 : i32
    %c0_i32_1 = arith.constant 0 : i32
    return %arg0, %c0_i32, %c0_i32_0 : i32, i32, i32
  }
  func.func @transform_11(%arg0: i32) -> (i32, i32, i32) {
    %c0_i32 = arith.constant 0 : i32
    %c0_i32_0 = arith.constant 0 : i32
    %c0_i32_1 = arith.constant 0 : i32
    return %arg0, %c0_i32, %c0_i32_0 : i32, i32, i32
  }
}

</mosaic_0001>

<llo_original>
// kernel: forward.1
$region0: #{forward.1}
  #allocation0 [shape = 'u32[]', space=smem, size = 0x4, offset = 0x4, fixed_abs, tag = 'smem constant byte address 0x4 - core index']
  #allocation1 [shape = 'u32[144,128]{1,0:T(1,128)}', space=vmem, size = 0x12000, scoped, tag = 'internal scratch']
  #allocation2 [shape = 'bf16[18,16,128]{2,1,0:T(16,128)(2,1)}', space=vmem, size = 0x12000, scoped, tag = 'scratch operand']
  %s0 = inlined_call_operand.vmem [shape: bf16[2,16,16,128], index: 0, kind: input, shape index: {}]
  %s1 = inlined_call_operand.vmem [shape: bf16[9,128,128], index: 1, kind: input, shape index: {}]
  %s2 = inlined_call_operand.vmem [shape: f32[1,128], index: 2, kind: input, shape index: {}]
  %s3 = inlined_call_operand.hbm [shape: bf16[9,128,128], index: 3, kind: input, shape index: {}]
  %s4 = inlined_call_operand.vmem [shape: f32[1,128], index: 4, kind: input, shape index: {}]
  %s5 = inlined_call_operand.hbm [shape: bf16[9,128,128], index: 5, kind: input, shape index: {}]
  %s6 = inlined_call_operand.vmem [shape: f32[1,128], index: 6, kind: input, shape index: {}]
  %s7 = inlined_call_operand.vmem [shape: bf16[1,128,128], index: 7, kind: input, shape index: {}]
  %s8 = inlined_call_operand.vmem [shape: f32[1,128], index: 8, kind: input, shape index: {}]
  %s9 = inlined_call_operand.vmem [shape: f32[2,8,256], index: 9, kind: output, shape index: {0}]
  %s10 = inlined_call_operand.vmem [shape: f32[2,16,256], index: 10, kind: output, shape index: {1}]
  %s11 = inlined_call_operand.vmem [shape: f32[2,32,256], index: 11, kind: output, shape index: {2}]
  %12 = xla_tuple %s9, %s10, %s11
  %s13 = sld [smem:[#allocation0]]
  $region93: #{forward.1} parent=0
    _
  %s15 = ssub.s32 1, %s13
  %s16 = scalar_select 0, %s15, %s13
  $region1: #{forward.1} parent=0
    #allocation3 [shape = 'u8[294912]{0}', space=vmem, size = 0x48000, scoped, tag = 'input window, operand 3, single buffered']
    #allocation4 [shape = 's32[2]{0}', space=sflag, size = 0x8, scoped, tag = 'scoped memory for forward.1']
    #allocation5 [shape = 'u8[294912]{0}', space=vmem, size = 0x48000, scoped, tag = 'input window, operand 5, single buffered']
    #allocation6 [shape = 's32[1]{0}', space=sflag, size = 0x4, scoped, tag = 'scoped memory for forward.1']
    %17 = vsyncpa [#allocation4], 0
    %18 = vsyncpa [#allocation6], 0
    loop: start=0, step=1, limit=4
    $region2: #{forward.1} parent=1 // loop_pre_header
      _
    $region3: #{forward.1} parent=1 // loop_header
      %s20 = sphi 0, %s24
      %p21 = scmp.ge.s32.totalorder %s20, 4
      %s30 = sphi 0, %s32
      %s33 = sphi 0, %s30
      %s34 = sphi 0, %s33
      %s50 = sphi 0, %s34
      %s54 = sphi 0, %s54
      %s56 = sphi 0, %s54
      %s57 = sphi 0, %s56
      %s71 = sphi 0, %s57
      %s75 = sphi 0, %s75
      %s77 = sphi 0, %s75
      %s78 = sphi 0, %s77
      %s92 = sphi 0, %s78
      %s96 = sphi 0, %s96
      %s98 = sphi 0, %s96
      %s99 = sphi 0, %s98
      %s113 = sphi 0, %s99
      %s117 = sphi 0, %s117
      %s119 = sphi 0, %s117
      %s120 = sphi 0, %s119
      %s134 = sphi 0, %s120
      %s138 = sphi 0, %s138
      %s140 = sphi 0, %s138
      %s141 = sphi 0, %s140
      %s155 = sphi 0, %s141
      %s159 = sphi 0, %s159
      %s161 = sphi 0, %s159
      %s162 = sphi 0, %s161
      %s176 = sphi 0, %s162
      %s180 = sphi 0, %s180
      %s182 = sphi 0, %s180
      %s183 = sphi 0, %s182
      %s197 = sphi 0, %s183
      %s201 = sphi 0, %s201
      %s203 = sphi 0, %s201
      %s204 = sphi 0, %s203
      %s218 = sphi 0, %s204
      %s224 = sphi 0, %s226
      %s227 = sphi 0, %s224
      %s228 = sphi 0, %s227
      %s244 = sphi 0, %s228
      %s250 = sphi 0, %s252
      %s253 = sphi 0, %s250
      %s254 = sphi 0, %s253
      %s270 = sphi 0, %s254
      %s276 = sphi 0, %s278
      %s279 = sphi 0, %s276
      %s280 = sphi 0, %s279
      %s296 = sphi 0, %s280
    $region4: #{forward.1} parent=1 // loop_header_branch
      %23 = sbr.rel (%p21) target = $region8
    $region5: #{forward.1} parent=1 // loop_body
      %s25 = ssub.s32 %s20, 1
      %s26 = ssub.s32 %s20, 2
      %s27 = sadd.s32 %s20, 1
      %s28 = ssub.s32 %s20, %s27
      %p29 = scmp.eq.s32.totalorder %s28, 0
      %s31 = sadd.s32 %s30, 1
      %s32 = scalar_select %p29, %s30, %s31
      %p35 = pneg %p29
      %p36 = scmp.eq.s32.totalorder %s20, 1
      %p37 = por %p35, %p36
      %p38 = scmp.ne.s32.totalorder %s30, %s33
      %p39 = scmp.eq.s32.totalorder %s20, 0
      %p40 = por %p38, %p39
      %p41 = scmp.ne.s32.totalorder %s30, %s33
      %p42 = scmp.eq.s32.totalorder %s25, 1
      %p43 = por %p41, %p42
      %p44 = scmp.ne.s32.totalorder %s33, %s34
      %p45 = scmp.eq.s32.totalorder %s25, 0
      %p46 = por %p44, %p45
      %p47 = scmp.ne.s32.totalorder %s33, %s34
      %p48 = scmp.eq.s32.totalorder %s26, 1
      %p49 = por %p47, %p48
      %p51 = scmp.ne.s32.totalorder %s34, %s50
      %p52 = scmp.eq.s32.totalorder %s26, 0
      %p53 = por %p51, %p52
      %s55 = sadd.s32 %s54, 1
      %p58 = scmp.eq.s32.totalorder %s20, 1
      %p59 = scmp.ne.s32.totalorder %s54, %s56
      %p60 = scmp.eq.s32.totalorder %s20, 0
      %p61 = por %p59, %p60
      %p62 = scmp.ne.s32.totalorder %s54, %s56
      %p63 = scmp.eq.s32.totalorder %s25, 1
      %p64 = por %p62, %p63
      %p65 = scmp.ne.s32.totalorder %s56, %s57
      %p66 = scmp.eq.s32.totalorder %s25, 0
      %p67 = por %p65, %p66
      %p68 = scmp.ne.s32.totalorder %s56, %s57
      %p69 = scmp.eq.s32.totalorder %s26, 1
      %p70 = por %p68, %p69
      %p72 = scmp.ne.s32.totalorder %s57, %s71
      %p73 = scmp.eq.s32.totalorder %s26, 0
      %p74 = por %p72, %p73
      %s76 = sadd.s32 %s75, 1
      %p79 = scmp.eq.s32.totalorder %s20, 1
      %p80 = scmp.ne.s32.totalorder %s75, %s77
      %p81 = scmp.eq.s32.totalorder %s20, 0
      %p82 = por %p80, %p81
      %p83 = scmp.ne.s32.totalorder %s75, %s77
      %p84 = scmp.eq.s32.totalorder %s25, 1
      %p85 = por %p83, %p84
      %p86 = scmp.ne.s32.totalorder %s77, %s78
      %p87 = scmp.eq.s32.totalorder %s25, 0
      %p88 = por %p86, %p87
      %p89 = scmp.ne.s32.totalorder %s77, %s78
      %p90 = scmp.eq.s32.totalorder %s26, 1
      %p91 = por %p89, %p90
      %p93 = scmp.ne.s32.totalorder %s78, %s92
      %p94 = scmp.eq.s32.totalorder %s26, 0
      %p95 = por %p93, %p94
      %s97 = sadd.s32 %s96, 1
      %p100 = scmp.eq.s32.totalorder %s20, 1
      %p101 = scmp.ne.s32.totalorder %s96, %s98
      %p102 = scmp.eq.s32.totalorder %s20, 0
      %p103 = por %p101, %p102
      %p104 = scmp.ne.s32.totalorder %s96, %s98
      %p105 = scmp.eq.s32.totalorder %s25, 1
      %p106 = por %p104, %p105
      %p107 = scmp.ne.s32.totalorder %s98, %s99
      %p108 = scmp.eq.s32.totalorder %s25, 0
      %p109 = por %p107, %p108
      %p110 = scmp.ne.s32.totalorder %s98, %s99
      %p111 = scmp.eq.s32.totalorder %s26, 1
      %p112 = por %p110, %p111
      %p114 = scmp.ne.s32.totalorder %s99, %s113
      %p115 = scmp.eq.s32.totalorder %s26, 0
      %p116 = por %p114, %p115
      %s118 = sadd.s32 %s117, 1
      %p121 = scmp.eq.s32.totalorder %s20, 1
      %p122 = scmp.ne.s32.totalorder %s117, %s119
      %p123 = scmp.eq.s32.totalorder %s20, 0
      %p124 = por %p122, %p123
      %p125 = scmp.ne.s32.totalorder %s117, %s119
      %p126 = scmp.eq.s32.totalorder %s25, 1
      %p127 = por %p125, %p126
      %p128 = scmp.ne.s32.totalorder %s119, %s120
      %p129 = scmp.eq.s32.totalorder %s25, 0
      %p130 = por %p128, %p129
      %p131 = scmp.ne.s32.totalorder %s119, %s120
      %p132 = scmp.eq.s32.totalorder %s26, 1
      %p133 = por %p131, %p132
      %p135 = scmp.ne.s32.totalorder %s120, %s134
      %p136 = scmp.eq.s32.totalorder %s26, 0
      %p137 = por %p135, %p136
      %s139 = sadd.s32 %s138, 1
      %p142 = scmp.eq.s32.totalorder %s20, 1
      %p143 = scmp.ne.s32.totalorder %s138, %s140
      %p144 = scmp.eq.s32.totalorder %s20, 0
      %p145 = por %p143, %p144
      %p146 = scmp.ne.s32.totalorder %s138, %s140
      %p147 = scmp.eq.s32.totalorder %s25, 1
      %p148 = por %p146, %p147
      %p149 = scmp.ne.s32.totalorder %s140, %s141
      %p150 = scmp.eq.s32.totalorder %s25, 0
      %p151 = por %p149, %p150
      %p152 = scmp.ne.s32.totalorder %s140, %s141
      %p153 = scmp.eq.s32.totalorder %s26, 1
      %p154 = por %p152, %p153
      %p156 = scmp.ne.s32.totalorder %s141, %s155
      %p157 = scmp.eq.s32.totalorder %s26, 0
      %p158 = por %p156, %p157
      %s160 = sadd.s32 %s159, 1
      %p163 = scmp.eq.s32.totalorder %s20, 1
      %p164 = scmp.ne.s32.totalorder %s159, %s161
      %p165 = scmp.eq.s32.totalorder %s20, 0
      %p166 = por %p164, %p165
      %p167 = scmp.ne.s32.totalorder %s159, %s161
      %p168 = scmp.eq.s32.totalorder %s25, 1
      %p169 = por %p167, %p168
      %p170 = scmp.ne.s32.totalorder %s161, %s162
      %p171 = scmp.eq.s32.totalorder %s25, 0
      %p172 = por %p170, %p171
      %p173 = scmp.ne.s32.totalorder %s161, %s162
      %p174 = scmp.eq.s32.totalorder %s26, 1
      %p175 = por %p173, %p174
      %p177 = scmp.ne.s32.totalorder %s162, %s176
      %p178 = scmp.eq.s32.totalorder %s26, 0
      %p179 = por %p177, %p178
      %s181 = sadd.s32 %s180, 1
      %p184 = scmp.eq.s32.totalorder %s20, 1
      %p185 = scmp.ne.s32.totalorder %s180, %s182
      %p186 = scmp.eq.s32.totalorder %s20, 0
      %p187 = por %p185, %p186
      %p188 = scmp.ne.s32.totalorder %s180, %s182
      %p189 = scmp.eq.s32.totalorder %s25, 1
      %p190 = por %p188, %p189
      %p191 = scmp.ne.s32.totalorder %s182, %s183
      %p192 = scmp.eq.s32.totalorder %s25, 0
      %p193 = por %p191, %p192
      %p194 = scmp.ne.s32.totalorder %s182, %s183
      %p195 = scmp.eq.s32.totalorder %s26, 1
      %p196 = por %p194, %p195
      %p198 = scmp.ne.s32.totalorder %s183, %s197
      %p199 = scmp.eq.s32.totalorder %s26, 0
      %p200 = por %p198, %p199
      %s202 = sadd.s32 %s201, 1
      %p205 = scmp.eq.s32.totalorder %s20, 1
      %p206 = scmp.ne.s32.totalorder %s201, %s203
      %p207 = scmp.eq.s32.totalorder %s20, 0
      %p208 = por %p206, %p207
      %p209 = scmp.ne.s32.totalorder %s201, %s203
      %p210 = scmp.eq.s32.totalorder %s25, 1
      %p211 = por %p209, %p210
      %p212 = scmp.ne.s32.totalorder %s203, %s204
      %p213 = scmp.eq.s32.totalorder %s25, 0
      %p214 = por %p212, %p213
      %p215 = scmp.ne.s32.totalorder %s203, %s204
      %p216 = scmp.eq.s32.totalorder %s26, 1
      %p217 = por %p215, %p216
      %p219 = scmp.ne.s32.totalorder %s204, %s218
      %p220 = scmp.eq.s32.totalorder %s26, 0
      %p221 = por %p219, %p220
      %s222 = ssub.s32 %s20, %s27
      %p223 = scmp.eq.s32.totalorder %s222, 0
      %s225 = sadd.s32 %s224, 1
      %s226 = scalar_select %p223, %s224, %s225
      %p229 = pneg %p223
      %p230 = scmp.eq.s32.totalorder %s20, 1
      %p231 = por %p229, %p230
      %p232 = scmp.ne.s32.totalorder %s224, %s227
      %p233 = scmp.eq.s32.totalorder %s20, 0
      %p234 = por %p232, %p233
      %p235 = scmp.ne.s32.totalorder %s224, %s227
      %p236 = scmp.eq.s32.totalorder %s25, 1
      %p237 = por %p235, %p236
      %p238 = scmp.ne.s32.totalorder %s227, %s228
      %p239 = scmp.eq.s32.totalorder %s25, 0
      %p240 = por %p238, %p239
      %p241 = scmp.ne.s32.totalorder %s227, %s228
      %p242 = scmp.eq.s32.totalorder %s26, 1
      %p243 = por %p241, %p242
      %p245 = scmp.ne.s32.totalorder %s228, %s244
      %p246 = scmp.eq.s32.totalorder %s26, 0
      %p247 = por %p245, %p246
      %s248 = ssub.s32 %s20, %s27
      %p249 = scmp.eq.s32.totalorder %s248, 0
      %s251 = sadd.s32 %s250, 1
      %s252 = scalar_select %p249, %s250, %s251
      %p255 = pneg %p249
      %p256 = scmp.eq.s32.totalorder %s20, 1
      %p257 = por %p255, %p256
      %p258 = scmp.ne.s32.totalorder %s250, %s253
      %p259 = scmp.eq.s32.totalorder %s20, 0
      %p260 = por %p258, %p259
      %p261 = scmp.ne.s32.totalorder %s250, %s253
      %p262 = scmp.eq.s32.totalorder %s25, 1
      %p263 = por %p261, %p262
      %p264 = scmp.ne.s32.totalorder %s253, %s254
      %p265 = scmp.eq.s32.totalorder %s25, 0
      %p266 = por %p264, %p265
      %p267 = scmp.ne.s32.totalorder %s253, %s254
      %p268 = scmp.eq.s32.totalorder %s26, 1
      %p269 = por %p267, %p268
      %p271 = scmp.ne.s32.totalorder %s254, %s270
      %p272 = scmp.eq.s32.totalorder %s26, 0
      %p273 = por %p271, %p272
      %s274 = ssub.s32 %s20, %s27
      %p275 = scmp.eq.s32.totalorder %s274, 0
      %s277 = sadd.s32 %s276, 1
      %s278 = scalar_select %p275, %s276, %s277
      %p281 = pneg %p275
      %p282 = scmp.eq.s32.totalorder %s20, 1
      %p283 = por %p281, %p282
      %p284 = scmp.ne.s32.totalorder %s276, %s279
      %p285 = scmp.eq.s32.totalorder %s20, 0
      %p286 = por %p284, %p285
      %p287 = scmp.ne.s32.totalorder %s276, %s279
      %p288 = scmp.eq.s32.totalorder %s25, 1
      %p289 = por %p287, %p288
      %p290 = scmp.ne.s32.totalorder %s279, %s280
      %p291 = scmp.eq.s32.totalorder %s25, 0
      %p292 = por %p290, %p291
      %p293 = scmp.ne.s32.totalorder %s279, %s280
      %p294 = scmp.eq.s32.totalorder %s26, 1
      %p295 = por %p293, %p294
      %p297 = scmp.ne.s32.totalorder %s280, %s296
      %p298 = scmp.eq.s32.totalorder %s26, 0
      %p299 = por %p297, %p298
      %p300 = scmp.le.s32.totalorder 1, %s20
      %p301 = scmp.lt.s32.totalorder %s20, 3
      %p302 = pnand %p300, %p301
      %p303 = pneg %p302
      // Predicated region
      $region9: #{forward.1} parent=5 // pred_check
        _
      $region10: #{forward.1} parent=5 // pred_check_branch
        %305 = sbr.rel (%p302) target = $region12
      $region11: #{forward.1} parent=5 // pred_region
        %s306 = ssub.s32 %s20, 1
        // Predicated region
        $region13: #{forward.1} parent=11 // pred_check
          %p307 = pneg %p67
        $region14: #{forward.1} parent=11 // pred_check_branch
          %309 = sbr.rel (%p307) target = $region16
        $region15: #{forward.1} parent=11 // pred_region
          _
        $region16: #{forward.1} parent=11 // pred_fallthru
          _
        // Predicated region
        $region17: #{forward.1} parent=11 // pred_check
          %p310 = pneg %p88
        $region18: #{forward.1} parent=11 // pred_check_branch
          %312 = sbr.rel (%p310) target = $region20
        $region19: #{forward.1} parent=11 // pred_region
          _
        $region20: #{forward.1} parent=11 // pred_fallthru
          _
        // Predicated region
        $region21: #{forward.1} parent=11 // pred_check
          %p313 = pneg %p109
        $region22: #{forward.1} parent=11 // pred_check_branch
          %315 = sbr.rel (%p313) target = $region24
        $region23: #{forward.1} parent=11 // pred_region
          %s317 = ssub.s32 9216, 9216
          %318 = vsyncadd [#allocation4], %s317
          %s319 = sshll.u32 [#allocation3], 4
          %s320 = int_to_ptr.vmem [resolvable:$true] %s319
          %325 = dma.hbm_to_vmem [thread:$0]  %s3, 9216, %s320, [#allocation4], 64, 64, 4
        $region24: #{forward.1} parent=11 // pred_fallthru
          _
        // Predicated region
        $region25: #{forward.1} parent=11 // pred_check
          %p326 = pneg %p130
        $region26: #{forward.1} parent=11 // pred_check_branch
          %328 = sbr.rel (%p326) target = $region28
        $region27: #{forward.1} parent=11 // pred_region
          _
        $region28: #{forward.1} parent=11 // pred_fallthru
          _
        // Predicated region
        $region29: #{forward.1} parent=11 // pred_check
          %p329 = pneg %p151
        $region30: #{forward.1} parent=11 // pred_check_branch
          %331 = sbr.rel (%p329) target = $region32
        $region31: #{forward.1} parent=11 // pred_region
          %s333 = ssub.s32 9216, 9216
          %334 = vsyncadd [#allocation6], %s333
          %s335 = sshll.u32 [#allocation5], 4
          %s336 = int_to_ptr.vmem [resolvable:$true] %s335
          %341 = dma.hbm_to_vmem [thread:$0]  %s5, 9216, %s336, [#allocation6], 64, 64, 4
        $region32: #{forward.1} parent=11 // pred_fallthru
          _
        // Predicated region
        $region33: #{forward.1} parent=11 // pred_check
          %p342 = pneg %p172
        $region34: #{forward.1} parent=11 // pred_check_branch
          %344 = sbr.rel (%p342) target = $region36
        $region35: #{forward.1} parent=11 // pred_region
          _
        $region36: #{forward.1} parent=11 // pred_fallthru
          _
        // Predicated region
        $region37: #{forward.1} parent=11 // pred_check
          %p345 = pneg %p193
        $region38: #{forward.1} parent=11 // pred_check_branch
          %347 = sbr.rel (%p345) target = $region40
        $region39: #{forward.1} parent=11 // pred_region
          _
        $region40: #{forward.1} parent=11 // pred_fallthru
          _
        // Predicated region
        $region41: #{forward.1} parent=11 // pred_check
          %p348 = pneg %p214
        $region42: #{forward.1} parent=11 // pred_check_branch
          %350 = sbr.rel (%p348) target = $region44
        $region43: #{forward.1} parent=11 // pred_region
          _
        $region44: #{forward.1} parent=11 // pred_fallthru
          _
      $region12: #{forward.1} parent=5 // pred_fallthru
        _
      %p351 = scmp.lt.s32.totalorder %s20, 2
      // Predicated region
      $region45: #{forward.1} parent=5 // pred_check
        %p352 = pneg %p351
      $region46: #{forward.1} parent=5 // pred_check_branch
        %354 = sbr.rel (%p352) target = $region48
      $region47: #{forward.1} parent=5 // pred_region
        // Predicated region
        $region49: #{forward.1} parent=47 // pred_check
          %p355 = pneg %p40
        $region50: #{forward.1} parent=47 // pred_check_branch
          %357 = sbr.rel (%p355) target = $region52
        $region51: #{forward.1} parent=47 // pred_region
          %p358 = scmp.lt.s32.totalorder %s20, 1
          %s359 = scalar_select %p358, %s20, 1
          %s360 = smul.addr %s359, 32
          %s361 = smul.addr %s360, 4
          %s362 = scalar_lea.vmem %s0, %s361
        $region52: #{forward.1} parent=47 // pred_fallthru
          _
      $region48: #{forward.1} parent=5 // pred_fallthru
        _
      %p363 = scmp.le.s32.totalorder 1, %s20
      %p364 = scmp.lt.s32.totalorder %s20, 3
      %p365 = pnand %p363, %p364
      %p366 = pneg %p365
      // Predicated region
      $region53: #{forward.1} parent=5 // pred_check
        _
      $region54: #{forward.1} parent=5 // pred_check_branch
        %368 = sbr.rel (%p365) target = $region56
      $region55: #{forward.1} parent=5 // pred_region
        %s369 = ssub.s32 %s20, 1
        // Predicated region
        $region57: #{forward.1} parent=55 // pred_check
          %p370 = pneg %p109
        $region58: #{forward.1} parent=55 // pred_check_branch
          %372 = sbr.rel (%p370) target = $region60
        $region59: #{forward.1} parent=55 // pred_region
          %373 = dma.done [#allocation4], 9216
        $region60: #{forward.1} parent=55 // pred_fallthru
          _
        // Predicated region
        $region61: #{forward.1} parent=55 // pred_check
          %p374 = pneg %p151
        $region62: #{forward.1} parent=55 // pred_check_branch
          %376 = sbr.rel (%p374) target = $region64
        $region63: #{forward.1} parent=55 // pred_region
          %377 = dma.done [#allocation6], 9216
        $region64: #{forward.1} parent=55 // pred_fallthru
          _
        %p378 = scmp.lt.s32.totalorder %s25, 1
        %s379 = scalar_select %p378, %s25, 1
        %s380 = smul.addr %s379, 32
        %s381 = smul.addr %s380, 4
        %s382 = scalar_lea.vmem %s0, %s381
        %p383 = pneg %p46
        %p384 = pneg %p43
        %p385 = pneg %p67
        %p386 = pneg %p64
        %p387 = pneg %p88
        %p388 = pneg %p85
        %p389 = pneg %p109
        %p390 = pneg %p106
        %p391 = pneg %p130
        %p392 = pneg %p127
        %p393 = pneg %p151
        %p394 = pneg %p148
        %p395 = pneg %p172
        %p396 = pneg %p169
        %p397 = pneg %p193
        %p398 = pneg %p190
        %p399 = pneg %p214
        %p400 = pneg %p211
        %p401 = pneg %p240
        %p402 = pneg %p237
        %p403 = scmp.lt.s32.totalorder %s25, 1
        %s404 = scalar_select %p403, %s25, 1
        %s405 = smul.addr %s404, 2
        %s406 = smul.addr %s405, 8
        %s407 = scalar_lea.vmem %s9, %s406
        %p408 = pneg %p266
        %p409 = pneg %p263
        %p410 = scmp.lt.s32.totalorder %s25, 1
        %s411 = scalar_select %p410, %s25, 1
        %s412 = smul.addr %s411, 4
        %s413 = smul.addr %s412, 8
        %s414 = scalar_lea.vmem %s10, %s413
        %p415 = pneg %p292
        %p416 = pneg %p289
        %p417 = scmp.lt.s32.totalorder %s25, 1
        %s418 = scalar_select %p417, %s25, 1
        %s419 = smul.addr %s418, 8
        %s420 = smul.addr %s419, 8
        %s421 = scalar_lea.vmem %s11, %s420
        %p422 = scmp.lt.s32.totalorder %s25, 1
        %s423 = scalar_select %p422, %s25, 1
        %s424 = smul.addr %s423, 32
        %s425 = smul.addr %s424, 4
        %s426 = scalar_lea.vmem %s0, %s425
        %p427 = scmp.lt.s32.totalorder %s25, 1
        %s428 = scalar_select %p427, %s25, 1
        %s429 = smul.addr %s428, 2
        %s430 = smul.addr %s429, 8
        %s431 = scalar_lea.vmem %s9, %s430
        %p432 = scmp.lt.s32.totalorder %s25, 1
        %s433 = scalar_select %p432, %s25, 1
        %s434 = smul.addr %s433, 4
        %s435 = smul.addr %s434, 8
        %s436 = scalar_lea.vmem %s10, %s435
        %p437 = scmp.lt.s32.totalorder %s25, 1
        %s438 = scalar_select %p437, %s25, 1
        %s439 = smul.addr %s438, 8
        %s440 = smul.addr %s439, 8
        %s441 = scalar_lea.vmem %s11, %s440
        %443 = vst [vmem:[#allocation2] sm:$0xff] 0
        %s444 = scalar_lea.vmem [#allocation2], 136
        %445 = vst [vmem:[%s444] sm:$0xff] 0
        %v446 = vld [vmem:[%s426] sm:$0xf]
        %v447 = vld [vmem:[%s426 + $0x4] sm:$0xf]
        %v448 = vld [vmem:[%s426 + $0x8] sm:$0xf]
        %v449 = vld [vmem:[%s426 + $0xc] sm:$0xf]
        %v450 = vld [vmem:[%s426 + $0x10] sm:$0xf]
        %v451 = vld [vmem:[%s426 + $0x14] sm:$0xf]
        %v452 = vld [vmem:[%s426 + $0x18] sm:$0xf]
        %v453 = vld [vmem:[%s426 + $0x1c] sm:$0xf]
        %v454 = vld [vmem:[%s426 + $0x20] sm:$0xf]
        %v455 = vld [vmem:[%s426 + $0x24] sm:$0xf]
        %v456 = vld [vmem:[%s426 + $0x28] sm:$0xf]
        %v457 = vld [vmem:[%s426 + $0x2c] sm:$0xf]
        %v458 = vld [vmem:[%s426 + $0x30] sm:$0xf]
        %v459 = vld [vmem:[%s426 + $0x34] sm:$0xf]
        %v460 = vld [vmem:[%s426 + $0x38] sm:$0xf]
        %v461 = vld [vmem:[%s426 + $0x3c] sm:$0xf]
        %v462 = vld [vmem:[%s426 + $0x40] sm:$0xf]
        %v463 = vld [vmem:[%s426 + $0x44] sm:$0xf]
        %v464 = vld [vmem:[%s426 + $0x48] sm:$0xf]
        %v465 = vld [vmem:[%s426 + $0x4c] sm:$0xf]
        %v466 = vld [vmem:[%s426 + $0x50] sm:$0xf]
        %v467 = vld [vmem:[%s426 + $0x54] sm:$0xf]
        %v468 = vld [vmem:[%s426 + $0x58] sm:$0xf]
        %v469 = vld [vmem:[%s426 + $0x5c] sm:$0xf]
        %v470 = vld [vmem:[%s426 + $0x60] sm:$0xf]
        %v471 = vld [vmem:[%s426 + $0x64] sm:$0xf]
        %v472 = vld [vmem:[%s426 + $0x68] sm:$0xf]
        %v473 = vld [vmem:[%s426 + $0x6c] sm:$0xf]
        %v474 = vld [vmem:[%s426 + $0x70] sm:$0xf]
        %v475 = vld [vmem:[%s426 + $0x74] sm:$0xf]
        %v476 = vld [vmem:[%s426 + $0x78] sm:$0xf]
        %v477 = vld [vmem:[%s426 + $0x7c] sm:$0xf]
        %v510 = vunpack.c.l.b16 %v446
        %v511 = vunpack.c.l.b16 %v447
        %v512 = vunpack.c.l.b16 %v448
        %v513 = vunpack.c.l.b16 %v449
        %v514 = vunpack.c.l.b16 %v450
        %v515 = vunpack.c.l.b16 %v451
        %v516 = vunpack.c.l.b16 %v452
        %v517 = vunpack.c.l.b16 %v453
        %v518 = vunpack.c.l.b16 %v454
        %v519 = vunpack.c.l.b16 %v455
        %v520 = vunpack.c.l.b16 %v456
        %v521 = vunpack.c.l.b16 %v457
        %v522 = vunpack.c.l.b16 %v458
        %v523 = vunpack.c.l.b16 %v459
        %v524 = vunpack.c.l.b16 %v460
        %v525 = vunpack.c.l.b16 %v461
        %v526 = vunpack.c.l.b16 %v462
        %v527 = vunpack.c.l.b16 %v463
        %v528 = vunpack.c.l.b16 %v464
        %v529 = vunpack.c.l.b16 %v465
        %v530 = vunpack.c.l.b16 %v466
        %v531 = vunpack.c.l.b16 %v467
        %v532 = vunpack.c.l.b16 %v468
        %v533 = vunpack.c.l.b16 %v469
        %v534 = vunpack.c.l.b16 %v470
        %v535 = vunpack.c.l.b16 %v471
        %v536 = vunpack.c.l.b16 %v472
        %v537 = vunpack.c.l.b16 %v473
        %v538 = vunpack.c.l.b16 %v474
        %v539 = vunpack.c.l.b16 %v475
        %v540 = vunpack.c.l.b16 %v476
        %v541 = vunpack.c.l.b16 %v477
        %v542 = vpack.c.b16 %v511, %v510
        %v543 = vpack.c.b16 %v513, %v512
        %v544 = vpack.c.b16 %v515, %v514
        %v545 = vpack.c.b16 %v517, %v516
        %v546 = vpack.c.b16 %v519, %v518
        %v547 = vpack.c.b16 %v521, %v520
        %v548 = vpack.c.b16 %v523, %v522
        %v549 = vpack.c.b16 %v525, %v524
        %v550 = vpack.c.b16 %v527, %v526
        %v551 = vpack.c.b16 %v529, %v528
        %v552 = vpack.c.b16 %v531, %v530
        %v553 = vpack.c.b16 %v533, %v532
        %v554 = vpack.c.b16 %v535, %v534
        %v555 = vpack.c.b16 %v537, %v536
        %v556 = vpack.c.b16 %v539, %v538
        %v557 = vpack.c.b16 %v541, %v540
        %s574 = scalar_lea.vmem [#allocation2], 8
        %575 = vst [vmem:[%s574] sm:$0xff] %v542
        %576 = vst [vmem:[%s574 + $0x8] sm:$0xff] %v543
        %577 = vst [vmem:[%s574 + $0x10] sm:$0xff] %v544
        %578 = vst [vmem:[%s574 + $0x18] sm:$0xff] %v545
        %579 = vst [vmem:[%s574 + $0x20] sm:$0xff] %v546
        %580 = vst [vmem:[%s574 + $0x28] sm:$0xff] %v547
        %581 = vst [vmem:[%s574 + $0x30] sm:$0xff] %v548
        %582 = vst [vmem:[%s574 + $0x38] sm:$0xff] %v549
        %583 = vst [vmem:[%s574 + $0x40] sm:$0xff] %v550
        %584 = vst [vmem:[%s574 + $0x48] sm:$0xff] %v551
        %585 = vst [vmem:[%s574 + $0x50] sm:$0xff] %v552
        %586 = vst [vmem:[%s574 + $0x58] sm:$0xff] %v553
        %587 = vst [vmem:[%s574 + $0x60] sm:$0xff] %v554
        %588 = vst [vmem:[%s574 + $0x68] sm:$0xff] %v555
        %589 = vst [vmem:[%s574 + $0x70] sm:$0xff] %v556
        %590 = vst [vmem:[%s574 + $0x78] sm:$0xff] %v557
        %v591 = vld [vmem:[#allocation2] sm:$0xff]
        %v592 = vld [vmem:[#allocation2 + $0x8] sm:$0xff]
        %v593 = vld [vmem:[#allocation2 + $0x10] sm:$0xff]
        %v594 = vld [vmem:[#allocation2 + $0x18] sm:$0xff]
        %v595 = vld [vmem:[#allocation2 + $0x20] sm:$0xff]
        %v596 = vld [vmem:[#allocation2 + $0x28] sm:$0xff]
        %v597 = vld [vmem:[#allocation2 + $0x30] sm:$0xff]
        %v598 = vld [vmem:[#allocation2 + $0x38] sm:$0xff]
        %v599 = vld [vmem:[#allocation2 + $0x40] sm:$0xff]
        %v600 = vld [vmem:[#allocation2 + $0x48] sm:$0xff]
        %v601 = vld [vmem:[#allocation2 + $0x50] sm:$0xff]
        %v602 = vld [vmem:[#allocation2 + $0x58] sm:$0xff]
        %v603 = vld [vmem:[#allocation2 + $0x60] sm:$0xff]
        %v604 = vld [vmem:[#allocation2 + $0x68] sm:$0xff]
        %v605 = vld [vmem:[#allocation2 + $0x70] sm:$0xff]
        %v606 = vld [vmem:[#allocation2 + $0x78] sm:$0xff]
        %v607 = vld [vmem:[#allocation2 + $0x80] sm:$0xff]
        %v608 = vld [vmem:[#allocation2 + $0x88] sm:$0xff]
        %v610 = vshrl.u32 %v591, 16
        %v612 = vrot.slane %v610, 7
        %v613 = vshll.u32 %v591, 16
        %v615 = vor.u32 %v612, %v613
        %v617 = vshrl.u32 %v592, 16
        %v619 = vrot.slane %v617, 7
        %v620 = vshll.u32 %v592, 16
        %v622 = vor.u32 %v619, %v620
        %v624 = vshrl.u32 %v593, 16
        %v626 = vrot.slane %v624, 7
        %v627 = vshll.u32 %v593, 16
        %v629 = vor.u32 %v626, %v627
        %v631 = vshrl.u32 %v594, 16
        %v633 = vrot.slane %v631, 7
        %v634 = vshll.u32 %v594, 16
        %v636 = vor.u32 %v633, %v634
        %v638 = vshrl.u32 %v595, 16
        %v640 = vrot.slane %v638, 7
        %v641 = vshll.u32 %v595, 16
        %v643 = vor.u32 %v640, %v641
        %v645 = vshrl.u32 %v596, 16
        %v647 = vrot.slane %v645, 7
        %v648 = vshll.u32 %v596, 16
        %v650 = vor.u32 %v647, %v648
        %v652 = vshrl.u32 %v597, 16
        %v654 = vrot.slane %v652, 7
        %v655 = vshll.u32 %v597, 16
        %v657 = vor.u32 %v654, %v655
        %v659 = vshrl.u32 %v598, 16
        %v661 = vrot.slane %v659, 7
        %v662 = vshll.u32 %v598, 16
        %v664 = vor.u32 %v661, %v662
        %v666 = vshrl.u32 %v599, 16
        %v668 = vrot.slane %v666, 7
        %v669 = vshll.u32 %v599, 16
        %v671 = vor.u32 %v668, %v669
        %v673 = vshrl.u32 %v600, 16
        %v675 = vrot.slane %v673, 7
        %v676 = vshll.u32 %v600, 16
        %v678 = vor.u32 %v675, %v676
        %v680 = vshrl.u32 %v601, 16
        %v682 = vrot.slane %v680, 7
        %v683 = vshll.u32 %v601, 16
        %v685 = vor.u32 %v682, %v683
        %v687 = vshrl.u32 %v602, 16
        %v689 = vrot.slane %v687, 7
        %v690 = vshll.u32 %v602, 16
        %v692 = vor.u32 %v689, %v690
        %v694 = vshrl.u32 %v603, 16
        %v696 = vrot.slane %v694, 7
        %v697 = vshll.u32 %v603, 16
        %v699 = vor.u32 %v696, %v697
        %v701 = vshrl.u32 %v604, 16
        %v703 = vrot.slane %v701, 7
        %v704 = vshll.u32 %v604, 16
        %v706 = vor.u32 %v703, %v704
        %v708 = vshrl.u32 %v605, 16
        %v710 = vrot.slane %v708, 7
        %v711 = vshll.u32 %v605, 16
        %v713 = vor.u32 %v710, %v711
        %v715 = vshrl.u32 %v606, 16
        %v717 = vrot.slane %v715, 7
        %v718 = vshll.u32 %v606, 16
        %v720 = vor.u32 %v717, %v718
        %v722 = vshrl.u32 %v607, 16
        %v724 = vrot.slane %v722, 7
        %v725 = vshll.u32 %v607, 16
        %v727 = vor.u32 %v724, %v725
        %v729 = vshrl.u32 %v608, 16
        %v731 = vrot.slane %v729, 7
        %v732 = vshll.u32 %v608, 16
        %v734 = vor.u32 %v731, %v732
        %vm753 = vcmask 1040384
        %vm754 = vsmask.f32 256
        %vm755 = vmand %vm753, %vm754
        %v756 = vsel %vm755, 0, %v615
        %v757 = vsel %vm755, 0, %v622
        %v758 = vsel %vm755, 0, %v629
        %v759 = vsel %vm755, 0, %v636
        %v760 = vsel %vm755, 0, %v643
        %v761 = vsel %vm755, 0, %v650
        %v762 = vsel %vm755, 0, %v657
        %v763 = vsel %vm755, 0, %v664
        %v764 = vsel %vm755, 0, %v671
        %v765 = vsel %vm755, 0, %v678
        %v766 = vsel %vm755, 0, %v685
        %v767 = vsel %vm755, 0, %v692
        %v768 = vsel %vm755, 0, %v699
        %v769 = vsel %vm755, 0, %v706
        %v770 = vsel %vm755, 0, %v713
        %v771 = vsel %vm755, 0, %v720
        %v772 = vsel %vm755, 0, %v727
        %v773 = vsel %vm755, 0, %v734
        %v774 = vld [vmem:[%s1] sm:$0xf]
        %v775 = vld [vmem:[%s1 + $0x4] sm:$0xf]
        %v776 = vld [vmem:[%s1 + $0x8] sm:$0xf]
        %v777 = vld [vmem:[%s1 + $0xc] sm:$0xf]
        %v778 = vld [vmem:[%s1 + $0x10] sm:$0xf]
        %v779 = vld [vmem:[%s1 + $0x14] sm:$0xf]
        %v780 = vld [vmem:[%s1 + $0x18] sm:$0xf]
        %v781 = vld [vmem:[%s1 + $0x1c] sm:$0xf]
        %v782 = vld [vmem:[%s1 + $0x20] sm:$0xf]
        %v783 = vld [vmem:[%s1 + $0x24] sm:$0xf]
        %v784 = vld [vmem:[%s1 + $0x28] sm:$0xf]
        %v785 = vld [vmem:[%s1 + $0x2c] sm:$0xf]
        %v786 = vld [vmem:[%s1 + $0x30] sm:$0xf]
        %v787 = vld [vmem:[%s1 + $0x34] sm:$0xf]
        %v788 = vld [vmem:[%s1 + $0x38] sm:$0xf]
        %v789 = vld [vmem:[%s1 + $0x3c] sm:$0xf]
        %s790 = scalar_lea.vmem %s1, 192
        %v791 = vld [vmem:[%s790] sm:$0xf]
        %v792 = vld [vmem:[%s790 + $0x4] sm:$0xf]
        %v793 = vld [vmem:[%s790 + $0x8] sm:$0xf]
        %v794 = vld [vmem:[%s790 + $0xc] sm:$0xf]
        %v795 = vld [vmem:[%s790 + $0x10] sm:$0xf]
        %v796 = vld [vmem:[%s790 + $0x14] sm:$0xf]
        %v797 = vld [vmem:[%s790 + $0x18] sm:$0xf]
        %v798 = vld [vmem:[%s790 + $0x1c] sm:$0xf]
        %v799 = vld [vmem:[%s790 + $0x20] sm:$0xf]
        %v800 = vld [vmem:[%s790 + $0x24] sm:$0xf]
        %v801 = vld [vmem:[%s790 + $0x28] sm:$0xf]
        %v802 = vld [vmem:[%s790 + $0x2c] sm:$0xf]
        %v803 = vld [vmem:[%s790 + $0x30] sm:$0xf]
        %v804 = vld [vmem:[%s790 + $0x34] sm:$0xf]
        %v805 = vld [vmem:[%s790 + $0x38] sm:$0xf]
        %v806 = vld [vmem:[%s790 + $0x3c] sm:$0xf]
        %v823 = vunpack.c.l.b16 %v791
        %v824 = vunpack.c.l.b16 %v792
        %v825 = vunpack.c.l.b16 %v793
        %v826 = vunpack.c.l.b16 %v794
        %v827 = vunpack.c.l.b16 %v795
        %v828 = vunpack.c.l.b16 %v796
        %v829 = vunpack.c.l.b16 %v797
        %v830 = vunpack.c.l.b16 %v798
        %v831 = vunpack.c.l.b16 %v799
        %v832 = vunpack.c.l.b16 %v800
        %v833 = vunpack.c.l.b16 %v801
        %v834 = vunpack.c.l.b16 %v802
        %v835 = vunpack.c.l.b16 %v803
        %v836 = vunpack.c.l.b16 %v804
        %v837 = vunpack.c.l.b16 %v805
        %v838 = vunpack.c.l.b16 %v806
        %v839 = vpack.c.b16 %v824, %v823
        %v840 = vpack.c.b16 %v826, %v825
        %v841 = vpack.c.b16 %v828, %v827
        %v842 = vpack.c.b16 %v830, %v829
        %v843 = vpack.c.b16 %v832, %v831
        %v844 = vpack.c.b16 %v834, %v833
        %v845 = vpack.c.b16 %v836, %v835
        %v846 = vpack.c.b16 %v838, %v837
        %855 = vmatprep.subr.bf16.mxu0 0
        %856 = vmatpush1.bf16.msra.mxu0 %v839
        %857 = vmatprep.subr.bf16.mxu0 0
        %858 = vmatpush1.bf16.msra.mxu0 %v840
        %859 = vmatprep.subr.bf16.mxu0 0
        %860 = vmatpush1.bf16.msra.mxu0 %v841
        %861 = vmatprep.subr.bf16.mxu0 0
        %862 = vmatpush1.bf16.msra.mxu0 %v842
        %863 = vmatprep.subr.bf16.mxu0 0
        %864 = vmatpush1.bf16.msra.mxu0 %v843
        %865 = vmatprep.subr.bf16.mxu0 0
        %866 = vmatpush1.bf16.msra.mxu0 %v844
        %867 = vmatprep.subr.bf16.mxu0 0
        %868 = vmatpush1.bf16.msra.mxu0 %v845
        %869 = vmatprep.subr.bf16.mxu0 0
        %870 = vmatpush1.bf16.msra.mxu0 %v846
        %871 = vmatprep.subr.bf16.mxu0 0
        %872 = vmatpush1.bf16.msra.mxu0 0
        %873 = vmatprep.subr.bf16.mxu0 0
        %874 = vmatpush1.bf16.msra.mxu0 0
        %875 = vmatprep.subr.bf16.mxu0 0
        %876 = vmatpush1.bf16.msra.mxu0 0
        %877 = vmatprep.subr.bf16.mxu0 0
        %878 = vmatpush1.bf16.msra.mxu0 0
        %879 = vmatprep.subr.bf16.mxu0 0
        %880 = vmatpush1.bf16.msra.mxu0 0
        %881 = vmatprep.subr.bf16.mxu0 0
        %882 = vmatpush1.bf16.msra.mxu0 0
        %883 = vmatprep.subr.bf16.mxu0 0
        %884 = vmatpush1.bf16.msra.mxu0 0
        %885 = vmatprep.subr.bf16.mxu0 0
        %886 = vmatpush1.bf16.msra.mxu0 0
        %887 = vmatprep.mubr.bf16.mxu0 0
        %888 = vmatmul.mubr.bf16.gmra.mrb[0].mxu0 %v757
        %v889 = vpop.f32.mrb[0].mxu0
        %v890 = vadd.f32 0.0, %v889
        %v891 = vpop.f32.mrb[0].mxu0
        %v892 = vpop.f32.mrb[0].mxu0
        %v893 = vadd.f32 0.0, %v892
        %v894 = vpop.f32.mrb[0].mxu0
        %895 = vmatprep.mubr.bf16.mxu0 0
        %896 = vmatmul.mubr.bf16.gmra.mrb[0].mxu0 %v758
        %v897 = vpop.f32.mrb[0].mxu0
        %v898 = vadd.f32 0.0, %v897
        %v899 = vpop.f32.mrb[0].mxu0
        %v900 = vpop.f32.mrb[0].mxu0
        %v901 = vadd.f32 0.0, %v900
        %v902 = vpop.f32.mrb[0].mxu0
        %903 = vmatprep.mubr.bf16.mxu0 0
        %904 = vmatmul.mubr.bf16.gmra.mrb[0].mxu0 %v759
        %v905 = vpop.f32.mrb[0].mxu0
        %v906 = vadd.f32 0.0, %v905
        %v907 = vpop.f32.mrb[0].mxu0
        %v908 = vpop.f32.mrb[0].mxu0
        %v909 = vadd.f32 0.0, %v908
        %v910 = vpop.f32.mrb[0].mxu0
        %911 = vmatprep.mubr.bf16.mxu0 0
        %912 = vmatmul.mubr.bf16.gmra.mrb[0].mxu0 %v760
        %v913 = vpop.f32.mrb[0].mxu0
        %v914 = vadd.f32 0.0, %v913
        %v915 = vpop.f32.mrb[0].mxu0
        %v916 = vpop.f32.mrb[0].mxu0
        %v917 = vadd.f32 0.0, %v916
        %v918 = vpop.f32.mrb[0].mxu0
        %919 = vmatprep.mubr.bf16.mxu0 0
        %920 = vmatmul.mubr.bf16.gmra.mrb[0].mxu0 %v761
        %v921 = vpop.f32.mrb[0].mxu0
        %v922 = vadd.f32 0.0, %v921
        %v923 = vpop.f32.mrb[0].mxu0
        %v924 = vpop.f32.mrb[0].mxu0
        %v925 = vadd.f32 0.0, %v924
        %v926 = vpop.f32.mrb[0].mxu0
        %927 = vmatprep.mubr.bf16.mxu0 0
        %928 = vmatmul.mubr.bf16.gmra.mrb[0].mxu0 %v762
        %v929 = vpop.f32.mrb[0].mxu0
        %v930 = vadd.f32 0.0, %v929
        %v931 = vpop.f32.mrb[0].mxu0
        %v932 = vpop.f32.mrb[0].mxu0
        %v933 = vadd.f32 0.0, %v932
        %v934 = vpop.f32.mrb[0].mxu0
        %935 = vmatprep.mubr.bf16.mxu0 0
        %936 = vmatmul.mubr.bf16.gmra.mrb[0].mxu0 %v763
        %v937 = vpop.f32.mrb[0].mxu0
        %v938 = vadd.f32 0.0, %v937
        %v939 = vpop.f32.mrb[0].mxu0
        %v940 = vpop.f32.mrb[0].mxu0
        %v941 = vadd.f32 0.0, %v940
        %v942 = vpop.f32.mrb[0].mxu0
        %943 = vmatprep.mubr.bf16.mxu0 0
        %944 = vmatmul.mubr.bf16.gmra.mrb[0].mxu0 %v764
        %v945 = vpop.f32.mrb[0].mxu0
        %v946 = vadd.f32 0.0, %v945
        %v947 = vpop.f32.mrb[0].mxu0
        %v948 = vpop.f32.mrb[0].mxu0
        %v949 = vadd.f32 0.0, %v948
        %v950 = vpop.f32.mrb[0].mxu0
        %951 = vmatprep.mubr.bf16.mxu0 0
        %952 = vmatmul.mubr.bf16.gmra.mrb[0].mxu0 %v765
        %v953 = vpop.f32.mrb[0].mxu0
        %v954 = vadd.f32 0.0, %v953
        %v955 = vpop.f32.mrb[0].mxu0
        %v956 = vpop.f32.mrb[0].mxu0
        %v957 = vadd.f32 0.0, %v956
        %v958 = vpop.f32.mrb[0].mxu0
        %959 = vmatprep.mubr.bf16.mxu0 0
        %960 = vmatmul.mubr.bf16.gmra.mrb[0].mxu0 %v766
        %v961 = vpop.f32.mrb[0].mxu0
        %v962 = vadd.f32 0.0, %v961
        %v963 = vpop.f32.mrb[0].mxu0
        %v964 = vpop.f32.mrb[0].mxu0
        %v965 = vadd.f32 0.0, %v964
        %v966 = vpop.f32.mrb[0].mxu0
        %967 = vmatprep.mubr.bf16.mxu0 0
        %968 = vmatmul.mubr.bf16.gmra.mrb[0].mxu0 %v767
        %v969 = vpop.f32.mrb[0].mxu0
        %v970 = vadd.f32 0.0, %v969
        %v971 = vpop.f32.mrb[0].mxu0
        %v972 = vpop.f32.mrb[0].mxu0
        %v973 = vadd.f32 0.0, %v972
        %v974 = vpop.f32.mrb[0].mxu0
        %975 = vmatprep.mubr.bf16.mxu0 0
        %976 = vmatmul.mubr.bf16.gmra.mrb[0].mxu0 %v768
        %v977 = vpop.f32.mrb[0].mxu0
        %v978 = vadd.f32 0.0, %v977
        %v979 = vpop.f32.mrb[0].mxu0
        %v980 = vpop.f32.mrb[0].mxu0
        %v981 = vadd.f32 0.0, %v980
        %v982 = vpop.f32.mrb[0].mxu0
        %983 = vmatprep.mubr.bf16.mxu0 0
        %984 = vmatmul.mubr.bf16.gmra.mrb[0].mxu0 %v769
        %v985 = vpop.f32.mrb[0].mxu0
        %v986 = vadd.f32 0.0, %v985
        %v987 = vpop.f32.mrb[0].mxu0
        %v988 = vpop.f32.mrb[0].mxu0
        %v989 = vadd.f32 0.0, %v988
        %v990 = vpop.f32.mrb[0].mxu0
        %991 = vmatprep.mubr.bf16.mxu0 0
        %992 = vmatmul.mubr.bf16.gmra.mrb[0].mxu0 %v770
        %v993 = vpop.f32.mrb[0].mxu0
        %v994 = vadd.f32 0.0, %v993
        %v995 = vpop.f32.mrb[0].mxu0
        %v996 = vpop.f32.mrb[0].mxu0
        %v997 = vadd.f32 0.0, %v996
        %v998 = vpop.f32.mrb[0].mxu0
        %999 = vmatprep.mubr.bf16.mxu0 0
        %1000 = vmatmul.mubr.bf16.gmra.mrb[0].mxu0 %v771
        %v1001 = vpop.f32.mrb[0].mxu0
        %v1002 = vadd.f32 0.0, %v1001
        %v1003 = vpop.f32.mrb[0].mxu0
        %v1004 = vpop.f32.mrb[0].mxu0
        %v1005 = vadd.f32 0.0, %v1004
        %v1006 = vpop.f32.mrb[0].mxu0
        %1007 = vmatprep.mubr.bf16.mxu0 0
        %1008 = vmatmul.mubr.bf16.gmra.mrb[0].mxu0 %v772
        %v1009 = vpop.f32.mrb[0].mxu0
        %v1010 = vadd.f32 0.0, %v1009
        %v1011 = vpop.f32.mrb[0].mxu0
        %v1012 = vpop.f32.mrb[0].mxu0
        %v1013 = vadd.f32 0.0, %v1012
        %v1014 = vpop.f32.mrb[0].mxu0
        %1015 = vdwg.mxu0
        %v1032 = vunpack.c.l.b16 %v774
        %v1033 = vunpack.c.l.b16 %v775
        %v1034 = vunpack.c.l.b16 %v776
        %v1035 = vunpack.c.l.b16 %v777
        %v1036 = vunpack.c.l.b16 %v778
        %v1037 = vunpack.c.l.b16 %v779
        %v1038 = vunpack.c.l.b16 %v780
        %v1039 = vunpack.c.l.b16 %v781
        %v1040 = vunpack.c.l.b16 %v782
        %v1041 = vunpack.c.l.b16 %v783
        %v1042 = vunpack.c.l.b16 %v784
        %v1043 = vunpack.c.l.b16 %v785
        %v1044 = vunpack.c.l.b16 %v786
        %v1045 = vunpack.c.l.b16 %v787
        %v1046 = vunpack.c.l.b16 %v788
        %v1047 = vunpack.c.l.b16 %v789
        %v1048 = vpack.c.b16 %v1033, %v1032
        %v1049 = vpack.c.b16 %v1035, %v1034
        %v1050 = vpack.c.b16 %v1037, %v1036
        %v1051 = vpack.c.b16 %v1039, %v1038
        %v1052 = vpack.c.b16 %v1041, %v1040
        %v1053 = vpack.c.b16 %v1043, %v1042
        %v1054 = vpack.c.b16 %v1045, %v1044
        %v1055 = vpack.c.b16 %v1047, %v1046
        %1064 = vmatprep.subr.bf16.mxu0 0
        %1065 = vmatpush1.bf16.msra.mxu0 %v1048
        %1066 = vmatprep.subr.bf16.mxu0 0
        %1067 = vmatpush1.bf16.msra.mxu0 %v1049
        %1068 = vmatprep.subr.bf16.mxu0 0
        %1069 = vmatpush1.bf16.msra.mxu0 %v1050
        %1070 = vmatprep.subr.bf16.mxu0 0
        %1071 = vmatpush1.bf16.msra.mxu0 %v1051
        %1072 = vmatprep.subr.bf16.mxu0 0
        %1073 = vmatpush1.bf16.msra.mxu0 %v1052
        %1074 = vmatprep.subr.bf16.mxu0 0
        %1075 = vmatpush1.bf16.msra.mxu0 %v1053
        %1076 = vmatprep.subr.bf16.mxu0 0
        %1077 = vmatpush1.bf16.msra.mxu0 %v1054
        %1078 = vmatprep.subr.bf16.mxu0 0
        %1079 = vmatpush1.bf16.msra.mxu0 %v1055
        %1080 = vmatprep.subr.bf16.mxu0 0
        %1081 = vmatpush1.bf16.msra.mxu0 0
        %1082 = vmatprep.subr.bf16.mxu0 0
        %1083 = vmatpush1.bf16.msra.mxu0 0
        %1084 = vmatprep.subr.bf16.mxu0 0
        %1085 = vmatpush1.bf16.msra.mxu0 0
        %1086 = vmatprep.subr.bf16.mxu0 0
        %1087 = vmatpush1.bf16.msra.mxu0 0
        %1088 = vmatprep.subr.bf16.mxu0 0
        %1089 = vmatpush1.bf16.msra.mxu0 0
        %1090 = vmatprep.subr.bf16.mxu0 0
        %1091 = vmatpush1.bf16.msra.mxu0 0
        %1092 = vmatprep.subr.bf16.mxu0 0
        %1093 = vmatpush1.bf16.msra.mxu0 0
        %1094 = vmatprep.subr.bf16.mxu0 0
        %1095 = vmatpush1.bf16.msra.mxu0 0
        %1096 = vmatprep.mubr.bf16.mxu0 0
        %1097 = vmatmul.mubr.bf16.gmra.mrb[0].mxu0 %v756
        %v1098 = vpop.f32.mrb[0].mxu0
        %v1099 = vadd.f32 %v890, %v1098
        %v1100 = vpop.f32.mrb[0].mxu0
        %v1101 = vpop.f32.mrb[0].mxu0
        %v1102 = vadd.f32 %v893, %v1101
        %v1103 = vpop.f32.mrb[0].mxu0
        %1104 = vmatprep.mubr.bf16.mxu0 0
        %1105 = vmatmul.mubr.bf16.gmra.mrb[0].mxu0 %v757
        %v1106 = vpop.f32.mrb[0].mxu0
        %v1107 = vadd.f32 %v898, %v1106
        %v1108 = vpop.f32.mrb[0].mxu0
        %v1109 = vpop.f32.mrb[0].mxu0
        %v1110 = vadd.f32 %v901, %v1109
        %v1111 = vpop.f32.mrb[0].mxu0
        %1112 = vmatprep.mubr.bf16.mxu0 0
        %1113 = vmatmul.mubr.bf16.gmra.mrb[0].mxu0 %v758
        %v1114 = vpop.f32.mrb[0].mxu0
        %v1115 = vadd.f32 %v906, %v1114
        %v1116 = vpop.f32.mrb[0].mxu0
        %v1117 = vpop.f32.mrb[0].mxu0
        %v1118 = vadd.f32 %v909, %v1117
        %v1119 = vpop.f32.mrb[0].mxu0
        %1120 = vmatprep.mubr.bf16.mxu0 0
        %1121 = vmatmul.mubr.bf16.gmra.mrb[0].mxu0 %v759
        %v1122 = vpop.f32.mrb[0].mxu0
        %v1123 = vadd.f32 %v914, %v1122
        %v1124 = vpop.f32.mrb[0].mxu0
        %v1125 = vpop.f32.mrb[0].mxu0
        %v1126 = vadd.f32 %v917, %v1125
        %v1127 = vpop.f32.mrb[0].mxu0
        %1128 = vmatprep.mubr.bf16.mxu0 0
        %1129 = vmatmul.mubr.bf16.gmra.mrb[0].mxu0 %v760
        %v1130 = vpop.f32.mrb[0].mxu0
        %v1131 = vadd.f32 %v922, %v1130
        %v1132 = vpop.f32.mrb[0].mxu0
        %v1133 = vpop.f32.mrb[0].mxu0
        %v1134 = vadd.f32 %v925, %v1133
        %v1135 = vpop.f32.mrb[0].mxu0
        %1136 = vmatprep.mubr.bf16.mxu0 0
        %1137 = vmatmul.mubr.bf16.gmra.mrb[0].mxu0 %v761
        %v1138 = vpop.f32.mrb[0].mxu0
        %v1139 = vadd.f32 %v930, %v1138
        %v1140 = vpop.f32.mrb[0].mxu0
        %v1141 = vpop.f32.mrb[0].mxu0
        %v1142 = vadd.f32 %v933, %v1141
        %v1143 = vpop.f32.mrb[0].mxu0
        %1144 = vmatprep.mubr.bf16.mxu0 0
        %1145 = vmatmul.mubr.bf16.gmra.mrb[0].mxu0 %v762
        %v1146 = vpop.f32.mrb[0].mxu0
        %v1147 = vadd.f32 %v938, %v1146
        %v1148 = vpop.f32.mrb[0].mxu0
        %v1149 = vpop.f32.mrb[0].mxu0
        %v1150 = vadd.f32 %v941, %v1149
        %v1151 = vpop.f32.mrb[0].mxu0
        %1152 = vmatprep.mubr.bf16.mxu0 0
        %1153 = vmatmul.mubr.bf16.gmra.mrb[0].mxu0 %v763
        %v1154 = vpop.f32.mrb[0].mxu0
        %v1155 = vadd.f32 %v946, %v1154
        %v1156 = vpop.f32.mrb[0].mxu0
        %v1157 = vpop.f32.mrb[0].mxu0
        %v1158 = vadd.f32 %v949, %v1157
        %v1159 = vpop.f32.mrb[0].mxu0
        %1160 = vmatprep.mubr.bf16.mxu0 0
        %1161 = vmatmul.mubr.bf16.gmra.mrb[0].mxu0 %v764
        %v1162 = vpop.f32.mrb[0].mxu0
        %v1163 = vadd.f32 %v954, %v1162
        %v1164 = vpop.f32.mrb[0].mxu0
        %v1165 = vpop.f32.mrb[0].mxu0
        %v1166 = vadd.f32 %v957, %v1165
        %v1167 = vpop.f32.mrb[0].mxu0
        %1168 = vmatprep.mubr.bf16.mxu0 0
        %1169 = vmatmul.mubr.bf16.gmra.mrb[0].mxu0 %v765
        %v1170 = vpop.f32.mrb[0].mxu0
        %v1171 = vadd.f32 %v962, %v1170
        %v1172 = vpop.f32.mrb[0].mxu0
        %v1173 = vpop.f32.mrb[0].mxu0
        %v1174 = vadd.f32 %v965, %v1173
        %v1175 = vpop.f32.mrb[0].mxu0
        %1176 = vmatprep.mubr.bf16.mxu0 0
        %1177 = vmatmul.mubr.bf16.gmra.mrb[0].mxu0 %v766
        %v1178 = vpop.f32.mrb[0].mxu0
        %v1179 = vadd.f32 %v970, %v1178
        %v1180 = vpop.f32.mrb[0].mxu0
        %v1181 = vpop.f32.mrb[0].mxu0
        %v1182 = vadd.f32 %v973, %v1181
        %v1183 = vpop.f32.mrb[0].mxu0
        %1184 = vmatprep.mubr.bf16.mxu0 0
        %1185 = vmatmul.mubr.bf16.gmra.mrb[0].mxu0 %v767
        %v1186 = vpop.f32.mrb[0].mxu0
        %v1187 = vadd.f32 %v978, %v1186
        %v1188 = vpop.f32.mrb[0].mxu0
        %v1189 = vpop.f32.mrb[0].mxu0
        %v1190 = vadd.f32 %v981, %v1189
        %v1191 = vpop.f32.mrb[0].mxu0
        %1192 = vmatprep.mubr.bf16.mxu0 0
        %1193 = vmatmul.mubr.bf16.gmra.mrb[0].mxu0 %v768
        %v1194 = vpop.f32.mrb[0].mxu0
        %v1195 = vadd.f32 %v986, %v1194
        %v1196 = vpop.f32.mrb[0].mxu0
        %v1197 = vpop.f32.mrb[0].mxu0
        %v1198 = vadd.f32 %v989, %v1197
        %v1199 = vpop.f32.mrb[0].mxu0
        %1200 = vmatprep.mubr.bf16.mxu0 0
        %1201 = vmatmul.mubr.bf16.gmra.mrb[0].mxu0 %v769
        %v1202 = vpop.f32.mrb[0].mxu0
        %v1203 = vadd.f32 %v994, %v1202
        %v1204 = vpop.f32.mrb[0].mxu0
        %v1205 = vpop.f32.mrb[0].mxu0
        %v1206 = vadd.f32 %v997, %v1205
        %v1207 = vpop.f32.mrb[0].mxu0
        %1208 = vmatprep.mubr.bf16.mxu0 0
        %1209 = vmatmul.mubr.bf16.gmra.mrb[0].mxu0 %v770
        %v1210 = vpop.f32.mrb[0].mxu0
        %v1211 = vadd.f32 %v1002, %v1210
        %v1212 = vpop.f32.mrb[0].mxu0
        %v1213 = vpop.f32.mrb[0].mxu0
        %v1214 = vadd.f32 %v1005, %v1213
        %v1215 = vpop.f32.mrb[0].mxu0
        %1216 = vmatprep.mubr.bf16.mxu0 0
        %1217 = vmatmul.mubr.bf16.gmra.mrb[0].mxu0 %v771
        %v1218 = vpop.f32.mrb[0].mxu0
        %v1219 = vadd.f32 %v1010, %v1218
        %v1220 = vpop.f32.mrb[0].mxu0
        %v1221 = vpop.f32.mrb[0].mxu0
        %v1222 = vadd.f32 %v1013, %v1221
        %v1223 = vpop.f32.mrb[0].mxu0
        %1224 = vdwg.mxu0
        %s1225 = scalar_lea.vmem %s1, 384
        %v1226 = vld [vmem:[%s1225] sm:$0xf]
        %v1227 = vld [vmem:[%s1225 + $0x4] sm:$0xf]
        %v1228 = vld [vmem:[%s1225 + $0x8] sm:$0xf]
        %v1229 = vld [vmem:[%s1225 + $0xc] sm:$0xf]
        %v1230 = vld [vmem:[%s1225 + $0x10] sm:$0xf]
        %v1231 = vld [vmem:[%s1225 + $0x14] sm:$0xf]
        %v1232 = vld [vmem:[%s1225 + $0x18] sm:$0xf]
        %v1233 = vld [vmem:[%s1225 + $0x1c] sm:$0xf]
        %v1234 = vld [vmem:[%s1225 + $0x20] sm:$0xf]
        %v1235 = vld [vmem:[%s1225 + $0x24] sm:$0xf]
        %v1236 = vld [vmem:[%s1225 + $0x28] sm:$0xf]
        %v1237 = vld [vmem:[%s1225 + $0x2c] sm:$0xf]
        %v1238 = vld [vmem:[%s1225 + $0x30] sm:$0xf]
        %v1239 = vld [vmem:[%s1225 + $0x34] sm:$0xf]
        %v1240 = vld [vmem:[%s1225 + $0x38] sm:$0xf]
        %v1241 = vld [vmem:[%s1225 + $0x3c] sm:$0xf]
        %v1258 = vunpack.c.l.b16 %v1226
        %v1259 = vunpack.c.l.b16 %v1227
        %v1260 = vunpack.c.l.b16 %v1228
        %v1261 = vunpack.c.l.b16 %v1229
        %v1262 = vunpack.c.l.b16 %v1230
        %v1263 = vunpack.c.l.b16 %v1231
        %v1264 = vunpack.c.l.b16 %v1232
        %v1265 = vunpack.c.l.b16 %v1233
        %v1266 = vunpack.c.l.b16 %v1234
        %v1267 = vunpack.c.l.b16 %v1235
        %v1268 = vunpack.c.l.b16 %v1236
        %v1269 = vunpack.c.l.b16 %v1237
        %v1270 = vunpack.c.l.b16 %v1238
        %v1271 = vunpack.c.l.b16 %v1239
        %v1272 = vunpack.c.l.b16 %v1240
        %v1273 = vunpack.c.l.b16 %v1241
        %v1274 = vpack.c.b16 %v1259, %v1258
        %v1275 = vpack.c.b16 %v1261, %v1260
        %v1276 = vpack.c.b16 %v1263, %v1262
        %v1277 = vpack.c.b16 %v1265, %v1264
        %v1278 = vpack.c.b16 %v1267, %v1266
        %v1279 = vpack.c.b16 %v1269, %v1268
        %v1280 = vpack.c.b16 %v1271, %v1270
        %v1281 = vpack.c.b16 %v1273, %v1272
        %1290 = vmatprep.subr.bf16.mxu0 0
        %1291 = vmatpush1.bf16.msra.mxu0 %v1274
        %1292 = vmatprep.subr.bf16.mxu0 0
        %1293 = vmatpush1.bf16.msra.mxu0 %v1275
        %1294 = vmatprep.subr.bf16.mxu0 0
        %1295 = vmatpush1.bf16.msra.mxu0 %v1276
        %1296 = vmatprep.subr.bf16.mxu0 0
        %1297 = vmatpush1.bf16.msra.mxu0 %v1277
        %1298 = vmatprep.subr.bf16.mxu0 0
        %1299 = vmatpush1.bf16.msra.mxu0 %v1278
        %1300 = vmatprep.subr.bf16.mxu0 0
        %1301 = vmatpush1.bf16.msra.mxu0 %v1279
        %1302 = vmatprep.subr.bf16.mxu0 0
        %1303 = vmatpush1.bf16.msra.mxu0 %v1280
        %1304 = vmatprep.subr.bf16.mxu0 0
        %1305 = vmatpush1.bf16.msra.mxu0 %v1281
        %1306 = vmatprep.subr.bf16.mxu0 0
        %1307 = vmatpush1.bf16.msra.mxu0 0
        %1308 = vmatprep.subr.bf16.mxu0 0
        %1309 = vmatpush1.bf16.msra.mxu0 0
        %1310 = vmatprep.subr.bf16.mxu0 0
        %1311 = vmatpush1.bf16.msra.mxu0 0
        %1312 = vmatprep.subr.bf16.mxu0 0
        %1313 = vmatpush1.bf16.msra.mxu0 0
        %1314 = vmatprep.subr.bf16.mxu0 0
        %1315 = vmatpush1.bf16.msra.mxu0 0
        %1316 = vmatprep.subr.bf16.mxu0 0
        %1317 = vmatpush1.bf16.msra.mxu0 0
        %1318 = vmatprep.subr.bf16.mxu0 0
        %1319 = vmatpush1.bf16.msra.mxu0 0
        %1320 = vmatprep.subr.bf16.mxu0 0
        %1321 = vmatpush1.bf16.msra.mxu0 0
        %1322 = vmatprep.mubr.bf16.mxu0 0
        %1323 = vmatmul.mubr.bf16.gmra.mrb[0].mxu0 %v758
        %v1324 = vpop.f32.mrb[0].mxu0
        %v1325 = vadd.f32 0.0, %v1324
        %v1326 = vpop.f32.mrb[0].mxu0
        %v1327 = vpop.f32.mrb[0].mxu0
        %v1328 = vadd.f32 0.0, %v1327
        %v1329 = vpop.f32.mrb[0].mxu0
        %1330 = vmatprep.mubr.bf16.mxu0 0
        %1331 = vmatmul.mubr.bf16.gmra.mrb[0].mxu0 %v759
        %v1332 = vpop.f32.mrb[0].mxu0
        %v1333 = vadd.f32 0.0, %v1332
        %v1334 = vpop.f32.mrb[0].mxu0
        %v1335 = vpop.f32.mrb[0].mxu0
        %v1336 = vadd.f32 0.0, %v1335
        %v1337 = vpop.f32.mrb[0].mxu0
        %1338 = vmatprep.mubr.bf16.mxu0 0
        %1339 = vmatmul.mubr.bf16.gmra.mrb[0].mxu0 %v760
        %v1340 = vpop.f32.mrb[0].mxu0
        %v1341 = vadd.f32 0.0, %v1340
        %v1342 = vpop.f32.mrb[0].mxu0
        %v1343 = vpop.f32.mrb[0].mxu0
        %v1344 = vadd.f32 0.0, %v1343
        %v1345 = vpop.f32.mrb[0].mxu0
        %1346 = vmatprep.mubr.bf16.mxu0 0
        %1347 = vmatmul.mubr.bf16.gmra.mrb[0].mxu0 %v761
        %v1348 = vpop.f32.mrb[0].mxu0
        %v1349 = vadd.f32 0.0, %v1348
        %v1350 = vpop.f32.mrb[0].mxu0
        %v1351 = vpop.f32.mrb[0].mxu0
        %v1352 = vadd.f32 0.0, %v1351
        %v1353 = vpop.f32.mrb[0].mxu0
        %1354 = vmatprep.mubr.bf16.mxu0 0
        %1355 = vmatmul.mubr.bf16.gmra.mrb[0].mxu0 %v762
        %v1356 = vpop.f32.mrb[0].mxu0
        %v1357 = vadd.f32 0.0, %v1356
        %v1358 = vpop.f32.mrb[0].mxu0
        %v1359 = vpop.f32.mrb[0].mxu0
        %v1360 = vadd.f32 0.0, %v1359
        %v1361 = vpop.f32.mrb[0].mxu0
        %1362 = vmatprep.mubr.bf16.mxu0 0
        %1363 = vmatmul.mubr.bf16.gmra.mrb[0].mxu0 %v763
        %v1364 = vpop.f32.mrb[0].mxu0
        %v1365 = vadd.f32 0.0, %v1364
        %v1366 = vpop.f32.mrb[0].mxu0
        %v1367 = vpop.f32.mrb[0].mxu0
        %v1368 = vadd.f32 0.0, %v1367
        %v1369 = vpop.f32.mrb[0].mxu0
        %1370 = vmatprep.mubr.bf16.mxu0 0
        %1371 = vmatmul.mubr.bf16.gmra.mrb[0].mxu0 %v764
        %v1372 = vpop.f32.mrb[0].mxu0
        %v1373 = vadd.f32 0.0, %v1372
        %v1374 = vpop.f32.mrb[0].mxu0
        %v1375 = vpop.f32.mrb[0].mxu0
        %v1376 = vadd.f32 0.0, %v1375
        %v1377 = vpop.f32.mrb[0].mxu0
        %1378 = vmatprep.mubr.bf16.mxu0 0
        %1379 = vmatmul.mubr.bf16.gmra.mrb[0].mxu0 %v765
        %v1380 = vpop.f32.mrb[0].mxu0
        %v1381 = vadd.f32 0.0, %v1380
        %v1382 = vpop.f32.mrb[0].mxu0
        %v1383 = vpop.f32.mrb[0].mxu0
        %v1384 = vadd.f32 0.0, %v1383
        %v1385 = vpop.f32.mrb[0].mxu0
        %1386 = vmatprep.mubr.bf16.mxu0 0
        %1387 = vmatmul.mubr.bf16.gmra.mrb[0].mxu0 %v766
        %v1388 = vpop.f32.mrb[0].mxu0
        %v1389 = vadd.f32 0.0, %v1388
        %v1390 = vpop.f32.mrb[0].mxu0
        %v1391 = vpop.f32.mrb[0].mxu0
        %v1392 = vadd.f32 0.0, %v1391
        %v1393 = vpop.f32.mrb[0].mxu0
        %1394 = vmatprep.mubr.bf16.mxu0 0
        %1395 = vmatmul.mubr.bf16.gmra.mrb[0].mxu0 %v767
        %v1396 = vpop.f32.mrb[0].mxu0
        %v1397 = vadd.f32 0.0, %v1396
        %v1398 = vpop.f32.mrb[0].mxu0
        %v1399 = vpop.f32.mrb[0].mxu0
        %v1400 = vadd.f32 0.0, %v1399
        %v1401 = vpop.f32.mrb[0].mxu0
        %1402 = vmatprep.mubr.bf16.mxu0 0
        %1403 = vmatmul.mubr.bf16.gmra.mrb[0].mxu0 %v768
        %v1404 = vpop.f32.mrb[0].mxu0
        %v1405 = vadd.f32 0.0, %v1404
        %v1406 = vpop.f32.mrb[0].mxu0
        %v1407 = vpop.f32.mrb[0].mxu0
        %v1408 = vadd.f32 0.0, %v1407
        %v1409 = vpop.f32.mrb[0].mxu0
        %1410 = vmatprep.mubr.bf16.mxu0 0
        %1411 = vmatmul.mubr.bf16.gmra.mrb[0].mxu0 %v769
        %v1412 = vpop.f32.mrb[0].mxu0
        %v1413 = vadd.f32 0.0, %v1412
        %v1414 = vpop.f32.mrb[0].mxu0
        %v1415 = vpop.f32.mrb[0].mxu0
        %v1416 = vadd.f32 0.0, %v1415
        %v1417 = vpop.f32.mrb[0].mxu0
        %1418 = vmatprep.mubr.bf16.mxu0 0
        %1419 = vmatmul.mubr.bf16.gmra.mrb[0].mxu0 %v770
        %v1420 = vpop.f32.mrb[0].mxu0
        %v1421 = vadd.f32 0.0, %v1420
        %v1422 = vpop.f32.mrb[0].mxu0
        %v1423 = vpop.f32.mrb[0].mxu0
        %v1424 = vadd.f32 0.0, %v1423
        %v1425 = vpop.f32.mrb[0].mxu0
        %1426 = vmatprep.mubr.bf16.mxu0 0
        %1427 = vmatmul.mubr.bf16.gmra.mrb[0].mxu0 %v771
        %v1428 = vpop.f32.mrb[0].mxu0
        %v1429 = vadd.f32 0.0, %v1428
        %v1430 = vpop.f32.mrb[0].mxu0
        %v1431 = vpop.f32.mrb[0].mxu0
        %v1432 = vadd.f32 0.0, %v1431
        %v1433 = vpop.f32.mrb[0].mxu0
        %1434 = vmatprep.mubr.bf16.mxu0 0
        %1435 = vmatmul.mubr.bf16.gmra.mrb[0].mxu0 %v772
        %v1436 = vpop.f32.mrb[0].mxu0
        %v1437 = vadd.f32 0.0, %v1436
        %v1438 = vpop.f32.mrb[0].mxu0
        %v1439 = vpop.f32.mrb[0].mxu0
        %v1440 = vadd.f32 0.0, %v1439
        %v1441 = vpop.f32.mrb[0].mxu0
        %1442 = vmatprep.mubr.bf16.mxu0 0
        %1443 = vmatmul.mubr.bf16.gmra.mrb[0].mxu0 %v773
        %v1444 = vpop.f32.mrb[0].mxu0
        %v1445 = vadd.f32 0.0, %v1444
        %v1446 = vpop.f32.mrb[0].mxu0
        %v1447 = vpop.f32.mrb[0].mxu0
        %v1448 = vadd.f32 0.0, %v1447
        %v1449 = vpop.f32.mrb[0].mxu0
        %1450 = vdwg.mxu0
        %v1451 = vadd.f32 %v1099, %v1325
        %v1452 = vadd.f32 %v1102, %v1328
        %v1453 = vadd.f32 %v1107, %v1333
        %v1454 = vadd.f32 %v1110, %v1336
        %v1455 = vadd.f32 %v1115, %v1341
        %v1456 = vadd.f32 %v1118, %v1344
        %v1457 = vadd.f32 %v1123, %v1349
        %v1458 = vadd.f32 %v1126, %v1352
        %v1459 = vadd.f32 %v1131, %v1357
        %v1460 = vadd.f32 %v1134, %v1360
        %v1461 = vadd.f32 %v1139, %v1365
        %v1462 = vadd.f32 %v1142, %v1368
        %v1463 = vadd.f32 %v1147, %v1373
        %v1464 = vadd.f32 %v1150, %v1376
        %v1465 = vadd.f32 %v1155, %v1381
        %v1466 = vadd.f32 %v1158, %v1384
        %v1467 = vadd.f32 %v1163, %v1389
        %v1468 = vadd.f32 %v1166, %v1392
        %v1469 = vadd.f32 %v1171, %v1397
        %v1470 = vadd.f32 %v1174, %v1400
        %v1471 = vadd.f32 %v1179, %v1405
        %v1472 = vadd.f32 %v1182, %v1408
        %v1473 = vadd.f32 %v1187, %v1413
        %v1474 = vadd.f32 %v1190, %v1416
        %v1475 = vadd.f32 %v1195, %v1421
        %v1476 = vadd.f32 %v1198, %v1424
        %v1477 = vadd.f32 %v1203, %v1429
        %v1478 = vadd.f32 %v1206, %v1432
        %v1479 = vadd.f32 %v1211, %v1437
        %v1480 = vadd.f32 %v1214, %v1440
        %v1481 = vadd.f32 %v1219, %v1445
        %v1482 = vadd.f32 %v1222, %v1448
        %s1483 = scalar_lea.vmem %s1, 64
        %v1484 = vld [vmem:[%s1483] sm:$0xf]
        %v1485 = vld [vmem:[%s1483 + $0x4] sm:$0xf]
        %v1486 = vld [vmem:[%s1483 + $0x8] sm:$0xf]
        %v1487 = vld [vmem:[%s1483 + $0xc] sm:$0xf]
        %v1488 = vld [vmem:[%s1483 + $0x10] sm:$0xf]
        %v1489 = vld [vmem:[%s1483 + $0x14] sm:$0xf]
        %v1490 = vld [vmem:[%s1483 + $0x18] sm:$0xf]
        %v1491 = vld [vmem:[%s1483 + $0x1c] sm:$0xf]
        %v1492 = vld [vmem:[%s1483 + $0x20] sm:$0xf]
        %v1493 = vld [vmem:[%s1483 + $0x24] sm:$0xf]
        %v1494 = vld [vmem:[%s1483 + $0x28] sm:$0xf]
        %v1495 = vld [vmem:[%s1483 + $0x2c] sm:$0xf]
        %v1496 = vld [vmem:[%s1483 + $0x30] sm:$0xf]
        %v1497 = vld [vmem:[%s1483 + $0x34] sm:$0xf]
        %v1498 = vld [vmem:[%s1483 + $0x38] sm:$0xf]
        %v1499 = vld [vmem:[%s1483 + $0x3c] sm:$0xf]
        %v1516 = vunpack.c.l.b16 %v1484
        %v1517 = vunpack.c.l.b16 %v1485
        %v1518 = vunpack.c.l.b16 %v1486
        %v1519 = vunpack.c.l.b16 %v1487
        %v1520 = vunpack.c.l.b16 %v1488
        %v1521 = vunpack.c.l.b16 %v1489
        %v1522 = vunpack.c.l.b16 %v1490
        %v1523 = vunpack.c.l.b16 %v1491
        %v1524 = vunpack.c.l.b16 %v1492
        %v1525 = vunpack.c.l.b16 %v1493
        %v1526 = vunpack.c.l.b16 %v1494
        %v1527 = vunpack.c.l.b16 %v1495
        %v1528 = vunpack.c.l.b16 %v1496
        %v1529 = vunpack.c.l.b16 %v1497
        %v1530 = vunpack.c.l.b16 %v1498
        %v1531 = vunpack.c.l.b16 %v1499
        %v1532 = vpack.c.b16 %v1517, %v1516
        %v1533 = vpack.c.b16 %v1519, %v1518
        %v1534 = vpack.c.b16 %v1521, %v1520
        %v1535 = vpack.c.b16 %v1523, %v1522
        %v1536 = vpack.c.b16 %v1525, %v1524
        %v1537 = vpack.c.b16 %v1527, %v1526
        %v1538 = vpack.c.b16 %v1529, %v1528
        %v1539 = vpack.c.b16 %v1531, %v1530
        %1548 = vmatprep.subr.bf16.mxu0 0
        %1549 = vmatpush1.bf16.msra.mxu0 %v1532
        %1550 = vmatprep.subr.bf16.mxu0 0
        %1551 = vmatpush1.bf16.msra.mxu0 %v1533
        %1552 = vmatprep.subr.bf16.mxu0 0
        %1553 = vmatpush1.bf16.msra.mxu0 %v1534
        %1554 = vmatprep.subr.bf16.mxu0 0
        %1555 = vmatpush1.bf16.msra.mxu0 %v1535
        %1556 = vmatprep.subr.bf16.mxu0 0
        %1557 = vmatpush1.bf16.msra.mxu0 %v1536
        %1558 = vmatprep.subr.bf16.mxu0 0
        %1559 = vmatpush1.bf16.msra.mxu0 %v1537
        %1560 = vmatprep.subr.bf16.mxu0 0
        %1561 = vmatpush1.bf16.msra.mxu0 %v1538
        %1562 = vmatprep.subr.bf16.mxu0 0
        %1563 = vmatpush1.bf16.msra.mxu0 %v1539
        %1564 = vmatprep.subr.bf16.mxu0 0
        %1565 = vmatpush1.bf16.msra.mxu0 0
        %1566 = vmatprep.subr.bf16.mxu0 0
        %1567 = vmatpush1.bf16.msra.mxu0 0
        %1568 = vmatprep.subr.bf16.mxu0 0
        %1569 = vmatpush1.bf16.msra.mxu0 0
        %1570 = vmatprep.subr.bf16.mxu0 0
        %1571 = vmatpush1.bf16.msra.mxu0 0
        %1572 = vmatprep.subr.bf16.mxu0 0
        %1573 = vmatpush1.bf16.msra.mxu0 0
        %1574 = vmatprep.subr.bf16.mxu0 0
        %1575 = vmatpush1.bf16.msra.mxu0 0
        %1576 = vmatprep.subr.bf16.mxu0 0
        %1577 = vmatpush1.bf16.msra.mxu0 0
        %1578 = vmatprep.subr.bf16.mxu0 0
        %1579 = vmatpush1.bf16.msra.mxu0 0
        %1580 = vmatprep.mubr.bf16.mxu0 0
        %1581 = vmatmul.mubr.bf16.gmra.mrb[0].mxu0 %v591
        %v1582 = vpop.f32.mrb[0].mxu0
        %v1583 = vadd.f32 0.0, %v1582
        %v1584 = vpop.f32.mrb[0].mxu0
        %v1585 = vpop.f32.mrb[0].mxu0
        %v1586 = vadd.f32 0.0, %v1585
        %v1587 = vpop.f32.mrb[0].mxu0
        %1588 = vmatprep.mubr.bf16.mxu0 0
        %1589 = vmatmul.mubr.bf16.gmra.mrb[0].mxu0 %v592
        %v1590 = vpop.f32.mrb[0].mxu0
        %v1591 = vadd.f32 0.0, %v1590
        %v1592 = vpop.f32.mrb[0].mxu0
        %v1593 = vpop.f32.mrb[0].mxu0
        %v1594 = vadd.f32 0.0, %v1593
        %v1595 = vpop.f32.mrb[0].mxu0
        %1596 = vmatprep.mubr.bf16.mxu0 0
        %1597 = vmatmul.mubr.bf16.gmra.mrb[0].mxu0 %v593
        %v1598 = vpop.f32.mrb[0].mxu0
        %v1599 = vadd.f32 0.0, %v1598
        %v1600 = vpop.f32.mrb[0].mxu0
        %v1601 = vpop.f32.mrb[0].mxu0
        %v1602 = vadd.f32 0.0, %v1601
        %v1603 = vpop.f32.mrb[0].mxu0
        %1604 = vmatprep.mubr.bf16.mxu0 0
        %1605 = vmatmul.mubr.bf16.gmra.mrb[0].mxu0 %v594
        %v1606 = vpop.f32.mrb[0].mxu0
        %v1607 = vadd.f32 0.0, %v1606
        %v1608 = vpop.f32.mrb[0].mxu0
        %v1609 = vpop.f32.mrb[0].mxu0
        %v1610 = vadd.f32 0.0, %v1609
        %v1611 = vpop.f32.mrb[0].mxu0
        %1612 = vmatprep.mubr.bf16.mxu0 0
        %1613 = vmatmul.mubr.bf16.gmra.mrb[0].mxu0 %v595
        %v1614 = vpop.f32.mrb[0].mxu0
        %v1615 = vadd.f32 0.0, %v1614
        %v1616 = vpop.f32.mrb[0].mxu0
        %v1617 = vpop.f32.mrb[0].mxu0
        %v1618 = vadd.f32 0.0, %v1617
        %v1619 = vpop.f32.mrb[0].mxu0
        %1620 = vmatprep.mubr.bf16.mxu0 0
        %1621 = vmatmul.mubr.bf16.gmra.mrb[0].mxu0 %v596
        %v1622 = vpop.f32.mrb[0].mxu0
        %v1623 = vadd.f32 0.0, %v1622
        %v1624 = vpop.f32.mrb[0].mxu0
        %v1625 = vpop.f32.mrb[0].mxu0
        %v1626 = vadd.f32 0.0, %v1625
        %v1627 = vpop.f32.mrb[0].mxu0
        %1628 = vmatprep.mubr.bf16.mxu0 0
        %1629 = vmatmul.mubr.bf16.gmra.mrb[0].mxu0 %v597
        %v1630 = vpop.f32.mrb[0].mxu0
        %v1631 = vadd.f32 0.0, %v1630
        %v1632 = vpop.f32.mrb[0].mxu0
        %v1633 = vpop.f32.mrb[0].mxu0
        %v1634 = vadd.f32 0.0, %v1633
        %v1635 = vpop.f32.mrb[0].mxu0
        %1636 = vmatprep.mubr.bf16.mxu0 0
        %1637 = vmatmul.mubr.bf16.gmra.mrb[0].mxu0 %v598
        %v1638 = vpop.f32.mrb[0].mxu0
        %v1639 = vadd.f32 0.0, %v1638
        %v1640 = vpop.f32.mrb[0].mxu0
        %v1641 = vpop.f32.mrb[0].mxu0
        %v1642 = vadd.f32 0.0, %v1641
        %v1643 = vpop.f32.mrb[0].mxu0
        %1644 = vmatprep.mubr.bf16.mxu0 0
        %1645 = vmatmul.mubr.bf16.gmra.mrb[0].mxu0 %v599
        %v1646 = vpop.f32.mrb[0].mxu0
        %v1647 = vadd.f32 0.0, %v1646
        %v1648 = vpop.f32.mrb[0].mxu0
        %v1649 = vpop.f32.mrb[0].mxu0
        %v1650 = vadd.f32 0.0, %v1649
        %v1651 = vpop.f32.mrb[0].mxu0
        %1652 = vmatprep.mubr.bf16.mxu0 0
        %1653 = vmatmul.mubr.bf16.gmra.mrb[0].mxu0 %v600
        %v1654 = vpop.f32.mrb[0].mxu0
        %v1655 = vadd.f32 0.0, %v1654
        %v1656 = vpop.f32.mrb[0].mxu0
        %v1657 = vpop.f32.mrb[0].mxu0
        %v1658 = vadd.f32 0.0, %v1657
        %v1659 = vpop.f32.mrb[0].mxu0
        %1660 = vmatprep.mubr.bf16.mxu0 0
        %1661 = vmatmul.mubr.bf16.gmra.mrb[0].mxu0 %v601
        %v1662 = vpop.f32.mrb[0].mxu0
        %v1663 = vadd.f32 0.0, %v1662
        %v1664 = vpop.f32.mrb[0].mxu0
        %v1665 = vpop.f32.mrb[0].mxu0
        %v1666 = vadd.f32 0.0, %v1665
        %v1667 = vpop.f32.mrb[0].mxu0
        %1668 = vmatprep.mubr.bf16.mxu0 0
        %1669 = vmatmul.mubr.bf16.gmra.mrb[0].mxu0 %v602
        %v1670 = vpop.f32.mrb[0].mxu0
        %v1671 = vadd.f32 0.0, %v1670
        %v1672 = vpop.f32.mrb[0].mxu0
        %v1673 = vpop.f32.mrb[0].mxu0
        %v1674 = vadd.f32 0.0, %v1673
        %v1675 = vpop.f32.mrb[0].mxu0
        %1676 = vmatprep.mubr.bf16.mxu0 0
        %1677 = vmatmul.mubr.bf16.gmra.mrb[0].mxu0 %v603
        %v1678 = vpop.f32.mrb[0].mxu0
        %v1679 = vadd.f32 0.0, %v1678
        %v1680 = vpop.f32.mrb[0].mxu0
        %v1681 = vpop.f32.mrb[0].mxu0
        %v1682 = vadd.f32 0.0, %v1681
        %v1683 = vpop.f32.mrb[0].mxu0
        %1684 = vmatprep.mubr.bf16.mxu0 0
        %1685 = vmatmul.mubr.bf16.gmra.mrb[0].mxu0 %v604
        %v1686 = vpop.f32.mrb[0].mxu0
        %v1687 = vadd.f32 0.0, %v1686
        %v1688 = vpop.f32.mrb[0].mxu0
        %v1689 = vpop.f32.mrb[0].mxu0
        %v1690 = vadd.f32 0.0, %v1689
        %v1691 = vpop.f32.mrb[0].mxu0
        %1692 = vmatprep.mubr.bf16.mxu0 0
        %1693 = vmatmul.mubr.bf16.gmra.mrb[0].mxu0 %v605
        %v1694 = vpop.f32.mrb[0].mxu0
        %v1695 = vadd.f32 0.0, %v1694
        %v1696 = vpop.f32.mrb[0].mxu0
        %v1697 = vpop.f32.mrb[0].mxu0
        %v1698 = vadd.f32 0.0, %v1697
        %v1699 = vpop.f32.mrb[0].mxu0
        %1700 = vmatprep.mubr.bf16.mxu0 0
        %1701 = vmatmul.mubr.bf16.gmra.mrb[0].mxu0 %v606
        %v1702 = vpop.f32.mrb[0].mxu0
        %v1703 = vadd.f32 0.0, %v1702
        %v1704 = vpop.f32.mrb[0].mxu0
        %v1705 = vpop.f32.mrb[0].mxu0
        %v1706 = vadd.f32 0.0, %v1705
        %v1707 = vpop.f32.mrb[0].mxu0
        %1708 = vdwg.mxu0
        %v1709 = vadd.f32 %v1451, %v1583
        %v1710 = vadd.f32 %v1452, %v1586
        %v1711 = vadd.f32 %v1453, %v1591
        %v1712 = vadd.f32 %v1454, %v1594
        %v1713 = vadd.f32 %v1455, %v1599
        %v1714 = vadd.f32 %v1456, %v1602
        %v1715 = vadd.f32 %v1457, %v1607
        %v1716 = vadd.f32 %v1458, %v1610
        %v1717 = vadd.f32 %v1459, %v1615
        %v1718 = vadd.f32 %v1460, %v1618
        %v1719 = vadd.f32 %v1461, %v1623
        %v1720 = vadd.f32 %v1462, %v1626
        %v1721 = vadd.f32 %v1463, %v1631
        %v1722 = vadd.f32 %v1464, %v1634
        %v1723 = vadd.f32 %v1465, %v1639
        %v1724 = vadd.f32 %v1466, %v1642
        %v1725 = vadd.f32 %v1467, %v1647
        %v1726 = vadd.f32 %v1468, %v1650
        %v1727 = vadd.f32 %v1469, %v1655
        %v1728 = vadd.f32 %v1470, %v1658
        %v1729 = vadd.f32 %v1471, %v1663
        %v1730 = vadd.f32 %v1472, %v1666
        %v1731 = vadd.f32 %v1473, %v1671
        %v1732 = vadd.f32 %v1474, %v1674
        %v1733 = vadd.f32 %v1475, %v1679
        %v1734 = vadd.f32 %v1476, %v1682
        %v1735 = vadd.f32 %v1477, %v1687
        %v1736 = vadd.f32 %v1478, %v1690
        %v1737 = vadd.f32 %v1479, %v1695
        %v1738 = vadd.f32 %v1480, %v1698
        %v1739 = vadd.f32 %v1481, %v1703
        %v1740 = vadd.f32 %v1482, %v1706
        %s1741 = scalar_lea.vmem %s1, 256
        %v1742 = vld [vmem:[%s1741] sm:$0xf]
        %v1743 = vld [vmem:[%s1741 + $0x4] sm:$0xf]
        %v1744 = vld [vmem:[%s1741 + $0x8] sm:$0xf]
        %v1745 = vld [vmem:[%s1741 + $0xc] sm:$0xf]
        %v1746 = vld [vmem:[%s1741 + $0x10] sm:$0xf]
        %v1747 = vld [vmem:[%s1741 + $0x14] sm:$0xf]
        %v1748 = vld [vmem:[%s1741 + $0x18] sm:$0xf]
        %v1749 = vld [vmem:[%s1741 + $0x1c] sm:$0xf]
        %v1750 = vld [vmem:[%s1741 + $0x20] sm:$0xf]
        %v1751 = vld [vmem:[%s1741 + $0x24] sm:$0xf]
        %v1752 = vld [vmem:[%s1741 + $0x28] sm:$0xf]
        %v1753 = vld [vmem:[%s1741 + $0x2c] sm:$0xf]
        %v1754 = vld [vmem:[%s1741 + $0x30] sm:$0xf]
        %v1755 = vld [vmem:[%s1741 + $0x34] sm:$0xf]
        %v1756 = vld [vmem:[%s1741 + $0x38] sm:$0xf]
        %v1757 = vld [vmem:[%s1741 + $0x3c] sm:$0xf]
        %v1774 = vunpack.c.l.b16 %v1742
        %v1775 = vunpack.c.l.b16 %v1743
        %v1776 = vunpack.c.l.b16 %v1744
        %v1777 = vunpack.c.l.b16 %v1745
        %v1778 = vunpack.c.l.b16 %v1746
        %v1779 = vunpack.c.l.b16 %v1747
        %v1780 = vunpack.c.l.b16 %v1748
        %v1781 = vunpack.c.l.b16 %v1749
        %v1782 = vunpack.c.l.b16 %v1750
        %v1783 = vunpack.c.l.b16 %v1751
        %v1784 = vunpack.c.l.b16 %v1752
        %v1785 = vunpack.c.l.b16 %v1753
        %v1786 = vunpack.c.l.b16 %v1754
        %v1787 = vunpack.c.l.b16 %v1755
        %v1788 = vunpack.c.l.b16 %v1756
        %v1789 = vunpack.c.l.b16 %v1757
        %v1790 = vpack.c.b16 %v1775, %v1774
        %v1791 = vpack.c.b16 %v1777, %v1776
        %v1792 = vpack.c.b16 %v1779, %v1778
        %v1793 = vpack.c.b16 %v1781, %v1780
        %v1794 = vpack.c.b16 %v1783, %v1782
        %v1795 = vpack.c.b16 %v1785, %v1784
        %v1796 = vpack.c.b16 %v1787, %v1786
        %v1797 = vpack.c.b16 %v1789, %v1788
        %1806 = vmatprep.subr.bf16.mxu0 0
        %1807 = vmatpush1.bf16.msra.mxu0 %v1790
        %1808 = vmatprep.subr.bf16.mxu0 0
        %1809 = vmatpush1.bf16.msra.mxu0 %v1791
        %1810 = vmatprep.subr.bf16.mxu0 0
        %1811 = vmatpush1.bf16.msra.mxu0 %v1792
        %1812 = vmatprep.subr.bf16.mxu0 0
        %1813 = vmatpush1.bf16.msra.mxu0 %v1793
        %1814 = vmatprep.subr.bf16.mxu0 0
        %1815 = vmatpush1.bf16.msra.mxu0 %v1794
        %1816 = vmatprep.subr.bf16.mxu0 0
        %1817 = vmatpush1.bf16.msra.mxu0 %v1795
        %1818 = vmatprep.subr.bf16.mxu0 0
        %1819 = vmatpush1.bf16.msra.mxu0 %v1796
        %1820 = vmatprep.subr.bf16.mxu0 0
        %1821 = vmatpush1.bf16.msra.mxu0 %v1797
        %1822 = vmatprep.subr.bf16.mxu0 0
        %1823 = vmatpush1.bf16.msra.mxu0 0
        %1824 = vmatprep.subr.bf16.mxu0 0
        %1825 = vmatpush1.bf16.msra.mxu0 0
        %1826 = vmatprep.subr.bf16.mxu0 0
        %1827 = vmatpush1.bf16.msra.mxu0 0
        %1828 = vmatprep.subr.bf16.mxu0 0
        %1829 = vmatpush1.bf16.msra.mxu0 0
        %1830 = vmatprep.subr.bf16.mxu0 0
        %1831 = vmatpush1.bf16.msra.mxu0 0
        %1832 = vmatprep.subr.bf16.mxu0 0
        %1833 = vmatpush1.bf16.msra.mxu0 0
        %1834 = vmatprep.subr.bf16.mxu0 0
        %1835 = vmatpush1.bf16.msra.mxu0 0
        %1836 = vmatprep.subr.bf16.mxu0 0
        %1837 = vmatpush1.bf16.msra.mxu0 0
        %1838 = vmatprep.mubr.bf16.mxu0 0
        %1839 = vmatmul.mubr.bf16.gmra.mrb[0].mxu0 %v592
        %v1840 = vpop.f32.mrb[0].mxu0
        %v1841 = vadd.f32 0.0, %v1840
        %v1842 = vpop.f32.mrb[0].mxu0
        %v1843 = vpop.f32.mrb[0].mxu0
        %v1844 = vadd.f32 0.0, %v1843
        %v1845 = vpop.f32.mrb[0].mxu0
        %1846 = vmatprep.mubr.bf16.mxu0 0
        %1847 = vmatmul.mubr.bf16.gmra.mrb[0].mxu0 %v593
        %v1848 = vpop.f32.mrb[0].mxu0
        %v1849 = vadd.f32 0.0, %v1848
        %v1850 = vpop.f32.mrb[0].mxu0
        %v1851 = vpop.f32.mrb[0].mxu0
        %v1852 = vadd.f32 0.0, %v1851
        %v1853 = vpop.f32.mrb[0].mxu0
        %1854 = vmatprep.mubr.bf16.mxu0 0
        %1855 = vmatmul.mubr.bf16.gmra.mrb[0].mxu0 %v594
        %v1856 = vpop.f32.mrb[0].mxu0
        %v1857 = vadd.f32 0.0, %v1856
        %v1858 = vpop.f32.mrb[0].mxu0
        %v1859 = vpop.f32.mrb[0].mxu0
        %v1860 = vadd.f32 0.0, %v1859
        %v1861 = vpop.f32.mrb[0].mxu0
        %1862 = vmatprep.mubr.bf16.mxu0 0
        %1863 = vmatmul.mubr.bf16.gmra.mrb[0].mxu0 %v595
        %v1864 = vpop.f32.mrb[0].mxu0
        %v1865 = vadd.f32 0.0, %v1864
        %v1866 = vpop.f32.mrb[0].mxu0
        %v1867 = vpop.f32.mrb[0].mxu0
        %v1868 = vadd.f32 0.0, %v1867
        %v1869 = vpop.f32.mrb[0].mxu0
        %1870 = vmatprep.mubr.bf16.mxu0 0
        %1871 = vmatmul.mubr.bf16.gmra.mrb[0].mxu0 %v596
        %v1872 = vpop.f32.mrb[0].mxu0
        %v1873 = vadd.f32 0.0, %v1872
        %v1874 = vpop.f32.mrb[0].mxu0
        %v1875 = vpop.f32.mrb[0].mxu0
        %v1876 = vadd.f32 0.0, %v1875
        %v1877 = vpop.f32.mrb[0].mxu0
        %1878 = vmatprep.mubr.bf16.mxu0 0
        %1879 = vmatmul.mubr.bf16.gmra.mrb[0].mxu0 %v597
        %v1880 = vpop.f32.mrb[0].mxu0
        %v1881 = vadd.f32 0.0, %v1880
        %v1882 = vpop.f32.mrb[0].mxu0
        %v1883 = vpop.f32.mrb[0].mxu0
        %v1884 = vadd.f32 0.0, %v1883
        %v1885 = vpop.f32.mrb[0].mxu0
        %1886 = vmatprep.mubr.bf16.mxu0 0
        %1887 = vmatmul.mubr.bf16.gmra.mrb[0].mxu0 %v598
        %v1888 = vpop.f32.mrb[0].mxu0
        %v1889 = vadd.f32 0.0, %v1888
        %v1890 = vpop.f32.mrb[0].mxu0
        %v1891 = vpop.f32.mrb[0].mxu0
        %v1892 = vadd.f32 0.0, %v1891
        %v1893 = vpop.f32.mrb[0].mxu0
        %1894 = vmatprep.mubr.bf16.mxu0 0
        %1895 = vmatmul.mubr.bf16.gmra.mrb[0].mxu0 %v599
        %v1896 = vpop.f32.mrb[0].mxu0
        %v1897 = vadd.f32 0.0, %v1896
        %v1898 = vpop.f32.mrb[0].mxu0
        %v1899 = vpop.f32.mrb[0].mxu0
        %v1900 = vadd.f32 0.0, %v1899
        %v1901 = vpop.f32.mrb[0].mxu0
        %1902 = vmatprep.mubr.bf16.mxu0 0
        %1903 = vmatmul.mubr.bf16.gmra.mrb[0].mxu0 %v600
        %v1904 = vpop.f32.mrb[0].mxu0
        %v1905 = vadd.f32 0.0, %v1904
        %v1906 = vpop.f32.mrb[0].mxu0
        %v1907 = vpop.f32.mrb[0].mxu0
        %v1908 = vadd.f32 0.0, %v1907
        %v1909 = vpop.f32.mrb[0].mxu0
        %1910 = vmatprep.mubr.bf16.mxu0 0
        %1911 = vmatmul.mubr.bf16.gmra.mrb[0].mxu0 %v601
        %v1912 = vpop.f32.mrb[0].mxu0
        %v1913 = vadd.f32 0.0, %v1912
        %v1914 = vpop.f32.mrb[0].mxu0
        %v1915 = vpop.f32.mrb[0].mxu0
        %v1916 = vadd.f32 0.0, %v1915
        %v1917 = vpop.f32.mrb[0].mxu0
        %1918 = vmatprep.mubr.bf16.mxu0 0
        %1919 = vmatmul.mubr.bf16.gmra.mrb[0].mxu0 %v602
        %v1920 = vpop.f32.mrb[0].mxu0
        %v1921 = vadd.f32 0.0, %v1920
        %v1922 = vpop.f32.mrb[0].mxu0
        %v1923 = vpop.f32.mrb[0].mxu0
        %v1924 = vadd.f32 0.0, %v1923
        %v1925 = vpop.f32.mrb[0].mxu0
        %1926 = vmatprep.mubr.bf16.mxu0 0
        %1927 = vmatmul.mubr.bf16.gmra.mrb[0].mxu0 %v603
        %v1928 = vpop.f32.mrb[0].mxu0
        %v1929 = vadd.f32 0.0, %v1928
        %v1930 = vpop.f32.mrb[0].mxu0
        %v1931 = vpop.f32.mrb[0].mxu0
        %v1932 = vadd.f32 0.0, %v1931
        %v1933 = vpop.f32.mrb[0].mxu0
        %1934 = vmatprep.mubr.bf16.mxu0 0
        %1935 = vmatmul.mubr.bf16.gmra.mrb[0].mxu0 %v604
        %v1936 = vpop.f32.mrb[0].mxu0
        %v1937 = vadd.f32 0.0, %v1936
        %v1938 = vpop.f32.mrb[0].mxu0
        %v1939 = vpop.f32.mrb[0].mxu0
        %v1940 = vadd.f32 0.0, %v1939
        %v1941 = vpop.f32.mrb[0].mxu0
        %1942 = vmatprep.mubr.bf16.mxu0 0
        %1943 = vmatmul.mubr.bf16.gmra.mrb[0].mxu0 %v605
        %v1944 = vpop.f32.mrb[0].mxu0
        %v1945 = vadd.f32 0.0, %v1944
        %v1946 = vpop.f32.mrb[0].mxu0
        %v1947 = vpop.f32.mrb[0].mxu0
        %v1948 = vadd.f32 0.0, %v1947
        %v1949 = vpop.f32.mrb[0].mxu0
        %1950 = vmatprep.mubr.bf16.mxu0 0
        %1951 = vmatmul.mubr.bf16.gmra.mrb[0].mxu0 %v606
        %v1952 = vpop.f32.mrb[0].mxu0
        %v1953 = vadd.f32 0.0, %v1952
        %v1954 = vpop.f32.mrb[0].mxu0
        %v1955 = vpop.f32.mrb[0].mxu0
        %v1956 = vadd.f32 0.0, %v1955
        %v1957 = vpop.f32.mrb[0].mxu0
        %1958 = vmatprep.mubr.bf16.mxu0 0
        %1959 = vmatmul.mubr.bf16.gmra.mrb[0].mxu0 %v607
        %v1960 = vpop.f32.mrb[0].mxu0
        %v1961 = vadd.f32 0.0, %v1960
        %v1962 = vpop.f32.mrb[0].mxu0
        %v1963 = vpop.f32.mrb[0].mxu0
        %v1964 = vadd.f32 0.0, %v1963
        %v1965 = vpop.f32.mrb[0].mxu0
        %1966 = vdwg.mxu0
        %v1967 = vadd.f32 %v1709, %v1841
        %v1968 = vadd.f32 %v1710, %v1844
        %v1969 = vadd.f32 %v1711, %v1849
        %v1970 = vadd.f32 %v1712, %v1852
        %v1971 = vadd.f32 %v1713, %v1857
        %v1972 = vadd.f32 %v1714, %v1860
        %v1973 = vadd.f32 %v1715, %v1865
        %v1974 = vadd.f32 %v1716, %v1868
        %v1975 = vadd.f32 %v1717, %v1873
        %v1976 = vadd.f32 %v1718, %v1876
        %v1977 = vadd.f32 %v1719, %v1881
        %v1978 = vadd.f32 %v1720, %v1884
        %v1979 = vadd.f32 %v1721, %v1889
        %v1980 = vadd.f32 %v1722, %v1892
        %v1981 = vadd.f32 %v1723, %v1897
        %v1982 = vadd.f32 %v1724, %v1900
        %v1983 = vadd.f32 %v1725, %v1905
        %v1984 = vadd.f32 %v1726, %v1908
        %v1985 = vadd.f32 %v1727, %v1913
        %v1986 = vadd.f32 %v1728, %v1916
        %v1987 = vadd.f32 %v1729, %v1921
        %v1988 = vadd.f32 %v1730, %v1924
        %v1989 = vadd.f32 %v1731, %v1929
        %v1990 = vadd.f32 %v1732, %v1932
        %v1991 = vadd.f32 %v1733, %v1937
        %v1992 = vadd.f32 %v1734, %v1940
        %v1993 = vadd.f32 %v1735, %v1945
        %v1994 = vadd.f32 %v1736, %v1948
        %v1995 = vadd.f32 %v1737, %v1953
        %v1996 = vadd.f32 %v1738, %v1956
        %v1997 = vadd.f32 %v1739, %v1961
        %v1998 = vadd.f32 %v1740, %v1964
        %s1999 = scalar_lea.vmem %s1, 448
        %v2000 = vld [vmem:[%s1999] sm:$0xf]
        %v2001 = vld [vmem:[%s1999 + $0x4] sm:$0xf]
        %v2002 = vld [vmem:[%s1999 + $0x8] sm:$0xf]
        %v2003 = vld [vmem:[%s1999 + $0xc] sm:$0xf]
        %v2004 = vld [vmem:[%s1999 + $0x10] sm:$0xf]
        %v2005 = vld [vmem:[%s1999 + $0x14] sm:$0xf]
        %v2006 = vld [vmem:[%s1999 + $0x18] sm:$0xf]
        %v2007 = vld [vmem:[%s1999 + $0x1c] sm:$0xf]
        %v2008 = vld [vmem:[%s1999 + $0x20] sm:$0xf]
        %v2009 = vld [vmem:[%s1999 + $0x24] sm:$0xf]
        %v2010 = vld [vmem:[%s1999 + $0x28] sm:$0xf]
        %v2011 = vld [vmem:[%s1999 + $0x2c] sm:$0xf]
        %v2012 = vld [vmem:[%s1999 + $0x30] sm:$0xf]
        %v2013 = vld [vmem:[%s1999 + $0x34] sm:$0xf]
        %v2014 = vld [vmem:[%s1999 + $0x38] sm:$0xf]
        %v2015 = vld [vmem:[%s1999 + $0x3c] sm:$0xf]
        %v2032 = vunpack.c.l.b16 %v2000
        %v2033 = vunpack.c.l.b16 %v2001
        %v2034 = vunpack.c.l.b16 %v2002
        %v2035 = vunpack.c.l.b16 %v2003
        %v2036 = vunpack.c.l.b16 %v2004
        %v2037 = vunpack.c.l.b16 %v2005
        %v2038 = vunpack.c.l.b16 %v2006
        %v2039 = vunpack.c.l.b16 %v2007
        %v2040 = vunpack.c.l.b16 %v2008
        %v2041 = vunpack.c.l.b16 %v2009
        %v2042 = vunpack.c.l.b16 %v2010
        %v2043 = vunpack.c.l.b16 %v2011
        %v2044 = vunpack.c.l.b16 %v2012
        %v2045 = vunpack.c.l.b16 %v2013
        %v2046 = vunpack.c.l.b16 %v2014
        %v2047 = vunpack.c.l.b16 %v2015
        %v2048 = vpack.c.b16 %v2033, %v2032
        %v2049 = vpack.c.b16 %v2035, %v2034
        %v2050 = vpack.c.b16 %v2037, %v2036
        %v2051 = vpack.c.b16 %v2039, %v2038
        %v2052 = vpack.c.b16 %v2041, %v2040
        %v2053 = vpack.c.b16 %v2043, %v2042
        %v2054 = vpack.c.b16 %v2045, %v2044
        %v2055 = vpack.c.b16 %v2047, %v2046
        %2064 = vmatprep.subr.bf16.mxu0 0
        %2065 = vmatpush1.bf16.msra.mxu0 %v2048
        %2066 = vmatprep.subr.bf16.mxu0 0
        %2067 = vmatpush1.bf16.msra.mxu0 %v2049
        %2068 = vmatprep.subr.bf16.mxu0 0
        %2069 = vmatpush1.bf16.msra.mxu0 %v2050
        %2070 = vmatprep.subr.bf16.mxu0 0
        %2071 = vmatpush1.bf16.msra.mxu0 %v2051
        %2072 = vmatprep.subr.bf16.mxu0 0
        %2073 = vmatpush1.bf16.msra.mxu0 %v2052
        %2074 = vmatprep.subr.bf16.mxu0 0
        %2075 = vmatpush1.bf16.msra.mxu0 %v2053
        %2076 = vmatprep.subr.bf16.mxu0 0
        %2077 = vmatpush1.bf16.msra.mxu0 %v2054
        %2078 = vmatprep.subr.bf16.mxu0 0
        %2079 = vmatpush1.bf16.msra.mxu0 %v2055
        %2080 = vmatprep.subr.bf16.mxu0 0
        %2081 = vmatpush1.bf16.msra.mxu0 0
        %2082 = vmatprep.subr.bf16.mxu0 0
        %2083 = vmatpush1.bf16.msra.mxu0 0
        %2084 = vmatprep.subr.bf16.mxu0 0
        %2085 = vmatpush1.bf16.msra.mxu0 0
        %2086 = vmatprep.subr.bf16.mxu0 0
        %2087 = vmatpush1.bf16.msra.mxu0 0
        %2088 = vmatprep.subr.bf16.mxu0 0
        %2089 = vmatpush1.bf16.msra.mxu0 0
        %2090 = vmatprep.subr.bf16.mxu0 0
        %2091 = vmatpush1.bf16.msra.mxu0 0
        %2092 = vmatprep.subr.bf16.mxu0 0
        %2093 = vmatpush1.bf16.msra.mxu0 0
        %2094 = vmatprep.subr.bf16.mxu0 0
        %2095 = vmatpush1.bf16.msra.mxu0 0
        %2096 = vmatprep.mubr.bf16.mxu0 0
        %2097 = vmatmul.mubr.bf16.gmra.mrb[0].mxu0 %v593
        %v2098 = vpop.f32.mrb[0].mxu0
        %v2099 = vadd.f32 0.0, %v2098
        %v2100 = vpop.f32.mrb[0].mxu0
        %v2101 = vpop.f32.mrb[0].mxu0
        %v2102 = vadd.f32 0.0, %v2101
        %v2103 = vpop.f32.mrb[0].mxu0
        %2104 = vmatprep.mubr.bf16.mxu0 0
        %2105 = vmatmul.mubr.bf16.gmra.mrb[0].mxu0 %v594
        %v2106 = vpop.f32.mrb[0].mxu0
        %v2107 = vadd.f32 0.0, %v2106
        %v2108 = vpop.f32.mrb[0].mxu0
        %v2109 = vpop.f32.mrb[0].mxu0
        %v2110 = vadd.f32 0.0, %v2109
        %v2111 = vpop.f32.mrb[0].mxu0
        %2112 = vmatprep.mubr.bf16.mxu0 0
        %2113 = vmatmul.mubr.bf16.gmra.mrb[0].mxu0 %v595
        %v2114 = vpop.f32.mrb[0].mxu0
        %v2115 = vadd.f32 0.0, %v2114
        %v2116 = vpop.f32.mrb[0].mxu0
        %v2117 = vpop.f32.mrb[0].mxu0
        %v2118 = vadd.f32 0.0, %v2117
        %v2119 = vpop.f32.mrb[0].mxu0
        %2120 = vmatprep.mubr.bf16.mxu0 0
        %2121 = vmatmul.mubr.bf16.gmra.mrb[0].mxu0 %v596
        %v2122 = vpop.f32.mrb[0].mxu0
        %v2123 = vadd.f32 0.0, %v2122
        %v2124 = vpop.f32.mrb[0].mxu0
        %v2125 = vpop.f32.mrb[0].mxu0
        %v2126 = vadd.f32 0.0, %v2125
        %v2127 = vpop.f32.mrb[0].mxu0
        %2128 = vmatprep.mubr.bf16.mxu0 0
        %2129 = vmatmul.mubr.bf16.gmra.mrb[0].mxu0 %v597
        %v2130 = vpop.f32.mrb[0].mxu0
        %v2131 = vadd.f32 0.0, %v2130
        %v2132 = vpop.f32.mrb[0].mxu0
        %v2133 = vpop.f32.mrb[0].mxu0
        %v2134 = vadd.f32 0.0, %v2133
        %v2135 = vpop.f32.mrb[0].mxu0
        %2136 = vmatprep.mubr.bf16.mxu0 0
        %2137 = vmatmul.mubr.bf16.gmra.mrb[0].mxu0 %v598
        %v2138 = vpop.f32.mrb[0].mxu0
        %v2139 = vadd.f32 0.0, %v2138
        %v2140 = vpop.f32.mrb[0].mxu0
        %v2141 = vpop.f32.mrb[0].mxu0
        %v2142 = vadd.f32 0.0, %v2141
        %v2143 = vpop.f32.mrb[0].mxu0
        %2144 = vmatprep.mubr.bf16.mxu0 0
        %2145 = vmatmul.mubr.bf16.gmra.mrb[0].mxu0 %v599
        %v2146 = vpop.f32.mrb[0].mxu0
        %v2147 = vadd.f32 0.0, %v2146
        %v2148 = vpop.f32.mrb[0].mxu0
        %v2149 = vpop.f32.mrb[0].mxu0
        %v2150 = vadd.f32 0.0, %v2149
        %v2151 = vpop.f32.mrb[0].mxu0
        %2152 = vmatprep.mubr.bf16.mxu0 0
        %2153 = vmatmul.mubr.bf16.gmra.mrb[0].mxu0 %v600
        %v2154 = vpop.f32.mrb[0].mxu0
        %v2155 = vadd.f32 0.0, %v2154
        %v2156 = vpop.f32.mrb[0].mxu0
        %v2157 = vpop.f32.mrb[0].mxu0
        %v2158 = vadd.f32 0.0, %v2157
        %v2159 = vpop.f32.mrb[0].mxu0
        %2160 = vmatprep.mubr.bf16.mxu0 0
        %2161 = vmatmul.mubr.bf16.gmra.mrb[0].mxu0 %v601
        %v2162 = vpop.f32.mrb[0].mxu0
        %v2163 = vadd.f32 0.0, %v2162
        %v2164 = vpop.f32.mrb[0].mxu0
        %v2165 = vpop.f32.mrb[0].mxu0
        %v2166 = vadd.f32 0.0, %v2165
        %v2167 = vpop.f32.mrb[0].mxu0
        %2168 = vmatprep.mubr.bf16.mxu0 0
        %2169 = vmatmul.mubr.bf16.gmra.mrb[0].mxu0 %v602
        %v2170 = vpop.f32.mrb[0].mxu0
        %v2171 = vadd.f32 0.0, %v2170
        %v2172 = vpop.f32.mrb[0].mxu0
        %v2173 = vpop.f32.mrb[0].mxu0
        %v2174 = vadd.f32 0.0, %v2173
        %v2175 = vpop.f32.mrb[0].mxu0
        %2176 = vmatprep.mubr.bf16.mxu0 0
        %2177 = vmatmul.mubr.bf16.gmra.mrb[0].mxu0 %v603
        %v2178 = vpop.f32.mrb[0].mxu0
        %v2179 = vadd.f32 0.0, %v2178
        %v2180 = vpop.f32.mrb[0].mxu0
        %v2181 = vpop.f32.mrb[0].mxu0
        %v2182 = vadd.f32 0.0, %v2181
        %v2183 = vpop.f32.mrb[0].mxu0
        %2184 = vmatprep.mubr.bf16.mxu0 0
        %2185 = vmatmul.mubr.bf16.gmra.mrb[0].mxu0 %v604
        %v2186 = vpop.f32.mrb[0].mxu0
        %v2187 = vadd.f32 0.0, %v2186
        %v2188 = vpop.f32.mrb[0].mxu0
        %v2189 = vpop.f32.mrb[0].mxu0
        %v2190 = vadd.f32 0.0, %v2189
        %v2191 = vpop.f32.mrb[0].mxu0
        %2192 = vmatprep.mubr.bf16.mxu0 0
        %2193 = vmatmul.mubr.bf16.gmra.mrb[0].mxu0 %v605
        %v2194 = vpop.f32.mrb[0].mxu0
        %v2195 = vadd.f32 0.0, %v2194
        %v2196 = vpop.f32.mrb[0].mxu0
        %v2197 = vpop.f32.mrb[0].mxu0
        %v2198 = vadd.f32 0.0, %v2197
        %v2199 = vpop.f32.mrb[0].mxu0
        %2200 = vmatprep.mubr.bf16.mxu0 0
        %2201 = vmatmul.mubr.bf16.gmra.mrb[0].mxu0 %v606
        %v2202 = vpop.f32.mrb[0].mxu0
        %v2203 = vadd.f32 0.0, %v2202
        %v2204 = vpop.f32.mrb[0].mxu0
        %v2205 = vpop.f32.mrb[0].mxu0
        %v2206 = vadd.f32 0.0, %v2205
        %v2207 = vpop.f32.mrb[0].mxu0
        %2208 = vmatprep.mubr.bf16.mxu0 0
        %2209 = vmatmul.mubr.bf16.gmra.mrb[0].mxu0 %v607
        %v2210 = vpop.f32.mrb[0].mxu0
        %v2211 = vadd.f32 0.0, %v2210
        %v2212 = vpop.f32.mrb[0].mxu0
        %v2213 = vpop.f32.mrb[0].mxu0
        %v2214 = vadd.f32 0.0, %v2213
        %v2215 = vpop.f32.mrb[0].mxu0
        %2216 = vmatprep.mubr.bf16.mxu0 0
        %2217 = vmatmul.mubr.bf16.gmra.mrb[0].mxu0 %v608
        %v2218 = vpop.f32.mrb[0].mxu0
        %v2219 = vadd.f32 0.0, %v2218
        %v2220 = vpop.f32.mrb[0].mxu0
        %v2221 = vpop.f32.mrb[0].mxu0
        %v2222 = vadd.f32 0.0, %v2221
        %v2223 = vpop.f32.mrb[0].mxu0
        %2224 = vdwg.mxu0
        %v2225 = vadd.f32 %v1967, %v2099
        %v2226 = vadd.f32 %v1968, %v2102
        %v2227 = vadd.f32 %v1969, %v2107
        %v2228 = vadd.f32 %v1970, %v2110
        %v2229 = vadd.f32 %v1971, %v2115
        %v2230 = vadd.f32 %v1972, %v2118
        %v2231 = vadd.f32 %v1973, %v2123
        %v2232 = vadd.f32 %v1974, %v2126
        %v2233 = vadd.f32 %v1975, %v2131
        %v2234 = vadd.f32 %v1976, %v2134
        %v2235 = vadd.f32 %v1977, %v2139
        %v2236 = vadd.f32 %v1978, %v2142
        %v2237 = vadd.f32 %v1979, %v2147
        %v2238 = vadd.f32 %v1980, %v2150
        %v2239 = vadd.f32 %v1981, %v2155
        %v2240 = vadd.f32 %v1982, %v2158
        %v2241 = vadd.f32 %v1983, %v2163
        %v2242 = vadd.f32 %v1984, %v2166
        %v2243 = vadd.f32 %v1985, %v2171
        %v2244 = vadd.f32 %v1986, %v2174
        %v2245 = vadd.f32 %v1987, %v2179
        %v2246 = vadd.f32 %v1988, %v2182
        %v2247 = vadd.f32 %v1989, %v2187
        %v2248 = vadd.f32 %v1990, %v2190
        %v2249 = vadd.f32 %v1991, %v2195
        %v2250 = vadd.f32 %v1992, %v2198
        %v2251 = vadd.f32 %v1993, %v2203
        %v2252 = vadd.f32 %v1994, %v2206
        %v2253 = vadd.f32 %v1995, %v2211
        %v2254 = vadd.f32 %v1996, %v2214
        %v2255 = vadd.f32 %v1997, %v2219
        %v2256 = vadd.f32 %v1998, %v2222
        %v2257 = vrot.slane %v613, 1
        %v2258 = vor.u32 %v610, %v2257
        %v2259 = vrot.slane %v620, 1
        %v2260 = vor.u32 %v617, %v2259
        %v2261 = vrot.slane %v627, 1
        %v2262 = vor.u32 %v624, %v2261
        %v2263 = vrot.slane %v634, 1
        %v2264 = vor.u32 %v631, %v2263
        %v2265 = vrot.slane %v641, 1
        %v2266 = vor.u32 %v638, %v2265
        %v2267 = vrot.slane %v648, 1
        %v2268 = vor.u32 %v645, %v2267
        %v2269 = vrot.slane %v655, 1
        %v2270 = vor.u32 %v652, %v2269
        %v2271 = vrot.slane %v662, 1
        %v2272 = vor.u32 %v659, %v2271
        %v2273 = vrot.slane %v669, 1
        %v2274 = vor.u32 %v666, %v2273
        %v2275 = vrot.slane %v676, 1
        %v2276 = vor.u32 %v673, %v2275
        %v2277 = vrot.slane %v683, 1
        %v2278 = vor.u32 %v680, %v2277
        %v2279 = vrot.slane %v690, 1
        %v2280 = vor.u32 %v687, %v2279
        %v2281 = vrot.slane %v697, 1
        %v2282 = vor.u32 %v694, %v2281
        %v2283 = vrot.slane %v704, 1
        %v2284 = vor.u32 %v701, %v2283
        %v2285 = vrot.slane %v711, 1
        %v2286 = vor.u32 %v708, %v2285
        %v2287 = vrot.slane %v718, 1
        %v2288 = vor.u32 %v715, %v2287
        %v2289 = vrot.slane %v725, 1
        %v2290 = vor.u32 %v722, %v2289
        %v2291 = vrot.slane %v732, 1
        %v2292 = vor.u32 %v729, %v2291
        %vm2311 = vcmask 1047552
        %vm2312 = vsmask.f32 7424
        %vm2313 = vmand %vm2311, %vm2312
        %v2314 = vsel %vm2313, %v2258, 0
        %v2315 = vsel %vm2313, %v2260, 0
        %v2316 = vsel %vm2313, %v2262, 0
        %v2317 = vsel %vm2313, %v2264, 0
        %v2318 = vsel %vm2313, %v2266, 0
        %v2319 = vsel %vm2313, %v2268, 0
        %v2320 = vsel %vm2313, %v2270, 0
        %v2321 = vsel %vm2313, %v2272, 0
        %v2322 = vsel %vm2313, %v2274, 0
        %v2323 = vsel %vm2313, %v2276, 0
        %v2324 = vsel %vm2313, %v2278, 0
        %v2325 = vsel %vm2313, %v2280, 0
        %v2326 = vsel %vm2313, %v2282, 0
        %v2327 = vsel %vm2313, %v2284, 0
        %v2328 = vsel %vm2313, %v2286, 0
        %v2329 = vsel %vm2313, %v2288, 0
        %v2330 = vsel %vm2313, %v2290, 0
        %v2331 = vsel %vm2313, %v2292, 0
        %s2332 = scalar_lea.vmem %s1, 128
        %v2333 = vld [vmem:[%s2332] sm:$0xf]
        %v2334 = vld [vmem:[%s2332 + $0x4] sm:$0xf]
        %v2335 = vld [vmem:[%s2332 + $0x8] sm:$0xf]
        %v2336 = vld [vmem:[%s2332 + $0xc] sm:$0xf]
        %v2337 = vld [vmem:[%s2332 + $0x10] sm:$0xf]
        %v2338 = vld [vmem:[%s2332 + $0x14] sm:$0xf]
        %v2339 = vld [vmem:[%s2332 + $0x18] sm:$0xf]
        %v2340 = vld [vmem:[%s2332 + $0x1c] sm:$0xf]
        %v2341 = vld [vmem:[%s2332 + $0x20] sm:$0xf]
        %v2342 = vld [vmem:[%s2332 + $0x24] sm:$0xf]
        %v2343 = vld [vmem:[%s2332 + $0x28] sm:$0xf]
        %v2344 = vld [vmem:[%s2332 + $0x2c] sm:$0xf]
        %v2345 = vld [vmem:[%s2332 + $0x30] sm:$0xf]
        %v2346 = vld [vmem:[%s2332 + $0x34] sm:$0xf]
        %v2347 = vld [vmem:[%s2332 + $0x38] sm:$0xf]
        %v2348 = vld [vmem:[%s2332 + $0x3c] sm:$0xf]
        %v2365 = vunpack.c.l.b16 %v2333
        %v2366 = vunpack.c.l.b16 %v2334
        %v2367 = vunpack.c.l.b16 %v2335
        %v2368 = vunpack.c.l.b16 %v2336
        %v2369 = vunpack.c.l.b16 %v2337
        %v2370 = vunpack.c.l.b16 %v2338
        %v2371 = vunpack.c.l.b16 %v2339
        %v2372 = vunpack.c.l.b16 %v2340
        %v2373 = vunpack.c.l.b16 %v2341
        %v2374 = vunpack.c.l.b16 %v2342
        %v2375 = vunpack.c.l.b16 %v2343
        %v2376 = vunpack.c.l.b16 %v2344
        %v2377 = vunpack.c.l.b16 %v2345
        %v2378 = vunpack.c.l.b16 %v2346
        %v2379 = vunpack.c.l.b16 %v2347
        %v2380 = vunpack.c.l.b16 %v2348
        %v2381 = vpack.c.b16 %v2366, %v2365
        %v2382 = vpack.c.b16 %v2368, %v2367
        %v2383 = vpack.c.b16 %v2370, %v2369
        %v2384 = vpack.c.b16 %v2372, %v2371
        %v2385 = vpack.c.b16 %v2374, %v2373
        %v2386 = vpack.c.b16 %v2376, %v2375
        %v2387 = vpack.c.b16 %v2378, %v2377
        %v2388 = vpack.c.b16 %v2380, %v2379
        %2397 = vmatprep.subr.bf16.mxu0 0
        %2398 = vmatpush1.bf16.msra.mxu0 %v2381
        %2399 = vmatprep.subr.bf16.mxu0 0
        %2400 = vmatpush1.bf16.msra.mxu0 %v2382
        %2401 = vmatprep.subr.bf16.mxu0 0
        %2402 = vmatpush1.bf16.msra.mxu0 %v2383
        %2403 = vmatprep.subr.bf16.mxu0 0
        %2404 = vmatpush1.bf16.msra.mxu0 %v2384
        %2405 = vmatprep.subr.bf16.mxu0 0
        %2406 = vmatpush1.bf16.msra.mxu0 %v2385
        %2407 = vmatprep.subr.bf16.mxu0 0
        %2408 = vmatpush1.bf16.msra.mxu0 %v2386
        %2409 = vmatprep.subr.bf16.mxu0 0
        %2410 = vmatpush1.bf16.msra.mxu0 %v2387
        %2411 = vmatprep.subr.bf16.mxu0 0
        %2412 = vmatpush1.bf16.msra.mxu0 %v2388
        %2413 = vmatprep.subr.bf16.mxu0 0
        %2414 = vmatpush1.bf16.msra.mxu0 0
        %2415 = vmatprep.subr.bf16.mxu0 0
        %2416 = vmatpush1.bf16.msra.mxu0 0
        %2417 = vmatprep.subr.bf16.mxu0 0
        %2418 = vmatpush1.bf16.msra.mxu0 0
        %2419 = vmatprep.subr.bf16.mxu0 0
        %2420 = vmatpush1.bf16.msra.mxu0 0
        %2421 = vmatprep.subr.bf16.mxu0 0
        %2422 = vmatpush1.bf16.msra.mxu0 0
        %2423 = vmatprep.subr.bf16.mxu0 0
        %2424 = vmatpush1.bf16.msra.mxu0 0
        %2425 = vmatprep.subr.bf16.mxu0 0
        %2426 = vmatpush1.bf16.msra.mxu0 0
        %2427 = vmatprep.subr.bf16.mxu0 0
        %2428 = vmatpush1.bf16.msra.mxu0 0
        %2429 = vmatprep.mubr.bf16.mxu0 0
        %2430 = vmatmul.mubr.bf16.gmra.mrb[0].mxu0 %v2314
        %v2431 = vpop.f32.mrb[0].mxu0
        %v2432 = vadd.f32 0.0, %v2431
        %v2433 = vpop.f32.mrb[0].mxu0
        %v2434 = vpop.f32.mrb[0].mxu0
        %v2435 = vadd.f32 0.0, %v2434
        %v2436 = vpop.f32.mrb[0].mxu0
        %2437 = vmatprep.mubr.bf16.mxu0 0
        %2438 = vmatmul.mubr.bf16.gmra.mrb[0].mxu0 %v2315
        %v2439 = vpop.f32.mrb[0].mxu0
        %v2440 = vadd.f32 0.0, %v2439
        %v2441 = vpop.f32.mrb[0].mxu0
        %v2442 = vpop.f32.mrb[0].mxu0
        %v2443 = vadd.f32 0.0, %v2442
        %v2444 = vpop.f32.mrb[0].mxu0
        %2445 = vmatprep.mubr.bf16.mxu0 0
        %2446 = vmatmul.mubr.bf16.gmra.mrb[0].mxu0 %v2316
        %v2447 = vpop.f32.mrb[0].mxu0
        %v2448 = vadd.f32 0.0, %v2447
        %v2449 = vpop.f32.mrb[0].mxu0
        %v2450 = vpop.f32.mrb[0].mxu0
        %v2451 = vadd.f32 0.0, %v2450
        %v2452 = vpop.f32.mrb[0].mxu0
        %2453 = vmatprep.mubr.bf16.mxu0 0
        %2454 = vmatmul.mubr.bf16.gmra.mrb[0].mxu0 %v2317
        %v2455 = vpop.f32.mrb[0].mxu0
        %v2456 = vadd.f32 0.0, %v2455
        %v2457 = vpop.f32.mrb[0].mxu0
        %v2458 = vpop.f32.mrb[0].mxu0
        %v2459 = vadd.f32 0.0, %v2458
        %v2460 = vpop.f32.mrb[0].mxu0
        %2461 = vmatprep.mubr.bf16.mxu0 0
        %2462 = vmatmul.mubr.bf16.gmra.mrb[0].mxu0 %v2318
        %v2463 = vpop.f32.mrb[0].mxu0
        %v2464 = vadd.f32 0.0, %v2463
        %v2465 = vpop.f32.mrb[0].mxu0
        %v2466 = vpop.f32.mrb[0].mxu0
        %v2467 = vadd.f32 0.0, %v2466
        %v2468 = vpop.f32.mrb[0].mxu0
        %2469 = vmatprep.mubr.bf16.mxu0 0
        %2470 = vmatmul.mubr.bf16.gmra.mrb[0].mxu0 %v2319
        %v2471 = vpop.f32.mrb[0].mxu0
        %v2472 = vadd.f32 0.0, %v2471
        %v2473 = vpop.f32.mrb[0].mxu0
        %v2474 = vpop.f32.mrb[0].mxu0
        %v2475 = vadd.f32 0.0, %v2474
        %v2476 = vpop.f32.mrb[0].mxu0
        %2477 = vmatprep.mubr.bf16.mxu0 0
        %2478 = vmatmul.mubr.bf16.gmra.mrb[0].mxu0 %v2320
        %v2479 = vpop.f32.mrb[0].mxu0
        %v2480 = vadd.f32 0.0, %v2479
        %v2481 = vpop.f32.mrb[0].mxu0
        %v2482 = vpop.f32.mrb[0].mxu0
        %v2483 = vadd.f32 0.0, %v2482
        %v2484 = vpop.f32.mrb[0].mxu0
        %2485 = vmatprep.mubr.bf16.mxu0 0
        %2486 = vmatmul.mubr.bf16.gmra.mrb[0].mxu0 %v2321
        %v2487 = vpop.f32.mrb[0].mxu0
        %v2488 = vadd.f32 0.0, %v2487
        %v2489 = vpop.f32.mrb[0].mxu0
        %v2490 = vpop.f32.mrb[0].mxu0
        %v2491 = vadd.f32 0.0, %v2490
        %v2492 = vpop.f32.mrb[0].mxu0
        %2493 = vmatprep.mubr.bf16.mxu0 0
        %2494 = vmatmul.mubr.bf16.gmra.mrb[0].mxu0 %v2322
        %v2495 = vpop.f32.mrb[0].mxu0
        %v2496 = vadd.f32 0.0, %v2495
        %v2497 = vpop.f32.mrb[0].mxu0
        %v2498 = vpop.f32.mrb[0].mxu0
        %v2499 = vadd.f32 0.0, %v2498
        %v2500 = vpop.f32.mrb[0].mxu0
        %2501 = vmatprep.mubr.bf16.mxu0 0
        %2502 = vmatmul.mubr.bf16.gmra.mrb[0].mxu0 %v2323
        %v2503 = vpop.f32.mrb[0].mxu0
        %v2504 = vadd.f32 0.0, %v2503
        %v2505 = vpop.f32.mrb[0].mxu0
        %v2506 = vpop.f32.mrb[0].mxu0
        %v2507 = vadd.f32 0.0, %v2506
        %v2508 = vpop.f32.mrb[0].mxu0
        %2509 = vmatprep.mubr.bf16.mxu0 0
        %2510 = vmatmul.mubr.bf16.gmra.mrb[0].mxu0 %v2324
        %v2511 = vpop.f32.mrb[0].mxu0
        %v2512 = vadd.f32 0.0, %v2511
        %v2513 = vpop.f32.mrb[0].mxu0
        %v2514 = vpop.f32.mrb[0].mxu0
        %v2515 = vadd.f32 0.0, %v2514
        %v2516 = vpop.f32.mrb[0].mxu0
        %2517 = vmatprep.mubr.bf16.mxu0 0
        %2518 = vmatmul.mubr.bf16.gmra.mrb[0].mxu0 %v2325
        %v2519 = vpop.f32.mrb[0].mxu0
        %v2520 = vadd.f32 0.0, %v2519
        %v2521 = vpop.f32.mrb[0].mxu0
        %v2522 = vpop.f32.mrb[0].mxu0
        %v2523 = vadd.f32 0.0, %v2522
        %v2524 = vpop.f32.mrb[0].mxu0
        %2525 = vmatprep.mubr.bf16.mxu0 0
        %2526 = vmatmul.mubr.bf16.gmra.mrb[0].mxu0 %v2326
        %v2527 = vpop.f32.mrb[0].mxu0
        %v2528 = vadd.f32 0.0, %v2527
        %v2529 = vpop.f32.mrb[0].mxu0
        %v2530 = vpop.f32.mrb[0].mxu0
        %v2531 = vadd.f32 0.0, %v2530
        %v2532 = vpop.f32.mrb[0].mxu0
        %2533 = vmatprep.mubr.bf16.mxu0 0
        %2534 = vmatmul.mubr.bf16.gmra.mrb[0].mxu0 %v2327
        %v2535 = vpop.f32.mrb[0].mxu0
        %v2536 = vadd.f32 0.0, %v2535
        %v2537 = vpop.f32.mrb[0].mxu0
        %v2538 = vpop.f32.mrb[0].mxu0
        %v2539 = vadd.f32 0.0, %v2538
        %v2540 = vpop.f32.mrb[0].mxu0
        %2541 = vmatprep.mubr.bf16.mxu0 0
        %2542 = vmatmul.mubr.bf16.gmra.mrb[0].mxu0 %v2328
        %v2543 = vpop.f32.mrb[0].mxu0
        %v2544 = vadd.f32 0.0, %v2543
        %v2545 = vpop.f32.mrb[0].mxu0
        %v2546 = vpop.f32.mrb[0].mxu0
        %v2547 = vadd.f32 0.0, %v2546
        %v2548 = vpop.f32.mrb[0].mxu0
        %2549 = vmatprep.mubr.bf16.mxu0 0
        %2550 = vmatmul.mubr.bf16.gmra.mrb[0].mxu0 %v2329
        %v2551 = vpop.f32.mrb[0].mxu0
        %v2552 = vadd.f32 0.0, %v2551
        %v2553 = vpop.f32.mrb[0].mxu0
        %v2554 = vpop.f32.mrb[0].mxu0
        %v2555 = vadd.f32 0.0, %v2554
        %v2556 = vpop.f32.mrb[0].mxu0
        %2557 = vdwg.mxu0
        %v2558 = vadd.f32 %v2225, %v2432
        %v2559 = vadd.f32 %v2226, %v2435
        %v2560 = vadd.f32 %v2227, %v2440
        %v2561 = vadd.f32 %v2228, %v2443
        %v2562 = vadd.f32 %v2229, %v2448
        %v2563 = vadd.f32 %v2230, %v2451
        %v2564 = vadd.f32 %v2231, %v2456
        %v2565 = vadd.f32 %v2232, %v2459
        %v2566 = vadd.f32 %v2233, %v2464
        %v2567 = vadd.f32 %v2234, %v2467
        %v2568 = vadd.f32 %v2235, %v2472
        %v2569 = vadd.f32 %v2236, %v2475
        %v2570 = vadd.f32 %v2237, %v2480
        %v2571 = vadd.f32 %v2238, %v2483
        %v2572 = vadd.f32 %v2239, %v2488
        %v2573 = vadd.f32 %v2240, %v2491
        %v2574 = vadd.f32 %v2241, %v2496
        %v2575 = vadd.f32 %v2242, %v2499
        %v2576 = vadd.f32 %v2243, %v2504
        %v2577 = vadd.f32 %v2244, %v2507
        %v2578 = vadd.f32 %v2245, %v2512
        %v2579 = vadd.f32 %v2246, %v2515
        %v2580 = vadd.f32 %v2247, %v2520
        %v2581 = vadd.f32 %v2248, %v2523
        %v2582 = vadd.f32 %v2249, %v2528
        %v2583 = vadd.f32 %v2250, %v2531
        %v2584 = vadd.f32 %v2251, %v2536
        %v2585 = vadd.f32 %v2252, %v2539
        %v2586 = vadd.f32 %v2253, %v2544
        %v2587 = vadd.f32 %v2254, %v2547
        %v2588 = vadd.f32 %v2255, %v2552
        %v2589 = vadd.f32 %v2256, %v2555
        %s2590 = scalar_lea.vmem %s1, 320
        %v2591 = vld [vmem:[%s2590] sm:$0xf]
        %v2592 = vld [vmem:[%s2590 + $0x4] sm:$0xf]
        %v2593 = vld [vmem:[%s2590 + $0x8] sm:$0xf]
        %v2594 = vld [vmem:[%s2590 + $0xc] sm:$0xf]
        %v2595 = vld [vmem:[%s2590 + $0x10] sm:$0xf]
        %v2596 = vld [vmem:[%s2590 + $0x14] sm:$0xf]
        %v2597 = vld [vmem:[%s2590 + $0x18] sm:$0xf]
        %v2598 = vld [vmem:[%s2590 + $0x1c] sm:$0xf]
        %v2599 = vld [vmem:[%s2590 + $0x20] sm:$0xf]
        %v2600 = vld [vmem:[%s2590 + $0x24] sm:$0xf]
        %v2601 = vld [vmem:[%s2590 + $0x28] sm:$0xf]
        %v2602 = vld [vmem:[%s2590 + $0x2c] sm:$0xf]
        %v2603 = vld [vmem:[%s2590 + $0x30] sm:$0xf]
        %v2604 = vld [vmem:[%s2590 + $0x34] sm:$0xf]
        %v2605 = vld [vmem:[%s2590 + $0x38] sm:$0xf]
        %v2606 = vld [vmem:[%s2590 + $0x3c] sm:$0xf]
        %v2623 = vunpack.c.l.b16 %v2591
        %v2624 = vunpack.c.l.b16 %v2592
        %v2625 = vunpack.c.l.b16 %v2593
        %v2626 = vunpack.c.l.b16 %v2594
        %v2627 = vunpack.c.l.b16 %v2595
        %v2628 = vunpack.c.l.b16 %v2596
        %v2629 = vunpack.c.l.b16 %v2597
        %v2630 = vunpack.c.l.b16 %v2598
        %v2631 = vunpack.c.l.b16 %v2599
        %v2632 = vunpack.c.l.b16 %v2600
        %v2633 = vunpack.c.l.b16 %v2601
        %v2634 = vunpack.c.l.b16 %v2602
        %v2635 = vunpack.c.l.b16 %v2603
        %v2636 = vunpack.c.l.b16 %v2604
        %v2637 = vunpack.c.l.b16 %v2605
        %v2638 = vunpack.c.l.b16 %v2606
        %v2639 = vpack.c.b16 %v2624, %v2623
        %v2640 = vpack.c.b16 %v2626, %v2625
        %v2641 = vpack.c.b16 %v2628, %v2627
        %v2642 = vpack.c.b16 %v2630, %v2629
        %v2643 = vpack.c.b16 %v2632, %v2631
        %v2644 = vpack.c.b16 %v2634, %v2633
        %v2645 = vpack.c.b16 %v2636, %v2635
        %v2646 = vpack.c.b16 %v2638, %v2637
        %2655 = vmatprep.subr.bf16.mxu0 0
        %2656 = vmatpush1.bf16.msra.mxu0 %v2639
        %2657 = vmatprep.subr.bf16.mxu0 0
        %2658 = vmatpush1.bf16.msra.mxu0 %v2640
        %2659 = vmatprep.subr.bf16.mxu0 0
        %2660 = vmatpush1.bf16.msra.mxu0 %v2641
        %2661 = vmatprep.subr.bf16.mxu0 0
        %2662 = vmatpush1.bf16.msra.mxu0 %v2642
        %2663 = vmatprep.subr.bf16.mxu0 0
        %2664 = vmatpush1.bf16.msra.mxu0 %v2643
        %2665 = vmatprep.subr.bf16.mxu0 0
        %2666 = vmatpush1.bf16.msra.mxu0 %v2644
        %2667 = vmatprep.subr.bf16.mxu0 0
        %2668 = vmatpush1.bf16.msra.mxu0 %v2645
        %2669 = vmatprep.subr.bf16.mxu0 0
        %2670 = vmatpush1.bf16.msra.mxu0 %v2646
        %2671 = vmatprep.subr.bf16.mxu0 0
        %2672 = vmatpush1.bf16.msra.mxu0 0
        %2673 = vmatprep.subr.bf16.mxu0 0
        %2674 = vmatpush1.bf16.msra.mxu0 0
        %2675 = vmatprep.subr.bf16.mxu0 0
        %2676 = vmatpush1.bf16.msra.mxu0 0
        %2677 = vmatprep.subr.bf16.mxu0 0
        %2678 = vmatpush1.bf16.msra.mxu0 0
        %2679 = vmatprep.subr.bf16.mxu0 0
        %2680 = vmatpush1.bf16.msra.mxu0 0
        %2681 = vmatprep.subr.bf16.mxu0 0
        %2682 = vmatpush1.bf16.msra.mxu0 0
        %2683 = vmatprep.subr.bf16.mxu0 0
        %2684 = vmatpush1.bf16.msra.mxu0 0
        %2685 = vmatprep.subr.bf16.mxu0 0
        %2686 = vmatpush1.bf16.msra.mxu0 0
        %2687 = vmatprep.mubr.bf16.mxu0 0
        %2688 = vmatmul.mubr.bf16.gmra.mrb[0].mxu0 %v2315
        %v2689 = vpop.f32.mrb[0].mxu0
        %v2690 = vadd.f32 0.0, %v2689
        %v2691 = vpop.f32.mrb[0].mxu0
        %v2692 = vpop.f32.mrb[0].mxu0
        %v2693 = vadd.f32 0.0, %v2692
        %v2694 = vpop.f32.mrb[0].mxu0
        %2695 = vmatprep.mubr.bf16.mxu0 0
        %2696 = vmatmul.mubr.bf16.gmra.mrb[0].mxu0 %v2316
        %v2697 = vpop.f32.mrb[0].mxu0
        %v2698 = vadd.f32 0.0, %v2697
        %v2699 = vpop.f32.mrb[0].mxu0
        %v2700 = vpop.f32.mrb[0].mxu0
        %v2701 = vadd.f32 0.0, %v2700
        %v2702 = vpop.f32.mrb[0].mxu0
        %2703 = vmatprep.mubr.bf16.mxu0 0
        %2704 = vmatmul.mubr.bf16.gmra.mrb[0].mxu0 %v2317
        %v2705 = vpop.f32.mrb[0].mxu0
        %v2706 = vadd.f32 0.0, %v2705
        %v2707 = vpop.f32.mrb[0].mxu0
        %v2708 = vpop.f32.mrb[0].mxu0
        %v2709 = vadd.f32 0.0, %v2708
        %v2710 = vpop.f32.mrb[0].mxu0
        %2711 = vmatprep.mubr.bf16.mxu0 0
        %2712 = vmatmul.mubr.bf16.gmra.mrb[0].mxu0 %v2318
        %v2713 = vpop.f32.mrb[0].mxu0
        %v2714 = vadd.f32 0.0, %v2713
        %v2715 = vpop.f32.mrb[0].mxu0
        %v2716 = vpop.f32.mrb[0].mxu0
        %v2717 = vadd.f32 0.0, %v2716
        %v2718 = vpop.f32.mrb[0].mxu0
        %2719 = vmatprep.mubr.bf16.mxu0 0
        %2720 = vmatmul.mubr.bf16.gmra.mrb[0].mxu0 %v2319
        %v2721 = vpop.f32.mrb[0].mxu0
        %v2722 = vadd.f32 0.0, %v2721
        %v2723 = vpop.f32.mrb[0].mxu0
        %v2724 = vpop.f32.mrb[0].mxu0
        %v2725 = vadd.f32 0.0, %v2724
        %v2726 = vpop.f32.mrb[0].mxu0
        %2727 = vmatprep.mubr.bf16.mxu0 0
        %2728 = vmatmul.mubr.bf16.gmra.mrb[0].mxu0 %v2320
        %v2729 = vpop.f32.mrb[0].mxu0
        %v2730 = vadd.f32 0.0, %v2729
        %v2731 = vpop.f32.mrb[0].mxu0
        %v2732 = vpop.f32.mrb[0].mxu0
        %v2733 = vadd.f32 0.0, %v2732
        %v2734 = vpop.f32.mrb[0].mxu0
        %2735 = vmatprep.mubr.bf16.mxu0 0
        %2736 = vmatmul.mubr.bf16.gmra.mrb[0].mxu0 %v2321
        %v2737 = vpop.f32.mrb[0].mxu0
        %v2738 = vadd.f32 0.0, %v2737
        %v2739 = vpop.f32.mrb[0].mxu0
        %v2740 = vpop.f32.mrb[0].mxu0
        %v2741 = vadd.f32 0.0, %v2740
        %v2742 = vpop.f32.mrb[0].mxu0
        %2743 = vmatprep.mubr.bf16.mxu0 0
        %2744 = vmatmul.mubr.bf16.gmra.mrb[0].mxu0 %v2322
        %v2745 = vpop.f32.mrb[0].mxu0
        %v2746 = vadd.f32 0.0, %v2745
        %v2747 = vpop.f32.mrb[0].mxu0
        %v2748 = vpop.f32.mrb[0].mxu0
        %v2749 = vadd.f32 0.0, %v2748
        %v2750 = vpop.f32.mrb[0].mxu0
        %2751 = vmatprep.mubr.bf16.mxu0 0
        %2752 = vmatmul.mubr.bf16.gmra.mrb[0].mxu0 %v2323
        %v2753 = vpop.f32.mrb[0].mxu0
        %v2754 = vadd.f32 0.0, %v2753
        %v2755 = vpop.f32.mrb[0].mxu0
        %v2756 = vpop.f32.mrb[0].mxu0
        %v2757 = vadd.f32 0.0, %v2756
        %v2758 = vpop.f32.mrb[0].mxu0
        %2759 = vmatprep.mubr.bf16.mxu0 0
        %2760 = vmatmul.mubr.bf16.gmra.mrb[0].mxu0 %v2324
        %v2761 = vpop.f32.mrb[0].mxu0
        %v2762 = vadd.f32 0.0, %v2761
        %v2763 = vpop.f32.mrb[0].mxu0
        %v2764 = vpop.f32.mrb[0].mxu0
        %v2765 = vadd.f32 0.0, %v2764
        %v2766 = vpop.f32.mrb[0].mxu0
        %2767 = vmatprep.mubr.bf16.mxu0 0
        %2768 = vmatmul.mubr.bf16.gmra.mrb[0].mxu0 %v2325
        %v2769 = vpop.f32.mrb[0].mxu0
        %v2770 = vadd.f32 0.0, %v2769
        %v2771 = vpop.f32.mrb[0].mxu0
        %v2772 = vpop.f32.mrb[0].mxu0
        %v2773 = vadd.f32 0.0, %v2772
        %v2774 = vpop.f32.mrb[0].mxu0
        %2775 = vmatprep.mubr.bf16.mxu0 0
        %2776 = vmatmul.mubr.bf16.gmra.mrb[0].mxu0 %v2326
        %v2777 = vpop.f32.mrb[0].mxu0
        %v2778 = vadd.f32 0.0, %v2777
        %v2779 = vpop.f32.mrb[0].mxu0
        %v2780 = vpop.f32.mrb[0].mxu0
        %v2781 = vadd.f32 0.0, %v2780
        %v2782 = vpop.f32.mrb[0].mxu0
        %2783 = vmatprep.mubr.bf16.mxu0 0
        %2784 = vmatmul.mubr.bf16.gmra.mrb[0].mxu0 %v2327
        %v2785 = vpop.f32.mrb[0].mxu0
        %v2786 = vadd.f32 0.0, %v2785
        %v2787 = vpop.f32.mrb[0].mxu0
        %v2788 = vpop.f32.mrb[0].mxu0
        %v2789 = vadd.f32 0.0, %v2788
        %v2790 = vpop.f32.mrb[0].mxu0
        %2791 = vmatprep.mubr.bf16.mxu0 0
        %2792 = vmatmul.mubr.bf16.gmra.mrb[0].mxu0 %v2328
        %v2793 = vpop.f32.mrb[0].mxu0
        %v2794 = vadd.f32 0.0, %v2793
        %v2795 = vpop.f32.mrb[0].mxu0
        %v2796 = vpop.f32.mrb[0].mxu0
        %v2797 = vadd.f32 0.0, %v2796
        %v2798 = vpop.f32.mrb[0].mxu0
        %2799 = vmatprep.mubr.bf16.mxu0 0
        %2800 = vmatmul.mubr.bf16.gmra.mrb[0].mxu0 %v2329
        %v2801 = vpop.f32.mrb[0].mxu0
        %v2802 = vadd.f32 0.0, %v2801
        %v2803 = vpop.f32.mrb[0].mxu0
        %v2804 = vpop.f32.mrb[0].mxu0
        %v2805 = vadd.f32 0.0, %v2804
        %v2806 = vpop.f32.mrb[0].mxu0
        %2807 = vmatprep.mubr.bf16.mxu0 0
        %2808 = vmatmul.mubr.bf16.gmra.mrb[0].mxu0 %v2330
        %v2809 = vpop.f32.mrb[0].mxu0
        %v2810 = vadd.f32 0.0, %v2809
        %v2811 = vpop.f32.mrb[0].mxu0
        %v2812 = vpop.f32.mrb[0].mxu0
        %v2813 = vadd.f32 0.0, %v2812
        %v2814 = vpop.f32.mrb[0].mxu0
        %2815 = vdwg.mxu0
        %v2816 = vadd.f32 %v2558, %v2690
        %v2817 = vadd.f32 %v2559, %v2693
        %v2818 = vadd.f32 %v2560, %v2698
        %v2819 = vadd.f32 %v2561, %v2701
        %v2820 = vadd.f32 %v2562, %v2706
        %v2821 = vadd.f32 %v2563, %v2709
        %v2822 = vadd.f32 %v2564, %v2714
        %v2823 = vadd.f32 %v2565, %v2717
        %v2824 = vadd.f32 %v2566, %v2722
        %v2825 = vadd.f32 %v2567, %v2725
        %v2826 = vadd.f32 %v2568, %v2730
        %v2827 = vadd.f32 %v2569, %v2733
        %v2828 = vadd.f32 %v2570, %v2738
        %v2829 = vadd.f32 %v2571, %v2741
        %v2830 = vadd.f32 %v2572, %v2746
        %v2831 = vadd.f32 %v2573, %v2749
        %v2832 = vadd.f32 %v2574, %v2754
        %v2833 = vadd.f32 %v2575, %v2757
        %v2834 = vadd.f32 %v2576, %v2762
        %v2835 = vadd.f32 %v2577, %v2765
        %v2836 = vadd.f32 %v2578, %v2770
        %v2837 = vadd.f32 %v2579, %v2773
        %v2838 = vadd.f32 %v2580, %v2778
        %v2839 = vadd.f32 %v2581, %v2781
        %v2840 = vadd.f32 %v2582, %v2786
        %v2841 = vadd.f32 %v2583, %v2789
        %v2842 = vadd.f32 %v2584, %v2794
        %v2843 = vadd.f32 %v2585, %v2797
        %v2844 = vadd.f32 %v2586, %v2802
        %v2845 = vadd.f32 %v2587, %v2805
        %v2846 = vadd.f32 %v2588, %v2810
        %v2847 = vadd.f32 %v2589, %v2813
        %s2848 = scalar_lea.vmem %s1, 512
        %v2849 = vld [vmem:[%s2848] sm:$0xf]
        %v2850 = vld [vmem:[%s2848 + $0x4] sm:$0xf]
        %v2851 = vld [vmem:[%s2848 + $0x8] sm:$0xf]
        %v2852 = vld [vmem:[%s2848 + $0xc] sm:$0xf]
        %v2853 = vld [vmem:[%s2848 + $0x10] sm:$0xf]
        %v2854 = vld [vmem:[%s2848 + $0x14] sm:$0xf]
        %v2855 = vld [vmem:[%s2848 + $0x18] sm:$0xf]
        %v2856 = vld [vmem:[%s2848 + $0x1c] sm:$0xf]
        %v2857 = vld [vmem:[%s2848 + $0x20] sm:$0xf]
        %v2858 = vld [vmem:[%s2848 + $0x24] sm:$0xf]
        %v2859 = vld [vmem:[%s2848 + $0x28] sm:$0xf]
        %v2860 = vld [vmem:[%s2848 + $0x2c] sm:$0xf]
        %v2861 = vld [vmem:[%s2848 + $0x30] sm:$0xf]
        %v2862 = vld [vmem:[%s2848 + $0x34] sm:$0xf]
        %v2863 = vld [vmem:[%s2848 + $0x38] sm:$0xf]
        %v2864 = vld [vmem:[%s2848 + $0x3c] sm:$0xf]
        %v2881 = vunpack.c.l.b16 %v2849
        %v2882 = vunpack.c.l.b16 %v2850
        %v2883 = vunpack.c.l.b16 %v2851
        %v2884 = vunpack.c.l.b16 %v2852
        %v2885 = vunpack.c.l.b16 %v2853
        %v2886 = vunpack.c.l.b16 %v2854
        %v2887 = vunpack.c.l.b16 %v2855
        %v2888 = vunpack.c.l.b16 %v2856
        %v2889 = vunpack.c.l.b16 %v2857
        %v2890 = vunpack.c.l.b16 %v2858
        %v2891 = vunpack.c.l.b16 %v2859
        %v2892 = vunpack.c.l.b16 %v2860
        %v2893 = vunpack.c.l.b16 %v2861
        %v2894 = vunpack.c.l.b16 %v2862
        %v2895 = vunpack.c.l.b16 %v2863
        %v2896 = vunpack.c.l.b16 %v2864
        %v2897 = vpack.c.b16 %v2882, %v2881
        %v2898 = vpack.c.b16 %v2884, %v2883
        %v2899 = vpack.c.b16 %v2886, %v2885
        %v2900 = vpack.c.b16 %v2888, %v2887
        %v2901 = vpack.c.b16 %v2890, %v2889
        %v2902 = vpack.c.b16 %v2892, %v2891
        %v2903 = vpack.c.b16 %v2894, %v2893
        %v2904 = vpack.c.b16 %v2896, %v2895
        %2913 = vmatprep.subr.bf16.mxu0 0
        %2914 = vmatpush1.bf16.msra.mxu0 %v2897
        %2915 = vmatprep.subr.bf16.mxu0 0
        %2916 = vmatpush1.bf16.msra.mxu0 %v2898
        %2917 = vmatprep.subr.bf16.mxu0 0
        %2918 = vmatpush1.bf16.msra.mxu0 %v2899
        %2919 = vmatprep.subr.bf16.mxu0 0
        %2920 = vmatpush1.bf16.msra.mxu0 %v2900
        %2921 = vmatprep.subr.bf16.mxu0 0
        %2922 = vmatpush1.bf16.msra.mxu0 %v2901
        %2923 = vmatprep.subr.bf16.mxu0 0
        %2924 = vmatpush1.bf16.msra.mxu0 %v2902
        %2925 = vmatprep.subr.bf16.mxu0 0
        %2926 = vmatpush1.bf16.msra.mxu0 %v2903
        %2927 = vmatprep.subr.bf16.mxu0 0
        %2928 = vmatpush1.bf16.msra.mxu0 %v2904
        %2929 = vmatprep.subr.bf16.mxu0 0
        %2930 = vmatpush1.bf16.msra.mxu0 0
        %2931 = vmatprep.subr.bf16.mxu0 0
        %2932 = vmatpush1.bf16.msra.mxu0 0
        %2933 = vmatprep.subr.bf16.mxu0 0
        %2934 = vmatpush1.bf16.msra.mxu0 0
        %2935 = vmatprep.subr.bf16.mxu0 0
        %2936 = vmatpush1.bf16.msra.mxu0 0
        %2937 = vmatprep.subr.bf16.mxu0 0
        %2938 = vmatpush1.bf16.msra.mxu0 0
        %2939 = vmatprep.subr.bf16.mxu0 0
        %2940 = vmatpush1.bf16.msra.mxu0 0
        %2941 = vmatprep.subr.bf16.mxu0 0
        %2942 = vmatpush1.bf16.msra.mxu0 0
        %2943 = vmatprep.subr.bf16.mxu0 0
        %2944 = vmatpush1.bf16.msra.mxu0 0
        %2945 = vmatprep.mubr.bf16.mxu0 0
        %2946 = vmatmul.mubr.bf16.gmra.mrb[0].mxu0 %v2316
        %v2947 = vpop.f32.mrb[0].mxu0
        %v2948 = vadd.f32 0.0, %v2947
        %v2949 = vpop.f32.mrb[0].mxu0
        %v2950 = vpop.f32.mrb[0].mxu0
        %v2951 = vadd.f32 0.0, %v2950
        %v2952 = vpop.f32.mrb[0].mxu0
        %2953 = vmatprep.mubr.bf16.mxu0 0
        %2954 = vmatmul.mubr.bf16.gmra.mrb[0].mxu0 %v2317
        %v2955 = vpop.f32.mrb[0].mxu0
        %v2956 = vadd.f32 0.0, %v2955
        %v2957 = vpop.f32.mrb[0].mxu0
        %v2958 = vpop.f32.mrb[0].mxu0
        %v2959 = vadd.f32 0.0, %v2958
        %v2960 = vpop.f32.mrb[0].mxu0
        %2961 = vmatprep.mubr.bf16.mxu0 0
        %2962 = vmatmul.mubr.bf16.gmra.mrb[0].mxu0 %v2318
        %v2963 = vpop.f32.mrb[0].mxu0
        %v2964 = vadd.f32 0.0, %v2963
        %v2965 = vpop.f32.mrb[0].mxu0
        %v2966 = vpop.f32.mrb[0].mxu0
        %v2967 = vadd.f32 0.0, %v2966
        %v2968 = vpop.f32.mrb[0].mxu0
        %2969 = vmatprep.mubr.bf16.mxu0 0
        %2970 = vmatmul.mubr.bf16.gmra.mrb[0].mxu0 %v2319
        %v2971 = vpop.f32.mrb[0].mxu0
        %v2972 = vadd.f32 0.0, %v2971
        %v2973 = vpop.f32.mrb[0].mxu0
        %v2974 = vpop.f32.mrb[0].mxu0
        %v2975 = vadd.f32 0.0, %v2974
        %v2976 = vpop.f32.mrb[0].mxu0
        %2977 = vmatprep.mubr.bf16.mxu0 0
        %2978 = vmatmul.mubr.bf16.gmra.mrb[0].mxu0 %v2320
        %v2979 = vpop.f32.mrb[0].mxu0
        %v2980 = vadd.f32 0.0, %v2979
        %v2981 = vpop.f32.mrb[0].mxu0
        %v2982 = vpop.f32.mrb[0].mxu0
        %v2983 = vadd.f32 0.0, %v2982
        %v2984 = vpop.f32.mrb[0].mxu0
        %2985 = vmatprep.mubr.bf16.mxu0 0
        %2986 = vmatmul.mubr.bf16.gmra.mrb[0].mxu0 %v2321
        %v2987 = vpop.f32.mrb[0].mxu0
        %v2988 = vadd.f32 0.0, %v2987
        %v2989 = vpop.f32.mrb[0].mxu0
        %v2990 = vpop.f32.mrb[0].mxu0
        %v2991 = vadd.f32 0.0, %v2990
        %v2992 = vpop.f32.mrb[0].mxu0
        %2993 = vmatprep.mubr.bf16.mxu0 0
        %2994 = vmatmul.mubr.bf16.gmra.mrb[0].mxu0 %v2322
        %v2995 = vpop.f32.mrb[0].mxu0
        %v2996 = vadd.f32 0.0, %v2995
        %v2997 = vpop.f32.mrb[0].mxu0
        %v2998 = vpop.f32.mrb[0].mxu0
        %v2999 = vadd.f32 0.0, %v2998
        %v3000 = vpop.f32.mrb[0].mxu0
        %3001 = vmatprep.mubr.bf16.mxu0 0
        %3002 = vmatmul.mubr.bf16.gmra.mrb[0].mxu0 %v2323
        %v3003 = vpop.f32.mrb[0].mxu0
        %v3004 = vadd.f32 0.0, %v3003
        %v3005 = vpop.f32.mrb[0].mxu0
        %v3006 = vpop.f32.mrb[0].mxu0
        %v3007 = vadd.f32 0.0, %v3006
        %v3008 = vpop.f32.mrb[0].mxu0
        %3009 = vmatprep.mubr.bf16.mxu0 0
        %3010 = vmatmul.mubr.bf16.gmra.mrb[0].mxu0 %v2324
        %v3011 = vpop.f32.mrb[0].mxu0
        %v3012 = vadd.f32 0.0, %v3011
        %v3013 = vpop.f32.mrb[0].mxu0
        %v3014 = vpop.f32.mrb[0].mxu0
        %v3015 = vadd.f32 0.0, %v3014
        %v3016 = vpop.f32.mrb[0].mxu0
        %3017 = vmatprep.mubr.bf16.mxu0 0
        %3018 = vmatmul.mubr.bf16.gmra.mrb[0].mxu0 %v2325
        %v3019 = vpop.f32.mrb[0].mxu0
        %v3020 = vadd.f32 0.0, %v3019
        %v3021 = vpop.f32.mrb[0].mxu0
        %v3022 = vpop.f32.mrb[0].mxu0
        %v3023 = vadd.f32 0.0, %v3022
        %v3024 = vpop.f32.mrb[0].mxu0
        %3025 = vmatprep.mubr.bf16.mxu0 0
        %3026 = vmatmul.mubr.bf16.gmra.mrb[0].mxu0 %v2326
        %v3027 = vpop.f32.mrb[0].mxu0
        %v3028 = vadd.f32 0.0, %v3027
        %v3029 = vpop.f32.mrb[0].mxu0
        %v3030 = vpop.f32.mrb[0].mxu0
        %v3031 = vadd.f32 0.0, %v3030
        %v3032 = vpop.f32.mrb[0].mxu0
        %3033 = vmatprep.mubr.bf16.mxu0 0
        %3034 = vmatmul.mubr.bf16.gmra.mrb[0].mxu0 %v2327
        %v3035 = vpop.f32.mrb[0].mxu0
        %v3036 = vadd.f32 0.0, %v3035
        %v3037 = vpop.f32.mrb[0].mxu0
        %v3038 = vpop.f32.mrb[0].mxu0
        %v3039 = vadd.f32 0.0, %v3038
        %v3040 = vpop.f32.mrb[0].mxu0
        %3041 = vmatprep.mubr.bf16.mxu0 0
        %3042 = vmatmul.mubr.bf16.gmra.mrb[0].mxu0 %v2328
        %v3043 = vpop.f32.mrb[0].mxu0
        %v3044 = vadd.f32 0.0, %v3043
        %v3045 = vpop.f32.mrb[0].mxu0
        %v3046 = vpop.f32.mrb[0].mxu0
        %v3047 = vadd.f32 0.0, %v3046
        %v3048 = vpop.f32.mrb[0].mxu0
        %3049 = vmatprep.mubr.bf16.mxu0 0
        %3050 = vmatmul.mubr.bf16.gmra.mrb[0].mxu0 %v2329
        %v3051 = vpop.f32.mrb[0].mxu0
        %v3052 = vadd.f32 0.0, %v3051
        %v3053 = vpop.f32.mrb[0].mxu0
        %v3054 = vpop.f32.mrb[0].mxu0
        %v3055 = vadd.f32 0.0, %v3054
        %v3056 = vpop.f32.mrb[0].mxu0
        %3057 = vmatprep.mubr.bf16.mxu0 0
        %3058 = vmatmul.mubr.bf16.gmra.mrb[0].mxu0 %v2330
        %v3059 = vpop.f32.mrb[0].mxu0
        %v3060 = vadd.f32 0.0, %v3059
        %v3061 = vpop.f32.mrb[0].mxu0
        %v3062 = vpop.f32.mrb[0].mxu0
        %v3063 = vadd.f32 0.0, %v3062
        %v3064 = vpop.f32.mrb[0].mxu0
        %3065 = vmatprep.mubr.bf16.mxu0 0
        %3066 = vmatmul.mubr.bf16.gmra.mrb[0].mxu0 %v2331
        %v3067 = vpop.f32.mrb[0].mxu0
        %v3068 = vadd.f32 0.0, %v3067
        %v3069 = vpop.f32.mrb[0].mxu0
        %v3070 = vpop.f32.mrb[0].mxu0
        %v3071 = vadd.f32 0.0, %v3070
        %v3072 = vpop.f32.mrb[0].mxu0
        %3073 = vdwg.mxu0
        %v3074 = vadd.f32 %v2816, %v2948
        %v3075 = vadd.f32 %v2817, %v2951
        %v3076 = vadd.f32 %v2818, %v2956
        %v3077 = vadd.f32 %v2819, %v2959
        %v3078 = vadd.f32 %v2820, %v2964
        %v3079 = vadd.f32 %v2821, %v2967
        %v3080 = vadd.f32 %v2822, %v2972
        %v3081 = vadd.f32 %v2823, %v2975
        %v3082 = vadd.f32 %v2824, %v2980
        %v3083 = vadd.f32 %v2825, %v2983
        %v3084 = vadd.f32 %v2826, %v2988
        %v3085 = vadd.f32 %v2827, %v2991
        %v3086 = vadd.f32 %v2828, %v2996
        %v3087 = vadd.f32 %v2829, %v2999
        %v3088 = vadd.f32 %v2830, %v3004
        %v3089 = vadd.f32 %v2831, %v3007
        %v3090 = vadd.f32 %v2832, %v3012
        %v3091 = vadd.f32 %v2833, %v3015
        %v3092 = vadd.f32 %v2834, %v3020
        %v3093 = vadd.f32 %v2835, %v3023
        %v3094 = vadd.f32 %v2836, %v3028
        %v3095 = vadd.f32 %v2837, %v3031
        %v3096 = vadd.f32 %v2838, %v3036
        %v3097 = vadd.f32 %v2839, %v3039
        %v3098 = vadd.f32 %v2840, %v3044
        %v3099 = vadd.f32 %v2841, %v3047
        %v3100 = vadd.f32 %v2842, %v3052
        %v3101 = vadd.f32 %v2843, %v3055
        %v3102 = vadd.f32 %v2844, %v3060
        %v3103 = vadd.f32 %v2845, %v3063
        %v3104 = vadd.f32 %v2846, %v3068
        %v3105 = vadd.f32 %v2847, %v3071
        %v3106 = vld [vmem:[%s2] sm:$0x1]
        %v3108 = vlaneseq
        %v3109 = vshrl.u32 %v3108, 7
        %v3110 = vsub.s32 0, %v3109
        %v3111 = vrot.slane %v3106, %v3110
        %v3113 = vadd.f32 %v3074, %v3111
        %v3114 = vadd.f32 %v3075, %v3111
        %v3115 = vadd.f32 %v3076, %v3111
        %v3116 = vadd.f32 %v3077, %v3111
        %v3117 = vadd.f32 %v3078, %v3111
        %v3118 = vadd.f32 %v3079, %v3111
        %v3119 = vadd.f32 %v3080, %v3111
        %v3120 = vadd.f32 %v3081, %v3111
        %v3121 = vadd.f32 %v3082, %v3111
        %v3122 = vadd.f32 %v3083, %v3111
        %v3123 = vadd.f32 %v3084, %v3111
        %v3124 = vadd.f32 %v3085, %v3111
        %v3125 = vadd.f32 %v3086, %v3111
        %v3126 = vadd.f32 %v3087, %v3111
        %v3127 = vadd.f32 %v3088, %v3111
        %v3128 = vadd.f32 %v3089, %v3111
        %v3129 = vadd.f32 %v3090, %v3111
        %v3130 = vadd.f32 %v3091, %v3111
        %v3131 = vadd.f32 %v3092, %v3111
        %v3132 = vadd.f32 %v3093, %v3111
        %v3133 = vadd.f32 %v3094, %v3111
        %v3134 = vadd.f32 %v3095, %v3111
        %v3135 = vadd.f32 %v3096, %v3111
        %v3136 = vadd.f32 %v3097, %v3111
        %v3137 = vadd.f32 %v3098, %v3111
        %v3138 = vadd.f32 %v3099, %v3111
        %v3139 = vadd.f32 %v3100, %v3111
        %v3140 = vadd.f32 %v3101, %v3111
        %v3141 = vadd.f32 %v3102, %v3111
        %v3142 = vadd.f32 %v3103, %v3111
        %v3143 = vadd.f32 %v3104, %v3111
        %v3144 = vadd.f32 %v3105, %v3111
        %v3145 = vadd.f32 %v3113, 3.0
        %v3146 = vadd.f32 %v3114, 3.0
        %v3147 = vadd.f32 %v3115, 3.0
        %v3148 = vadd.f32 %v3116, 3.0
        %v3149 = vadd.f32 %v3117, 3.0
        %v3150 = vadd.f32 %v3118, 3.0
        %v3151 = vadd.f32 %v3119, 3.0
        %v3152 = vadd.f32 %v3120, 3.0
        %v3153 = vadd.f32 %v3121, 3.0
        %v3154 = vadd.f32 %v3122, 3.0
        %v3155 = vadd.f32 %v3123, 3.0
        %v3156 = vadd.f32 %v3124, 3.0
        %v3157 = vadd.f32 %v3125, 3.0
        %v3158 = vadd.f32 %v3126, 3.0
        %v3159 = vadd.f32 %v3127, 3.0
        %v3160 = vadd.f32 %v3128, 3.0
        %v3161 = vadd.f32 %v3129, 3.0
        %v3162 = vadd.f32 %v3130, 3.0
        %v3163 = vadd.f32 %v3131, 3.0
        %v3164 = vadd.f32 %v3132, 3.0
        %v3165 = vadd.f32 %v3133, 3.0
        %v3166 = vadd.f32 %v3134, 3.0
        %v3167 = vadd.f32 %v3135, 3.0
        %v3168 = vadd.f32 %v3136, 3.0
        %v3169 = vadd.f32 %v3137, 3.0
        %v3170 = vadd.f32 %v3138, 3.0
        %v3171 = vadd.f32 %v3139, 3.0
        %v3172 = vadd.f32 %v3140, 3.0
        %v3173 = vadd.f32 %v3141, 3.0
        %v3174 = vadd.f32 %v3142, 3.0
        %v3175 = vadd.f32 %v3143, 3.0
        %v3176 = vadd.f32 %v3144, 3.0
        %v3177 = vmax.f32 %v3145, 0.0
        %v3178 = vmax.f32 %v3146, 0.0
        %v3179 = vmax.f32 %v3147, 0.0
        %v3180 = vmax.f32 %v3148, 0.0
        %v3181 = vmax.f32 %v3149, 0.0
        %v3182 = vmax.f32 %v3150, 0.0
        %v3183 = vmax.f32 %v3151, 0.0
        %v3184 = vmax.f32 %v3152, 0.0
        %v3185 = vmax.f32 %v3153, 0.0
        %v3186 = vmax.f32 %v3154, 0.0
        %v3187 = vmax.f32 %v3155, 0.0
        %v3188 = vmax.f32 %v3156, 0.0
        %v3189 = vmax.f32 %v3157, 0.0
        %v3190 = vmax.f32 %v3158, 0.0
        %v3191 = vmax.f32 %v3159, 0.0
        %v3192 = vmax.f32 %v3160, 0.0
        %v3193 = vmax.f32 %v3161, 0.0
        %v3194 = vmax.f32 %v3162, 0.0
        %v3195 = vmax.f32 %v3163, 0.0
        %v3196 = vmax.f32 %v3164, 0.0
        %v3197 = vmax.f32 %v3165, 0.0
        %v3198 = vmax.f32 %v3166, 0.0
        %v3199 = vmax.f32 %v3167, 0.0
        %v3200 = vmax.f32 %v3168, 0.0
        %v3201 = vmax.f32 %v3169, 0.0
        %v3202 = vmax.f32 %v3170, 0.0
        %v3203 = vmax.f32 %v3171, 0.0
        %v3204 = vmax.f32 %v3172, 0.0
        %v3205 = vmax.f32 %v3173, 0.0
        %v3206 = vmax.f32 %v3174, 0.0
        %v3207 = vmax.f32 %v3175, 0.0
        %v3208 = vmax.f32 %v3176, 0.0
        %v3209 = vmin.f32 %v3177, 6.0
        %v3210 = vmin.f32 %v3178, 6.0
        %v3211 = vmin.f32 %v3179, 6.0
        %v3212 = vmin.f32 %v3180, 6.0
        %v3213 = vmin.f32 %v3181, 6.0
        %v3214 = vmin.f32 %v3182, 6.0
        %v3215 = vmin.f32 %v3183, 6.0
        %v3216 = vmin.f32 %v3184, 6.0
        %v3217 = vmin.f32 %v3185, 6.0
        %v3218 = vmin.f32 %v3186, 6.0
        %v3219 = vmin.f32 %v3187, 6.0
        %v3220 = vmin.f32 %v3188, 6.0
        %v3221 = vmin.f32 %v3189, 6.0
        %v3222 = vmin.f32 %v3190, 6.0
        %v3223 = vmin.f32 %v3191, 6.0
        %v3224 = vmin.f32 %v3192, 6.0
        %v3225 = vmin.f32 %v3193, 6.0
        %v3226 = vmin.f32 %v3194, 6.0
        %v3227 = vmin.f32 %v3195, 6.0
        %v3228 = vmin.f32 %v3196, 6.0
        %v3229 = vmin.f32 %v3197, 6.0
        %v3230 = vmin.f32 %v3198, 6.0
        %v3231 = vmin.f32 %v3199, 6.0
        %v3232 = vmin.f32 %v3200, 6.0
        %v3233 = vmin.f32 %v3201, 6.0
        %v3234 = vmin.f32 %v3202, 6.0
        %v3235 = vmin.f32 %v3203, 6.0
        %v3236 = vmin.f32 %v3204, 6.0
        %v3237 = vmin.f32 %v3205, 6.0
        %v3238 = vmin.f32 %v3206, 6.0
        %v3239 = vmin.f32 %v3207, 6.0
        %v3240 = vmin.f32 %v3208, 6.0
        %v3241 = vmul.f32 %v3113, %v3209
        %v3242 = vmul.f32 %v3114, %v3210
        %v3243 = vmul.f32 %v3115, %v3211
        %v3244 = vmul.f32 %v3116, %v3212
        %v3245 = vmul.f32 %v3117, %v3213
        %v3246 = vmul.f32 %v3118, %v3214
        %v3247 = vmul.f32 %v3119, %v3215
        %v3248 = vmul.f32 %v3120, %v3216
        %v3249 = vmul.f32 %v3121, %v3217
        %v3250 = vmul.f32 %v3122, %v3218
        %v3251 = vmul.f32 %v3123, %v3219
        %v3252 = vmul.f32 %v3124, %v3220
        %v3253 = vmul.f32 %v3125, %v3221
        %v3254 = vmul.f32 %v3126, %v3222
        %v3255 = vmul.f32 %v3127, %v3223
        %v3256 = vmul.f32 %v3128, %v3224
        %v3257 = vmul.f32 %v3129, %v3225
        %v3258 = vmul.f32 %v3130, %v3226
        %v3259 = vmul.f32 %v3131, %v3227
        %v3260 = vmul.f32 %v3132, %v3228
        %v3261 = vmul.f32 %v3133, %v3229
        %v3262 = vmul.f32 %v3134, %v3230
        %v3263 = vmul.f32 %v3135, %v3231
        %v3264 = vmul.f32 %v3136, %v3232
        %v3265 = vmul.f32 %v3137, %v3233
        %v3266 = vmul.f32 %v3138, %v3234
        %v3267 = vmul.f32 %v3139, %v3235
        %v3268 = vmul.f32 %v3140, %v3236
        %v3269 = vmul.f32 %v3141, %v3237
        %v3270 = vmul.f32 %v3142, %v3238
        %v3271 = vmul.f32 %v3143, %v3239
        %v3272 = vmul.f32 %v3144, %v3240
        %v3273 = vmul.f32 %v3241, 0.16666667
        %v3274 = vmul.f32 %v3242, 0.16666667
        %v3275 = vmul.f32 %v3243, 0.16666667
        %v3276 = vmul.f32 %v3244, 0.16666667
        %v3277 = vmul.f32 %v3245, 0.16666667
        %v3278 = vmul.f32 %v3246, 0.16666667
        %v3279 = vmul.f32 %v3247, 0.16666667
        %v3280 = vmul.f32 %v3248, 0.16666667
        %v3281 = vmul.f32 %v3249, 0.16666667
        %v3282 = vmul.f32 %v3250, 0.16666667
        %v3283 = vmul.f32 %v3251, 0.16666667
        %v3284 = vmul.f32 %v3252, 0.16666667
        %v3285 = vmul.f32 %v3253, 0.16666667
        %v3286 = vmul.f32 %v3254, 0.16666667
        %v3287 = vmul.f32 %v3255, 0.16666667
        %v3288 = vmul.f32 %v3256, 0.16666667
        %v3289 = vmul.f32 %v3257, 0.16666667
        %v3290 = vmul.f32 %v3258, 0.16666667
        %v3291 = vmul.f32 %v3259, 0.16666667
        %v3292 = vmul.f32 %v3260, 0.16666667
        %v3293 = vmul.f32 %v3261, 0.16666667
        %v3294 = vmul.f32 %v3262, 0.16666667
        %v3295 = vmul.f32 %v3263, 0.16666667
        %v3296 = vmul.f32 %v3264, 0.16666667
        %v3297 = vmul.f32 %v3265, 0.16666667
        %v3298 = vmul.f32 %v3266, 0.16666667
        %v3299 = vmul.f32 %v3267, 0.16666667
        %v3300 = vmul.f32 %v3268, 0.16666667
        %v3301 = vmul.f32 %v3269, 0.16666667
        %v3302 = vmul.f32 %v3270, 0.16666667
        %v3303 = vmul.f32 %v3271, 0.16666667
        %v3304 = vmul.f32 %v3272, 0.16666667
        %v3305 = vpack.c.bf16 %v3274, %v3273
        %v3306 = vpack.c.bf16 %v3276, %v3275
        %v3307 = vpack.c.bf16 %v3278, %v3277
        %v3308 = vpack.c.bf16 %v3280, %v3279
        %v3309 = vpack.c.bf16 %v3282, %v3281
        %v3310 = vpack.c.bf16 %v3284, %v3283
        %v3311 = vpack.c.bf16 %v3286, %v3285
        %v3312 = vpack.c.bf16 %v3288, %v3287
        %v3313 = vpack.c.bf16 %v3290, %v3289
        %v3314 = vpack.c.bf16 %v3292, %v3291
        %v3315 = vpack.c.bf16 %v3294, %v3293
        %v3316 = vpack.c.bf16 %v3296, %v3295
        %v3317 = vpack.c.bf16 %v3298, %v3297
        %v3318 = vpack.c.bf16 %v3300, %v3299
        %v3319 = vpack.c.bf16 %v3302, %v3301
        %v3320 = vpack.c.bf16 %v3304, %v3303
        %3321 = vst [vmem:[%s574] sm:$0xff] %v3305
        %3322 = vst [vmem:[%s574 + $0x8] sm:$0xff] %v3306
        %3323 = vst [vmem:[%s574 + $0x10] sm:$0xff] %v3307
        %3324 = vst [vmem:[%s574 + $0x18] sm:$0xff] %v3308
        %3325 = vst [vmem:[%s574 + $0x20] sm:$0xff] %v3309
        %3326 = vst [vmem:[%s574 + $0x28] sm:$0xff] %v3310
        %3327 = vst [vmem:[%s574 + $0x30] sm:$0xff] %v3311
        %3328 = vst [vmem:[%s574 + $0x38] sm:$0xff] %v3312
        %3329 = vst [vmem:[%s574 + $0x40] sm:$0xff] %v3313
        %3330 = vst [vmem:[%s574 + $0x48] sm:$0xff] %v3314
        %3331 = vst [vmem:[%s574 + $0x50] sm:$0xff] %v3315
        %3332 = vst [vmem:[%s574 + $0x58] sm:$0xff] %v3316
        %3333 = vst [vmem:[%s574 + $0x60] sm:$0xff] %v3317
        %3334 = vst [vmem:[%s574 + $0x68] sm:$0xff] %v3318
        %3335 = vst [vmem:[%s574 + $0x70] sm:$0xff] %v3319
        %3336 = vst [vmem:[%s574 + $0x78] sm:$0xff] %v3320
        %v3337 = vld [vmem:[#allocation2] sm:$0xff]
        %v3338 = vld [vmem:[#allocation2 + $0x8] sm:$0xff]
        %v3339 = vld [vmem:[#allocation2 + $0x10] sm:$0xff]
        %v3340 = vld [vmem:[#allocation2 + $0x18] sm:$0xff]
        %v3341 = vld [vmem:[#allocation2 + $0x20] sm:$0xff]
        %v3342 = vld [vmem:[#allocation2 + $0x28] sm:$0xff]
        %v3343 = vld [vmem:[#allocation2 + $0x30] sm:$0xff]
        %v3344 = vld [vmem:[#allocation2 + $0x38] sm:$0xff]
        %v3345 = vld [vmem:[#allocation2 + $0x40] sm:$0xff]
        %v3346 = vld [vmem:[#allocation2 + $0x48] sm:$0xff]
        %v3347 = vld [vmem:[#allocation2 + $0x50] sm:$0xff]
        %v3348 = vld [vmem:[#allocation2 + $0x58] sm:$0xff]
        %v3349 = vld [vmem:[#allocation2 + $0x60] sm:$0xff]
        %v3350 = vld [vmem:[#allocation2 + $0x68] sm:$0xff]
        %v3351 = vld [vmem:[#allocation2 + $0x70] sm:$0xff]
        %v3352 = vld [vmem:[#allocation2 + $0x78] sm:$0xff]
        %v3353 = vld [vmem:[#allocation2 + $0x80] sm:$0xff]
        %v3354 = vld [vmem:[#allocation2 + $0x88] sm:$0xff]
        %v3356 = vshrl.u32 %v3337, 16
        %v3358 = vrot.slane %v3356, 7
        %v3359 = vshll.u32 %v3337, 16
        %v3361 = vor.u32 %v3358, %v3359
        %v3363 = vshrl.u32 %v3338, 16
        %v3365 = vrot.slane %v3363, 7
        %v3366 = vshll.u32 %v3338, 16
        %v3368 = vor.u32 %v3365, %v3366
        %v3370 = vshrl.u32 %v3339, 16
        %v3372 = vrot.slane %v3370, 7
        %v3373 = vshll.u32 %v3339, 16
        %v3375 = vor.u32 %v3372, %v3373
        %v3377 = vshrl.u32 %v3340, 16
        %v3379 = vrot.slane %v3377, 7
        %v3380 = vshll.u32 %v3340, 16
        %v3382 = vor.u32 %v3379, %v3380
        %v3384 = vshrl.u32 %v3341, 16
        %v3386 = vrot.slane %v3384, 7
        %v3387 = vshll.u32 %v3341, 16
        %v3389 = vor.u32 %v3386, %v3387
        %v3391 = vshrl.u32 %v3342, 16
        %v3393 = vrot.slane %v3391, 7
        %v3394 = vshll.u32 %v3342, 16
        %v3396 = vor.u32 %v3393, %v3394
        %v3398 = vshrl.u32 %v3343, 16
        %v3400 = vrot.slane %v3398, 7
        %v3401 = vshll.u32 %v3343, 16
        %v3403 = vor.u32 %v3400, %v3401
        %v3405 = vshrl.u32 %v3344, 16
        %v3407 = vrot.slane %v3405, 7
        %v3408 = vshll.u32 %v3344, 16
        %v3410 = vor.u32 %v3407, %v3408
        %v3412 = vshrl.u32 %v3345, 16
        %v3414 = vrot.slane %v3412, 7
        %v3415 = vshll.u32 %v3345, 16
        %v3417 = vor.u32 %v3414, %v3415
        %v3419 = vshrl.u32 %v3346, 16
        %v3421 = vrot.slane %v3419, 7
        %v3422 = vshll.u32 %v3346, 16
        %v3424 = vor.u32 %v3421, %v3422
        %v3426 = vshrl.u32 %v3347, 16
        %v3428 = vrot.slane %v3426, 7
        %v3429 = vshll.u32 %v3347, 16
        %v3431 = vor.u32 %v3428, %v3429
        %v3433 = vshrl.u32 %v3348, 16
        %v3435 = vrot.slane %v3433, 7
        %v3436 = vshll.u32 %v3348, 16
        %v3438 = vor.u32 %v3435, %v3436
        %v3440 = vshrl.u32 %v3349, 16
        %v3442 = vrot.slane %v3440, 7
        %v3443 = vshll.u32 %v3349, 16
        %v3445 = vor.u32 %v3442, %v3443
        %v3447 = vshrl.u32 %v3350, 16
        %v3449 = vrot.slane %v3447, 7
        %v3450 = vshll.u32 %v3350, 16
        %v3452 = vor.u32 %v3449, %v3450
        %v3454 = vshrl.u32 %v3351, 16
        %v3456 = vrot.slane %v3454, 7
        %v3457 = vshll.u32 %v3351, 16
        %v3459 = vor.u32 %v3456, %v3457
        %v3461 = vshrl.u32 %v3352, 16
        %v3463 = vrot.slane %v3461, 7
        %v3464 = vshll.u32 %v3352, 16
        %v3466 = vor.u32 %v3463, %v3464
        %v3468 = vshrl.u32 %v3353, 16
        %v3470 = vrot.slane %v3468, 7
        %v3471 = vshll.u32 %v3353, 16
        %v3473 = vor.u32 %v3470, %v3471
        %v3475 = vshrl.u32 %v3354, 16
        %v3477 = vrot.slane %v3475, 7
        %v3478 = vshll.u32 %v3354, 16
        %v3480 = vor.u32 %v3477, %v3478
        %v3499 = vsel %vm755, 0, %v3361
        %v3500 = vsel %vm755, 0, %v3368
        %v3501 = vsel %vm755, 0, %v3375
        %v3502 = vsel %vm755, 0, %v3382
        %v3503 = vsel %vm755, 0, %v3389
        %v3504 = vsel %vm755, 0, %v3396
        %v3505 = vsel %vm755, 0, %v3403
        %v3506 = vsel %vm755, 0, %v3410
        %v3507 = vsel %vm755, 0, %v3417
        %v3508 = vsel %vm755, 0, %v3424
        %v3509 = vsel %vm755, 0, %v3431
        %v3510 = vsel %vm755, 0, %v3438
        %v3511 = vsel %vm755, 0, %v3445
        %v3512 = vsel %vm755, 0, %v3452
        %v3513 = vsel %vm755, 0, %v3459
        %v3514 = vsel %vm755, 0, %v3466
        %v3515 = vsel %vm755, 0, %v3473
        %v3516 = vsel %vm755, 0, %v3480
        %v3517 = vld [vmem:[#allocation3] sm:$0xf]
        %v3518 = vld [vmem:[#allocation3 + $0x4] sm:$0xf]
        %v3519 = vld [vmem:[#allocation3 + $0x8] sm:$0xf]
        %v3520 = vld [vmem:[#allocation3 + $0xc] sm:$0xf]
        %v3521 = vld [vmem:[#allocation3 + $0x10] sm:$0xf]
        %v3522 = vld [vmem:[#allocation3 + $0x14] sm:$0xf]
        %v3523 = vld [vmem:[#allocation3 + $0x18] sm:$0xf]
        %v3524 = vld [vmem:[#allocation3 + $0x1c] sm:$0xf]
        %v3525 = vld [vmem:[#allocation3 + $0x20] sm:$0xf]
        %v3526 = vld [vmem:[#allocation3 + $0x24] sm:$0xf]
        %v3527 = vld [vmem:[#allocation3 + $0x28] sm:$0xf]
        %v3528 = vld [vmem:[#allocation3 + $0x2c] sm:$0xf]
        %v3529 = vld [vmem:[#allocation3 + $0x30] sm:$0xf]
        %v3530 = vld [vmem:[#allocation3 + $0x34] sm:$0xf]
        %v3531 = vld [vmem:[#allocation3 + $0x38] sm:$0xf]
        %v3532 = vld [vmem:[#allocation3 + $0x3c] sm:$0xf]
        %s3533 = scalar_lea.vmem [#allocation3], 192
        %v3534 = vld [vmem:[%s3533] sm:$0xf]
        %v3535 = vld [vmem:[%s3533 + $0x4] sm:$0xf]
        %v3536 = vld [vmem:[%s3533 + $0x8] sm:$0xf]
        %v3537 = vld [vmem:[%s3533 + $0xc] sm:$0xf]
        %v3538 = vld [vmem:[%s3533 + $0x10] sm:$0xf]
        %v3539 = vld [vmem:[%s3533 + $0x14] sm:$0xf]
        %v3540 = vld [vmem:[%s3533 + $0x18] sm:$0xf]
        %v3541 = vld [vmem:[%s3533 + $0x1c] sm:$0xf]
        %v3542 = vld [vmem:[%s3533 + $0x20] sm:$0xf]
        %v3543 = vld [vmem:[%s3533 + $0x24] sm:$0xf]
        %v3544 = vld [vmem:[%s3533 + $0x28] sm:$0xf]
        %v3545 = vld [vmem:[%s3533 + $0x2c] sm:$0xf]
        %v3546 = vld [vmem:[%s3533 + $0x30] sm:$0xf]
        %v3547 = vld [vmem:[%s3533 + $0x34] sm:$0xf]
        %v3548 = vld [vmem:[%s3533 + $0x38] sm:$0xf]
        %v3549 = vld [vmem:[%s3533 + $0x3c] sm:$0xf]
        %v3566 = vunpack.c.l.b16 %v3534
        %v3567 = vunpack.c.l.b16 %v3535
        %v3568 = vunpack.c.l.b16 %v3536
        %v3569 = vunpack.c.l.b16 %v3537
        %v3570 = vunpack.c.l.b16 %v3538
        %v3571 = vunpack.c.l.b16 %v3539
        %v3572 = vunpack.c.l.b16 %v3540
        %v3573 = vunpack.c.l.b16 %v3541
        %v3574 = vunpack.c.l.b16 %v3542
        %v3575 = vunpack.c.l.b16 %v3543
        %v3576 = vunpack.c.l.b16 %v3544
        %v3577 = vunpack.c.l.b16 %v3545
        %v3578 = vunpack.c.l.b16 %v3546
        %v3579 = vunpack.c.l.b16 %v3547
        %v3580 = vunpack.c.l.b16 %v3548
        %v3581 = vunpack.c.l.b16 %v3549
        %v3582 = vpack.c.b16 %v3567, %v3566
        %v3583 = vpack.c.b16 %v3569, %v3568
        %v3584 = vpack.c.b16 %v3571, %v3570
        %v3585 = vpack.c.b16 %v3573, %v3572
        %v3586 = vpack.c.b16 %v3575, %v3574
        %v3587 = vpack.c.b16 %v3577, %v3576
        %v3588 = vpack.c.b16 %v3579, %v3578
        %v3589 = vpack.c.b16 %v3581, %v3580
        %3598 = vmatprep.subr.bf16.mxu0 0
        %3599 = vmatpush1.bf16.msra.mxu0 %v3582
        %3600 = vmatprep.subr.bf16.mxu0 0
        %3601 = vmatpush1.bf16.msra.mxu0 %v3583
        %3602 = vmatprep.subr.bf16.mxu0 0
        %3603 = vmatpush1.bf16.msra.mxu0 %v3584
        %3604 = vmatprep.subr.bf16.mxu0 0
        %3605 = vmatpush1.bf16.msra.mxu0 %v3585
        %3606 = vmatprep.subr.bf16.mxu0 0
        %3607 = vmatpush1.bf16.msra.mxu0 %v3586
        %3608 = vmatprep.subr.bf16.mxu0 0
        %3609 = vmatpush1.bf16.msra.mxu0 %v3587
        %3610 = vmatprep.subr.bf16.mxu0 0
        %3611 = vmatpush1.bf16.msra.mxu0 %v3588
        %3612 = vmatprep.subr.bf16.mxu0 0
        %3613 = vmatpush1.bf16.msra.mxu0 %v3589
        %3614 = vmatprep.subr.bf16.mxu0 0
        %3615 = vmatpush1.bf16.msra.mxu0 0
        %3616 = vmatprep.subr.bf16.mxu0 0
        %3617 = vmatpush1.bf16.msra.mxu0 0
        %3618 = vmatprep.subr.bf16.mxu0 0
        %3619 = vmatpush1.bf16.msra.mxu0 0
        %3620 = vmatprep.subr.bf16.mxu0 0
        %3621 = vmatpush1.bf16.msra.mxu0 0
        %3622 = vmatprep.subr.bf16.mxu0 0
        %3623 = vmatpush1.bf16.msra.mxu0 0
        %3624 = vmatprep.subr.bf16.mxu0 0
        %3625 = vmatpush1.bf16.msra.mxu0 0
        %3626 = vmatprep.subr.bf16.mxu0 0
        %3627 = vmatpush1.bf16.msra.mxu0 0
        %3628 = vmatprep.subr.bf16.mxu0 0
        %3629 = vmatpush1.bf16.msra.mxu0 0
        %3630 = vmatprep.mubr.bf16.mxu0 0
        %3631 = vmatmul.mubr.bf16.gmra.mrb[0].mxu0 %v3500
        %v3632 = vpop.f32.mrb[0].mxu0
        %v3633 = vadd.f32 0.0, %v3632
        %v3634 = vpop.f32.mrb[0].mxu0
        %v3635 = vpop.f32.mrb[0].mxu0
        %v3636 = vadd.f32 0.0, %v3635
        %v3637 = vpop.f32.mrb[0].mxu0
        %3638 = vmatprep.mubr.bf16.mxu0 0
        %3639 = vmatmul.mubr.bf16.gmra.mrb[0].mxu0 %v3501
        %v3640 = vpop.f32.mrb[0].mxu0
        %v3641 = vadd.f32 0.0, %v3640
        %v3642 = vpop.f32.mrb[0].mxu0
        %v3643 = vpop.f32.mrb[0].mxu0
        %v3644 = vadd.f32 0.0, %v3643
        %v3645 = vpop.f32.mrb[0].mxu0
        %3646 = vmatprep.mubr.bf16.mxu0 0
        %3647 = vmatmul.mubr.bf16.gmra.mrb[0].mxu0 %v3502
        %v3648 = vpop.f32.mrb[0].mxu0
        %v3649 = vadd.f32 0.0, %v3648
        %v3650 = vpop.f32.mrb[0].mxu0
        %v3651 = vpop.f32.mrb[0].mxu0
        %v3652 = vadd.f32 0.0, %v3651
        %v3653 = vpop.f32.mrb[0].mxu0
        %3654 = vmatprep.mubr.bf16.mxu0 0
        %3655 = vmatmul.mubr.bf16.gmra.mrb[0].mxu0 %v3503
        %v3656 = vpop.f32.mrb[0].mxu0
        %v3657 = vadd.f32 0.0, %v3656
        %v3658 = vpop.f32.mrb[0].mxu0
        %v3659 = vpop.f32.mrb[0].mxu0
        %v3660 = vadd.f32 0.0, %v3659
        %v3661 = vpop.f32.mrb[0].mxu0
        %3662 = vmatprep.mubr.bf16.mxu0 0
        %3663 = vmatmul.mubr.bf16.gmra.mrb[0].mxu0 %v3504
        %v3664 = vpop.f32.mrb[0].mxu0
        %v3665 = vadd.f32 0.0, %v3664
        %v3666 = vpop.f32.mrb[0].mxu0
        %v3667 = vpop.f32.mrb[0].mxu0
        %v3668 = vadd.f32 0.0, %v3667
        %v3669 = vpop.f32.mrb[0].mxu0
        %3670 = vmatprep.mubr.bf16.mxu0 0
        %3671 = vmatmul.mubr.bf16.gmra.mrb[0].mxu0 %v3505
        %v3672 = vpop.f32.mrb[0].mxu0
        %v3673 = vadd.f32 0.0, %v3672
        %v3674 = vpop.f32.mrb[0].mxu0
        %v3675 = vpop.f32.mrb[0].mxu0
        %v3676 = vadd.f32 0.0, %v3675
        %v3677 = vpop.f32.mrb[0].mxu0
        %3678 = vmatprep.mubr.bf16.mxu0 0
        %3679 = vmatmul.mubr.bf16.gmra.mrb[0].mxu0 %v3506
        %v3680 = vpop.f32.mrb[0].mxu0
        %v3681 = vadd.f32 0.0, %v3680
        %v3682 = vpop.f32.mrb[0].mxu0
        %v3683 = vpop.f32.mrb[0].mxu0
        %v3684 = vadd.f32 0.0, %v3683
        %v3685 = vpop.f32.mrb[0].mxu0
        %3686 = vmatprep.mubr.bf16.mxu0 0
        %3687 = vmatmul.mubr.bf16.gmra.mrb[0].mxu0 %v3507
        %v3688 = vpop.f32.mrb[0].mxu0
        %v3689 = vadd.f32 0.0, %v3688
        %v3690 = vpop.f32.mrb[0].mxu0
        %v3691 = vpop.f32.mrb[0].mxu0
        %v3692 = vadd.f32 0.0, %v3691
        %v3693 = vpop.f32.mrb[0].mxu0
        %3694 = vmatprep.mubr.bf16.mxu0 0
        %3695 = vmatmul.mubr.bf16.gmra.mrb[0].mxu0 %v3508
        %v3696 = vpop.f32.mrb[0].mxu0
        %v3697 = vadd.f32 0.0, %v3696
        %v3698 = vpop.f32.mrb[0].mxu0
        %v3699 = vpop.f32.mrb[0].mxu0
        %v3700 = vadd.f32 0.0, %v3699
        %v3701 = vpop.f32.mrb[0].mxu0
        %3702 = vmatprep.mubr.bf16.mxu0 0
        %3703 = vmatmul.mubr.bf16.gmra.mrb[0].mxu0 %v3509
        %v3704 = vpop.f32.mrb[0].mxu0
        %v3705 = vadd.f32 0.0, %v3704
        %v3706 = vpop.f32.mrb[0].mxu0
        %v3707 = vpop.f32.mrb[0].mxu0
        %v3708 = vadd.f32 0.0, %v3707
        %v3709 = vpop.f32.mrb[0].mxu0
        %3710 = vmatprep.mubr.bf16.mxu0 0
        %3711 = vmatmul.mubr.bf16.gmra.mrb[0].mxu0 %v3510
        %v3712 = vpop.f32.mrb[0].mxu0
        %v3713 = vadd.f32 0.0, %v3712
        %v3714 = vpop.f32.mrb[0].mxu0
        %v3715 = vpop.f32.mrb[0].mxu0
        %v3716 = vadd.f32 0.0, %v3715
        %v3717 = vpop.f32.mrb[0].mxu0
        %3718 = vmatprep.mubr.bf16.mxu0 0
        %3719 = vmatmul.mubr.bf16.gmra.mrb[0].mxu0 %v3511
        %v3720 = vpop.f32.mrb[0].mxu0
        %v3721 = vadd.f32 0.0, %v3720
        %v3722 = vpop.f32.mrb[0].mxu0
        %v3723 = vpop.f32.mrb[0].mxu0
        %v3724 = vadd.f32 0.0, %v3723
        %v3725 = vpop.f32.mrb[0].mxu0
        %3726 = vmatprep.mubr.bf16.mxu0 0
        %3727 = vmatmul.mubr.bf16.gmra.mrb[0].mxu0 %v3512
        %v3728 = vpop.f32.mrb[0].mxu0
        %v3729 = vadd.f32 0.0, %v3728
        %v3730 = vpop.f32.mrb[0].mxu0
        %v3731 = vpop.f32.mrb[0].mxu0
        %v3732 = vadd.f32 0.0, %v3731
        %v3733 = vpop.f32.mrb[0].mxu0
        %3734 = vmatprep.mubr.bf16.mxu0 0
        %3735 = vmatmul.mubr.bf16.gmra.mrb[0].mxu0 %v3513
        %v3736 = vpop.f32.mrb[0].mxu0
        %v3737 = vadd.f32 0.0, %v3736
        %v3738 = vpop.f32.mrb[0].mxu0
        %v3739 = vpop.f32.mrb[0].mxu0
        %v3740 = vadd.f32 0.0, %v3739
        %v3741 = vpop.f32.mrb[0].mxu0
        %3742 = vmatprep.mubr.bf16.mxu0 0
        %3743 = vmatmul.mubr.bf16.gmra.mrb[0].mxu0 %v3514
        %v3744 = vpop.f32.mrb[0].mxu0
        %v3745 = vadd.f32 0.0, %v3744
        %v3746 = vpop.f32.mrb[0].mxu0
        %v3747 = vpop.f32.mrb[0].mxu0
        %v3748 = vadd.f32 0.0, %v3747
        %v3749 = vpop.f32.mrb[0].mxu0
        %3750 = vmatprep.mubr.bf16.mxu0 0
        %3751 = vmatmul.mubr.bf16.gmra.mrb[0].mxu0 %v3515
        %v3752 = vpop.f32.mrb[0].mxu0
        %v3753 = vadd.f32 0.0, %v3752
        %v3754 = vpop.f32.mrb[0].mxu0
        %v3755 = vpop.f32.mrb[0].mxu0
        %v3756 = vadd.f32 0.0, %v3755
        %v3757 = vpop.f32.mrb[0].mxu0
        %3758 = vdwg.mxu0
        %v3775 = vunpack.c.l.b16 %v3517
        %v3776 = vunpack.c.l.b16 %v3518
        %v3777 = vunpack.c.l.b16 %v3519
        %v3778 = vunpack.c.l.b16 %v3520
        %v3779 = vunpack.c.l.b16 %v3521
        %v3780 = vunpack.c.l.b16 %v3522
        %v3781 = vunpack.c.l.b16 %v3523
        %v3782 = vunpack.c.l.b16 %v3524
        %v3783 = vunpack.c.l.b16 %v3525
        %v3784 = vunpack.c.l.b16 %v3526
        %v3785 = vunpack.c.l.b16 %v3527
        %v3786 = vunpack.c.l.b16 %v3528
        %v3787 = vunpack.c.l.b16 %v3529
        %v3788 = vunpack.c.l.b16 %v3530
        %v3789 = vunpack.c.l.b16 %v3531
        %v3790 = vunpack.c.l.b16 %v3532
        %v3791 = vpack.c.b16 %v3776, %v3775
        %v3792 = vpack.c.b16 %v3778, %v3777
        %v3793 = vpack.c.b16 %v3780, %v3779
        %v3794 = vpack.c.b16 %v3782, %v3781
        %v3795 = vpack.c.b16 %v3784, %v3783
        %v3796 = vpack.c.b16 %v3786, %v3785
        %v3797 = vpack.c.b16 %v3788, %v3787
        %v3798 = vpack.c.b16 %v3790, %v3789
        %3807 = vmatprep.subr.bf16.mxu0 0
        %3808 = vmatpush1.bf16.msra.mxu0 %v3791
        %3809 = vmatprep.subr.bf16.mxu0 0
        %3810 = vmatpush1.bf16.msra.mxu0 %v3792
        %3811 = vmatprep.subr.bf16.mxu0 0
        %3812 = vmatpush1.bf16.msra.mxu0 %v3793
        %3813 = vmatprep.subr.bf16.mxu0 0
        %3814 = vmatpush1.bf16.msra.mxu0 %v3794
        %3815 = vmatprep.subr.bf16.mxu0 0
        %3816 = vmatpush1.bf16.msra.mxu0 %v3795
        %3817 = vmatprep.subr.bf16.mxu0 0
        %3818 = vmatpush1.bf16.msra.mxu0 %v3796
        %3819 = vmatprep.subr.bf16.mxu0 0
        %3820 = vmatpush1.bf16.msra.mxu0 %v3797
        %3821 = vmatprep.subr.bf16.mxu0 0
        %3822 = vmatpush1.bf16.msra.mxu0 %v3798
        %3823 = vmatprep.subr.bf16.mxu0 0
        %3824 = vmatpush1.bf16.msra.mxu0 0
        %3825 = vmatprep.subr.bf16.mxu0 0
        %3826 = vmatpush1.bf16.msra.mxu0 0
        %3827 = vmatprep.subr.bf16.mxu0 0
        %3828 = vmatpush1.bf16.msra.mxu0 0
        %3829 = vmatprep.subr.bf16.mxu0 0
        %3830 = vmatpush1.bf16.msra.mxu0 0
        %3831 = vmatprep.subr.bf16.mxu0 0
        %3832 = vmatpush1.bf16.msra.mxu0 0
        %3833 = vmatprep.subr.bf16.mxu0 0
        %3834 = vmatpush1.bf16.msra.mxu0 0
        %3835 = vmatprep.subr.bf16.mxu0 0
        %3836 = vmatpush1.bf16.msra.mxu0 0
        %3837 = vmatprep.subr.bf16.mxu0 0
        %3838 = vmatpush1.bf16.msra.mxu0 0
        %3839 = vmatprep.mubr.bf16.mxu0 0
        %3840 = vmatmul.mubr.bf16.gmra.mrb[0].mxu0 %v3499
        %v3841 = vpop.f32.mrb[0].mxu0
        %v3842 = vadd.f32 %v3633, %v3841
        %v3843 = vpop.f32.mrb[0].mxu0
        %v3844 = vpop.f32.mrb[0].mxu0
        %v3845 = vadd.f32 %v3636, %v3844
        %v3846 = vpop.f32.mrb[0].mxu0
        %3847 = vmatprep.mubr.bf16.mxu0 0
        %3848 = vmatmul.mubr.bf16.gmra.mrb[0].mxu0 %v3500
        %v3849 = vpop.f32.mrb[0].mxu0
        %v3850 = vadd.f32 %v3641, %v3849
        %v3851 = vpop.f32.mrb[0].mxu0
        %v3852 = vpop.f32.mrb[0].mxu0
        %v3853 = vadd.f32 %v3644, %v3852
        %v3854 = vpop.f32.mrb[0].mxu0
        %3855 = vmatprep.mubr.bf16.mxu0 0
        %3856 = vmatmul.mubr.bf16.gmra.mrb[0].mxu0 %v3501
        %v3857 = vpop.f32.mrb[0].mxu0
        %v3858 = vadd.f32 %v3649, %v3857
        %v3859 = vpop.f32.mrb[0].mxu0
        %v3860 = vpop.f32.mrb[0].mxu0
        %v3861 = vadd.f32 %v3652, %v3860
        %v3862 = vpop.f32.mrb[0].mxu0
        %3863 = vmatprep.mubr.bf16.mxu0 0
        %3864 = vmatmul.mubr.bf16.gmra.mrb[0].mxu0 %v3502
        %v3865 = vpop.f32.mrb[0].mxu0
        %v3866 = vadd.f32 %v3657, %v3865
        %v3867 = vpop.f32.mrb[0].mxu0
        %v3868 = vpop.f32.mrb[0].mxu0
        %v3869 = vadd.f32 %v3660, %v3868
        %v3870 = vpop.f32.mrb[0].mxu0
        %3871 = vmatprep.mubr.bf16.mxu0 0
        %3872 = vmatmul.mubr.bf16.gmra.mrb[0].mxu0 %v3503
        %v3873 = vpop.f32.mrb[0].mxu0
        %v3874 = vadd.f32 %v3665, %v3873
        %v3875 = vpop.f32.mrb[0].mxu0
        %v3876 = vpop.f32.mrb[0].mxu0
        %v3877 = vadd.f32 %v3668, %v3876
        %v3878 = vpop.f32.mrb[0].mxu0
        %3879 = vmatprep.mubr.bf16.mxu0 0
        %3880 = vmatmul.mubr.bf16.gmra.mrb[0].mxu0 %v3504
        %v3881 = vpop.f32.mrb[0].mxu0
        %v3882 = vadd.f32 %v3673, %v3881
        %v3883 = vpop.f32.mrb[0].mxu0
        %v3884 = vpop.f32.mrb[0].mxu0
        %v3885 = vadd.f32 %v3676, %v3884
        %v3886 = vpop.f32.mrb[0].mxu0
        %3887 = vmatprep.mubr.bf16.mxu0 0
        %3888 = vmatmul.mubr.bf16.gmra.mrb[0].mxu0 %v3505
        %v3889 = vpop.f32.mrb[0].mxu0
        %v3890 = vadd.f32 %v3681, %v3889
        %v3891 = vpop.f32.mrb[0].mxu0
        %v3892 = vpop.f32.mrb[0].mxu0
        %v3893 = vadd.f32 %v3684, %v3892
        %v3894 = vpop.f32.mrb[0].mxu0
        %3895 = vmatprep.mubr.bf16.mxu0 0
        %3896 = vmatmul.mubr.bf16.gmra.mrb[0].mxu0 %v3506
        %v3897 = vpop.f32.mrb[0].mxu0
        %v3898 = vadd.f32 %v3689, %v3897
        %v3899 = vpop.f32.mrb[0].mxu0
        %v3900 = vpop.f32.mrb[0].mxu0
        %v3901 = vadd.f32 %v3692, %v3900
        %v3902 = vpop.f32.mrb[0].mxu0
        %3903 = vmatprep.mubr.bf16.mxu0 0
        %3904 = vmatmul.mubr.bf16.gmra.mrb[0].mxu0 %v3507
        %v3905 = vpop.f32.mrb[0].mxu0
        %v3906 = vadd.f32 %v3697, %v3905
        %v3907 = vpop.f32.mrb[0].mxu0
        %v3908 = vpop.f32.mrb[0].mxu0
        %v3909 = vadd.f32 %v3700, %v3908
        %v3910 = vpop.f32.mrb[0].mxu0
        %3911 = vmatprep.mubr.bf16.mxu0 0
        %3912 = vmatmul.mubr.bf16.gmra.mrb[0].mxu0 %v3508
        %v3913 = vpop.f32.mrb[0].mxu0
        %v3914 = vadd.f32 %v3705, %v3913
        %v3915 = vpop.f32.mrb[0].mxu0
        %v3916 = vpop.f32.mrb[0].mxu0
        %v3917 = vadd.f32 %v3708, %v3916
        %v3918 = vpop.f32.mrb[0].mxu0
        %3919 = vmatprep.mubr.bf16.mxu0 0
        %3920 = vmatmul.mubr.bf16.gmra.mrb[0].mxu0 %v3509
        %v3921 = vpop.f32.mrb[0].mxu0
        %v3922 = vadd.f32 %v3713, %v3921
        %v3923 = vpop.f32.mrb[0].mxu0
        %v3924 = vpop.f32.mrb[0].mxu0
        %v3925 = vadd.f32 %v3716, %v3924
        %v3926 = vpop.f32.mrb[0].mxu0
        %3927 = vmatprep.mubr.bf16.mxu0 0
        %3928 = vmatmul.mubr.bf16.gmra.mrb[0].mxu0 %v3510
        %v3929 = vpop.f32.mrb[0].mxu0
        %v3930 = vadd.f32 %v3721, %v3929
        %v3931 = vpop.f32.mrb[0].mxu0
        %v3932 = vpop.f32.mrb[0].mxu0
        %v3933 = vadd.f32 %v3724, %v3932
        %v3934 = vpop.f32.mrb[0].mxu0
        %3935 = vmatprep.mubr.bf16.mxu0 0
        %3936 = vmatmul.mubr.bf16.gmra.mrb[0].mxu0 %v3511
        %v3937 = vpop.f32.mrb[0].mxu0
        %v3938 = vadd.f32 %v3729, %v3937
        %v3939 = vpop.f32.mrb[0].mxu0
        %v3940 = vpop.f32.mrb[0].mxu0
        %v3941 = vadd.f32 %v3732, %v3940
        %v3942 = vpop.f32.mrb[0].mxu0
        %3943 = vmatprep.mubr.bf16.mxu0 0
        %3944 = vmatmul.mubr.bf16.gmra.mrb[0].mxu0 %v3512
        %v3945 = vpop.f32.mrb[0].mxu0
        %v3946 = vadd.f32 %v3737, %v3945
        %v3947 = vpop.f32.mrb[0].mxu0
        %v3948 = vpop.f32.mrb[0].mxu0
        %v3949 = vadd.f32 %v3740, %v3948
        %v3950 = vpop.f32.mrb[0].mxu0
        %3951 = vmatprep.mubr.bf16.mxu0 0
        %3952 = vmatmul.mubr.bf16.gmra.mrb[0].mxu0 %v3513
        %v3953 = vpop.f32.mrb[0].mxu0
        %v3954 = vadd.f32 %v3745, %v3953
        %v3955 = vpop.f32.mrb[0].mxu0
        %v3956 = vpop.f32.mrb[0].mxu0
        %v3957 = vadd.f32 %v3748, %v3956
        %v3958 = vpop.f32.mrb[0].mxu0
        %3959 = vmatprep.mubr.bf16.mxu0 0
        %3960 = vmatmul.mubr.bf16.gmra.mrb[0].mxu0 %v3514
        %v3961 = vpop.f32.mrb[0].mxu0
        %v3962 = vadd.f32 %v3753, %v3961
        %v3963 = vpop.f32.mrb[0].mxu0
        %v3964 = vpop.f32.mrb[0].mxu0
        %v3965 = vadd.f32 %v3756, %v3964
        %v3966 = vpop.f32.mrb[0].mxu0
        %3967 = vdwg.mxu0
        %s3968 = scalar_lea.vmem [#allocation3], 384
        %v3969 = vld [vmem:[%s3968] sm:$0xf]
        %v3970 = vld [vmem:[%s3968 + $0x4] sm:$0xf]
        %v3971 = vld [vmem:[%s3968 + $0x8] sm:$0xf]
        %v3972 = vld [vmem:[%s3968 + $0xc] sm:$0xf]
        %v3973 = vld [vmem:[%s3968 + $0x10] sm:$0xf]
        %v3974 = vld [vmem:[%s3968 + $0x14] sm:$0xf]
        %v3975 = vld [vmem:[%s3968 + $0x18] sm:$0xf]
        %v3976 = vld [vmem:[%s3968 + $0x1c] sm:$0xf]
        %v3977 = vld [vmem:[%s3968 + $0x20] sm:$0xf]
        %v3978 = vld [vmem:[%s3968 + $0x24] sm:$0xf]
        %v3979 = vld [vmem:[%s3968 + $0x28] sm:$0xf]
        %v3980 = vld [vmem:[%s3968 + $0x2c] sm:$0xf]
        %v3981 = vld [vmem:[%s3968 + $0x30] sm:$0xf]
        %v3982 = vld [vmem:[%s3968 + $0x34] sm:$0xf]
        %v3983 = vld [vmem:[%s3968 + $0x38] sm:$0xf]
        %v3984 = vld [vmem:[%s3968 + $0x3c] sm:$0xf]
        %v4001 = vunpack.c.l.b16 %v3969
        %v4002 = vunpack.c.l.b16 %v3970
        %v4003 = vunpack.c.l.b16 %v3971
        %v4004 = vunpack.c.l.b16 %v3972
        %v4005 = vunpack.c.l.b16 %v3973
        %v4006 = vunpack.c.l.b16 %v3974
        %v4007 = vunpack.c.l.b16 %v3975
        %v4008 = vunpack.c.l.b16 %v3976
        %v4009 = vunpack.c.l.b16 %v3977
        %v4010 = vunpack.c.l.b16 %v3978
        %v4011 = vunpack.c.l.b16 %v3979
        %v4012 = vunpack.c.l.b16 %v3980
        %v4013 = vunpack.c.l.b16 %v3981
        %v4014 = vunpack.c.l.b16 %v3982
        %v4015 = vunpack.c.l.b16 %v3983
        %v4016 = vunpack.c.l.b16 %v3984
        %v4017 = vpack.c.b16 %v4002, %v4001
        %v4018 = vpack.c.b16 %v4004, %v4003
        %v4019 = vpack.c.b16 %v4006, %v4005
        %v4020 = vpack.c.b16 %v4008, %v4007
        %v4021 = vpack.c.b16 %v4010, %v4009
        %v4022 = vpack.c.b16 %v4012, %v4011
        %v4023 = vpack.c.b16 %v4014, %v4013
        %v4024 = vpack.c.b16 %v4016, %v4015
        %4033 = vmatprep.subr.bf16.mxu0 0
        %4034 = vmatpush1.bf16.msra.mxu0 %v4017
        %4035 = vmatprep.subr.bf16.mxu0 0
        %4036 = vmatpush1.bf16.msra.mxu0 %v4018
        %4037 = vmatprep.subr.bf16.mxu0 0
        %4038 = vmatpush1.bf16.msra.mxu0 %v4019
        %4039 = vmatprep.subr.bf16.mxu0 0
        %4040 = vmatpush1.bf16.msra.mxu0 %v4020
        %4041 = vmatprep.subr.bf16.mxu0 0
        %4042 = vmatpush1.bf16.msra.mxu0 %v4021
        %4043 = vmatprep.subr.bf16.mxu0 0
        %4044 = vmatpush1.bf16.msra.mxu0 %v4022
        %4045 = vmatprep.subr.bf16.mxu0 0
        %4046 = vmatpush1.bf16.msra.mxu0 %v4023
        %4047 = vmatprep.subr.bf16.mxu0 0
        %4048 = vmatpush1.bf16.msra.mxu0 %v4024
        %4049 = vmatprep.subr.bf16.mxu0 0
        %4050 = vmatpush1.bf16.msra.mxu0 0
        %4051 = vmatprep.subr.bf16.mxu0 0
        %4052 = vmatpush1.bf16.msra.mxu0 0
        %4053 = vmatprep.subr.bf16.mxu0 0
        %4054 = vmatpush1.bf16.msra.mxu0 0
        %4055 = vmatprep.subr.bf16.mxu0 0
        %4056 = vmatpush1.bf16.msra.mxu0 0
        %4057 = vmatprep.subr.bf16.mxu0 0
        %4058 = vmatpush1.bf16.msra.mxu0 0
        %4059 = vmatprep.subr.bf16.mxu0 0
        %4060 = vmatpush1.bf16.msra.mxu0 0
        %4061 = vmatprep.subr.bf16.mxu0 0
        %4062 = vmatpush1.bf16.msra.mxu0 0
        %4063 = vmatprep.subr.bf16.mxu0 0
        %4064 = vmatpush1.bf16.msra.mxu0 0
        %4065 = vmatprep.mubr.bf16.mxu0 0
        %4066 = vmatmul.mubr.bf16.gmra.mrb[0].mxu0 %v3501
        %v4067 = vpop.f32.mrb[0].mxu0
        %v4068 = vadd.f32 0.0, %v4067
        %v4069 = vpop.f32.mrb[0].mxu0
        %v4070 = vpop.f32.mrb[0].mxu0
        %v4071 = vadd.f32 0.0, %v4070
        %v4072 = vpop.f32.mrb[0].mxu0
        %4073 = vmatprep.mubr.bf16.mxu0 0
        %4074 = vmatmul.mubr.bf16.gmra.mrb[0].mxu0 %v3502
        %v4075 = vpop.f32.mrb[0].mxu0
        %v4076 = vadd.f32 0.0, %v4075
        %v4077 = vpop.f32.mrb[0].mxu0
        %v4078 = vpop.f32.mrb[0].mxu0
        %v4079 = vadd.f32 0.0, %v4078
        %v4080 = vpop.f32.mrb[0].mxu0
        %4081 = vmatprep.mubr.bf16.mxu0 0
        %4082 = vmatmul.mubr.bf16.gmra.mrb[0].mxu0 %v3503
        %v4083 = vpop.f32.mrb[0].mxu0
        %v4084 = vadd.f32 0.0, %v4083
        %v4085 = vpop.f32.mrb[0].mxu0
        %v4086 = vpop.f32.mrb[0].mxu0
        %v4087 = vadd.f32 0.0, %v4086
        %v4088 = vpop.f32.mrb[0].mxu0
        %4089 = vmatprep.mubr.bf16.mxu0 0
        %4090 = vmatmul.mubr.bf16.gmra.mrb[0].mxu0 %v3504
        %v4091 = vpop.f32.mrb[0].mxu0
        %v4092 = vadd.f32 0.0, %v4091
        %v4093 = vpop.f32.mrb[0].mxu0
        %v4094 = vpop.f32.mrb[0].mxu0
        %v4095 = vadd.f32 0.0, %v4094
        %v4096 = vpop.f32.mrb[0].mxu0
        %4097 = vmatprep.mubr.bf16.mxu0 0
        %4098 = vmatmul.mubr.bf16.gmra.mrb[0].mxu0 %v3505
        %v4099 = vpop.f32.mrb[0].mxu0
        %v4100 = vadd.f32 0.0, %v4099
        %v4101 = vpop.f32.mrb[0].mxu0
        %v4102 = vpop.f32.mrb[0].mxu0
        %v4103 = vadd.f32 0.0, %v4102
        %v4104 = vpop.f32.mrb[0].mxu0
        %4105 = vmatprep.mubr.bf16.mxu0 0
        %4106 = vmatmul.mubr.bf16.gmra.mrb[0].mxu0 %v3506
        %v4107 = vpop.f32.mrb[0].mxu0
        %v4108 = vadd.f32 0.0, %v4107
        %v4109 = vpop.f32.mrb[0].mxu0
        %v4110 = vpop.f32.mrb[0].mxu0
        %v4111 = vadd.f32 0.0, %v4110
        %v4112 = vpop.f32.mrb[0].mxu0
        %4113 = vmatprep.mubr.bf16.mxu0 0
        %4114 = vmatmul.mubr.bf16.gmra.mrb[0].mxu0 %v3507
        %v4115 = vpop.f32.mrb[0].mxu0
        %v4116 = vadd.f32 0.0, %v4115
        %v4117 = vpop.f32.mrb[0].mxu0
        %v4118 = vpop.f32.mrb[0].mxu0
        %v4119 = vadd.f32 0.0, %v4118
        %v4120 = vpop.f32.mrb[0].mxu0
        %4121 = vmatprep.mubr.bf16.mxu0 0
        %4122 = vmatmul.mubr.bf16.gmra.mrb[0].mxu0 %v3508
        %v4123 = vpop.f32.mrb[0].mxu0
        %v4124 = vadd.f32 0.0, %v4123
        %v4125 = vpop.f32.mrb[0].mxu0
        %v4126 = vpop.f32.mrb[0].mxu0
        %v4127 = vadd.f32 0.0, %v4126
        %v4128 = vpop.f32.mrb[0].mxu0
        %4129 = vmatprep.mubr.bf16.mxu0 0
        %4130 = vmatmul.mubr.bf16.gmra.mrb[0].mxu0 %v3509
        %v4131 = vpop.f32.mrb[0].mxu0
        %v4132 = vadd.f32 0.0, %v4131
        %v4133 = vpop.f32.mrb[0].mxu0
        %v4134 = vpop.f32.mrb[0].mxu0
        %v4135 = vadd.f32 0.0, %v4134
        %v4136 = vpop.f32.mrb[0].mxu0
        %4137 = vmatprep.mubr.bf16.mxu0 0
        %4138 = vmatmul.mubr.bf16.gmra.mrb[0].mxu0 %v3510
        %v4139 = vpop.f32.mrb[0].mxu0
        %v4140 = vadd.f32 0.0, %v4139
        %v4141 = vpop.f32.mrb[0].mxu0
        %v4142 = vpop.f32.mrb[0].mxu0
        %v4143 = vadd.f32 0.0, %v4142
        %v4144 = vpop.f32.mrb[0].mxu0
        %4145 = vmatprep.mubr.bf16.mxu0 0
        %4146 = vmatmul.mubr.bf16.gmra.mrb[0].mxu0 %v3511
        %v4147 = vpop.f32.mrb[0].mxu0
        %v4148 = vadd.f32 0.0, %v4147
        %v4149 = vpop.f32.mrb[0].mxu0
        %v4150 = vpop.f32.mrb[0].mxu0
        %v4151 = vadd.f32 0.0, %v4150
        %v4152 = vpop.f32.mrb[0].mxu0
        %4153 = vmatprep.mubr.bf16.mxu0 0
        %4154 = vmatmul.mubr.bf16.gmra.mrb[0].mxu0 %v3512
        %v4155 = vpop.f32.mrb[0].mxu0
        %v4156 = vadd.f32 0.0, %v4155
        %v4157 = vpop.f32.mrb[0].mxu0
        %v4158 = vpop.f32.mrb[0].mxu0
        %v4159 = vadd.f32 0.0, %v4158
        %v4160 = vpop.f32.mrb[0].mxu0
        %4161 = vmatprep.mubr.bf16.mxu0 0
        %4162 = vmatmul.mubr.bf16.gmra.mrb[0].mxu0 %v3513
        %v4163 = vpop.f32.mrb[0].mxu0
        %v4164 = vadd.f32 0.0, %v4163
        %v4165 = vpop.f32.mrb[0].mxu0
        %v4166 = vpop.f32.mrb[0].mxu0
        %v4167 = vadd.f32 0.0, %v4166
        %v4168 = vpop.f32.mrb[0].mxu0
        %4169 = vmatprep.mubr.bf16.mxu0 0
        %4170 = vmatmul.mubr.bf16.gmra.mrb[0].mxu0 %v3514
        %v4171 = vpop.f32.mrb[0].mxu0
        %v4172 = vadd.f32 0.0, %v4171
        %v4173 = vpop.f32.mrb[0].mxu0
        %v4174 = vpop.f32.mrb[0].mxu0
        %v4175 = vadd.f32 0.0, %v4174
        %v4176 = vpop.f32.mrb[0].mxu0
        %4177 = vmatprep.mubr.bf16.mxu0 0
        %4178 = vmatmul.mubr.bf16.gmra.mrb[0].mxu0 %v3515
        %v4179 = vpop.f32.mrb[0].mxu0
        %v4180 = vadd.f32 0.0, %v4179
        %v4181 = vpop.f32.mrb[0].mxu0
        %v4182 = vpop.f32.mrb[0].mxu0
        %v4183 = vadd.f32 0.0, %v4182
        %v4184 = vpop.f32.mrb[0].mxu0
        %4185 = vmatprep.mubr.bf16.mxu0 0
        %4186 = vmatmul.mubr.bf16.gmra.mrb[0].mxu0 %v3516
        %v4187 = vpop.f32.mrb[0].mxu0
        %v4188 = vadd.f32 0.0, %v4187
        %v4189 = vpop.f32.mrb[0].mxu0
        %v4190 = vpop.f32.mrb[0].mxu0
        %v4191 = vadd.f32 0.0, %v4190
        %v4192 = vpop.f32.mrb[0].mxu0
        %4193 = vdwg.mxu0
        %v4194 = vadd.f32 %v3842, %v4068
        %v4195 = vadd.f32 %v3845, %v4071
        %v4196 = vadd.f32 %v3850, %v4076
        %v4197 = vadd.f32 %v3853, %v4079
        %v4198 = vadd.f32 %v3858, %v4084
        %v4199 = vadd.f32 %v3861, %v4087
        %v4200 = vadd.f32 %v3866, %v4092
        %v4201 = vadd.f32 %v3869, %v4095
        %v4202 = vadd.f32 %v3874, %v4100
        %v4203 = vadd.f32 %v3877, %v4103
        %v4204 = vadd.f32 %v3882, %v4108
        %v4205 = vadd.f32 %v3885, %v4111
        %v4206 = vadd.f32 %v3890, %v4116
        %v4207 = vadd.f32 %v3893, %v4119
        %v4208 = vadd.f32 %v3898, %v4124
        %v4209 = vadd.f32 %v3901, %v4127
        %v4210 = vadd.f32 %v3906, %v4132
        %v4211 = vadd.f32 %v3909, %v4135
        %v4212 = vadd.f32 %v3914, %v4140
        %v4213 = vadd.f32 %v3917, %v4143
        %v4214 = vadd.f32 %v3922, %v4148
        %v4215 = vadd.f32 %v3925, %v4151
        %v4216 = vadd.f32 %v3930, %v4156
        %v4217 = vadd.f32 %v3933, %v4159
        %v4218 = vadd.f32 %v3938, %v4164
        %v4219 = vadd.f32 %v3941, %v4167
        %v4220 = vadd.f32 %v3946, %v4172
        %v4221 = vadd.f32 %v3949, %v4175
        %v4222 = vadd.f32 %v3954, %v4180
        %v4223 = vadd.f32 %v3957, %v4183
        %v4224 = vadd.f32 %v3962, %v4188
        %v4225 = vadd.f32 %v3965, %v4191
        %s4226 = scalar_lea.vmem [#allocation3], 64
        %v4227 = vld [vmem:[%s4226] sm:$0xf]
        %v4228 = vld [vmem:[%s4226 + $0x4] sm:$0xf]
        %v4229 = vld [vmem:[%s4226 + $0x8] sm:$0xf]
        %v4230 = vld [vmem:[%s4226 + $0xc] sm:$0xf]
        %v4231 = vld [vmem:[%s4226 + $0x10] sm:$0xf]
        %v4232 = vld [vmem:[%s4226 + $0x14] sm:$0xf]
        %v4233 = vld [vmem:[%s4226 + $0x18] sm:$0xf]
        %v4234 = vld [vmem:[%s4226 + $0x1c] sm:$0xf]
        %v4235 = vld [vmem:[%s4226 + $0x20] sm:$0xf]
        %v4236 = vld [vmem:[%s4226 + $0x24] sm:$0xf]
        %v4237 = vld [vmem:[%s4226 + $0x28] sm:$0xf]
        %v4238 = vld [vmem:[%s4226 + $0x2c] sm:$0xf]
        %v4239 = vld [vmem:[%s4226 + $0x30] sm:$0xf]
        %v4240 = vld [vmem:[%s4226 + $0x34] sm:$0xf]
        %v4241 = vld [vmem:[%s4226 + $0x38] sm:$0xf]
        %v4242 = vld [vmem:[%s4226 + $0x3c] sm:$0xf]
        %v4259 = vunpack.c.l.b16 %v4227
        %v4260 = vunpack.c.l.b16 %v4228
        %v4261 = vunpack.c.l.b16 %v4229
        %v4262 = vunpack.c.l.b16 %v4230
        %v4263 = vunpack.c.l.b16 %v4231
        %v4264 = vunpack.c.l.b16 %v4232
        %v4265 = vunpack.c.l.b16 %v4233
        %v4266 = vunpack.c.l.b16 %v4234
        %v4267 = vunpack.c.l.b16 %v4235
        %v4268 = vunpack.c.l.b16 %v4236
        %v4269 = vunpack.c.l.b16 %v4237
        %v4270 = vunpack.c.l.b16 %v4238
        %v4271 = vunpack.c.l.b16 %v4239
        %v4272 = vunpack.c.l.b16 %v4240
        %v4273 = vunpack.c.l.b16 %v4241
        %v4274 = vunpack.c.l.b16 %v4242
        %v4275 = vpack.c.b16 %v4260, %v4259
        %v4276 = vpack.c.b16 %v4262, %v4261
        %v4277 = vpack.c.b16 %v4264, %v4263
        %v4278 = vpack.c.b16 %v4266, %v4265
        %v4279 = vpack.c.b16 %v4268, %v4267
        %v4280 = vpack.c.b16 %v4270, %v4269
        %v4281 = vpack.c.b16 %v4272, %v4271
        %v4282 = vpack.c.b16 %v4274, %v4273
        %4291 = vmatprep.subr.bf16.mxu0 0
        %4292 = vmatpush1.bf16.msra.mxu0 %v4275
        %4293 = vmatprep.subr.bf16.mxu0 0
        %4294 = vmatpush1.bf16.msra.mxu0 %v4276
        %4295 = vmatprep.subr.bf16.mxu0 0
        %4296 = vmatpush1.bf16.msra.mxu0 %v4277
        %4297 = vmatprep.subr.bf16.mxu0 0
        %4298 = vmatpush1.bf16.msra.mxu0 %v4278
        %4299 = vmatprep.subr.bf16.mxu0 0
        %4300 = vmatpush1.bf16.msra.mxu0 %v4279
        %4301 = vmatprep.subr.bf16.mxu0 0
        %4302 = vmatpush1.bf16.msra.mxu0 %v4280
        %4303 = vmatprep.subr.bf16.mxu0 0
        %4304 = vmatpush1.bf16.msra.mxu0 %v4281
        %4305 = vmatprep.subr.bf16.mxu0 0
        %4306 = vmatpush1.bf16.msra.mxu0 %v4282
        %4307 = vmatprep.subr.bf16.mxu0 0
        %4308 = vmatpush1.bf16.msra.mxu0 0
        %4309 = vmatprep.subr.bf16.mxu0 0
        %4310 = vmatpush1.bf16.msra.mxu0 0
        %4311 = vmatprep.subr.bf16.mxu0 0
        %4312 = vmatpush1.bf16.msra.mxu0 0
        %4313 = vmatprep.subr.bf16.mxu0 0
        %4314 = vmatpush1.bf16.msra.mxu0 0
        %4315 = vmatprep.subr.bf16.mxu0 0
        %4316 = vmatpush1.bf16.msra.mxu0 0
        %4317 = vmatprep.subr.bf16.mxu0 0
        %4318 = vmatpush1.bf16.msra.mxu0 0
        %4319 = vmatprep.subr.bf16.mxu0 0
        %4320 = vmatpush1.bf16.msra.mxu0 0
        %4321 = vmatprep.subr.bf16.mxu0 0
        %4322 = vmatpush1.bf16.msra.mxu0 0
        %4323 = vmatprep.mubr.bf16.mxu0 0
        %4324 = vmatmul.mubr.bf16.gmra.mrb[0].mxu0 %v3337
        %v4325 = vpop.f32.mrb[0].mxu0
        %v4326 = vadd.f32 0.0, %v4325
        %v4327 = vpop.f32.mrb[0].mxu0
        %v4328 = vpop.f32.mrb[0].mxu0
        %v4329 = vadd.f32 0.0, %v4328
        %v4330 = vpop.f32.mrb[0].mxu0
        %4331 = vmatprep.mubr.bf16.mxu0 0
        %4332 = vmatmul.mubr.bf16.gmra.mrb[0].mxu0 %v3338
        %v4333 = vpop.f32.mrb[0].mxu0
        %v4334 = vadd.f32 0.0, %v4333
        %v4335 = vpop.f32.mrb[0].mxu0
        %v4336 = vpop.f32.mrb[0].mxu0
        %v4337 = vadd.f32 0.0, %v4336
        %v4338 = vpop.f32.mrb[0].mxu0
        %4339 = vmatprep.mubr.bf16.mxu0 0
        %4340 = vmatmul.mubr.bf16.gmra.mrb[0].mxu0 %v3339
        %v4341 = vpop.f32.mrb[0].mxu0
        %v4342 = vadd.f32 0.0, %v4341
        %v4343 = vpop.f32.mrb[0].mxu0
        %v4344 = vpop.f32.mrb[0].mxu0
        %v4345 = vadd.f32 0.0, %v4344
        %v4346 = vpop.f32.mrb[0].mxu0
        %4347 = vmatprep.mubr.bf16.mxu0 0
        %4348 = vmatmul.mubr.bf16.gmra.mrb[0].mxu0 %v3340
        %v4349 = vpop.f32.mrb[0].mxu0
        %v4350 = vadd.f32 0.0, %v4349
        %v4351 = vpop.f32.mrb[0].mxu0
        %v4352 = vpop.f32.mrb[0].mxu0
        %v4353 = vadd.f32 0.0, %v4352
        %v4354 = vpop.f32.mrb[0].mxu0
        %4355 = vmatprep.mubr.bf16.mxu0 0
        %4356 = vmatmul.mubr.bf16.gmra.mrb[0].mxu0 %v3341
        %v4357 = vpop.f32.mrb[0].mxu0
        %v4358 = vadd.f32 0.0, %v4357
        %v4359 = vpop.f32.mrb[0].mxu0
        %v4360 = vpop.f32.mrb[0].mxu0
        %v4361 = vadd.f32 0.0, %v4360
        %v4362 = vpop.f32.mrb[0].mxu0
        %4363 = vmatprep.mubr.bf16.mxu0 0
        %4364 = vmatmul.mubr.bf16.gmra.mrb[0].mxu0 %v3342
        %v4365 = vpop.f32.mrb[0].mxu0
        %v4366 = vadd.f32 0.0, %v4365
        %v4367 = vpop.f32.mrb[0].mxu0
        %v4368 = vpop.f32.mrb[0].mxu0
        %v4369 = vadd.f32 0.0, %v4368
        %v4370 = vpop.f32.mrb[0].mxu0
        %4371 = vmatprep.mubr.bf16.mxu0 0
        %4372 = vmatmul.mubr.bf16.gmra.mrb[0].mxu0 %v3343
        %v4373 = vpop.f32.mrb[0].mxu0
        %v4374 = vadd.f32 0.0, %v4373
        %v4375 = vpop.f32.mrb[0].mxu0
        %v4376 = vpop.f32.mrb[0].mxu0
        %v4377 = vadd.f32 0.0, %v4376
        %v4378 = vpop.f32.mrb[0].mxu0
        %4379 = vmatprep.mubr.bf16.mxu0 0
        %4380 = vmatmul.mubr.bf16.gmra.mrb[0].mxu0 %v3344
        %v4381 = vpop.f32.mrb[0].mxu0
        %v4382 = vadd.f32 0.0, %v4381
        %v4383 = vpop.f32.mrb[0].mxu0
        %v4384 = vpop.f32.mrb[0].mxu0
        %v4385 = vadd.f32 0.0, %v4384
        %v4386 = vpop.f32.mrb[0].mxu0
        %4387 = vmatprep.mubr.bf16.mxu0 0
        %4388 = vmatmul.mubr.bf16.gmra.mrb[0].mxu0 %v3345
        %v4389 = vpop.f32.mrb[0].mxu0
        %v4390 = vadd.f32 0.0, %v4389
        %v4391 = vpop.f32.mrb[0].mxu0
        %v4392 = vpop.f32.mrb[0].mxu0
        %v4393 = vadd.f32 0.0, %v4392
        %v4394 = vpop.f32.mrb[0].mxu0
        %4395 = vmatprep.mubr.bf16.mxu0 0
        %4396 = vmatmul.mubr.bf16.gmra.mrb[0].mxu0 %v3346
        %v4397 = vpop.f32.mrb[0].mxu0
        %v4398 = vadd.f32 0.0, %v4397
        %v4399 = vpop.f32.mrb[0].mxu0
        %v4400 = vpop.f32.mrb[0].mxu0
        %v4401 = vadd.f32 0.0, %v4400
        %v4402 = vpop.f32.mrb[0].mxu0
        %4403 = vmatprep.mubr.bf16.mxu0 0
        %4404 = vmatmul.mubr.bf16.gmra.mrb[0].mxu0 %v3347
        %v4405 = vpop.f32.mrb[0].mxu0
        %v4406 = vadd.f32 0.0, %v4405
        %v4407 = vpop.f32.mrb[0].mxu0
        %v4408 = vpop.f32.mrb[0].mxu0
        %v4409 = vadd.f32 0.0, %v4408
        %v4410 = vpop.f32.mrb[0].mxu0
        %4411 = vmatprep.mubr.bf16.mxu0 0
        %4412 = vmatmul.mubr.bf16.gmra.mrb[0].mxu0 %v3348
        %v4413 = vpop.f32.mrb[0].mxu0
        %v4414 = vadd.f32 0.0, %v4413
        %v4415 = vpop.f32.mrb[0].mxu0
        %v4416 = vpop.f32.mrb[0].mxu0
        %v4417 = vadd.f32 0.0, %v4416
        %v4418 = vpop.f32.mrb[0].mxu0
        %4419 = vmatprep.mubr.bf16.mxu0 0
        %4420 = vmatmul.mubr.bf16.gmra.mrb[0].mxu0 %v3349
        %v4421 = vpop.f32.mrb[0].mxu0
        %v4422 = vadd.f32 0.0, %v4421
        %v4423 = vpop.f32.mrb[0].mxu0
        %v4424 = vpop.f32.mrb[0].mxu0
        %v4425 = vadd.f32 0.0, %v4424
        %v4426 = vpop.f32.mrb[0].mxu0
        %4427 = vmatprep.mubr.bf16.mxu0 0
        %4428 = vmatmul.mubr.bf16.gmra.mrb[0].mxu0 %v3350
        %v4429 = vpop.f32.mrb[0].mxu0
        %v4430 = vadd.f32 0.0, %v4429
        %v4431 = vpop.f32.mrb[0].mxu0
        %v4432 = vpop.f32.mrb[0].mxu0
        %v4433 = vadd.f32 0.0, %v4432
        %v4434 = vpop.f32.mrb[0].mxu0
        %4435 = vmatprep.mubr.bf16.mxu0 0
        %4436 = vmatmul.mubr.bf16.gmra.mrb[0].mxu0 %v3351
        %v4437 = vpop.f32.mrb[0].mxu0
        %v4438 = vadd.f32 0.0, %v4437
        %v4439 = vpop.f32.mrb[0].mxu0
        %v4440 = vpop.f32.mrb[0].mxu0
        %v4441 = vadd.f32 0.0, %v4440
        %v4442 = vpop.f32.mrb[0].mxu0
        %4443 = vmatprep.mubr.bf16.mxu0 0
        %4444 = vmatmul.mubr.bf16.gmra.mrb[0].mxu0 %v3352
        %v4445 = vpop.f32.mrb[0].mxu0
        %v4446 = vadd.f32 0.0, %v4445
        %v4447 = vpop.f32.mrb[0].mxu0
        %v4448 = vpop.f32.mrb[0].mxu0
        %v4449 = vadd.f32 0.0, %v4448
        %v4450 = vpop.f32.mrb[0].mxu0
        %4451 = vdwg.mxu0
        %v4452 = vadd.f32 %v4194, %v4326
        %v4453 = vadd.f32 %v4195, %v4329
        %v4454 = vadd.f32 %v4196, %v4334
        %v4455 = vadd.f32 %v4197, %v4337
        %v4456 = vadd.f32 %v4198, %v4342
        %v4457 = vadd.f32 %v4199, %v4345
        %v4458 = vadd.f32 %v4200, %v4350
        %v4459 = vadd.f32 %v4201, %v4353
        %v4460 = vadd.f32 %v4202, %v4358
        %v4461 = vadd.f32 %v4203, %v4361
        %v4462 = vadd.f32 %v4204, %v4366
        %v4463 = vadd.f32 %v4205, %v4369
        %v4464 = vadd.f32 %v4206, %v4374
        %v4465 = vadd.f32 %v4207, %v4377
        %v4466 = vadd.f32 %v4208, %v4382
        %v4467 = vadd.f32 %v4209, %v4385
        %v4468 = vadd.f32 %v4210, %v4390
        %v4469 = vadd.f32 %v4211, %v4393
        %v4470 = vadd.f32 %v4212, %v4398
        %v4471 = vadd.f32 %v4213, %v4401
        %v4472 = vadd.f32 %v4214, %v4406
        %v4473 = vadd.f32 %v4215, %v4409
        %v4474 = vadd.f32 %v4216, %v4414
        %v4475 = vadd.f32 %v4217, %v4417
        %v4476 = vadd.f32 %v4218, %v4422
        %v4477 = vadd.f32 %v4219, %v4425
        %v4478 = vadd.f32 %v4220, %v4430
        %v4479 = vadd.f32 %v4221, %v4433
        %v4480 = vadd.f32 %v4222, %v4438
        %v4481 = vadd.f32 %v4223, %v4441
        %v4482 = vadd.f32 %v4224, %v4446
        %v4483 = vadd.f32 %v4225, %v4449
        %s4484 = scalar_lea.vmem [#allocation3], 256
        %v4485 = vld [vmem:[%s4484] sm:$0xf]
        %v4486 = vld [vmem:[%s4484 + $0x4] sm:$0xf]
        %v4487 = vld [vmem:[%s4484 + $0x8] sm:$0xf]
        %v4488 = vld [vmem:[%s4484 + $0xc] sm:$0xf]
        %v4489 = vld [vmem:[%s4484 + $0x10] sm:$0xf]
        %v4490 = vld [vmem:[%s4484 + $0x14] sm:$0xf]
        %v4491 = vld [vmem:[%s4484 + $0x18] sm:$0xf]
        %v4492 = vld [vmem:[%s4484 + $0x1c] sm:$0xf]
        %v4493 = vld [vmem:[%s4484 + $0x20] sm:$0xf]
        %v4494 = vld [vmem:[%s4484 + $0x24] sm:$0xf]
        %v4495 = vld [vmem:[%s4484 + $0x28] sm:$0xf]
        %v4496 = vld [vmem:[%s4484 + $0x2c] sm:$0xf]
        %v4497 = vld [vmem:[%s4484 + $0x30] sm:$0xf]
        %v4498 = vld [vmem:[%s4484 + $0x34] sm:$0xf]
        %v4499 = vld [vmem:[%s4484 + $0x38] sm:$0xf]
        %v4500 = vld [vmem:[%s4484 + $0x3c] sm:$0xf]
        %v4517 = vunpack.c.l.b16 %v4485
        %v4518 = vunpack.c.l.b16 %v4486
        %v4519 = vunpack.c.l.b16 %v4487
        %v4520 = vunpack.c.l.b16 %v4488
        %v4521 = vunpack.c.l.b16 %v4489
        %v4522 = vunpack.c.l.b16 %v4490
        %v4523 = vunpack.c.l.b16 %v4491
        %v4524 = vunpack.c.l.b16 %v4492
        %v4525 = vunpack.c.l.b16 %v4493
        %v4526 = vunpack.c.l.b16 %v4494
        %v4527 = vunpack.c.l.b16 %v4495
        %v4528 = vunpack.c.l.b16 %v4496
        %v4529 = vunpack.c.l.b16 %v4497
        %v4530 = vunpack.c.l.b16 %v4498
        %v4531 = vunpack.c.l.b16 %v4499
        %v4532 = vunpack.c.l.b16 %v4500
        %v4533 = vpack.c.b16 %v4518, %v4517
        %v4534 = vpack.c.b16 %v4520, %v4519
        %v4535 = vpack.c.b16 %v4522, %v4521
        %v4536 = vpack.c.b16 %v4524, %v4523
        %v4537 = vpack.c.b16 %v4526, %v4525
        %v4538 = vpack.c.b16 %v4528, %v4527
        %v4539 = vpack.c.b16 %v4530, %v4529
        %v4540 = vpack.c.b16 %v4532, %v4531
        %4549 = vmatprep.subr.bf16.mxu0 0
        %4550 = vmatpush1.bf16.msra.mxu0 %v4533
        %4551 = vmatprep.subr.bf16.mxu0 0
        %4552 = vmatpush1.bf16.msra.mxu0 %v4534
        %4553 = vmatprep.subr.bf16.mxu0 0
        %4554 = vmatpush1.bf16.msra.mxu0 %v4535
        %4555 = vmatprep.subr.bf16.mxu0 0
        %4556 = vmatpush1.bf16.msra.mxu0 %v4536
        %4557 = vmatprep.subr.bf16.mxu0 0
        %4558 = vmatpush1.bf16.msra.mxu0 %v4537
        %4559 = vmatprep.subr.bf16.mxu0 0
        %4560 = vmatpush1.bf16.msra.mxu0 %v4538
        %4561 = vmatprep.subr.bf16.mxu0 0
        %4562 = vmatpush1.bf16.msra.mxu0 %v4539
        %4563 = vmatprep.subr.bf16.mxu0 0
        %4564 = vmatpush1.bf16.msra.mxu0 %v4540
        %4565 = vmatprep.subr.bf16.mxu0 0
        %4566 = vmatpush1.bf16.msra.mxu0 0
        %4567 = vmatprep.subr.bf16.mxu0 0
        %4568 = vmatpush1.bf16.msra.mxu0 0
        %4569 = vmatprep.subr.bf16.mxu0 0
        %4570 = vmatpush1.bf16.msra.mxu0 0
        %4571 = vmatprep.subr.bf16.mxu0 0
        %4572 = vmatpush1.bf16.msra.mxu0 0
        %4573 = vmatprep.subr.bf16.mxu0 0
        %4574 = vmatpush1.bf16.msra.mxu0 0
        %4575 = vmatprep.subr.bf16.mxu0 0
        %4576 = vmatpush1.bf16.msra.mxu0 0
        %4577 = vmatprep.subr.bf16.mxu0 0
        %4578 = vmatpush1.bf16.msra.mxu0 0
        %4579 = vmatprep.subr.bf16.mxu0 0
        %4580 = vmatpush1.bf16.msra.mxu0 0
        %4581 = vmatprep.mubr.bf16.mxu0 0
        %4582 = vmatmul.mubr.bf16.gmra.mrb[0].mxu0 %v3338
        %v4583 = vpop.f32.mrb[0].mxu0
        %v4584 = vadd.f32 0.0, %v4583
        %v4585 = vpop.f32.mrb[0].mxu0
        %v4586 = vpop.f32.mrb[0].mxu0
        %v4587 = vadd.f32 0.0, %v4586
        %v4588 = vpop.f32.mrb[0].mxu0
        %4589 = vmatprep.mubr.bf16.mxu0 0
        %4590 = vmatmul.mubr.bf16.gmra.mrb[0].mxu0 %v3339
        %v4591 = vpop.f32.mrb[0].mxu0
        %v4592 = vadd.f32 0.0, %v4591
        %v4593 = vpop.f32.mrb[0].mxu0
        %v4594 = vpop.f32.mrb[0].mxu0
        %v4595 = vadd.f32 0.0, %v4594
        %v4596 = vpop.f32.mrb[0].mxu0
        %4597 = vmatprep.mubr.bf16.mxu0 0
        %4598 = vmatmul.mubr.bf16.gmra.mrb[0].mxu0 %v3340
        %v4599 = vpop.f32.mrb[0].mxu0
        %v4600 = vadd.f32 0.0, %v4599
        %v4601 = vpop.f32.mrb[0].mxu0
        %v4602 = vpop.f32.mrb[0].mxu0
        %v4603 = vadd.f32 0.0, %v4602
        %v4604 = vpop.f32.mrb[0].mxu0
        %4605 = vmatprep.mubr.bf16.mxu0 0
        %4606 = vmatmul.mubr.bf16.gmra.mrb[0].mxu0 %v3341
        %v4607 = vpop.f32.mrb[0].mxu0
        %v4608 = vadd.f32 0.0, %v4607
        %v4609 = vpop.f32.mrb[0].mxu0
        %v4610 = vpop.f32.mrb[0].mxu0
        %v4611 = vadd.f32 0.0, %v4610
        %v4612 = vpop.f32.mrb[0].mxu0
        %4613 = vmatprep.mubr.bf16.mxu0 0
        %4614 = vmatmul.mubr.bf16.gmra.mrb[0].mxu0 %v3342
        %v4615 = vpop.f32.mrb[0].mxu0
        %v4616 = vadd.f32 0.0, %v4615
        %v4617 = vpop.f32.mrb[0].mxu0
        %v4618 = vpop.f32.mrb[0].mxu0
        %v4619 = vadd.f32 0.0, %v4618
        %v4620 = vpop.f32.mrb[0].mxu0
        %4621 = vmatprep.mubr.bf16.mxu0 0
        %4622 = vmatmul.mubr.bf16.gmra.mrb[0].mxu0 %v3343
        %v4623 = vpop.f32.mrb[0].mxu0
        %v4624 = vadd.f32 0.0, %v4623
        %v4625 = vpop.f32.mrb[0].mxu0
        %v4626 = vpop.f32.mrb[0].mxu0
        %v4627 = vadd.f32 0.0, %v4626
        %v4628 = vpop.f32.mrb[0].mxu0
        %4629 = vmatprep.mubr.bf16.mxu0 0
        %4630 = vmatmul.mubr.bf16.gmra.mrb[0].mxu0 %v3344
        %v4631 = vpop.f32.mrb[0].mxu0
        %v4632 = vadd.f32 0.0, %v4631
        %v4633 = vpop.f32.mrb[0].mxu0
        %v4634 = vpop.f32.mrb[0].mxu0
        %v4635 = vadd.f32 0.0, %v4634
        %v4636 = vpop.f32.mrb[0].mxu0
        %4637 = vmatprep.mubr.bf16.mxu0 0
        %4638 = vmatmul.mubr.bf16.gmra.mrb[0].mxu0 %v3345
        %v4639 = vpop.f32.mrb[0].mxu0
        %v4640 = vadd.f32 0.0, %v4639
        %v4641 = vpop.f32.mrb[0].mxu0
        %v4642 = vpop.f32.mrb[0].mxu0
        %v4643 = vadd.f32 0.0, %v4642
        %v4644 = vpop.f32.mrb[0].mxu0
        %4645 = vmatprep.mubr.bf16.mxu0 0
        %4646 = vmatmul.mubr.bf16.gmra.mrb[0].mxu0 %v3346
        %v4647 = vpop.f32.mrb[0].mxu0
        %v4648 = vadd.f32 0.0, %v4647
        %v4649 = vpop.f32.mrb[0].mxu0
        %v4650 = vpop.f32.mrb[0].mxu0
        %v4651 = vadd.f32 0.0, %v4650
        %v4652 = vpop.f32.mrb[0].mxu0
        %4653 = vmatprep.mubr.bf16.mxu0 0
        %4654 = vmatmul.mubr.bf16.gmra.mrb[0].mxu0 %v3347
        %v4655 = vpop.f32.mrb[0].mxu0
        %v4656 = vadd.f32 0.0, %v4655
        %v4657 = vpop.f32.mrb[0].mxu0
        %v4658 = vpop.f32.mrb[0].mxu0
        %v4659 = vadd.f32 0.0, %v4658
        %v4660 = vpop.f32.mrb[0].mxu0
        %4661 = vmatprep.mubr.bf16.mxu0 0
        %4662 = vmatmul.mubr.bf16.gmra.mrb[0].mxu0 %v3348
        %v4663 = vpop.f32.mrb[0].mxu0
        %v4664 = vadd.f32 0.0, %v4663
        %v4665 = vpop.f32.mrb[0].mxu0
        %v4666 = vpop.f32.mrb[0].mxu0
        %v4667 = vadd.f32 0.0, %v4666
        %v4668 = vpop.f32.mrb[0].mxu0
        %4669 = vmatprep.mubr.bf16.mxu0 0
        %4670 = vmatmul.mubr.bf16.gmra.mrb[0].mxu0 %v3349
        %v4671 = vpop.f32.mrb[0].mxu0
        %v4672 = vadd.f32 0.0, %v4671
        %v4673 = vpop.f32.mrb[0].mxu0
        %v4674 = vpop.f32.mrb[0].mxu0
        %v4675 = vadd.f32 0.0, %v4674
        %v4676 = vpop.f32.mrb[0].mxu0
        %4677 = vmatprep.mubr.bf16.mxu0 0
        %4678 = vmatmul.mubr.bf16.gmra.mrb[0].mxu0 %v3350
        %v4679 = vpop.f32.mrb[0].mxu0
        %v4680 = vadd.f32 0.0, %v4679
        %v4681 = vpop.f32.mrb[0].mxu0
        %v4682 = vpop.f32.mrb[0].mxu0
        %v4683 = vadd.f32 0.0, %v4682
        %v4684 = vpop.f32.mrb[0].mxu0
        %4685 = vmatprep.mubr.bf16.mxu0 0
        %4686 = vmatmul.mubr.bf16.gmra.mrb[0].mxu0 %v3351
        %v4687 = vpop.f32.mrb[0].mxu0
        %v4688 = vadd.f32 0.0, %v4687
        %v4689 = vpop.f32.mrb[0].mxu0
        %v4690 = vpop.f32.mrb[0].mxu0
        %v4691 = vadd.f32 0.0, %v4690
        %v4692 = vpop.f32.mrb[0].mxu0
        %4693 = vmatprep.mubr.bf16.mxu0 0
        %4694 = vmatmul.mubr.bf16.gmra.mrb[0].mxu0 %v3352
        %v4695 = vpop.f32.mrb[0].mxu0
        %v4696 = vadd.f32 0.0, %v4695
        %v4697 = vpop.f32.mrb[0].mxu0
        %v4698 = vpop.f32.mrb[0].mxu0
        %v4699 = vadd.f32 0.0, %v4698
        %v4700 = vpop.f32.mrb[0].mxu0
        %4701 = vmatprep.mubr.bf16.mxu0 0
        %4702 = vmatmul.mubr.bf16.gmra.mrb[0].mxu0 %v3353
        %v4703 = vpop.f32.mrb[0].mxu0
        %v4704 = vadd.f32 0.0, %v4703
        %v4705 = vpop.f32.mrb[0].mxu0
        %v4706 = vpop.f32.mrb[0].mxu0
        %v4707 = vadd.f32 0.0, %v4706
        %v4708 = vpop.f32.mrb[0].mxu0
        %4709 = vdwg.mxu0
        %v4710 = vadd.f32 %v4452, %v4584
        %v4711 = vadd.f32 %v4453, %v4587
        %v4712 = vadd.f32 %v4454, %v4592
        %v4713 = vadd.f32 %v4455, %v4595
        %v4714 = vadd.f32 %v4456, %v4600
        %v4715 = vadd.f32 %v4457, %v4603
        %v4716 = vadd.f32 %v4458, %v4608
        %v4717 = vadd.f32 %v4459, %v4611
        %v4718 = vadd.f32 %v4460, %v4616
        %v4719 = vadd.f32 %v4461, %v4619
        %v4720 = vadd.f32 %v4462, %v4624
        %v4721 = vadd.f32 %v4463, %v4627
        %v4722 = vadd.f32 %v4464, %v4632
        %v4723 = vadd.f32 %v4465, %v4635
        %v4724 = vadd.f32 %v4466, %v4640
        %v4725 = vadd.f32 %v4467, %v4643
        %v4726 = vadd.f32 %v4468, %v4648
        %v4727 = vadd.f32 %v4469, %v4651
        %v4728 = vadd.f32 %v4470, %v4656
        %v4729 = vadd.f32 %v4471, %v4659
        %v4730 = vadd.f32 %v4472, %v4664
        %v4731 = vadd.f32 %v4473, %v4667
        %v4732 = vadd.f32 %v4474, %v4672
        %v4733 = vadd.f32 %v4475, %v4675
        %v4734 = vadd.f32 %v4476, %v4680
        %v4735 = vadd.f32 %v4477, %v4683
        %v4736 = vadd.f32 %v4478, %v4688
        %v4737 = vadd.f32 %v4479, %v4691
        %v4738 = vadd.f32 %v4480, %v4696
        %v4739 = vadd.f32 %v4481, %v4699
        %v4740 = vadd.f32 %v4482, %v4704
        %v4741 = vadd.f32 %v4483, %v4707
        %s4742 = scalar_lea.vmem [#allocation3], 448
        %v4743 = vld [vmem:[%s4742] sm:$0xf]
        %v4744 = vld [vmem:[%s4742 + $0x4] sm:$0xf]
        %v4745 = vld [vmem:[%s4742 + $0x8] sm:$0xf]
        %v4746 = vld [vmem:[%s4742 + $0xc] sm:$0xf]
        %v4747 = vld [vmem:[%s4742 + $0x10] sm:$0xf]
        %v4748 = vld [vmem:[%s4742 + $0x14] sm:$0xf]
        %v4749 = vld [vmem:[%s4742 + $0x18] sm:$0xf]
        %v4750 = vld [vmem:[%s4742 + $0x1c] sm:$0xf]
        %v4751 = vld [vmem:[%s4742 + $0x20] sm:$0xf]
        %v4752 = vld [vmem:[%s4742 + $0x24] sm:$0xf]
        %v4753 = vld [vmem:[%s4742 + $0x28] sm:$0xf]
        %v4754 = vld [vmem:[%s4742 + $0x2c] sm:$0xf]
        %v4755 = vld [vmem:[%s4742 + $0x30] sm:$0xf]
        %v4756 = vld [vmem:[%s4742 + $0x34] sm:$0xf]
        %v4757 = vld [vmem:[%s4742 + $0x38] sm:$0xf]
        %v4758 = vld [vmem:[%s4742 + $0x3c] sm:$0xf]
        %v4775 = vunpack.c.l.b16 %v4743
        %v4776 = vunpack.c.l.b16 %v4744
        %v4777 = vunpack.c.l.b16 %v4745
        %v4778 = vunpack.c.l.b16 %v4746
        %v4779 = vunpack.c.l.b16 %v4747
        %v4780 = vunpack.c.l.b16 %v4748
        %v4781 = vunpack.c.l.b16 %v4749
        %v4782 = vunpack.c.l.b16 %v4750
        %v4783 = vunpack.c.l.b16 %v4751
        %v4784 = vunpack.c.l.b16 %v4752
        %v4785 = vunpack.c.l.b16 %v4753
        %v4786 = vunpack.c.l.b16 %v4754
        %v4787 = vunpack.c.l.b16 %v4755
        %v4788 = vunpack.c.l.b16 %v4756
        %v4789 = vunpack.c.l.b16 %v4757
        %v4790 = vunpack.c.l.b16 %v4758
        %v4791 = vpack.c.b16 %v4776, %v4775
        %v4792 = vpack.c.b16 %v4778, %v4777
        %v4793 = vpack.c.b16 %v4780, %v4779
        %v4794 = vpack.c.b16 %v4782, %v4781
        %v4795 = vpack.c.b16 %v4784, %v4783
        %v4796 = vpack.c.b16 %v4786, %v4785
        %v4797 = vpack.c.b16 %v4788, %v4787
        %v4798 = vpack.c.b16 %v4790, %v4789
        %4807 = vmatprep.subr.bf16.mxu0 0
        %4808 = vmatpush1.bf16.msra.mxu0 %v4791
        %4809 = vmatprep.subr.bf16.mxu0 0
        %4810 = vmatpush1.bf16.msra.mxu0 %v4792
        %4811 = vmatprep.subr.bf16.mxu0 0
        %4812 = vmatpush1.bf16.msra.mxu0 %v4793
        %4813 = vmatprep.subr.bf16.mxu0 0
        %4814 = vmatpush1.bf16.msra.mxu0 %v4794
        %4815 = vmatprep.subr.bf16.mxu0 0
        %4816 = vmatpush1.bf16.msra.mxu0 %v4795
        %4817 = vmatprep.subr.bf16.mxu0 0
        %4818 = vmatpush1.bf16.msra.mxu0 %v4796
        %4819 = vmatprep.subr.bf16.mxu0 0
        %4820 = vmatpush1.bf16.msra.mxu0 %v4797
        %4821 = vmatprep.subr.bf16.mxu0 0
        %4822 = vmatpush1.bf16.msra.mxu0 %v4798
        %4823 = vmatprep.subr.bf16.mxu0 0
        %4824 = vmatpush1.bf16.msra.mxu0 0
        %4825 = vmatprep.subr.bf16.mxu0 0
        %4826 = vmatpush1.bf16.msra.mxu0 0
        %4827 = vmatprep.subr.bf16.mxu0 0
        %4828 = vmatpush1.bf16.msra.mxu0 0
        %4829 = vmatprep.subr.bf16.mxu0 0
        %4830 = vmatpush1.bf16.msra.mxu0 0
        %4831 = vmatprep.subr.bf16.mxu0 0
        %4832 = vmatpush1.bf16.msra.mxu0 0
        %4833 = vmatprep.subr.bf16.mxu0 0
        %4834 = vmatpush1.bf16.msra.mxu0 0
        %4835 = vmatprep.subr.bf16.mxu0 0
        %4836 = vmatpush1.bf16.msra.mxu0 0
        %4837 = vmatprep.subr.bf16.mxu0 0
        %4838 = vmatpush1.bf16.msra.mxu0 0
        %4839 = vmatprep.mubr.bf16.mxu0 0
        %4840 = vmatmul.mubr.bf16.gmra.mrb[0].mxu0 %v3339
        %v4841 = vpop.f32.mrb[0].mxu0
        %v4842 = vadd.f32 0.0, %v4841
        %v4843 = vpop.f32.mrb[0].mxu0
        %v4844 = vpop.f32.mrb[0].mxu0
        %v4845 = vadd.f32 0.0, %v4844
        %v4846 = vpop.f32.mrb[0].mxu0
        %4847 = vmatprep.mubr.bf16.mxu0 0
        %4848 = vmatmul.mubr.bf16.gmra.mrb[0].mxu0 %v3340
        %v4849 = vpop.f32.mrb[0].mxu0
        %v4850 = vadd.f32 0.0, %v4849
        %v4851 = vpop.f32.mrb[0].mxu0
        %v4852 = vpop.f32.mrb[0].mxu0
        %v4853 = vadd.f32 0.0, %v4852
        %v4854 = vpop.f32.mrb[0].mxu0
        %4855 = vmatprep.mubr.bf16.mxu0 0
        %4856 = vmatmul.mubr.bf16.gmra.mrb[0].mxu0 %v3341
        %v4857 = vpop.f32.mrb[0].mxu0
        %v4858 = vadd.f32 0.0, %v4857
        %v4859 = vpop.f32.mrb[0].mxu0
        %v4860 = vpop.f32.mrb[0].mxu0
        %v4861 = vadd.f32 0.0, %v4860
        %v4862 = vpop.f32.mrb[0].mxu0
        %4863 = vmatprep.mubr.bf16.mxu0 0
        %4864 = vmatmul.mubr.bf16.gmra.mrb[0].mxu0 %v3342
        %v4865 = vpop.f32.mrb[0].mxu0
        %v4866 = vadd.f32 0.0, %v4865
        %v4867 = vpop.f32.mrb[0].mxu0
        %v4868 = vpop.f32.mrb[0].mxu0
        %v4869 = vadd.f32 0.0, %v4868
        %v4870 = vpop.f32.mrb[0].mxu0
        %4871 = vmatprep.mubr.bf16.mxu0 0
        %4872 = vmatmul.mubr.bf16.gmra.mrb[0].mxu0 %v3343
        %v4873 = vpop.f32.mrb[0].mxu0
        %v4874 = vadd.f32 0.0, %v4873
        %v4875 = vpop.f32.mrb[0].mxu0
        %v4876 = vpop.f32.mrb[0].mxu0
        %v4877 = vadd.f32 0.0, %v4876
        %v4878 = vpop.f32.mrb[0].mxu0
        %4879 = vmatprep.mubr.bf16.mxu0 0
        %4880 = vmatmul.mubr.bf16.gmra.mrb[0].mxu0 %v3344
        %v4881 = vpop.f32.mrb[0].mxu0
        %v4882 = vadd.f32 0.0, %v4881
        %v4883 = vpop.f32.mrb[0].mxu0
        %v4884 = vpop.f32.mrb[0].mxu0
        %v4885 = vadd.f32 0.0, %v4884
        %v4886 = vpop.f32.mrb[0].mxu0
        %4887 = vmatprep.mubr.bf16.mxu0 0
        %4888 = vmatmul.mubr.bf16.gmra.mrb[0].mxu0 %v3345
        %v4889 = vpop.f32.mrb[0].mxu0
        %v4890 = vadd.f32 0.0, %v4889
        %v4891 = vpop.f32.mrb[0].mxu0
        %v4892 = vpop.f32.mrb[0].mxu0
        %v4893 = vadd.f32 0.0, %v4892
        %v4894 = vpop.f32.mrb[0].mxu0
        %4895 = vmatprep.mubr.bf16.mxu0 0
        %4896 = vmatmul.mubr.bf16.gmra.mrb[0].mxu0 %v3346
        %v4897 = vpop.f32.mrb[0].mxu0
        %v4898 = vadd.f32 0.0, %v4897
        %v4899 = vpop.f32.mrb[0].mxu0
        %v4900 = vpop.f32.mrb[0].mxu0
        %v4901 = vadd.f32 0.0, %v4900
        %v4902 = vpop.f32.mrb[0].mxu0
        %4903 = vmatprep.mubr.bf16.mxu0 0
        %4904 = vmatmul.mubr.bf16.gmra.mrb[0].mxu0 %v3347
        %v4905 = vpop.f32.mrb[0].mxu0
        %v4906 = vadd.f32 0.0, %v4905
        %v4907 = vpop.f32.mrb[0].mxu0
        %v4908 = vpop.f32.mrb[0].mxu0
        %v4909 = vadd.f32 0.0, %v4908
        %v4910 = vpop.f32.mrb[0].mxu0
        %4911 = vmatprep.mubr.bf16.mxu0 0
        %4912 = vmatmul.mubr.bf16.gmra.mrb[0].mxu0 %v3348
        %v4913 = vpop.f32.mrb[0].mxu0
        %v4914 = vadd.f32 0.0, %v4913
        %v4915 = vpop.f32.mrb[0].mxu0
        %v4916 = vpop.f32.mrb[0].mxu0
        %v4917 = vadd.f32 0.0, %v4916
        %v4918 = vpop.f32.mrb[0].mxu0
        %4919 = vmatprep.mubr.bf16.mxu0 0
        %4920 = vmatmul.mubr.bf16.gmra.mrb[0].mxu0 %v3349
        %v4921 = vpop.f32.mrb[0].mxu0
        %v4922 = vadd.f32 0.0, %v4921
        %v4923 = vpop.f32.mrb[0].mxu0
        %v4924 = vpop.f32.mrb[0].mxu0
        %v4925 = vadd.f32 0.0, %v4924
        %v4926 = vpop.f32.mrb[0].mxu0
        %4927 = vmatprep.mubr.bf16.mxu0 0
        %4928 = vmatmul.mubr.bf16.gmra.mrb[0].mxu0 %v3350
        %v4929 = vpop.f32.mrb[0].mxu0
        %v4930 = vadd.f32 0.0, %v4929
        %v4931 = vpop.f32.mrb[0].mxu0
        %v4932 = vpop.f32.mrb[0].mxu0
        %v4933 = vadd.f32 0.0, %v4932
        %v4934 = vpop.f32.mrb[0].mxu0
        %4935 = vmatprep.mubr.bf16.mxu0 0
        %4936 = vmatmul.mubr.bf16.gmra.mrb[0].mxu0 %v3351
        %v4937 = vpop.f32.mrb[0].mxu0
        %v4938 = vadd.f32 0.0, %v4937
        %v4939 = vpop.f32.mrb[0].mxu0
        %v4940 = vpop.f32.mrb[0].mxu0
        %v4941 = vadd.f32 0.0, %v4940
        %v4942 = vpop.f32.mrb[0].mxu0
        %4943 = vmatprep.mubr.bf16.mxu0 0
        %4944 = vmatmul.mubr.bf16.gmra.mrb[0].mxu0 %v3352
        %v4945 = vpop.f32.mrb[0].mxu0
        %v4946 = vadd.f32 0.0, %v4945
        %v4947 = vpop.f32.mrb[0].mxu0
        %v4948 = vpop.f32.mrb[0].mxu0
        %v4949 = vadd.f32 0.0, %v4948
        %v4950 = vpop.f32.mrb[0].mxu0
        %4951 = vmatprep.mubr.bf16.mxu0 0
        %4952 = vmatmul.mubr.bf16.gmra.mrb[0].mxu0 %v3353
        %v4953 = vpop.f32.mrb[0].mxu0
        %v4954 = vadd.f32 0.0, %v4953
        %v4955 = vpop.f32.mrb[0].mxu0
        %v4956 = vpop.f32.mrb[0].mxu0
        %v4957 = vadd.f32 0.0, %v4956
        %v4958 = vpop.f32.mrb[0].mxu0
        %4959 = vmatprep.mubr.bf16.mxu0 0
        %4960 = vmatmul.mubr.bf16.gmra.mrb[0].mxu0 %v3354
        %v4961 = vpop.f32.mrb[0].mxu0
        %v4962 = vadd.f32 0.0, %v4961
        %v4963 = vpop.f32.mrb[0].mxu0
        %v4964 = vpop.f32.mrb[0].mxu0
        %v4965 = vadd.f32 0.0, %v4964
        %v4966 = vpop.f32.mrb[0].mxu0
        %4967 = vdwg.mxu0
        %v4968 = vadd.f32 %v4710, %v4842
        %v4969 = vadd.f32 %v4711, %v4845
        %v4970 = vadd.f32 %v4712, %v4850
        %v4971 = vadd.f32 %v4713, %v4853
        %v4972 = vadd.f32 %v4714, %v4858
        %v4973 = vadd.f32 %v4715, %v4861
        %v4974 = vadd.f32 %v4716, %v4866
        %v4975 = vadd.f32 %v4717, %v4869
        %v4976 = vadd.f32 %v4718, %v4874
        %v4977 = vadd.f32 %v4719, %v4877
        %v4978 = vadd.f32 %v4720, %v4882
        %v4979 = vadd.f32 %v4721, %v4885
        %v4980 = vadd.f32 %v4722, %v4890
        %v4981 = vadd.f32 %v4723, %v4893
        %v4982 = vadd.f32 %v4724, %v4898
        %v4983 = vadd.f32 %v4725, %v4901
        %v4984 = vadd.f32 %v4726, %v4906
        %v4985 = vadd.f32 %v4727, %v4909
        %v4986 = vadd.f32 %v4728, %v4914
        %v4987 = vadd.f32 %v4729, %v4917
        %v4988 = vadd.f32 %v4730, %v4922
        %v4989 = vadd.f32 %v4731, %v4925
        %v4990 = vadd.f32 %v4732, %v4930
        %v4991 = vadd.f32 %v4733, %v4933
        %v4992 = vadd.f32 %v4734, %v4938
        %v4993 = vadd.f32 %v4735, %v4941
        %v4994 = vadd.f32 %v4736, %v4946
        %v4995 = vadd.f32 %v4737, %v4949
        %v4996 = vadd.f32 %v4738, %v4954
        %v4997 = vadd.f32 %v4739, %v4957
        %v4998 = vadd.f32 %v4740, %v4962
        %v4999 = vadd.f32 %v4741, %v4965
        %v5000 = vrot.slane %v3359, 1
        %v5001 = vor.u32 %v3356, %v5000
        %v5002 = vrot.slane %v3366, 1
        %v5003 = vor.u32 %v3363, %v5002
        %v5004 = vrot.slane %v3373, 1
        %v5005 = vor.u32 %v3370, %v5004
        %v5006 = vrot.slane %v3380, 1
        %v5007 = vor.u32 %v3377, %v5006
        %v5008 = vrot.slane %v3387, 1
        %v5009 = vor.u32 %v3384, %v5008
        %v5010 = vrot.slane %v3394, 1
        %v5011 = vor.u32 %v3391, %v5010
        %v5012 = vrot.slane %v3401, 1
        %v5013 = vor.u32 %v3398, %v5012
        %v5014 = vrot.slane %v3408, 1
        %v5015 = vor.u32 %v3405, %v5014
        %v5016 = vrot.slane %v3415, 1
        %v5017 = vor.u32 %v3412, %v5016
        %v5018 = vrot.slane %v3422, 1
        %v5019 = vor.u32 %v3419, %v5018
        %v5020 = vrot.slane %v3429, 1
        %v5021 = vor.u32 %v3426, %v5020
        %v5022 = vrot.slane %v3436, 1
        %v5023 = vor.u32 %v3433, %v5022
        %v5024 = vrot.slane %v3443, 1
        %v5025 = vor.u32 %v3440, %v5024
        %v5026 = vrot.slane %v3450, 1
        %v5027 = vor.u32 %v3447, %v5026
        %v5028 = vrot.slane %v3457, 1
        %v5029 = vor.u32 %v3454, %v5028
        %v5030 = vrot.slane %v3464, 1
        %v5031 = vor.u32 %v3461, %v5030
        %v5032 = vrot.slane %v3471, 1
        %v5033 = vor.u32 %v3468, %v5032
        %v5034 = vrot.slane %v3478, 1
        %v5035 = vor.u32 %v3475, %v5034
        %v5054 = vsel %vm2313, %v5001, 0
        %v5055 = vsel %vm2313, %v5003, 0
        %v5056 = vsel %vm2313, %v5005, 0
        %v5057 = vsel %vm2313, %v5007, 0
        %v5058 = vsel %vm2313, %v5009, 0
        %v5059 = vsel %vm2313, %v5011, 0
        %v5060 = vsel %vm2313, %v5013, 0
        %v5061 = vsel %vm2313, %v5015, 0
        %v5062 = vsel %vm2313, %v5017, 0
        %v5063 = vsel %vm2313, %v5019, 0
        %v5064 = vsel %vm2313, %v5021, 0
        %v5065 = vsel %vm2313, %v5023, 0
        %v5066 = vsel %vm2313, %v5025, 0
        %v5067 = vsel %vm2313, %v5027, 0
        %v5068 = vsel %vm2313, %v5029, 0
        %v5069 = vsel %vm2313, %v5031, 0
        %v5070 = vsel %vm2313, %v5033, 0
        %v5071 = vsel %vm2313, %v5035, 0
        %s5072 = scalar_lea.vmem [#allocation3], 128
        %v5073 = vld [vmem:[%s5072] sm:$0xf]
        %v5074 = vld [vmem:[%s5072 + $0x4] sm:$0xf]
        %v5075 = vld [vmem:[%s5072 + $0x8] sm:$0xf]
        %v5076 = vld [vmem:[%s5072 + $0xc] sm:$0xf]
        %v5077 = vld [vmem:[%s5072 + $0x10] sm:$0xf]
        %v5078 = vld [vmem:[%s5072 + $0x14] sm:$0xf]
        %v5079 = vld [vmem:[%s5072 + $0x18] sm:$0xf]
        %v5080 = vld [vmem:[%s5072 + $0x1c] sm:$0xf]
        %v5081 = vld [vmem:[%s5072 + $0x20] sm:$0xf]
        %v5082 = vld [vmem:[%s5072 + $0x24] sm:$0xf]
        %v5083 = vld [vmem:[%s5072 + $0x28] sm:$0xf]
        %v5084 = vld [vmem:[%s5072 + $0x2c] sm:$0xf]
        %v5085 = vld [vmem:[%s5072 + $0x30] sm:$0xf]
        %v5086 = vld [vmem:[%s5072 + $0x34] sm:$0xf]
        %v5087 = vld [vmem:[%s5072 + $0x38] sm:$0xf]
        %v5088 = vld [vmem:[%s5072 + $0x3c] sm:$0xf]
        %v5105 = vunpack.c.l.b16 %v5073
        %v5106 = vunpack.c.l.b16 %v5074
        %v5107 = vunpack.c.l.b16 %v5075
        %v5108 = vunpack.c.l.b16 %v5076
        %v5109 = vunpack.c.l.b16 %v5077
        %v5110 = vunpack.c.l.b16 %v5078
        %v5111 = vunpack.c.l.b16 %v5079
        %v5112 = vunpack.c.l.b16 %v5080
        %v5113 = vunpack.c.l.b16 %v5081
        %v5114 = vunpack.c.l.b16 %v5082
        %v5115 = vunpack.c.l.b16 %v5083
        %v5116 = vunpack.c.l.b16 %v5084
        %v5117 = vunpack.c.l.b16 %v5085
        %v5118 = vunpack.c.l.b16 %v5086
        %v5119 = vunpack.c.l.b16 %v5087
        %v5120 = vunpack.c.l.b16 %v5088
        %v5121 = vpack.c.b16 %v5106, %v5105
        %v5122 = vpack.c.b16 %v5108, %v5107
        %v5123 = vpack.c.b16 %v5110, %v5109
        %v5124 = vpack.c.b16 %v5112, %v5111
        %v5125 = vpack.c.b16 %v5114, %v5113
        %v5126 = vpack.c.b16 %v5116, %v5115
        %v5127 = vpack.c.b16 %v5118, %v5117
        %v5128 = vpack.c.b16 %v5120, %v5119
        %5137 = vmatprep.subr.bf16.mxu0 0
        %5138 = vmatpush1.bf16.msra.mxu0 %v5121
        %5139 = vmatprep.subr.bf16.mxu0 0
        %5140 = vmatpush1.bf16.msra.mxu0 %v5122
        %5141 = vmatprep.subr.bf16.mxu0 0
        %5142 = vmatpush1.bf16.msra.mxu0 %v5123
        %5143 = vmatprep.subr.bf16.mxu0 0
        %5144 = vmatpush1.bf16.msra.mxu0 %v5124
        %5145 = vmatprep.subr.bf16.mxu0 0
        %5146 = vmatpush1.bf16.msra.mxu0 %v5125
        %5147 = vmatprep.subr.bf16.mxu0 0
        %5148 = vmatpush1.bf16.msra.mxu0 %v5126
        %5149 = vmatprep.subr.bf16.mxu0 0
        %5150 = vmatpush1.bf16.msra.mxu0 %v5127
        %5151 = vmatprep.subr.bf16.mxu0 0
        %5152 = vmatpush1.bf16.msra.mxu0 %v5128
        %5153 = vmatprep.subr.bf16.mxu0 0
        %5154 = vmatpush1.bf16.msra.mxu0 0
        %5155 = vmatprep.subr.bf16.mxu0 0
        %5156 = vmatpush1.bf16.msra.mxu0 0
        %5157 = vmatprep.subr.bf16.mxu0 0
        %5158 = vmatpush1.bf16.msra.mxu0 0
        %5159 = vmatprep.subr.bf16.mxu0 0
        %5160 = vmatpush1.bf16.msra.mxu0 0
        %5161 = vmatprep.subr.bf16.mxu0 0
        %5162 = vmatpush1.bf16.msra.mxu0 0
        %5163 = vmatprep.subr.bf16.mxu0 0
        %5164 = vmatpush1.bf16.msra.mxu0 0
        %5165 = vmatprep.subr.bf16.mxu0 0
        %5166 = vmatpush1.bf16.msra.mxu0 0
        %5167 = vmatprep.subr.bf16.mxu0 0
        %5168 = vmatpush1.bf16.msra.mxu0 0
        %5169 = vmatprep.mubr.bf16.mxu0 0
        %5170 = vmatmul.mubr.bf16.gmra.mrb[0].mxu0 %v5054
        %v5171 = vpop.f32.mrb[0].mxu0
        %v5172 = vadd.f32 0.0, %v5171
        %v5173 = vpop.f32.mrb[0].mxu0
        %v5174 = vpop.f32.mrb[0].mxu0
        %v5175 = vadd.f32 0.0, %v5174
        %v5176 = vpop.f32.mrb[0].mxu0
        %5177 = vmatprep.mubr.bf16.mxu0 0
        %5178 = vmatmul.mubr.bf16.gmra.mrb[0].mxu0 %v5055
        %v5179 = vpop.f32.mrb[0].mxu0
        %v5180 = vadd.f32 0.0, %v5179
        %v5181 = vpop.f32.mrb[0].mxu0
        %v5182 = vpop.f32.mrb[0].mxu0
        %v5183 = vadd.f32 0.0, %v5182
        %v5184 = vpop.f32.mrb[0].mxu0
        %5185 = vmatprep.mubr.bf16.mxu0 0
        %5186 = vmatmul.mubr.bf16.gmra.mrb[0].mxu0 %v5056
        %v5187 = vpop.f32.mrb[0].mxu0
        %v5188 = vadd.f32 0.0, %v5187
        %v5189 = vpop.f32.mrb[0].mxu0
        %v5190 = vpop.f32.mrb[0].mxu0
        %v5191 = vadd.f32 0.0, %v5190
        %v5192 = vpop.f32.mrb[0].mxu0
        %5193 = vmatprep.mubr.bf16.mxu0 0
        %5194 = vmatmul.mubr.bf16.gmra.mrb[0].mxu0 %v5057
        %v5195 = vpop.f32.mrb[0].mxu0
        %v5196 = vadd.f32 0.0, %v5195
        %v5197 = vpop.f32.mrb[0].mxu0
        %v5198 = vpop.f32.mrb[0].mxu0
        %v5199 = vadd.f32 0.0, %v5198
        %v5200 = vpop.f32.mrb[0].mxu0
        %5201 = vmatprep.mubr.bf16.mxu0 0
        %5202 = vmatmul.mubr.bf16.gmra.mrb[0].mxu0 %v5058
        %v5203 = vpop.f32.mrb[0].mxu0
        %v5204 = vadd.f32 0.0, %v5203
        %v5205 = vpop.f32.mrb[0].mxu0
        %v5206 = vpop.f32.mrb[0].mxu0
        %v5207 = vadd.f32 0.0, %v5206
        %v5208 = vpop.f32.mrb[0].mxu0
        %5209 = vmatprep.mubr.bf16.mxu0 0
        %5210 = vmatmul.mubr.bf16.gmra.mrb[0].mxu0 %v5059
        %v5211 = vpop.f32.mrb[0].mxu0
        %v5212 = vadd.f32 0.0, %v5211
        %v5213 = vpop.f32.mrb[0].mxu0
        %v5214 = vpop.f32.mrb[0].mxu0
        %v5215 = vadd.f32 0.0, %v5214
        %v5216 = vpop.f32.mrb[0].mxu0
        %5217 = vmatprep.mubr.bf16.mxu0 0
        %5218 = vmatmul.mubr.bf16.gmra.mrb[0].mxu0 %v5060
        %v5219 = vpop.f32.mrb[0].mxu0
        %v5220 = vadd.f32 0.0, %v5219
        %v5221 = vpop.f32.mrb[0].mxu0
        %v5222 = vpop.f32.mrb[0].mxu0
        %v5223 = vadd.f32 0.0, %v5222
        %v5224 = vpop.f32.mrb[0].mxu0
        %5225 = vmatprep.mubr.bf16.mxu0 0
        %5226 = vmatmul.mubr.bf16.gmra.mrb[0].mxu0 %v5061
        %v5227 = vpop.f32.mrb[0].mxu0
        %v5228 = vadd.f32 0.0, %v5227
        %v5229 = vpop.f32.mrb[0].mxu0
        %v5230 = vpop.f32.mrb[0].mxu0
        %v5231 = vadd.f32 0.0, %v5230
        %v5232 = vpop.f32.mrb[0].mxu0
        %5233 = vmatprep.mubr.bf16.mxu0 0
        %5234 = vmatmul.mubr.bf16.gmra.mrb[0].mxu0 %v5062
        %v5235 = vpop.f32.mrb[0].mxu0
        %v5236 = vadd.f32 0.0, %v5235
        %v5237 = vpop.f32.mrb[0].mxu0
        %v5238 = vpop.f32.mrb[0].mxu0
        %v5239 = vadd.f32 0.0, %v5238
        %v5240 = vpop.f32.mrb[0].mxu0
        %5241 = vmatprep.mubr.bf16.mxu0 0
        %5242 = vmatmul.mubr.bf16.gmra.mrb[0].mxu0 %v5063
        %v5243 = vpop.f32.mrb[0].mxu0
        %v5244 = vadd.f32 0.0, %v5243
        %v5245 = vpop.f32.mrb[0].mxu0
        %v5246 = vpop.f32.mrb[0].mxu0
        %v5247 = vadd.f32 0.0, %v5246
        %v5248 = vpop.f32.mrb[0].mxu0
        %5249 = vmatprep.mubr.bf16.mxu0 0
        %5250 = vmatmul.mubr.bf16.gmra.mrb[0].mxu0 %v5064
        %v5251 = vpop.f32.mrb[0].mxu0
        %v5252 = vadd.f32 0.0, %v5251
        %v5253 = vpop.f32.mrb[0].mxu0
        %v5254 = vpop.f32.mrb[0].mxu0
        %v5255 = vadd.f32 0.0, %v5254
        %v5256 = vpop.f32.mrb[0].mxu0
        %5257 = vmatprep.mubr.bf16.mxu0 0
        %5258 = vmatmul.mubr.bf16.gmra.mrb[0].mxu0 %v5065
        %v5259 = vpop.f32.mrb[0].mxu0
        %v5260 = vadd.f32 0.0, %v5259
        %v5261 = vpop.f32.mrb[0].mxu0
        %v5262 = vpop.f32.mrb[0].mxu0
        %v5263 = vadd.f32 0.0, %v5262
        %v5264 = vpop.f32.mrb[0].mxu0
        %5265 = vmatprep.mubr.bf16.mxu0 0
        %5266 = vmatmul.mubr.bf16.gmra.mrb[0].mxu0 %v5066
        %v5267 = vpop.f32.mrb[0].mxu0
        %v5268 = vadd.f32 0.0, %v5267
        %v5269 = vpop.f32.mrb[0].mxu0
        %v5270 = vpop.f32.mrb[0].mxu0
        %v5271 = vadd.f32 0.0, %v5270
        %v5272 = vpop.f32.mrb[0].mxu0
        %5273 = vmatprep.mubr.bf16.mxu0 0
        %5274 = vmatmul.mubr.bf16.gmra.mrb[0].mxu0 %v5067
        %v5275 = vpop.f32.mrb[0].mxu0
        %v5276 = vadd.f32 0.0, %v5275
        %v5277 = vpop.f32.mrb[0].mxu0
        %v5278 = vpop.f32.mrb[0].mxu0
        %v5279 = vadd.f32 0.0, %v5278
        %v5280 = vpop.f32.mrb[0].mxu0
        %5281 = vmatprep.mubr.bf16.mxu0 0
        %5282 = vmatmul.mubr.bf16.gmra.mrb[0].mxu0 %v5068
        %v5283 = vpop.f32.mrb[0].mxu0
        %v5284 = vadd.f32 0.0, %v5283
        %v5285 = vpop.f32.mrb[0].mxu0
        %v5286 = vpop.f32.mrb[0].mxu0
        %v5287 = vadd.f32 0.0, %v5286
        %v5288 = vpop.f32.mrb[0].mxu0
        %5289 = vmatprep.mubr.bf16.mxu0 0
        %5290 = vmatmul.mubr.bf16.gmra.mrb[0].mxu0 %v5069
        %v5291 = vpop.f32.mrb[0].mxu0
        %v5292 = vadd.f32 0.0, %v5291
        %v5293 = vpop.f32.mrb[0].mxu0
        %v5294 = vpop.f32.mrb[0].mxu0
        %v5295 = vadd.f32 0.0, %v5294
        %v5296 = vpop.f32.mrb[0].mxu0
        %5297 = vdwg.mxu0
        %v5298 = vadd.f32 %v4968, %v5172
        %v5299 = vadd.f32 %v4969, %v5175
        %v5300 = vadd.f32 %v4970, %v5180
        %v5301 = vadd.f32 %v4971, %v5183
        %v5302 = vadd.f32 %v4972, %v5188
        %v5303 = vadd.f32 %v4973, %v5191
        %v5304 = vadd.f32 %v4974, %v5196
        %v5305 = vadd.f32 %v4975, %v5199
        %v5306 = vadd.f32 %v4976, %v5204
        %v5307 = vadd.f32 %v4977, %v5207
        %v5308 = vadd.f32 %v4978, %v5212
        %v5309 = vadd.f32 %v4979, %v5215
        %v5310 = vadd.f32 %v4980, %v5220
        %v5311 = vadd.f32 %v4981, %v5223
        %v5312 = vadd.f32 %v4982, %v5228
        %v5313 = vadd.f32 %v4983, %v5231
        %v5314 = vadd.f32 %v4984, %v5236
        %v5315 = vadd.f32 %v4985, %v5239
        %v5316 = vadd.f32 %v4986, %v5244
        %v5317 = vadd.f32 %v4987, %v5247
        %v5318 = vadd.f32 %v4988, %v5252
        %v5319 = vadd.f32 %v4989, %v5255
        %v5320 = vadd.f32 %v4990, %v5260
        %v5321 = vadd.f32 %v4991, %v5263
        %v5322 = vadd.f32 %v4992, %v5268
        %v5323 = vadd.f32 %v4993, %v5271
        %v5324 = vadd.f32 %v4994, %v5276
        %v5325 = vadd.f32 %v4995, %v5279
        %v5326 = vadd.f32 %v4996, %v5284
        %v5327 = vadd.f32 %v4997, %v5287
        %v5328 = vadd.f32 %v4998, %v5292
        %v5329 = vadd.f32 %v4999, %v5295
        %s5330 = scalar_lea.vmem [#allocation3], 320
        %v5331 = vld [vmem:[%s5330] sm:$0xf]
        %v5332 = vld [vmem:[%s5330 + $0x4] sm:$0xf]
        %v5333 = vld [vmem:[%s5330 + $0x8] sm:$0xf]
        %v5334 = vld [vmem:[%s5330 + $0xc] sm:$0xf]
        %v5335 = vld [vmem:[%s5330 + $0x10] sm:$0xf]
        %v5336 = vld [vmem:[%s5330 + $0x14] sm:$0xf]
        %v5337 = vld [vmem:[%s5330 + $0x18] sm:$0xf]
        %v5338 = vld [vmem:[%s5330 + $0x1c] sm:$0xf]
        %v5339 = vld [vmem:[%s5330 + $0x20] sm:$0xf]
        %v5340 = vld [vmem:[%s5330 + $0x24] sm:$0xf]
        %v5341 = vld [vmem:[%s5330 + $0x28] sm:$0xf]
        %v5342 = vld [vmem:[%s5330 + $0x2c] sm:$0xf]
        %v5343 = vld [vmem:[%s5330 + $0x30] sm:$0xf]
        %v5344 = vld [vmem:[%s5330 + $0x34] sm:$0xf]
        %v5345 = vld [vmem:[%s5330 + $0x38] sm:$0xf]
        %v5346 = vld [vmem:[%s5330 + $0x3c] sm:$0xf]
        %v5363 = vunpack.c.l.b16 %v5331
        %v5364 = vunpack.c.l.b16 %v5332
        %v5365 = vunpack.c.l.b16 %v5333
        %v5366 = vunpack.c.l.b16 %v5334
        %v5367 = vunpack.c.l.b16 %v5335
        %v5368 = vunpack.c.l.b16 %v5336
        %v5369 = vunpack.c.l.b16 %v5337
        %v5370 = vunpack.c.l.b16 %v5338
        %v5371 = vunpack.c.l.b16 %v5339
        %v5372 = vunpack.c.l.b16 %v5340
        %v5373 = vunpack.c.l.b16 %v5341
        %v5374 = vunpack.c.l.b16 %v5342
        %v5375 = vunpack.c.l.b16 %v5343
        %v5376 = vunpack.c.l.b16 %v5344
        %v5377 = vunpack.c.l.b16 %v5345
        %v5378 = vunpack.c.l.b16 %v5346
        %v5379 = vpack.c.b16 %v5364, %v5363
        %v5380 = vpack.c.b16 %v5366, %v5365
        %v5381 = vpack.c.b16 %v5368, %v5367
        %v5382 = vpack.c.b16 %v5370, %v5369
        %v5383 = vpack.c.b16 %v5372, %v5371
        %v5384 = vpack.c.b16 %v5374, %v5373
        %v5385 = vpack.c.b16 %v5376, %v5375
        %v5386 = vpack.c.b16 %v5378, %v5377
        %5395 = vmatprep.subr.bf16.mxu0 0
        %5396 = vmatpush1.bf16.msra.mxu0 %v5379
        %5397 = vmatprep.subr.bf16.mxu0 0
        %5398 = vmatpush1.bf16.msra.mxu0 %v5380
        %5399 = vmatprep.subr.bf16.mxu0 0
        %5400 = vmatpush1.bf16.msra.mxu0 %v5381
        %5401 = vmatprep.subr.bf16.mxu0 0
        %5402 = vmatpush1.bf16.msra.mxu0 %v5382
        %5403 = vmatprep.subr.bf16.mxu0 0
        %5404 = vmatpush1.bf16.msra.mxu0 %v5383
        %5405 = vmatprep.subr.bf16.mxu0 0
        %5406 = vmatpush1.bf16.msra.mxu0 %v5384
        %5407 = vmatprep.subr.bf16.mxu0 0
        %5408 = vmatpush1.bf16.msra.mxu0 %v5385
        %5409 = vmatprep.subr.bf16.mxu0 0
        %5410 = vmatpush1.bf16.msra.mxu0 %v5386
        %5411 = vmatprep.subr.bf16.mxu0 0
        %5412 = vmatpush1.bf16.msra.mxu0 0
        %5413 = vmatprep.subr.bf16.mxu0 0
        %5414 = vmatpush1.bf16.msra.mxu0 0
        %5415 = vmatprep.subr.bf16.mxu0 0
        %5416 = vmatpush1.bf16.msra.mxu0 0
        %5417 = vmatprep.subr.bf16.mxu0 0
        %5418 = vmatpush1.bf16.msra.mxu0 0
        %5419 = vmatprep.subr.bf16.mxu0 0
        %5420 = vmatpush1.bf16.msra.mxu0 0
        %5421 = vmatprep.subr.bf16.mxu0 0
        %5422 = vmatpush1.bf16.msra.mxu0 0
        %5423 = vmatprep.subr.bf16.mxu0 0
        %5424 = vmatpush1.bf16.msra.mxu0 0
        %5425 = vmatprep.subr.bf16.mxu0 0
        %5426 = vmatpush1.bf16.msra.mxu0 0
        %5427 = vmatprep.mubr.bf16.mxu0 0
        %5428 = vmatmul.mubr.bf16.gmra.mrb[0].mxu0 %v5055
        %v5429 = vpop.f32.mrb[0].mxu0
        %v5430 = vadd.f32 0.0, %v5429
        %v5431 = vpop.f32.mrb[0].mxu0
        %v5432 = vpop.f32.mrb[0].mxu0
        %v5433 = vadd.f32 0.0, %v5432
        %v5434 = vpop.f32.mrb[0].mxu0
        %5435 = vmatprep.mubr.bf16.mxu0 0
        %5436 = vmatmul.mubr.bf16.gmra.mrb[0].mxu0 %v5056
        %v5437 = vpop.f32.mrb[0].mxu0
        %v5438 = vadd.f32 0.0, %v5437
        %v5439 = vpop.f32.mrb[0].mxu0
        %v5440 = vpop.f32.mrb[0].mxu0
        %v5441 = vadd.f32 0.0, %v5440
        %v5442 = vpop.f32.mrb[0].mxu0
        %5443 = vmatprep.mubr.bf16.mxu0 0
        %5444 = vmatmul.mubr.bf16.gmra.mrb[0].mxu0 %v5057
        %v5445 = vpop.f32.mrb[0].mxu0
        %v5446 = vadd.f32 0.0, %v5445
        %v5447 = vpop.f32.mrb[0].mxu0
        %v5448 = vpop.f32.mrb[0].mxu0
        %v5449 = vadd.f32 0.0, %v5448
        %v5450 = vpop.f32.mrb[0].mxu0
        %5451 = vmatprep.mubr.bf16.mxu0 0
        %5452 = vmatmul.mubr.bf16.gmra.mrb[0].mxu0 %v5058
        %v5453 = vpop.f32.mrb[0].mxu0
        %v5454 = vadd.f32 0.0, %v5453
        %v5455 = vpop.f32.mrb[0].mxu0
        %v5456 = vpop.f32.mrb[0].mxu0
        %v5457 = vadd.f32 0.0, %v5456
        %v5458 = vpop.f32.mrb[0].mxu0
        %5459 = vmatprep.mubr.bf16.mxu0 0
        %5460 = vmatmul.mubr.bf16.gmra.mrb[0].mxu0 %v5059
        %v5461 = vpop.f32.mrb[0].mxu0
        %v5462 = vadd.f32 0.0, %v5461
        %v5463 = vpop.f32.mrb[0].mxu0
        %v5464 = vpop.f32.mrb[0].mxu0
        %v5465 = vadd.f32 0.0, %v5464
        %v5466 = vpop.f32.mrb[0].mxu0
        %5467 = vmatprep.mubr.bf16.mxu0 0
        %5468 = vmatmul.mubr.bf16.gmra.mrb[0].mxu0 %v5060
        %v5469 = vpop.f32.mrb[0].mxu0
        %v5470 = vadd.f32 0.0, %v5469
        %v5471 = vpop.f32.mrb[0].mxu0
        %v5472 = vpop.f32.mrb[0].mxu0
        %v5473 = vadd.f32 0.0, %v5472
        %v5474 = vpop.f32.mrb[0].mxu0
        %5475 = vmatprep.mubr.bf16.mxu0 0
        %5476 = vmatmul.mubr.bf16.gmra.mrb[0].mxu0 %v5061
        %v5477 = vpop.f32.mrb[0].mxu0
        %v5478 = vadd.f32 0.0, %v5477
        %v5479 = vpop.f32.mrb[0].mxu0
        %v5480 = vpop.f32.mrb[0].mxu0
        %v5481 = vadd.f32 0.0, %v5480
        %v5482 = vpop.f32.mrb[0].mxu0
        %5483 = vmatprep.mubr.bf16.mxu0 0
        %5484 = vmatmul.mubr.bf16.gmra.mrb[0].mxu0 %v5062
        %v5485 = vpop.f32.mrb[0].mxu0
        %v5486 = vadd.f32 0.0, %v5485
        %v5487 = vpop.f32.mrb[0].mxu0
        %v5488 = vpop.f32.mrb[0].mxu0
        %v5489 = vadd.f32 0.0, %v5488
        %v5490 = vpop.f32.mrb[0].mxu0
        %5491 = vmatprep.mubr.bf16.mxu0 0
        %5492 = vmatmul.mubr.bf16.gmra.mrb[0].mxu0 %v5063
        %v5493 = vpop.f32.mrb[0].mxu0
        %v5494 = vadd.f32 0.0, %v5493
        %v5495 = vpop.f32.mrb[0].mxu0
        %v5496 = vpop.f32.mrb[0].mxu0
        %v5497 = vadd.f32 0.0, %v5496
        %v5498 = vpop.f32.mrb[0].mxu0
        %5499 = vmatprep.mubr.bf16.mxu0 0
        %5500 = vmatmul.mubr.bf16.gmra.mrb[0].mxu0 %v5064
        %v5501 = vpop.f32.mrb[0].mxu0
        %v5502 = vadd.f32 0.0, %v5501
        %v5503 = vpop.f32.mrb[0].mxu0
        %v5504 = vpop.f32.mrb[0].mxu0
        %v5505 = vadd.f32 0.0, %v5504
        %v5506 = vpop.f32.mrb[0].mxu0
        %5507 = vmatprep.mubr.bf16.mxu0 0
        %5508 = vmatmul.mubr.bf16.gmra.mrb[0].mxu0 %v5065
        %v5509 = vpop.f32.mrb[0].mxu0
        %v5510 = vadd.f32 0.0, %v5509
        %v5511 = vpop.f32.mrb[0].mxu0
        %v5512 = vpop.f32.mrb[0].mxu0
        %v5513 = vadd.f32 0.0, %v5512
        %v5514 = vpop.f32.mrb[0].mxu0
        %5515 = vmatprep.mubr.bf16.mxu0 0
        %5516 = vmatmul.mubr.bf16.gmra.mrb[0].mxu0 %v5066
        %v5517 = vpop.f32.mrb[0].mxu0
        %v5518 = vadd.f32 0.0, %v5517
        %v5519 = vpop.f32.mrb[0].mxu0
        %v5520 = vpop.f32.mrb[0].mxu0
        %v5521 = vadd.f32 0.0, %v5520
        %v5522 = vpop.f32.mrb[0].mxu0
        %5523 = vmatprep.mubr.bf16.mxu0 0
        %5524 = vmatmul.mubr.bf16.gmra.mrb[0].mxu0 %v5067
        %v5525 = vpop.f32.mrb[0].mxu0
        %v5526 = vadd.f32 0.0, %v5525
        %v5527 = vpop.f32.mrb[0].mxu0
        %v5528 = vpop.f32.mrb[0].mxu0
        %v5529 = vadd.f32 0.0, %v5528
        %v5530 = vpop.f32.mrb[0].mxu0
        %5531 = vmatprep.mubr.bf16.mxu0 0
        %5532 = vmatmul.mubr.bf16.gmra.mrb[0].mxu0 %v5068
        %v5533 = vpop.f32.mrb[0].mxu0
        %v5534 = vadd.f32 0.0, %v5533
        %v5535 = vpop.f32.mrb[0].mxu0
        %v5536 = vpop.f32.mrb[0].mxu0
        %v5537 = vadd.f32 0.0, %v5536
        %v5538 = vpop.f32.mrb[0].mxu0
        %5539 = vmatprep.mubr.bf16.mxu0 0
        %5540 = vmatmul.mubr.bf16.gmra.mrb[0].mxu0 %v5069
        %v5541 = vpop.f32.mrb[0].mxu0
        %v5542 = vadd.f32 0.0, %v5541
        %v5543 = vpop.f32.mrb[0].mxu0
        %v5544 = vpop.f32.mrb[0].mxu0
        %v5545 = vadd.f32 0.0, %v5544
        %v5546 = vpop.f32.mrb[0].mxu0
        %5547 = vmatprep.mubr.bf16.mxu0 0
        %5548 = vmatmul.mubr.bf16.gmra.mrb[0].mxu0 %v5070
        %v5549 = vpop.f32.mrb[0].mxu0
        %v5550 = vadd.f32 0.0, %v5549
        %v5551 = vpop.f32.mrb[0].mxu0
        %v5552 = vpop.f32.mrb[0].mxu0
        %v5553 = vadd.f32 0.0, %v5552
        %v5554 = vpop.f32.mrb[0].mxu0
        %5555 = vdwg.mxu0
        %v5556 = vadd.f32 %v5298, %v5430
        %v5557 = vadd.f32 %v5299, %v5433
        %v5558 = vadd.f32 %v5300, %v5438
        %v5559 = vadd.f32 %v5301, %v5441
        %v5560 = vadd.f32 %v5302, %v5446
        %v5561 = vadd.f32 %v5303, %v5449
        %v5562 = vadd.f32 %v5304, %v5454
        %v5563 = vadd.f32 %v5305, %v5457
        %v5564 = vadd.f32 %v5306, %v5462
        %v5565 = vadd.f32 %v5307, %v5465
        %v5566 = vadd.f32 %v5308, %v5470
        %v5567 = vadd.f32 %v5309, %v5473
        %v5568 = vadd.f32 %v5310, %v5478
        %v5569 = vadd.f32 %v5311, %v5481
        %v5570 = vadd.f32 %v5312, %v5486
        %v5571 = vadd.f32 %v5313, %v5489
        %v5572 = vadd.f32 %v5314, %v5494
        %v5573 = vadd.f32 %v5315, %v5497
        %v5574 = vadd.f32 %v5316, %v5502
        %v5575 = vadd.f32 %v5317, %v5505
        %v5576 = vadd.f32 %v5318, %v5510
        %v5577 = vadd.f32 %v5319, %v5513
        %v5578 = vadd.f32 %v5320, %v5518
        %v5579 = vadd.f32 %v5321, %v5521
        %v5580 = vadd.f32 %v5322, %v5526
        %v5581 = vadd.f32 %v5323, %v5529
        %v5582 = vadd.f32 %v5324, %v5534
        %v5583 = vadd.f32 %v5325, %v5537
        %v5584 = vadd.f32 %v5326, %v5542
        %v5585 = vadd.f32 %v5327, %v5545
        %v5586 = vadd.f32 %v5328, %v5550
        %v5587 = vadd.f32 %v5329, %v5553
        %s5588 = scalar_lea.vmem [#allocation3], 512
        %v5589 = vld [vmem:[%s5588] sm:$0xf]
        %v5590 = vld [vmem:[%s5588 + $0x4] sm:$0xf]
        %v5591 = vld [vmem:[%s5588 + $0x8] sm:$0xf]
        %v5592 = vld [vmem:[%s5588 + $0xc] sm:$0xf]
        %v5593 = vld [vmem:[%s5588 + $0x10] sm:$0xf]
        %v5594 = vld [vmem:[%s5588 + $0x14] sm:$0xf]
        %v5595 = vld [vmem:[%s5588 + $0x18] sm:$0xf]
        %v5596 = vld [vmem:[%s5588 + $0x1c] sm:$0xf]
        %v5597 = vld [vmem:[%s5588 + $0x20] sm:$0xf]
        %v5598 = vld [vmem:[%s5588 + $0x24] sm:$0xf]
        %v5599 = vld [vmem:[%s5588 + $0x28] sm:$0xf]
        %v5600 = vld [vmem:[%s5588 + $0x2c] sm:$0xf]
        %v5601 = vld [vmem:[%s5588 + $0x30] sm:$0xf]
        %v5602 = vld [vmem:[%s5588 + $0x34] sm:$0xf]
        %v5603 = vld [vmem:[%s5588 + $0x38] sm:$0xf]
        %v5604 = vld [vmem:[%s5588 + $0x3c] sm:$0xf]
        %v5621 = vunpack.c.l.b16 %v5589
        %v5622 = vunpack.c.l.b16 %v5590
        %v5623 = vunpack.c.l.b16 %v5591
        %v5624 = vunpack.c.l.b16 %v5592
        %v5625 = vunpack.c.l.b16 %v5593
        %v5626 = vunpack.c.l.b16 %v5594
        %v5627 = vunpack.c.l.b16 %v5595
        %v5628 = vunpack.c.l.b16 %v5596
        %v5629 = vunpack.c.l.b16 %v5597
        %v5630 = vunpack.c.l.b16 %v5598
        %v5631 = vunpack.c.l.b16 %v5599
        %v5632 = vunpack.c.l.b16 %v5600
        %v5633 = vunpack.c.l.b16 %v5601
        %v5634 = vunpack.c.l.b16 %v5602
        %v5635 = vunpack.c.l.b16 %v5603
        %v5636 = vunpack.c.l.b16 %v5604
        %v5637 = vpack.c.b16 %v5622, %v5621
        %v5638 = vpack.c.b16 %v5624, %v5623
        %v5639 = vpack.c.b16 %v5626, %v5625
        %v5640 = vpack.c.b16 %v5628, %v5627
        %v5641 = vpack.c.b16 %v5630, %v5629
        %v5642 = vpack.c.b16 %v5632, %v5631
        %v5643 = vpack.c.b16 %v5634, %v5633
        %v5644 = vpack.c.b16 %v5636, %v5635
        %5653 = vmatprep.subr.bf16.mxu0 0
        %5654 = vmatpush1.bf16.msra.mxu0 %v5637
        %5655 = vmatprep.subr.bf16.mxu0 0
        %5656 = vmatpush1.bf16.msra.mxu0 %v5638
        %5657 = vmatprep.subr.bf16.mxu0 0
        %5658 = vmatpush1.bf16.msra.mxu0 %v5639
        %5659 = vmatprep.subr.bf16.mxu0 0
        %5660 = vmatpush1.bf16.msra.mxu0 %v5640
        %5661 = vmatprep.subr.bf16.mxu0 0
        %5662 = vmatpush1.bf16.msra.mxu0 %v5641
        %5663 = vmatprep.subr.bf16.mxu0 0
        %5664 = vmatpush1.bf16.msra.mxu0 %v5642
        %5665 = vmatprep.subr.bf16.mxu0 0
        %5666 = vmatpush1.bf16.msra.mxu0 %v5643
        %5667 = vmatprep.subr.bf16.mxu0 0
        %5668 = vmatpush1.bf16.msra.mxu0 %v5644
        %5669 = vmatprep.subr.bf16.mxu0 0
        %5670 = vmatpush1.bf16.msra.mxu0 0
        %5671 = vmatprep.subr.bf16.mxu0 0
        %5672 = vmatpush1.bf16.msra.mxu0 0
        %5673 = vmatprep.subr.bf16.mxu0 0
        %5674 = vmatpush1.bf16.msra.mxu0 0
        %5675 = vmatprep.subr.bf16.mxu0 0
        %5676 = vmatpush1.bf16.msra.mxu0 0
        %5677 = vmatprep.subr.bf16.mxu0 0
        %5678 = vmatpush1.bf16.msra.mxu0 0
        %5679 = vmatprep.subr.bf16.mxu0 0
        %5680 = vmatpush1.bf16.msra.mxu0 0
        %5681 = vmatprep.subr.bf16.mxu0 0
        %5682 = vmatpush1.bf16.msra.mxu0 0
        %5683 = vmatprep.subr.bf16.mxu0 0
        %5684 = vmatpush1.bf16.msra.mxu0 0
        %5685 = vmatprep.mubr.bf16.mxu0 0
        %5686 = vmatmul.mubr.bf16.gmra.mrb[0].mxu0 %v5056
        %v5687 = vpop.f32.mrb[0].mxu0
        %v5688 = vadd.f32 0.0, %v5687
        %v5689 = vpop.f32.mrb[0].mxu0
        %v5690 = vpop.f32.mrb[0].mxu0
        %v5691 = vadd.f32 0.0, %v5690
        %v5692 = vpop.f32.mrb[0].mxu0
        %5693 = vmatprep.mubr.bf16.mxu0 0
        %5694 = vmatmul.mubr.bf16.gmra.mrb[0].mxu0 %v5057
        %v5695 = vpop.f32.mrb[0].mxu0
        %v5696 = vadd.f32 0.0, %v5695
        %v5697 = vpop.f32.mrb[0].mxu0
        %v5698 = vpop.f32.mrb[0].mxu0
        %v5699 = vadd.f32 0.0, %v5698
        %v5700 = vpop.f32.mrb[0].mxu0
        %5701 = vmatprep.mubr.bf16.mxu0 0
        %5702 = vmatmul.mubr.bf16.gmra.mrb[0].mxu0 %v5058
        %v5703 = vpop.f32.mrb[0].mxu0
        %v5704 = vadd.f32 0.0, %v5703
        %v5705 = vpop.f32.mrb[0].mxu0
        %v5706 = vpop.f32.mrb[0].mxu0
        %v5707 = vadd.f32 0.0, %v5706
        %v5708 = vpop.f32.mrb[0].mxu0
        %5709 = vmatprep.mubr.bf16.mxu0 0
        %5710 = vmatmul.mubr.bf16.gmra.mrb[0].mxu0 %v5059
        %v5711 = vpop.f32.mrb[0].mxu0
        %v5712 = vadd.f32 0.0, %v5711
        %v5713 = vpop.f32.mrb[0].mxu0
        %v5714 = vpop.f32.mrb[0].mxu0
        %v5715 = vadd.f32 0.0, %v5714
        %v5716 = vpop.f32.mrb[0].mxu0
        %5717 = vmatprep.mubr.bf16.mxu0 0
        %5718 = vmatmul.mubr.bf16.gmra.mrb[0].mxu0 %v5060
        %v5719 = vpop.f32.mrb[0].mxu0
        %v5720 = vadd.f32 0.0, %v5719
        %v5721 = vpop.f32.mrb[0].mxu0
        %v5722 = vpop.f32.mrb[0].mxu0
        %v5723 = vadd.f32 0.0, %v5722
        %v5724 = vpop.f32.mrb[0].mxu0
        %5725 = vmatprep.mubr.bf16.mxu0 0
        %5726 = vmatmul.mubr.bf16.gmra.mrb[0].mxu0 %v5061
        %v5727 = vpop.f32.mrb[0].mxu0
        %v5728 = vadd.f32 0.0, %v5727
        %v5729 = vpop.f32.mrb[0].mxu0
        %v5730 = vpop.f32.mrb[0].mxu0
        %v5731 = vadd.f32 0.0, %v5730
        %v5732 = vpop.f32.mrb[0].mxu0
        %5733 = vmatprep.mubr.bf16.mxu0 0
        %5734 = vmatmul.mubr.bf16.gmra.mrb[0].mxu0 %v5062
        %v5735 = vpop.f32.mrb[0].mxu0
        %v5736 = vadd.f32 0.0, %v5735
        %v5737 = vpop.f32.mrb[0].mxu0
        %v5738 = vpop.f32.mrb[0].mxu0
        %v5739 = vadd.f32 0.0, %v5738
        %v5740 = vpop.f32.mrb[0].mxu0
        %5741 = vmatprep.mubr.bf16.mxu0 0
        %5742 = vmatmul.mubr.bf16.gmra.mrb[0].mxu0 %v5063
        %v5743 = vpop.f32.mrb[0].mxu0
        %v5744 = vadd.f32 0.0, %v5743
        %v5745 = vpop.f32.mrb[0].mxu0
        %v5746 = vpop.f32.mrb[0].mxu0
        %v5747 = vadd.f32 0.0, %v5746
        %v5748 = vpop.f32.mrb[0].mxu0
        %5749 = vmatprep.mubr.bf16.mxu0 0
        %5750 = vmatmul.mubr.bf16.gmra.mrb[0].mxu0 %v5064
        %v5751 = vpop.f32.mrb[0].mxu0
        %v5752 = vadd.f32 0.0, %v5751
        %v5753 = vpop.f32.mrb[0].mxu0
        %v5754 = vpop.f32.mrb[0].mxu0
        %v5755 = vadd.f32 0.0, %v5754
        %v5756 = vpop.f32.mrb[0].mxu0
        %5757 = vmatprep.mubr.bf16.mxu0 0
        %5758 = vmatmul.mubr.bf16.gmra.mrb[0].mxu0 %v5065
        %v5759 = vpop.f32.mrb[0].mxu0
        %v5760 = vadd.f32 0.0, %v5759
        %v5761 = vpop.f32.mrb[0].mxu0
        %v5762 = vpop.f32.mrb[0].mxu0
        %v5763 = vadd.f32 0.0, %v5762
        %v5764 = vpop.f32.mrb[0].mxu0
        %5765 = vmatprep.mubr.bf16.mxu0 0
        %5766 = vmatmul.mubr.bf16.gmra.mrb[0].mxu0 %v5066
        %v5767 = vpop.f32.mrb[0].mxu0
        %v5768 = vadd.f32 0.0, %v5767
        %v5769 = vpop.f32.mrb[0].mxu0
        %v5770 = vpop.f32.mrb[0].mxu0
        %v5771 = vadd.f32 0.0, %v5770
        %v5772 = vpop.f32.mrb[0].mxu0
        %5773 = vmatprep.mubr.bf16.mxu0 0
        %5774 = vmatmul.mubr.bf16.gmra.mrb[0].mxu0 %v5067
        %v5775 = vpop.f32.mrb[0].mxu0
        %v5776 = vadd.f32 0.0, %v5775
        %v5777 = vpop.f32.mrb[0].mxu0
        %v5778 = vpop.f32.mrb[0].mxu0
        %v5779 = vadd.f32 0.0, %v5778
        %v5780 = vpop.f32.mrb[0].mxu0
        %5781 = vmatprep.mubr.bf16.mxu0 0
        %5782 = vmatmul.mubr.bf16.gmra.mrb[0].mxu0 %v5068
        %v5783 = vpop.f32.mrb[0].mxu0
        %v5784 = vadd.f32 0.0, %v5783
        %v5785 = vpop.f32.mrb[0].mxu0
        %v5786 = vpop.f32.mrb[0].mxu0
        %v5787 = vadd.f32 0.0, %v5786
        %v5788 = vpop.f32.mrb[0].mxu0
        %5789 = vmatprep.mubr.bf16.mxu0 0
        %5790 = vmatmul.mubr.bf16.gmra.mrb[0].mxu0 %v5069
        %v5791 = vpop.f32.mrb[0].mxu0
        %v5792 = vadd.f32 0.0, %v5791
        %v5793 = vpop.f32.mrb[0].mxu0
        %v5794 = vpop.f32.mrb[0].mxu0
        %v5795 = vadd.f32 0.0, %v5794
        %v5796 = vpop.f32.mrb[0].mxu0
        %5797 = vmatprep.mubr.bf16.mxu0 0
        %5798 = vmatmul.mubr.bf16.gmra.mrb[0].mxu0 %v5070
        %v5799 = vpop.f32.mrb[0].mxu0
        %v5800 = vadd.f32 0.0, %v5799
        %v5801 = vpop.f32.mrb[0].mxu0
        %v5802 = vpop.f32.mrb[0].mxu0
        %v5803 = vadd.f32 0.0, %v5802
        %v5804 = vpop.f32.mrb[0].mxu0
        %5805 = vmatprep.mubr.bf16.mxu0 0
        %5806 = vmatmul.mubr.bf16.gmra.mrb[0].mxu0 %v5071
        %v5807 = vpop.f32.mrb[0].mxu0
        %v5808 = vadd.f32 0.0, %v5807
        %v5809 = vpop.f32.mrb[0].mxu0
        %v5810 = vpop.f32.mrb[0].mxu0
        %v5811 = vadd.f32 0.0, %v5810
        %v5812 = vpop.f32.mrb[0].mxu0
        %5813 = vdwg.mxu0
        %v5814 = vadd.f32 %v5556, %v5688
        %v5815 = vadd.f32 %v5557, %v5691
        %v5816 = vadd.f32 %v5558, %v5696
        %v5817 = vadd.f32 %v5559, %v5699
        %v5818 = vadd.f32 %v5560, %v5704
        %v5819 = vadd.f32 %v5561, %v5707
        %v5820 = vadd.f32 %v5562, %v5712
        %v5821 = vadd.f32 %v5563, %v5715
        %v5822 = vadd.f32 %v5564, %v5720
        %v5823 = vadd.f32 %v5565, %v5723
        %v5824 = vadd.f32 %v5566, %v5728
        %v5825 = vadd.f32 %v5567, %v5731
        %v5826 = vadd.f32 %v5568, %v5736
        %v5827 = vadd.f32 %v5569, %v5739
        %v5828 = vadd.f32 %v5570, %v5744
        %v5829 = vadd.f32 %v5571, %v5747
        %v5830 = vadd.f32 %v5572, %v5752
        %v5831 = vadd.f32 %v5573, %v5755
        %v5832 = vadd.f32 %v5574, %v5760
        %v5833 = vadd.f32 %v5575, %v5763
        %v5834 = vadd.f32 %v5576, %v5768
        %v5835 = vadd.f32 %v5577, %v5771
        %v5836 = vadd.f32 %v5578, %v5776
        %v5837 = vadd.f32 %v5579, %v5779
        %v5838 = vadd.f32 %v5580, %v5784
        %v5839 = vadd.f32 %v5581, %v5787
        %v5840 = vadd.f32 %v5582, %v5792
        %v5841 = vadd.f32 %v5583, %v5795
        %v5842 = vadd.f32 %v5584, %v5800
        %v5843 = vadd.f32 %v5585, %v5803
        %v5844 = vadd.f32 %v5586, %v5808
        %v5845 = vadd.f32 %v5587, %v5811
        %v5846 = vld [vmem:[%s4] sm:$0x1]
        %v5848 = vlaneseq
        %v5849 = vshrl.u32 %v5848, 7
        %v5850 = vsub.s32 0, %v5849
        %v5851 = vrot.slane %v5846, %v5850
        %v5853 = vadd.f32 %v5814, %v5851
        %v5854 = vadd.f32 %v5815, %v5851
        %v5855 = vadd.f32 %v5816, %v5851
        %v5856 = vadd.f32 %v5817, %v5851
        %v5857 = vadd.f32 %v5818, %v5851
        %v5858 = vadd.f32 %v5819, %v5851
        %v5859 = vadd.f32 %v5820, %v5851
        %v5860 = vadd.f32 %v5821, %v5851
        %v5861 = vadd.f32 %v5822, %v5851
        %v5862 = vadd.f32 %v5823, %v5851
        %v5863 = vadd.f32 %v5824, %v5851
        %v5864 = vadd.f32 %v5825, %v5851
        %v5865 = vadd.f32 %v5826, %v5851
        %v5866 = vadd.f32 %v5827, %v5851
        %v5867 = vadd.f32 %v5828, %v5851
        %v5868 = vadd.f32 %v5829, %v5851
        %v5869 = vadd.f32 %v5830, %v5851
        %v5870 = vadd.f32 %v5831, %v5851
        %v5871 = vadd.f32 %v5832, %v5851
        %v5872 = vadd.f32 %v5833, %v5851
        %v5873 = vadd.f32 %v5834, %v5851
        %v5874 = vadd.f32 %v5835, %v5851
        %v5875 = vadd.f32 %v5836, %v5851
        %v5876 = vadd.f32 %v5837, %v5851
        %v5877 = vadd.f32 %v5838, %v5851
        %v5878 = vadd.f32 %v5839, %v5851
        %v5879 = vadd.f32 %v5840, %v5851
        %v5880 = vadd.f32 %v5841, %v5851
        %v5881 = vadd.f32 %v5842, %v5851
        %v5882 = vadd.f32 %v5843, %v5851
        %v5883 = vadd.f32 %v5844, %v5851
        %v5884 = vadd.f32 %v5845, %v5851
        %v5885 = vmax.f32 %v5853, 0.0
        %v5886 = vmax.f32 %v5854, 0.0
        %v5887 = vmax.f32 %v5855, 0.0
        %v5888 = vmax.f32 %v5856, 0.0
        %v5889 = vmax.f32 %v5857, 0.0
        %v5890 = vmax.f32 %v5858, 0.0
        %v5891 = vmax.f32 %v5859, 0.0
        %v5892 = vmax.f32 %v5860, 0.0
        %v5893 = vmax.f32 %v5861, 0.0
        %v5894 = vmax.f32 %v5862, 0.0
        %v5895 = vmax.f32 %v5863, 0.0
        %v5896 = vmax.f32 %v5864, 0.0
        %v5897 = vmax.f32 %v5865, 0.0
        %v5898 = vmax.f32 %v5866, 0.0
        %v5899 = vmax.f32 %v5867, 0.0
        %v5900 = vmax.f32 %v5868, 0.0
        %v5901 = vmax.f32 %v5869, 0.0
        %v5902 = vmax.f32 %v5870, 0.0
        %v5903 = vmax.f32 %v5871, 0.0
        %v5904 = vmax.f32 %v5872, 0.0
        %v5905 = vmax.f32 %v5873, 0.0
        %v5906 = vmax.f32 %v5874, 0.0
        %v5907 = vmax.f32 %v5875, 0.0
        %v5908 = vmax.f32 %v5876, 0.0
        %v5909 = vmax.f32 %v5877, 0.0
        %v5910 = vmax.f32 %v5878, 0.0
        %v5911 = vmax.f32 %v5879, 0.0
        %v5912 = vmax.f32 %v5880, 0.0
        %v5913 = vmax.f32 %v5881, 0.0
        %v5914 = vmax.f32 %v5882, 0.0
        %v5915 = vmax.f32 %v5883, 0.0
        %v5916 = vmax.f32 %v5884, 0.0
        %5917 = vxpose.xlu0.b32.start [1/16] %v5885, 128
        %5918 = vxpose.xlu0.b32.cont [2/16] %v5886, 128
        %5919 = vxpose.xlu0.b32.cont [3/16] %v5887, 128
        %5920 = vxpose.xlu0.b32.cont [4/16] %v5888, 128
        %5921 = vxpose.xlu0.b32.cont [5/16] %v5889, 128
        %5922 = vxpose.xlu0.b32.cont [6/16] %v5890, 128
        %5923 = vxpose.xlu0.b32.cont [7/16] %v5891, 128
        %5924 = vxpose.xlu0.b32.cont [8/16] %v5892, 128
        %5925 = vxpose.xlu0.b32.cont [9/16] %v5893, 128
        %5926 = vxpose.xlu0.b32.cont [10/16] %v5894, 128
        %5927 = vxpose.xlu0.b32.cont [11/16] %v5895, 128
        %5928 = vxpose.xlu0.b32.cont [12/16] %v5896, 128
        %5929 = vxpose.xlu0.b32.cont [13/16] %v5897, 128
        %5930 = vxpose.xlu0.b32.cont [14/16] %v5898, 128
        %5931 = vxpose.xlu0.b32.cont [15/16] %v5899, 128
        %5932 = vxpose.xlu0.b32.end [16/16] %v5900, 128
        %v5933 = vpop.trf.xlu0
        %v5934 = vpop.trf.xlu0
        %v5935 = vpop.trf.xlu0
        %v5936 = vpop.trf.xlu0
        %v5937 = vpop.trf.xlu0
        %v5938 = vpop.trf.xlu0
        %v5939 = vpop.trf.xlu0
        %v5940 = vpop.trf.xlu0
        %v5941 = vpop.trf.xlu0
        %v5942 = vpop.trf.xlu0
        %v5943 = vpop.trf.xlu0
        %v5944 = vpop.trf.xlu0
        %v5945 = vpop.trf.xlu0
        %v5946 = vpop.trf.xlu0
        %v5947 = vpop.trf.xlu0
        %v5948 = vpop.trf.xlu0
        %5949 = vxpose.xlu0.b32.start [1/16] %v5901, 128
        %5950 = vxpose.xlu0.b32.cont [2/16] %v5902, 128
        %5951 = vxpose.xlu0.b32.cont [3/16] %v5903, 128
        %5952 = vxpose.xlu0.b32.cont [4/16] %v5904, 128
        %5953 = vxpose.xlu0.b32.cont [5/16] %v5905, 128
        %5954 = vxpose.xlu0.b32.cont [6/16] %v5906, 128
        %5955 = vxpose.xlu0.b32.cont [7/16] %v5907, 128
        %5956 = vxpose.xlu0.b32.cont [8/16] %v5908, 128
        %5957 = vxpose.xlu0.b32.cont [9/16] %v5909, 128
        %5958 = vxpose.xlu0.b32.cont [10/16] %v5910, 128
        %5959 = vxpose.xlu0.b32.cont [11/16] %v5911, 128
        %5960 = vxpose.xlu0.b32.cont [12/16] %v5912, 128
        %5961 = vxpose.xlu0.b32.cont [13/16] %v5913, 128
        %5962 = vxpose.xlu0.b32.cont [14/16] %v5914, 128
        %5963 = vxpose.xlu0.b32.cont [15/16] %v5915, 128
        %5964 = vxpose.xlu0.b32.end [16/16] %v5916, 128
        %v5965 = vpop.trf.xlu0
        %v5966 = vpop.trf.xlu0
        %v5967 = vpop.trf.xlu0
        %v5968 = vpop.trf.xlu0
        %v5969 = vpop.trf.xlu0
        %v5970 = vpop.trf.xlu0
        %v5971 = vpop.trf.xlu0
        %v5972 = vpop.trf.xlu0
        %v5973 = vpop.trf.xlu0
        %v5974 = vpop.trf.xlu0
        %v5975 = vpop.trf.xlu0
        %v5976 = vpop.trf.xlu0
        %v5977 = vpop.trf.xlu0
        %v5978 = vpop.trf.xlu0
        %v5979 = vpop.trf.xlu0
        %v5980 = vpop.trf.xlu0
        %5981 = vst [vmem:[%s431] sm:$0xff] %v5933
        %5982 = vst [vmem:[%s431 + $0x8] sm:$0xff] %v5965
        %v5983 = vpack.c.bf16 %v5886, %v5885
        %v5984 = vpack.c.bf16 %v5888, %v5887
        %v5985 = vpack.c.bf16 %v5890, %v5889
        %v5986 = vpack.c.bf16 %v5892, %v5891
        %v5987 = vpack.c.bf16 %v5894, %v5893
        %v5988 = vpack.c.bf16 %v5896, %v5895
        %v5989 = vpack.c.bf16 %v5898, %v5897
        %v5990 = vpack.c.bf16 %v5900, %v5899
        %v5991 = vpack.c.bf16 %v5902, %v5901
        %v5992 = vpack.c.bf16 %v5904, %v5903
        %v5993 = vpack.c.bf16 %v5906, %v5905
        %v5994 = vpack.c.bf16 %v5908, %v5907
        %v5995 = vpack.c.bf16 %v5910, %v5909
        %v5996 = vpack.c.bf16 %v5912, %v5911
        %v5997 = vpack.c.bf16 %v5914, %v5913
        %v5998 = vpack.c.bf16 %v5916, %v5915
        %5999 = vst [vmem:[%s574] sm:$0xff] %v5983
        %6000 = vst [vmem:[%s574 + $0x8] sm:$0xff] %v5984
        %6001 = vst [vmem:[%s574 + $0x10] sm:$0xff] %v5985
        %6002 = vst [vmem:[%s574 + $0x18] sm:$0xff] %v5986
        %6003 = vst [vmem:[%s574 + $0x20] sm:$0xff] %v5987
        %6004 = vst [vmem:[%s574 + $0x28] sm:$0xff] %v5988
        %6005 = vst [vmem:[%s574 + $0x30] sm:$0xff] %v5989
        %6006 = vst [vmem:[%s574 + $0x38] sm:$0xff] %v5990
        %6007 = vst [vmem:[%s574 + $0x40] sm:$0xff] %v5991
        %6008 = vst [vmem:[%s574 + $0x48] sm:$0xff] %v5992
        %6009 = vst [vmem:[%s574 + $0x50] sm:$0xff] %v5993
        %6010 = vst [vmem:[%s574 + $0x58] sm:$0xff] %v5994
        %6011 = vst [vmem:[%s574 + $0x60] sm:$0xff] %v5995
        %6012 = vst [vmem:[%s574 + $0x68] sm:$0xff] %v5996
        %6013 = vst [vmem:[%s574 + $0x70] sm:$0xff] %v5997
        %6014 = vst [vmem:[%s574 + $0x78] sm:$0xff] %v5998
        %v6015 = vld [vmem:[#allocation2] sm:$0xff]
        %v6016 = vld [vmem:[#allocation2 + $0x8] sm:$0xff]
        %v6017 = vld [vmem:[#allocation2 + $0x10] sm:$0xff]
        %v6018 = vld [vmem:[#allocation2 + $0x18] sm:$0xff]
        %v6019 = vld [vmem:[#allocation2 + $0x20] sm:$0xff]
        %v6020 = vld [vmem:[#allocation2 + $0x28] sm:$0xff]
        %v6021 = vld [vmem:[#allocation2 + $0x30] sm:$0xff]
        %v6022 = vld [vmem:[#allocation2 + $0x38] sm:$0xff]
        %v6023 = vld [vmem:[#allocation2 + $0x40] sm:$0xff]
        %v6024 = vld [vmem:[#allocation2 + $0x48] sm:$0xff]
        %v6025 = vld [vmem:[#allocation2 + $0x50] sm:$0xff]
        %v6026 = vld [vmem:[#allocation2 + $0x58] sm:$0xff]
        %v6027 = vld [vmem:[#allocation2 + $0x60] sm:$0xff]
        %v6028 = vld [vmem:[#allocation2 + $0x68] sm:$0xff]
        %v6029 = vld [vmem:[#allocation2 + $0x70] sm:$0xff]
        %v6030 = vld [vmem:[#allocation2 + $0x78] sm:$0xff]
        %v6031 = vld [vmem:[#allocation2 + $0x80] sm:$0xff]
        %v6032 = vld [vmem:[#allocation2 + $0x88] sm:$0xff]
        %v6034 = vshrl.u32 %v6015, 16
        %v6036 = vrot.slane %v6034, 7
        %v6037 = vshll.u32 %v6015, 16
        %v6039 = vor.u32 %v6036, %v6037
        %v6041 = vshrl.u32 %v6016, 16
        %v6043 = vrot.slane %v6041, 7
        %v6044 = vshll.u32 %v6016, 16
        %v6046 = vor.u32 %v6043, %v6044
        %v6048 = vshrl.u32 %v6017, 16
        %v6050 = vrot.slane %v6048, 7
        %v6051 = vshll.u32 %v6017, 16
        %v6053 = vor.u32 %v6050, %v6051
        %v6055 = vshrl.u32 %v6018, 16
        %v6057 = vrot.slane %v6055, 7
        %v6058 = vshll.u32 %v6018, 16
        %v6060 = vor.u32 %v6057, %v6058
        %v6062 = vshrl.u32 %v6019, 16
        %v6064 = vrot.slane %v6062, 7
        %v6065 = vshll.u32 %v6019, 16
        %v6067 = vor.u32 %v6064, %v6065
        %v6069 = vshrl.u32 %v6020, 16
        %v6071 = vrot.slane %v6069, 7
        %v6072 = vshll.u32 %v6020, 16
        %v6074 = vor.u32 %v6071, %v6072
        %v6076 = vshrl.u32 %v6021, 16
        %v6078 = vrot.slane %v6076, 7
        %v6079 = vshll.u32 %v6021, 16
        %v6081 = vor.u32 %v6078, %v6079
        %v6083 = vshrl.u32 %v6022, 16
        %v6085 = vrot.slane %v6083, 7
        %v6086 = vshll.u32 %v6022, 16
        %v6088 = vor.u32 %v6085, %v6086
        %v6090 = vshrl.u32 %v6023, 16
        %v6092 = vrot.slane %v6090, 7
        %v6093 = vshll.u32 %v6023, 16
        %v6095 = vor.u32 %v6092, %v6093
        %v6097 = vshrl.u32 %v6024, 16
        %v6099 = vrot.slane %v6097, 7
        %v6100 = vshll.u32 %v6024, 16
        %v6102 = vor.u32 %v6099, %v6100
        %v6104 = vshrl.u32 %v6025, 16
        %v6106 = vrot.slane %v6104, 7
        %v6107 = vshll.u32 %v6025, 16
        %v6109 = vor.u32 %v6106, %v6107
        %v6111 = vshrl.u32 %v6026, 16
        %v6113 = vrot.slane %v6111, 7
        %v6114 = vshll.u32 %v6026, 16
        %v6116 = vor.u32 %v6113, %v6114
        %v6118 = vshrl.u32 %v6027, 16
        %v6120 = vrot.slane %v6118, 7
        %v6121 = vshll.u32 %v6027, 16
        %v6123 = vor.u32 %v6120, %v6121
        %v6125 = vshrl.u32 %v6028, 16
        %v6127 = vrot.slane %v6125, 7
        %v6128 = vshll.u32 %v6028, 16
        %v6130 = vor.u32 %v6127, %v6128
        %v6132 = vshrl.u32 %v6029, 16
        %v6134 = vrot.slane %v6132, 7
        %v6135 = vshll.u32 %v6029, 16
        %v6137 = vor.u32 %v6134, %v6135
        %v6139 = vshrl.u32 %v6030, 16
        %v6141 = vrot.slane %v6139, 7
        %v6142 = vshll.u32 %v6030, 16
        %v6144 = vor.u32 %v6141, %v6142
        %v6146 = vshrl.u32 %v6031, 16
        %v6148 = vrot.slane %v6146, 7
        %v6149 = vshll.u32 %v6031, 16
        %v6151 = vor.u32 %v6148, %v6149
        %v6153 = vshrl.u32 %v6032, 16
        %v6155 = vrot.slane %v6153, 7
        %v6156 = vshll.u32 %v6032, 16
        %v6158 = vor.u32 %v6155, %v6156
        %v6177 = vsel %vm755, 0, %v6039
        %v6178 = vsel %vm755, 0, %v6046
        %v6179 = vsel %vm755, 0, %v6053
        %v6180 = vsel %vm755, 0, %v6060
        %v6181 = vsel %vm755, 0, %v6067
        %v6182 = vsel %vm755, 0, %v6074
        %v6183 = vsel %vm755, 0, %v6081
        %v6184 = vsel %vm755, 0, %v6088
        %v6185 = vsel %vm755, 0, %v6095
        %v6186 = vsel %vm755, 0, %v6102
        %v6187 = vsel %vm755, 0, %v6109
        %v6188 = vsel %vm755, 0, %v6116
        %v6189 = vsel %vm755, 0, %v6123
        %v6190 = vsel %vm755, 0, %v6130
        %v6191 = vsel %vm755, 0, %v6137
        %v6192 = vsel %vm755, 0, %v6144
        %v6193 = vsel %vm755, 0, %v6151
        %v6194 = vsel %vm755, 0, %v6158
        %v6195 = vld [vmem:[#allocation5] sm:$0xf]
        %v6196 = vld [vmem:[#allocation5 + $0x4] sm:$0xf]
        %v6197 = vld [vmem:[#allocation5 + $0x8] sm:$0xf]
        %v6198 = vld [vmem:[#allocation5 + $0xc] sm:$0xf]
        %v6199 = vld [vmem:[#allocation5 + $0x10] sm:$0xf]
        %v6200 = vld [vmem:[#allocation5 + $0x14] sm:$0xf]
        %v6201 = vld [vmem:[#allocation5 + $0x18] sm:$0xf]
        %v6202 = vld [vmem:[#allocation5 + $0x1c] sm:$0xf]
        %v6203 = vld [vmem:[#allocation5 + $0x20] sm:$0xf]
        %v6204 = vld [vmem:[#allocation5 + $0x24] sm:$0xf]
        %v6205 = vld [vmem:[#allocation5 + $0x28] sm:$0xf]
        %v6206 = vld [vmem:[#allocation5 + $0x2c] sm:$0xf]
        %v6207 = vld [vmem:[#allocation5 + $0x30] sm:$0xf]
        %v6208 = vld [vmem:[#allocation5 + $0x34] sm:$0xf]
        %v6209 = vld [vmem:[#allocation5 + $0x38] sm:$0xf]
        %v6210 = vld [vmem:[#allocation5 + $0x3c] sm:$0xf]
        %s6211 = scalar_lea.vmem [#allocation5], 192
        %v6212 = vld [vmem:[%s6211] sm:$0xf]
        %v6213 = vld [vmem:[%s6211 + $0x4] sm:$0xf]
        %v6214 = vld [vmem:[%s6211 + $0x8] sm:$0xf]
        %v6215 = vld [vmem:[%s6211 + $0xc] sm:$0xf]
        %v6216 = vld [vmem:[%s6211 + $0x10] sm:$0xf]
        %v6217 = vld [vmem:[%s6211 + $0x14] sm:$0xf]
        %v6218 = vld [vmem:[%s6211 + $0x18] sm:$0xf]
        %v6219 = vld [vmem:[%s6211 + $0x1c] sm:$0xf]
        %v6220 = vld [vmem:[%s6211 + $0x20] sm:$0xf]
        %v6221 = vld [vmem:[%s6211 + $0x24] sm:$0xf]
        %v6222 = vld [vmem:[%s6211 + $0x28] sm:$0xf]
        %v6223 = vld [vmem:[%s6211 + $0x2c] sm:$0xf]
        %v6224 = vld [vmem:[%s6211 + $0x30] sm:$0xf]
        %v6225 = vld [vmem:[%s6211 + $0x34] sm:$0xf]
        %v6226 = vld [vmem:[%s6211 + $0x38] sm:$0xf]
        %v6227 = vld [vmem:[%s6211 + $0x3c] sm:$0xf]
        %v6244 = vunpack.c.l.b16 %v6212
        %v6245 = vunpack.c.l.b16 %v6213
        %v6246 = vunpack.c.l.b16 %v6214
        %v6247 = vunpack.c.l.b16 %v6215
        %v6248 = vunpack.c.l.b16 %v6216
        %v6249 = vunpack.c.l.b16 %v6217
        %v6250 = vunpack.c.l.b16 %v6218
        %v6251 = vunpack.c.l.b16 %v6219
        %v6252 = vunpack.c.l.b16 %v6220
        %v6253 = vunpack.c.l.b16 %v6221
        %v6254 = vunpack.c.l.b16 %v6222
        %v6255 = vunpack.c.l.b16 %v6223
        %v6256 = vunpack.c.l.b16 %v6224
        %v6257 = vunpack.c.l.b16 %v6225
        %v6258 = vunpack.c.l.b16 %v6226
        %v6259 = vunpack.c.l.b16 %v6227
        %v6260 = vpack.c.b16 %v6245, %v6244
        %v6261 = vpack.c.b16 %v6247, %v6246
        %v6262 = vpack.c.b16 %v6249, %v6248
        %v6263 = vpack.c.b16 %v6251, %v6250
        %v6264 = vpack.c.b16 %v6253, %v6252
        %v6265 = vpack.c.b16 %v6255, %v6254
        %v6266 = vpack.c.b16 %v6257, %v6256
        %v6267 = vpack.c.b16 %v6259, %v6258
        %6276 = vmatprep.subr.bf16.mxu0 0
        %6277 = vmatpush1.bf16.msra.mxu0 %v6260
        %6278 = vmatprep.subr.bf16.mxu0 0
        %6279 = vmatpush1.bf16.msra.mxu0 %v6261
        %6280 = vmatprep.subr.bf16.mxu0 0
        %6281 = vmatpush1.bf16.msra.mxu0 %v6262
        %6282 = vmatprep.subr.bf16.mxu0 0
        %6283 = vmatpush1.bf16.msra.mxu0 %v6263
        %6284 = vmatprep.subr.bf16.mxu0 0
        %6285 = vmatpush1.bf16.msra.mxu0 %v6264
        %6286 = vmatprep.subr.bf16.mxu0 0
        %6287 = vmatpush1.bf16.msra.mxu0 %v6265
        %6288 = vmatprep.subr.bf16.mxu0 0
        %6289 = vmatpush1.bf16.msra.mxu0 %v6266
        %6290 = vmatprep.subr.bf16.mxu0 0
        %6291 = vmatpush1.bf16.msra.mxu0 %v6267
        %6292 = vmatprep.subr.bf16.mxu0 0
        %6293 = vmatpush1.bf16.msra.mxu0 0
        %6294 = vmatprep.subr.bf16.mxu0 0
        %6295 = vmatpush1.bf16.msra.mxu0 0
        %6296 = vmatprep.subr.bf16.mxu0 0
        %6297 = vmatpush1.bf16.msra.mxu0 0
        %6298 = vmatprep.subr.bf16.mxu0 0
        %6299 = vmatpush1.bf16.msra.mxu0 0
        %6300 = vmatprep.subr.bf16.mxu0 0
        %6301 = vmatpush1.bf16.msra.mxu0 0
        %6302 = vmatprep.subr.bf16.mxu0 0
        %6303 = vmatpush1.bf16.msra.mxu0 0
        %6304 = vmatprep.subr.bf16.mxu0 0
        %6305 = vmatpush1.bf16.msra.mxu0 0
        %6306 = vmatprep.subr.bf16.mxu0 0
        %6307 = vmatpush1.bf16.msra.mxu0 0
        %6308 = vmatprep.mubr.bf16.mxu0 0
        %6309 = vmatmul.mubr.bf16.gmra.mrb[0].mxu0 %v6178
        %v6310 = vpop.f32.mrb[0].mxu0
        %v6311 = vadd.f32 0.0, %v6310
        %v6312 = vpop.f32.mrb[0].mxu0
        %v6313 = vpop.f32.mrb[0].mxu0
        %v6314 = vadd.f32 0.0, %v6313
        %v6315 = vpop.f32.mrb[0].mxu0
        %6316 = vmatprep.mubr.bf16.mxu0 0
        %6317 = vmatmul.mubr.bf16.gmra.mrb[0].mxu0 %v6179
        %v6318 = vpop.f32.mrb[0].mxu0
        %v6319 = vadd.f32 0.0, %v6318
        %v6320 = vpop.f32.mrb[0].mxu0
        %v6321 = vpop.f32.mrb[0].mxu0
        %v6322 = vadd.f32 0.0, %v6321
        %v6323 = vpop.f32.mrb[0].mxu0
        %6324 = vmatprep.mubr.bf16.mxu0 0
        %6325 = vmatmul.mubr.bf16.gmra.mrb[0].mxu0 %v6180
        %v6326 = vpop.f32.mrb[0].mxu0
        %v6327 = vadd.f32 0.0, %v6326
        %v6328 = vpop.f32.mrb[0].mxu0
        %v6329 = vpop.f32.mrb[0].mxu0
        %v6330 = vadd.f32 0.0, %v6329
        %v6331 = vpop.f32.mrb[0].mxu0
        %6332 = vmatprep.mubr.bf16.mxu0 0
        %6333 = vmatmul.mubr.bf16.gmra.mrb[0].mxu0 %v6181
        %v6334 = vpop.f32.mrb[0].mxu0
        %v6335 = vadd.f32 0.0, %v6334
        %v6336 = vpop.f32.mrb[0].mxu0
        %v6337 = vpop.f32.mrb[0].mxu0
        %v6338 = vadd.f32 0.0, %v6337
        %v6339 = vpop.f32.mrb[0].mxu0
        %6340 = vmatprep.mubr.bf16.mxu0 0
        %6341 = vmatmul.mubr.bf16.gmra.mrb[0].mxu0 %v6182
        %v6342 = vpop.f32.mrb[0].mxu0
        %v6343 = vadd.f32 0.0, %v6342
        %v6344 = vpop.f32.mrb[0].mxu0
        %v6345 = vpop.f32.mrb[0].mxu0
        %v6346 = vadd.f32 0.0, %v6345
        %v6347 = vpop.f32.mrb[0].mxu0
        %6348 = vmatprep.mubr.bf16.mxu0 0
        %6349 = vmatmul.mubr.bf16.gmra.mrb[0].mxu0 %v6183
        %v6350 = vpop.f32.mrb[0].mxu0
        %v6351 = vadd.f32 0.0, %v6350
        %v6352 = vpop.f32.mrb[0].mxu0
        %v6353 = vpop.f32.mrb[0].mxu0
        %v6354 = vadd.f32 0.0, %v6353
        %v6355 = vpop.f32.mrb[0].mxu0
        %6356 = vmatprep.mubr.bf16.mxu0 0
        %6357 = vmatmul.mubr.bf16.gmra.mrb[0].mxu0 %v6184
        %v6358 = vpop.f32.mrb[0].mxu0
        %v6359 = vadd.f32 0.0, %v6358
        %v6360 = vpop.f32.mrb[0].mxu0
        %v6361 = vpop.f32.mrb[0].mxu0
        %v6362 = vadd.f32 0.0, %v6361
        %v6363 = vpop.f32.mrb[0].mxu0
        %6364 = vmatprep.mubr.bf16.mxu0 0
        %6365 = vmatmul.mubr.bf16.gmra.mrb[0].mxu0 %v6185
        %v6366 = vpop.f32.mrb[0].mxu0
        %v6367 = vadd.f32 0.0, %v6366
        %v6368 = vpop.f32.mrb[0].mxu0
        %v6369 = vpop.f32.mrb[0].mxu0
        %v6370 = vadd.f32 0.0, %v6369
        %v6371 = vpop.f32.mrb[0].mxu0
        %6372 = vmatprep.mubr.bf16.mxu0 0
        %6373 = vmatmul.mubr.bf16.gmra.mrb[0].mxu0 %v6186
        %v6374 = vpop.f32.mrb[0].mxu0
        %v6375 = vadd.f32 0.0, %v6374
        %v6376 = vpop.f32.mrb[0].mxu0
        %v6377 = vpop.f32.mrb[0].mxu0
        %v6378 = vadd.f32 0.0, %v6377
        %v6379 = vpop.f32.mrb[0].mxu0
        %6380 = vmatprep.mubr.bf16.mxu0 0
        %6381 = vmatmul.mubr.bf16.gmra.mrb[0].mxu0 %v6187
        %v6382 = vpop.f32.mrb[0].mxu0
        %v6383 = vadd.f32 0.0, %v6382
        %v6384 = vpop.f32.mrb[0].mxu0
        %v6385 = vpop.f32.mrb[0].mxu0
        %v6386 = vadd.f32 0.0, %v6385
        %v6387 = vpop.f32.mrb[0].mxu0
        %6388 = vmatprep.mubr.bf16.mxu0 0
        %6389 = vmatmul.mubr.bf16.gmra.mrb[0].mxu0 %v6188
        %v6390 = vpop.f32.mrb[0].mxu0
        %v6391 = vadd.f32 0.0, %v6390
        %v6392 = vpop.f32.mrb[0].mxu0
        %v6393 = vpop.f32.mrb[0].mxu0
        %v6394 = vadd.f32 0.0, %v6393
        %v6395 = vpop.f32.mrb[0].mxu0
        %6396 = vmatprep.mubr.bf16.mxu0 0
        %6397 = vmatmul.mubr.bf16.gmra.mrb[0].mxu0 %v6189
        %v6398 = vpop.f32.mrb[0].mxu0
        %v6399 = vadd.f32 0.0, %v6398
        %v6400 = vpop.f32.mrb[0].mxu0
        %v6401 = vpop.f32.mrb[0].mxu0
        %v6402 = vadd.f32 0.0, %v6401
        %v6403 = vpop.f32.mrb[0].mxu0
        %6404 = vmatprep.mubr.bf16.mxu0 0
        %6405 = vmatmul.mubr.bf16.gmra.mrb[0].mxu0 %v6190
        %v6406 = vpop.f32.mrb[0].mxu0
        %v6407 = vadd.f32 0.0, %v6406
        %v6408 = vpop.f32.mrb[0].mxu0
        %v6409 = vpop.f32.mrb[0].mxu0
        %v6410 = vadd.f32 0.0, %v6409
        %v6411 = vpop.f32.mrb[0].mxu0
        %6412 = vmatprep.mubr.bf16.mxu0 0
        %6413 = vmatmul.mubr.bf16.gmra.mrb[0].mxu0 %v6191
        %v6414 = vpop.f32.mrb[0].mxu0
        %v6415 = vadd.f32 0.0, %v6414
        %v6416 = vpop.f32.mrb[0].mxu0
        %v6417 = vpop.f32.mrb[0].mxu0
        %v6418 = vadd.f32 0.0, %v6417
        %v6419 = vpop.f32.mrb[0].mxu0
        %6420 = vmatprep.mubr.bf16.mxu0 0
        %6421 = vmatmul.mubr.bf16.gmra.mrb[0].mxu0 %v6192
        %v6422 = vpop.f32.mrb[0].mxu0
        %v6423 = vadd.f32 0.0, %v6422
        %v6424 = vpop.f32.mrb[0].mxu0
        %v6425 = vpop.f32.mrb[0].mxu0
        %v6426 = vadd.f32 0.0, %v6425
        %v6427 = vpop.f32.mrb[0].mxu0
        %6428 = vmatprep.mubr.bf16.mxu0 0
        %6429 = vmatmul.mubr.bf16.gmra.mrb[0].mxu0 %v6193
        %v6430 = vpop.f32.mrb[0].mxu0
        %v6431 = vadd.f32 0.0, %v6430
        %v6432 = vpop.f32.mrb[0].mxu0
        %v6433 = vpop.f32.mrb[0].mxu0
        %v6434 = vadd.f32 0.0, %v6433
        %v6435 = vpop.f32.mrb[0].mxu0
        %6436 = vdwg.mxu0
        %v6453 = vunpack.c.l.b16 %v6195
        %v6454 = vunpack.c.l.b16 %v6196
        %v6455 = vunpack.c.l.b16 %v6197
        %v6456 = vunpack.c.l.b16 %v6198
        %v6457 = vunpack.c.l.b16 %v6199
        %v6458 = vunpack.c.l.b16 %v6200
        %v6459 = vunpack.c.l.b16 %v6201
        %v6460 = vunpack.c.l.b16 %v6202
        %v6461 = vunpack.c.l.b16 %v6203
        %v6462 = vunpack.c.l.b16 %v6204
        %v6463 = vunpack.c.l.b16 %v6205
        %v6464 = vunpack.c.l.b16 %v6206
        %v6465 = vunpack.c.l.b16 %v6207
        %v6466 = vunpack.c.l.b16 %v6208
        %v6467 = vunpack.c.l.b16 %v6209
        %v6468 = vunpack.c.l.b16 %v6210
        %v6469 = vpack.c.b16 %v6454, %v6453
        %v6470 = vpack.c.b16 %v6456, %v6455
        %v6471 = vpack.c.b16 %v6458, %v6457
        %v6472 = vpack.c.b16 %v6460, %v6459
        %v6473 = vpack.c.b16 %v6462, %v6461
        %v6474 = vpack.c.b16 %v6464, %v6463
        %v6475 = vpack.c.b16 %v6466, %v6465
        %v6476 = vpack.c.b16 %v6468, %v6467
        %6485 = vmatprep.subr.bf16.mxu0 0
        %6486 = vmatpush1.bf16.msra.mxu0 %v6469
        %6487 = vmatprep.subr.bf16.mxu0 0
        %6488 = vmatpush1.bf16.msra.mxu0 %v6470
        %6489 = vmatprep.subr.bf16.mxu0 0
        %6490 = vmatpush1.bf16.msra.mxu0 %v6471
        %6491 = vmatprep.subr.bf16.mxu0 0
        %6492 = vmatpush1.bf16.msra.mxu0 %v6472
        %6493 = vmatprep.subr.bf16.mxu0 0
        %6494 = vmatpush1.bf16.msra.mxu0 %v6473
        %6495 = vmatprep.subr.bf16.mxu0 0
        %6496 = vmatpush1.bf16.msra.mxu0 %v6474
        %6497 = vmatprep.subr.bf16.mxu0 0
        %6498 = vmatpush1.bf16.msra.mxu0 %v6475
        %6499 = vmatprep.subr.bf16.mxu0 0
        %6500 = vmatpush1.bf16.msra.mxu0 %v6476
        %6501 = vmatprep.subr.bf16.mxu0 0
        %6502 = vmatpush1.bf16.msra.mxu0 0
        %6503 = vmatprep.subr.bf16.mxu0 0
        %6504 = vmatpush1.bf16.msra.mxu0 0
        %6505 = vmatprep.subr.bf16.mxu0 0
        %6506 = vmatpush1.bf16.msra.mxu0 0
        %6507 = vmatprep.subr.bf16.mxu0 0
        %6508 = vmatpush1.bf16.msra.mxu0 0
        %6509 = vmatprep.subr.bf16.mxu0 0
        %6510 = vmatpush1.bf16.msra.mxu0 0
        %6511 = vmatprep.subr.bf16.mxu0 0
        %6512 = vmatpush1.bf16.msra.mxu0 0
        %6513 = vmatprep.subr.bf16.mxu0 0
        %6514 = vmatpush1.bf16.msra.mxu0 0
        %6515 = vmatprep.subr.bf16.mxu0 0
        %6516 = vmatpush1.bf16.msra.mxu0 0
        %6517 = vmatprep.mubr.bf16.mxu0 0
        %6518 = vmatmul.mubr.bf16.gmra.mrb[0].mxu0 %v6177
        %v6519 = vpop.f32.mrb[0].mxu0
        %v6520 = vadd.f32 %v6311, %v6519
        %v6521 = vpop.f32.mrb[0].mxu0
        %v6522 = vpop.f32.mrb[0].mxu0
        %v6523 = vadd.f32 %v6314, %v6522
        %v6524 = vpop.f32.mrb[0].mxu0
        %6525 = vmatprep.mubr.bf16.mxu0 0
        %6526 = vmatmul.mubr.bf16.gmra.mrb[0].mxu0 %v6178
        %v6527 = vpop.f32.mrb[0].mxu0
        %v6528 = vadd.f32 %v6319, %v6527
        %v6529 = vpop.f32.mrb[0].mxu0
        %v6530 = vpop.f32.mrb[0].mxu0
        %v6531 = vadd.f32 %v6322, %v6530
        %v6532 = vpop.f32.mrb[0].mxu0
        %6533 = vmatprep.mubr.bf16.mxu0 0
        %6534 = vmatmul.mubr.bf16.gmra.mrb[0].mxu0 %v6179
        %v6535 = vpop.f32.mrb[0].mxu0
        %v6536 = vadd.f32 %v6327, %v6535
        %v6537 = vpop.f32.mrb[0].mxu0
        %v6538 = vpop.f32.mrb[0].mxu0
        %v6539 = vadd.f32 %v6330, %v6538
        %v6540 = vpop.f32.mrb[0].mxu0
        %6541 = vmatprep.mubr.bf16.mxu0 0
        %6542 = vmatmul.mubr.bf16.gmra.mrb[0].mxu0 %v6180
        %v6543 = vpop.f32.mrb[0].mxu0
        %v6544 = vadd.f32 %v6335, %v6543
        %v6545 = vpop.f32.mrb[0].mxu0
        %v6546 = vpop.f32.mrb[0].mxu0
        %v6547 = vadd.f32 %v6338, %v6546
        %v6548 = vpop.f32.mrb[0].mxu0
        %6549 = vmatprep.mubr.bf16.mxu0 0
        %6550 = vmatmul.mubr.bf16.gmra.mrb[0].mxu0 %v6181
        %v6551 = vpop.f32.mrb[0].mxu0
        %v6552 = vadd.f32 %v6343, %v6551
        %v6553 = vpop.f32.mrb[0].mxu0
        %v6554 = vpop.f32.mrb[0].mxu0
        %v6555 = vadd.f32 %v6346, %v6554
        %v6556 = vpop.f32.mrb[0].mxu0
        %6557 = vmatprep.mubr.bf16.mxu0 0
        %6558 = vmatmul.mubr.bf16.gmra.mrb[0].mxu0 %v6182
        %v6559 = vpop.f32.mrb[0].mxu0
        %v6560 = vadd.f32 %v6351, %v6559
        %v6561 = vpop.f32.mrb[0].mxu0
        %v6562 = vpop.f32.mrb[0].mxu0
        %v6563 = vadd.f32 %v6354, %v6562
        %v6564 = vpop.f32.mrb[0].mxu0
        %6565 = vmatprep.mubr.bf16.mxu0 0
        %6566 = vmatmul.mubr.bf16.gmra.mrb[0].mxu0 %v6183
        %v6567 = vpop.f32.mrb[0].mxu0
        %v6568 = vadd.f32 %v6359, %v6567
        %v6569 = vpop.f32.mrb[0].mxu0
        %v6570 = vpop.f32.mrb[0].mxu0
        %v6571 = vadd.f32 %v6362, %v6570
        %v6572 = vpop.f32.mrb[0].mxu0
        %6573 = vmatprep.mubr.bf16.mxu0 0
        %6574 = vmatmul.mubr.bf16.gmra.mrb[0].mxu0 %v6184
        %v6575 = vpop.f32.mrb[0].mxu0
        %v6576 = vadd.f32 %v6367, %v6575
        %v6577 = vpop.f32.mrb[0].mxu0
        %v6578 = vpop.f32.mrb[0].mxu0
        %v6579 = vadd.f32 %v6370, %v6578
        %v6580 = vpop.f32.mrb[0].mxu0
        %6581 = vmatprep.mubr.bf16.mxu0 0
        %6582 = vmatmul.mubr.bf16.gmra.mrb[0].mxu0 %v6185
        %v6583 = vpop.f32.mrb[0].mxu0
        %v6584 = vadd.f32 %v6375, %v6583
        %v6585 = vpop.f32.mrb[0].mxu0
        %v6586 = vpop.f32.mrb[0].mxu0
        %v6587 = vadd.f32 %v6378, %v6586
        %v6588 = vpop.f32.mrb[0].mxu0
        %6589 = vmatprep.mubr.bf16.mxu0 0
        %6590 = vmatmul.mubr.bf16.gmra.mrb[0].mxu0 %v6186
        %v6591 = vpop.f32.mrb[0].mxu0
        %v6592 = vadd.f32 %v6383, %v6591
        %v6593 = vpop.f32.mrb[0].mxu0
        %v6594 = vpop.f32.mrb[0].mxu0
        %v6595 = vadd.f32 %v6386, %v6594
        %v6596 = vpop.f32.mrb[0].mxu0
        %6597 = vmatprep.mubr.bf16.mxu0 0
        %6598 = vmatmul.mubr.bf16.gmra.mrb[0].mxu0 %v6187
        %v6599 = vpop.f32.mrb[0].mxu0
        %v6600 = vadd.f32 %v6391, %v6599
        %v6601 = vpop.f32.mrb[0].mxu0
        %v6602 = vpop.f32.mrb[0].mxu0
        %v6603 = vadd.f32 %v6394, %v6602
        %v6604 = vpop.f32.mrb[0].mxu0
        %6605 = vmatprep.mubr.bf16.mxu0 0
        %6606 = vmatmul.mubr.bf16.gmra.mrb[0].mxu0 %v6188
        %v6607 = vpop.f32.mrb[0].mxu0
        %v6608 = vadd.f32 %v6399, %v6607
        %v6609 = vpop.f32.mrb[0].mxu0
        %v6610 = vpop.f32.mrb[0].mxu0
        %v6611 = vadd.f32 %v6402, %v6610
        %v6612 = vpop.f32.mrb[0].mxu0
        %6613 = vmatprep.mubr.bf16.mxu0 0
        %6614 = vmatmul.mubr.bf16.gmra.mrb[0].mxu0 %v6189
        %v6615 = vpop.f32.mrb[0].mxu0
        %v6616 = vadd.f32 %v6407, %v6615
        %v6617 = vpop.f32.mrb[0].mxu0
        %v6618 = vpop.f32.mrb[0].mxu0
        %v6619 = vadd.f32 %v6410, %v6618
        %v6620 = vpop.f32.mrb[0].mxu0
        %6621 = vmatprep.mubr.bf16.mxu0 0
        %6622 = vmatmul.mubr.bf16.gmra.mrb[0].mxu0 %v6190
        %v6623 = vpop.f32.mrb[0].mxu0
        %v6624 = vadd.f32 %v6415, %v6623
        %v6625 = vpop.f32.mrb[0].mxu0
        %v6626 = vpop.f32.mrb[0].mxu0
        %v6627 = vadd.f32 %v6418, %v6626
        %v6628 = vpop.f32.mrb[0].mxu0
        %6629 = vmatprep.mubr.bf16.mxu0 0
        %6630 = vmatmul.mubr.bf16.gmra.mrb[0].mxu0 %v6191
        %v6631 = vpop.f32.mrb[0].mxu0
        %v6632 = vadd.f32 %v6423, %v6631
        %v6633 = vpop.f32.mrb[0].mxu0
        %v6634 = vpop.f32.mrb[0].mxu0
        %v6635 = vadd.f32 %v6426, %v6634
        %v6636 = vpop.f32.mrb[0].mxu0
        %6637 = vmatprep.mubr.bf16.mxu0 0
        %6638 = vmatmul.mubr.bf16.gmra.mrb[0].mxu0 %v6192
        %v6639 = vpop.f32.mrb[0].mxu0
        %v6640 = vadd.f32 %v6431, %v6639
        %v6641 = vpop.f32.mrb[0].mxu0
        %v6642 = vpop.f32.mrb[0].mxu0
        %v6643 = vadd.f32 %v6434, %v6642
        %v6644 = vpop.f32.mrb[0].mxu0
        %6645 = vdwg.mxu0
        %s6646 = scalar_lea.vmem [#allocation5], 384
        %v6647 = vld [vmem:[%s6646] sm:$0xf]
        %v6648 = vld [vmem:[%s6646 + $0x4] sm:$0xf]
        %v6649 = vld [vmem:[%s6646 + $0x8] sm:$0xf]
        %v6650 = vld [vmem:[%s6646 + $0xc] sm:$0xf]
        %v6651 = vld [vmem:[%s6646 + $0x10] sm:$0xf]
        %v6652 = vld [vmem:[%s6646 + $0x14] sm:$0xf]
        %v6653 = vld [vmem:[%s6646 + $0x18] sm:$0xf]
        %v6654 = vld [vmem:[%s6646 + $0x1c] sm:$0xf]
        %v6655 = vld [vmem:[%s6646 + $0x20] sm:$0xf]
        %v6656 = vld [vmem:[%s6646 + $0x24] sm:$0xf]
        %v6657 = vld [vmem:[%s6646 + $0x28] sm:$0xf]
        %v6658 = vld [vmem:[%s6646 + $0x2c] sm:$0xf]
        %v6659 = vld [vmem:[%s6646 + $0x30] sm:$0xf]
        %v6660 = vld [vmem:[%s6646 + $0x34] sm:$0xf]
        %v6661 = vld [vmem:[%s6646 + $0x38] sm:$0xf]
        %v6662 = vld [vmem:[%s6646 + $0x3c] sm:$0xf]
        %v6679 = vunpack.c.l.b16 %v6647
        %v6680 = vunpack.c.l.b16 %v6648
        %v6681 = vunpack.c.l.b16 %v6649
        %v6682 = vunpack.c.l.b16 %v6650
        %v6683 = vunpack.c.l.b16 %v6651
        %v6684 = vunpack.c.l.b16 %v6652
        %v6685 = vunpack.c.l.b16 %v6653
        %v6686 = vunpack.c.l.b16 %v6654
        %v6687 = vunpack.c.l.b16 %v6655
        %v6688 = vunpack.c.l.b16 %v6656
        %v6689 = vunpack.c.l.b16 %v6657
        %v6690 = vunpack.c.l.b16 %v6658
        %v6691 = vunpack.c.l.b16 %v6659
        %v6692 = vunpack.c.l.b16 %v6660
        %v6693 = vunpack.c.l.b16 %v6661
        %v6694 = vunpack.c.l.b16 %v6662
        %v6695 = vpack.c.b16 %v6680, %v6679
        %v6696 = vpack.c.b16 %v6682, %v6681
        %v6697 = vpack.c.b16 %v6684, %v6683
        %v6698 = vpack.c.b16 %v6686, %v6685
        %v6699 = vpack.c.b16 %v6688, %v6687
        %v6700 = vpack.c.b16 %v6690, %v6689
        %v6701 = vpack.c.b16 %v6692, %v6691
        %v6702 = vpack.c.b16 %v6694, %v6693
        %6711 = vmatprep.subr.bf16.mxu0 0
        %6712 = vmatpush1.bf16.msra.mxu0 %v6695
        %6713 = vmatprep.subr.bf16.mxu0 0
        %6714 = vmatpush1.bf16.msra.mxu0 %v6696
        %6715 = vmatprep.subr.bf16.mxu0 0
        %6716 = vmatpush1.bf16.msra.mxu0 %v6697
        %6717 = vmatprep.subr.bf16.mxu0 0
        %6718 = vmatpush1.bf16.msra.mxu0 %v6698
        %6719 = vmatprep.subr.bf16.mxu0 0
        %6720 = vmatpush1.bf16.msra.mxu0 %v6699
        %6721 = vmatprep.subr.bf16.mxu0 0
        %6722 = vmatpush1.bf16.msra.mxu0 %v6700
        %6723 = vmatprep.subr.bf16.mxu0 0
        %6724 = vmatpush1.bf16.msra.mxu0 %v6701
        %6725 = vmatprep.subr.bf16.mxu0 0
        %6726 = vmatpush1.bf16.msra.mxu0 %v6702
        %6727 = vmatprep.subr.bf16.mxu0 0
        %6728 = vmatpush1.bf16.msra.mxu0 0
        %6729 = vmatprep.subr.bf16.mxu0 0
        %6730 = vmatpush1.bf16.msra.mxu0 0
        %6731 = vmatprep.subr.bf16.mxu0 0
        %6732 = vmatpush1.bf16.msra.mxu0 0
        %6733 = vmatprep.subr.bf16.mxu0 0
        %6734 = vmatpush1.bf16.msra.mxu0 0
        %6735 = vmatprep.subr.bf16.mxu0 0
        %6736 = vmatpush1.bf16.msra.mxu0 0
        %6737 = vmatprep.subr.bf16.mxu0 0
        %6738 = vmatpush1.bf16.msra.mxu0 0
        %6739 = vmatprep.subr.bf16.mxu0 0
        %6740 = vmatpush1.bf16.msra.mxu0 0
        %6741 = vmatprep.subr.bf16.mxu0 0
        %6742 = vmatpush1.bf16.msra.mxu0 0
        %6743 = vmatprep.mubr.bf16.mxu0 0
        %6744 = vmatmul.mubr.bf16.gmra.mrb[0].mxu0 %v6179
        %v6745 = vpop.f32.mrb[0].mxu0
        %v6746 = vadd.f32 0.0, %v6745
        %v6747 = vpop.f32.mrb[0].mxu0
        %v6748 = vpop.f32.mrb[0].mxu0
        %v6749 = vadd.f32 0.0, %v6748
        %v6750 = vpop.f32.mrb[0].mxu0
        %6751 = vmatprep.mubr.bf16.mxu0 0
        %6752 = vmatmul.mubr.bf16.gmra.mrb[0].mxu0 %v6180
        %v6753 = vpop.f32.mrb[0].mxu0
        %v6754 = vadd.f32 0.0, %v6753
        %v6755 = vpop.f32.mrb[0].mxu0
        %v6756 = vpop.f32.mrb[0].mxu0
        %v6757 = vadd.f32 0.0, %v6756
        %v6758 = vpop.f32.mrb[0].mxu0
        %6759 = vmatprep.mubr.bf16.mxu0 0
        %6760 = vmatmul.mubr.bf16.gmra.mrb[0].mxu0 %v6181
        %v6761 = vpop.f32.mrb[0].mxu0
        %v6762 = vadd.f32 0.0, %v6761
        %v6763 = vpop.f32.mrb[0].mxu0
        %v6764 = vpop.f32.mrb[0].mxu0
        %v6765 = vadd.f32 0.0, %v6764
        %v6766 = vpop.f32.mrb[0].mxu0
        %6767 = vmatprep.mubr.bf16.mxu0 0
        %6768 = vmatmul.mubr.bf16.gmra.mrb[0].mxu0 %v6182
        %v6769 = vpop.f32.mrb[0].mxu0
        %v6770 = vadd.f32 0.0, %v6769
        %v6771 = vpop.f32.mrb[0].mxu0
        %v6772 = vpop.f32.mrb[0].mxu0
        %v6773 = vadd.f32 0.0, %v6772
        %v6774 = vpop.f32.mrb[0].mxu0
        %6775 = vmatprep.mubr.bf16.mxu0 0
        %6776 = vmatmul.mubr.bf16.gmra.mrb[0].mxu0 %v6183
        %v6777 = vpop.f32.mrb[0].mxu0
        %v6778 = vadd.f32 0.0, %v6777
        %v6779 = vpop.f32.mrb[0].mxu0
        %v6780 = vpop.f32.mrb[0].mxu0
        %v6781 = vadd.f32 0.0, %v6780
        %v6782 = vpop.f32.mrb[0].mxu0
        %6783 = vmatprep.mubr.bf16.mxu0 0
        %6784 = vmatmul.mubr.bf16.gmra.mrb[0].mxu0 %v6184
        %v6785 = vpop.f32.mrb[0].mxu0
        %v6786 = vadd.f32 0.0, %v6785
        %v6787 = vpop.f32.mrb[0].mxu0
        %v6788 = vpop.f32.mrb[0].mxu0
        %v6789 = vadd.f32 0.0, %v6788
        %v6790 = vpop.f32.mrb[0].mxu0
        %6791 = vmatprep.mubr.bf16.mxu0 0
        %6792 = vmatmul.mubr.bf16.gmra.mrb[0].mxu0 %v6185
        %v6793 = vpop.f32.mrb[0].mxu0
        %v6794 = vadd.f32 0.0, %v6793
        %v6795 = vpop.f32.mrb[0].mxu0
        %v6796 = vpop.f32.mrb[0].mxu0
        %v6797 = vadd.f32 0.0, %v6796
        %v6798 = vpop.f32.mrb[0].mxu0
        %6799 = vmatprep.mubr.bf16.mxu0 0
        %6800 = vmatmul.mubr.bf16.gmra.mrb[0].mxu0 %v6186
        %v6801 = vpop.f32.mrb[0].mxu0
        %v6802 = vadd.f32 0.0, %v6801
        %v6803 = vpop.f32.mrb[0].mxu0
        %v6804 = vpop.f32.mrb[0].mxu0
        %v6805 = vadd.f32 0.0, %v6804
        %v6806 = vpop.f32.mrb[0].mxu0
        %6807 = vmatprep.mubr.bf16.mxu0 0
        %6808 = vmatmul.mubr.bf16.gmra.mrb[0].mxu0 %v6187
        %v6809 = vpop.f32.mrb[0].mxu0
        %v6810 = vadd.f32 0.0, %v6809
        %v6811 = vpop.f32.mrb[0].mxu0
        %v6812 = vpop.f32.mrb[0].mxu0
        %v6813 = vadd.f32 0.0, %v6812
        %v6814 = vpop.f32.mrb[0].mxu0
        %6815 = vmatprep.mubr.bf16.mxu0 0
        %6816 = vmatmul.mubr.bf16.gmra.mrb[0].mxu0 %v6188
        %v6817 = vpop.f32.mrb[0].mxu0
        %v6818 = vadd.f32 0.0, %v6817
        %v6819 = vpop.f32.mrb[0].mxu0
        %v6820 = vpop.f32.mrb[0].mxu0
        %v6821 = vadd.f32 0.0, %v6820
        %v6822 = vpop.f32.mrb[0].mxu0
        %6823 = vmatprep.mubr.bf16.mxu0 0
        %6824 = vmatmul.mubr.bf16.gmra.mrb[0].mxu0 %v6189
        %v6825 = vpop.f32.mrb[0].mxu0
        %v6826 = vadd.f32 0.0, %v6825
        %v6827 = vpop.f32.mrb[0].mxu0
        %v6828 = vpop.f32.mrb[0].mxu0
        %v6829 = vadd.f32 0.0, %v6828
        %v6830 = vpop.f32.mrb[0].mxu0
        %6831 = vmatprep.mubr.bf16.mxu0 0
        %6832 = vmatmul.mubr.bf16.gmra.mrb[0].mxu0 %v6190
        %v6833 = vpop.f32.mrb[0].mxu0
        %v6834 = vadd.f32 0.0, %v6833
        %v6835 = vpop.f32.mrb[0].mxu0
        %v6836 = vpop.f32.mrb[0].mxu0
        %v6837 = vadd.f32 0.0, %v6836
        %v6838 = vpop.f32.mrb[0].mxu0
        %6839 = vmatprep.mubr.bf16.mxu0 0
        %6840 = vmatmul.mubr.bf16.gmra.mrb[0].mxu0 %v6191
        %v6841 = vpop.f32.mrb[0].mxu0
        %v6842 = vadd.f32 0.0, %v6841
        %v6843 = vpop.f32.mrb[0].mxu0
        %v6844 = vpop.f32.mrb[0].mxu0
        %v6845 = vadd.f32 0.0, %v6844
        %v6846 = vpop.f32.mrb[0].mxu0
        %6847 = vmatprep.mubr.bf16.mxu0 0
        %6848 = vmatmul.mubr.bf16.gmra.mrb[0].mxu0 %v6192
        %v6849 = vpop.f32.mrb[0].mxu0
        %v6850 = vadd.f32 0.0, %v6849
        %v6851 = vpop.f32.mrb[0].mxu0
        %v6852 = vpop.f32.mrb[0].mxu0
        %v6853 = vadd.f32 0.0, %v6852
        %v6854 = vpop.f32.mrb[0].mxu0
        %6855 = vmatprep.mubr.bf16.mxu0 0
        %6856 = vmatmul.mubr.bf16.gmra.mrb[0].mxu0 %v6193
        %v6857 = vpop.f32.mrb[0].mxu0
        %v6858 = vadd.f32 0.0, %v6857
        %v6859 = vpop.f32.mrb[0].mxu0
        %v6860 = vpop.f32.mrb[0].mxu0
        %v6861 = vadd.f32 0.0, %v6860
        %v6862 = vpop.f32.mrb[0].mxu0
        %6863 = vmatprep.mubr.bf16.mxu0 0
        %6864 = vmatmul.mubr.bf16.gmra.mrb[0].mxu0 %v6194
        %v6865 = vpop.f32.mrb[0].mxu0
        %v6866 = vadd.f32 0.0, %v6865
        %v6867 = vpop.f32.mrb[0].mxu0
        %v6868 = vpop.f32.mrb[0].mxu0
        %v6869 = vadd.f32 0.0, %v6868
        %v6870 = vpop.f32.mrb[0].mxu0
        %6871 = vdwg.mxu0
        %v6872 = vadd.f32 %v6520, %v6746
        %v6873 = vadd.f32 %v6523, %v6749
        %v6874 = vadd.f32 %v6528, %v6754
        %v6875 = vadd.f32 %v6531, %v6757
        %v6876 = vadd.f32 %v6536, %v6762
        %v6877 = vadd.f32 %v6539, %v6765
        %v6878 = vadd.f32 %v6544, %v6770
        %v6879 = vadd.f32 %v6547, %v6773
        %v6880 = vadd.f32 %v6552, %v6778
        %v6881 = vadd.f32 %v6555, %v6781
        %v6882 = vadd.f32 %v6560, %v6786
        %v6883 = vadd.f32 %v6563, %v6789
        %v6884 = vadd.f32 %v6568, %v6794
        %v6885 = vadd.f32 %v6571, %v6797
        %v6886 = vadd.f32 %v6576, %v6802
        %v6887 = vadd.f32 %v6579, %v6805
        %v6888 = vadd.f32 %v6584, %v6810
        %v6889 = vadd.f32 %v6587, %v6813
        %v6890 = vadd.f32 %v6592, %v6818
        %v6891 = vadd.f32 %v6595, %v6821
        %v6892 = vadd.f32 %v6600, %v6826
        %v6893 = vadd.f32 %v6603, %v6829
        %v6894 = vadd.f32 %v6608, %v6834
        %v6895 = vadd.f32 %v6611, %v6837
        %v6896 = vadd.f32 %v6616, %v6842
        %v6897 = vadd.f32 %v6619, %v6845
        %v6898 = vadd.f32 %v6624, %v6850
        %v6899 = vadd.f32 %v6627, %v6853
        %v6900 = vadd.f32 %v6632, %v6858
        %v6901 = vadd.f32 %v6635, %v6861
        %v6902 = vadd.f32 %v6640, %v6866
        %v6903 = vadd.f32 %v6643, %v6869
        %s6904 = scalar_lea.vmem [#allocation5], 64
        %v6905 = vld [vmem:[%s6904] sm:$0xf]
        %v6906 = vld [vmem:[%s6904 + $0x4] sm:$0xf]
        %v6907 = vld [vmem:[%s6904 + $0x8] sm:$0xf]
        %v6908 = vld [vmem:[%s6904 + $0xc] sm:$0xf]
        %v6909 = vld [vmem:[%s6904 + $0x10] sm:$0xf]
        %v6910 = vld [vmem:[%s6904 + $0x14] sm:$0xf]
        %v6911 = vld [vmem:[%s6904 + $0x18] sm:$0xf]
        %v6912 = vld [vmem:[%s6904 + $0x1c] sm:$0xf]
        %v6913 = vld [vmem:[%s6904 + $0x20] sm:$0xf]
        %v6914 = vld [vmem:[%s6904 + $0x24] sm:$0xf]
        %v6915 = vld [vmem:[%s6904 + $0x28] sm:$0xf]
        %v6916 = vld [vmem:[%s6904 + $0x2c] sm:$0xf]
        %v6917 = vld [vmem:[%s6904 + $0x30] sm:$0xf]
        %v6918 = vld [vmem:[%s6904 + $0x34] sm:$0xf]
        %v6919 = vld [vmem:[%s6904 + $0x38] sm:$0xf]
        %v6920 = vld [vmem:[%s6904 + $0x3c] sm:$0xf]
        %v6937 = vunpack.c.l.b16 %v6905
        %v6938 = vunpack.c.l.b16 %v6906
        %v6939 = vunpack.c.l.b16 %v6907
        %v6940 = vunpack.c.l.b16 %v6908
        %v6941 = vunpack.c.l.b16 %v6909
        %v6942 = vunpack.c.l.b16 %v6910
        %v6943 = vunpack.c.l.b16 %v6911
        %v6944 = vunpack.c.l.b16 %v6912
        %v6945 = vunpack.c.l.b16 %v6913
        %v6946 = vunpack.c.l.b16 %v6914
        %v6947 = vunpack.c.l.b16 %v6915
        %v6948 = vunpack.c.l.b16 %v6916
        %v6949 = vunpack.c.l.b16 %v6917
        %v6950 = vunpack.c.l.b16 %v6918
        %v6951 = vunpack.c.l.b16 %v6919
        %v6952 = vunpack.c.l.b16 %v6920
        %v6953 = vpack.c.b16 %v6938, %v6937
        %v6954 = vpack.c.b16 %v6940, %v6939
        %v6955 = vpack.c.b16 %v6942, %v6941
        %v6956 = vpack.c.b16 %v6944, %v6943
        %v6957 = vpack.c.b16 %v6946, %v6945
        %v6958 = vpack.c.b16 %v6948, %v6947
        %v6959 = vpack.c.b16 %v6950, %v6949
        %v6960 = vpack.c.b16 %v6952, %v6951
        %6969 = vmatprep.subr.bf16.mxu0 0
        %6970 = vmatpush1.bf16.msra.mxu0 %v6953
        %6971 = vmatprep.subr.bf16.mxu0 0
        %6972 = vmatpush1.bf16.msra.mxu0 %v6954
        %6973 = vmatprep.subr.bf16.mxu0 0
        %6974 = vmatpush1.bf16.msra.mxu0 %v6955
        %6975 = vmatprep.subr.bf16.mxu0 0
        %6976 = vmatpush1.bf16.msra.mxu0 %v6956
        %6977 = vmatprep.subr.bf16.mxu0 0
        %6978 = vmatpush1.bf16.msra.mxu0 %v6957
        %6979 = vmatprep.subr.bf16.mxu0 0
        %6980 = vmatpush1.bf16.msra.mxu0 %v6958
        %6981 = vmatprep.subr.bf16.mxu0 0
        %6982 = vmatpush1.bf16.msra.mxu0 %v6959
        %6983 = vmatprep.subr.bf16.mxu0 0
        %6984 = vmatpush1.bf16.msra.mxu0 %v6960
        %6985 = vmatprep.subr.bf16.mxu0 0
        %6986 = vmatpush1.bf16.msra.mxu0 0
        %6987 = vmatprep.subr.bf16.mxu0 0
        %6988 = vmatpush1.bf16.msra.mxu0 0
        %6989 = vmatprep.subr.bf16.mxu0 0
        %6990 = vmatpush1.bf16.msra.mxu0 0
        %6991 = vmatprep.subr.bf16.mxu0 0
        %6992 = vmatpush1.bf16.msra.mxu0 0
        %6993 = vmatprep.subr.bf16.mxu0 0
        %6994 = vmatpush1.bf16.msra.mxu0 0
        %6995 = vmatprep.subr.bf16.mxu0 0
        %6996 = vmatpush1.bf16.msra.mxu0 0
        %6997 = vmatprep.subr.bf16.mxu0 0
        %6998 = vmatpush1.bf16.msra.mxu0 0
        %6999 = vmatprep.subr.bf16.mxu0 0
        %7000 = vmatpush1.bf16.msra.mxu0 0
        %7001 = vmatprep.mubr.bf16.mxu0 0
        %7002 = vmatmul.mubr.bf16.gmra.mrb[0].mxu0 %v6015
        %v7003 = vpop.f32.mrb[0].mxu0
        %v7004 = vadd.f32 0.0, %v7003
        %v7005 = vpop.f32.mrb[0].mxu0
        %v7006 = vpop.f32.mrb[0].mxu0
        %v7007 = vadd.f32 0.0, %v7006
        %v7008 = vpop.f32.mrb[0].mxu0
        %7009 = vmatprep.mubr.bf16.mxu0 0
        %7010 = vmatmul.mubr.bf16.gmra.mrb[0].mxu0 %v6016
        %v7011 = vpop.f32.mrb[0].mxu0
        %v7012 = vadd.f32 0.0, %v7011
        %v7013 = vpop.f32.mrb[0].mxu0
        %v7014 = vpop.f32.mrb[0].mxu0
        %v7015 = vadd.f32 0.0, %v7014
        %v7016 = vpop.f32.mrb[0].mxu0
        %7017 = vmatprep.mubr.bf16.mxu0 0
        %7018 = vmatmul.mubr.bf16.gmra.mrb[0].mxu0 %v6017
        %v7019 = vpop.f32.mrb[0].mxu0
        %v7020 = vadd.f32 0.0, %v7019
        %v7021 = vpop.f32.mrb[0].mxu0
        %v7022 = vpop.f32.mrb[0].mxu0
        %v7023 = vadd.f32 0.0, %v7022
        %v7024 = vpop.f32.mrb[0].mxu0
        %7025 = vmatprep.mubr.bf16.mxu0 0
        %7026 = vmatmul.mubr.bf16.gmra.mrb[0].mxu0 %v6018
        %v7027 = vpop.f32.mrb[0].mxu0
        %v7028 = vadd.f32 0.0, %v7027
        %v7029 = vpop.f32.mrb[0].mxu0
        %v7030 = vpop.f32.mrb[0].mxu0
        %v7031 = vadd.f32 0.0, %v7030
        %v7032 = vpop.f32.mrb[0].mxu0
        %7033 = vmatprep.mubr.bf16.mxu0 0
        %7034 = vmatmul.mubr.bf16.gmra.mrb[0].mxu0 %v6019
        %v7035 = vpop.f32.mrb[0].mxu0
        %v7036 = vadd.f32 0.0, %v7035
        %v7037 = vpop.f32.mrb[0].mxu0
        %v7038 = vpop.f32.mrb[0].mxu0
        %v7039 = vadd.f32 0.0, %v7038
        %v7040 = vpop.f32.mrb[0].mxu0
        %7041 = vmatprep.mubr.bf16.mxu0 0
        %7042 = vmatmul.mubr.bf16.gmra.mrb[0].mxu0 %v6020
        %v7043 = vpop.f32.mrb[0].mxu0
        %v7044 = vadd.f32 0.0, %v7043
        %v7045 = vpop.f32.mrb[0].mxu0
        %v7046 = vpop.f32.mrb[0].mxu0
        %v7047 = vadd.f32 0.0, %v7046
        %v7048 = vpop.f32.mrb[0].mxu0
        %7049 = vmatprep.mubr.bf16.mxu0 0
        %7050 = vmatmul.mubr.bf16.gmra.mrb[0].mxu0 %v6021
        %v7051 = vpop.f32.mrb[0].mxu0
        %v7052 = vadd.f32 0.0, %v7051
        %v7053 = vpop.f32.mrb[0].mxu0
        %v7054 = vpop.f32.mrb[0].mxu0
        %v7055 = vadd.f32 0.0, %v7054
        %v7056 = vpop.f32.mrb[0].mxu0
        %7057 = vmatprep.mubr.bf16.mxu0 0
        %7058 = vmatmul.mubr.bf16.gmra.mrb[0].mxu0 %v6022
        %v7059 = vpop.f32.mrb[0].mxu0
        %v7060 = vadd.f32 0.0, %v7059
        %v7061 = vpop.f32.mrb[0].mxu0
        %v7062 = vpop.f32.mrb[0].mxu0
        %v7063 = vadd.f32 0.0, %v7062
        %v7064 = vpop.f32.mrb[0].mxu0
        %7065 = vmatprep.mubr.bf16.mxu0 0
        %7066 = vmatmul.mubr.bf16.gmra.mrb[0].mxu0 %v6023
        %v7067 = vpop.f32.mrb[0].mxu0
        %v7068 = vadd.f32 0.0, %v7067
        %v7069 = vpop.f32.mrb[0].mxu0
        %v7070 = vpop.f32.mrb[0].mxu0
        %v7071 = vadd.f32 0.0, %v7070
        %v7072 = vpop.f32.mrb[0].mxu0
        %7073 = vmatprep.mubr.bf16.mxu0 0
        %7074 = vmatmul.mubr.bf16.gmra.mrb[0].mxu0 %v6024
        %v7075 = vpop.f32.mrb[0].mxu0
        %v7076 = vadd.f32 0.0, %v7075
        %v7077 = vpop.f32.mrb[0].mxu0
        %v7078 = vpop.f32.mrb[0].mxu0
        %v7079 = vadd.f32 0.0, %v7078
        %v7080 = vpop.f32.mrb[0].mxu0
        %7081 = vmatprep.mubr.bf16.mxu0 0
        %7082 = vmatmul.mubr.bf16.gmra.mrb[0].mxu0 %v6025
        %v7083 = vpop.f32.mrb[0].mxu0
        %v7084 = vadd.f32 0.0, %v7083
        %v7085 = vpop.f32.mrb[0].mxu0
        %v7086 = vpop.f32.mrb[0].mxu0
        %v7087 = vadd.f32 0.0, %v7086
        %v7088 = vpop.f32.mrb[0].mxu0
        %7089 = vmatprep.mubr.bf16.mxu0 0
        %7090 = vmatmul.mubr.bf16.gmra.mrb[0].mxu0 %v6026
        %v7091 = vpop.f32.mrb[0].mxu0
        %v7092 = vadd.f32 0.0, %v7091
        %v7093 = vpop.f32.mrb[0].mxu0
        %v7094 = vpop.f32.mrb[0].mxu0
        %v7095 = vadd.f32 0.0, %v7094
        %v7096 = vpop.f32.mrb[0].mxu0
        %7097 = vmatprep.mubr.bf16.mxu0 0
        %7098 = vmatmul.mubr.bf16.gmra.mrb[0].mxu0 %v6027
        %v7099 = vpop.f32.mrb[0].mxu0
        %v7100 = vadd.f32 0.0, %v7099
        %v7101 = vpop.f32.mrb[0].mxu0
        %v7102 = vpop.f32.mrb[0].mxu0
        %v7103 = vadd.f32 0.0, %v7102
        %v7104 = vpop.f32.mrb[0].mxu0
        %7105 = vmatprep.mubr.bf16.mxu0 0
        %7106 = vmatmul.mubr.bf16.gmra.mrb[0].mxu0 %v6028
        %v7107 = vpop.f32.mrb[0].mxu0
        %v7108 = vadd.f32 0.0, %v7107
        %v7109 = vpop.f32.mrb[0].mxu0
        %v7110 = vpop.f32.mrb[0].mxu0
        %v7111 = vadd.f32 0.0, %v7110
        %v7112 = vpop.f32.mrb[0].mxu0
        %7113 = vmatprep.mubr.bf16.mxu0 0
        %7114 = vmatmul.mubr.bf16.gmra.mrb[0].mxu0 %v6029
        %v7115 = vpop.f32.mrb[0].mxu0
        %v7116 = vadd.f32 0.0, %v7115
        %v7117 = vpop.f32.mrb[0].mxu0
        %v7118 = vpop.f32.mrb[0].mxu0
        %v7119 = vadd.f32 0.0, %v7118
        %v7120 = vpop.f32.mrb[0].mxu0
        %7121 = vmatprep.mubr.bf16.mxu0 0
        %7122 = vmatmul.mubr.bf16.gmra.mrb[0].mxu0 %v6030
        %v7123 = vpop.f32.mrb[0].mxu0
        %v7124 = vadd.f32 0.0, %v7123
        %v7125 = vpop.f32.mrb[0].mxu0
        %v7126 = vpop.f32.mrb[0].mxu0
        %v7127 = vadd.f32 0.0, %v7126
        %v7128 = vpop.f32.mrb[0].mxu0
        %7129 = vdwg.mxu0
        %v7130 = vadd.f32 %v6872, %v7004
        %v7131 = vadd.f32 %v6873, %v7007
        %v7132 = vadd.f32 %v6874, %v7012
        %v7133 = vadd.f32 %v6875, %v7015
        %v7134 = vadd.f32 %v6876, %v7020
        %v7135 = vadd.f32 %v6877, %v7023
        %v7136 = vadd.f32 %v6878, %v7028
        %v7137 = vadd.f32 %v6879, %v7031
        %v7138 = vadd.f32 %v6880, %v7036
        %v7139 = vadd.f32 %v6881, %v7039
        %v7140 = vadd.f32 %v6882, %v7044
        %v7141 = vadd.f32 %v6883, %v7047
        %v7142 = vadd.f32 %v6884, %v7052
        %v7143 = vadd.f32 %v6885, %v7055
        %v7144 = vadd.f32 %v6886, %v7060
        %v7145 = vadd.f32 %v6887, %v7063
        %v7146 = vadd.f32 %v6888, %v7068
        %v7147 = vadd.f32 %v6889, %v7071
        %v7148 = vadd.f32 %v6890, %v7076
        %v7149 = vadd.f32 %v6891, %v7079
        %v7150 = vadd.f32 %v6892, %v7084
        %v7151 = vadd.f32 %v6893, %v7087
        %v7152 = vadd.f32 %v6894, %v7092
        %v7153 = vadd.f32 %v6895, %v7095
        %v7154 = vadd.f32 %v6896, %v7100
        %v7155 = vadd.f32 %v6897, %v7103
        %v7156 = vadd.f32 %v6898, %v7108
        %v7157 = vadd.f32 %v6899, %v7111
        %v7158 = vadd.f32 %v6900, %v7116
        %v7159 = vadd.f32 %v6901, %v7119
        %v7160 = vadd.f32 %v6902, %v7124
        %v7161 = vadd.f32 %v6903, %v7127
        %s7162 = scalar_lea.vmem [#allocation5], 256
        %v7163 = vld [vmem:[%s7162] sm:$0xf]
        %v7164 = vld [vmem:[%s7162 + $0x4] sm:$0xf]
        %v7165 = vld [vmem:[%s7162 + $0x8] sm:$0xf]
        %v7166 = vld [vmem:[%s7162 + $0xc] sm:$0xf]
        %v7167 = vld [vmem:[%s7162 + $0x10] sm:$0xf]
        %v7168 = vld [vmem:[%s7162 + $0x14] sm:$0xf]
        %v7169 = vld [vmem:[%s7162 + $0x18] sm:$0xf]
        %v7170 = vld [vmem:[%s7162 + $0x1c] sm:$0xf]
        %v7171 = vld [vmem:[%s7162 + $0x20] sm:$0xf]
        %v7172 = vld [vmem:[%s7162 + $0x24] sm:$0xf]
        %v7173 = vld [vmem:[%s7162 + $0x28] sm:$0xf]
        %v7174 = vld [vmem:[%s7162 + $0x2c] sm:$0xf]
        %v7175 = vld [vmem:[%s7162 + $0x30] sm:$0xf]
        %v7176 = vld [vmem:[%s7162 + $0x34] sm:$0xf]
        %v7177 = vld [vmem:[%s7162 + $0x38] sm:$0xf]
        %v7178 = vld [vmem:[%s7162 + $0x3c] sm:$0xf]
        %v7195 = vunpack.c.l.b16 %v7163
        %v7196 = vunpack.c.l.b16 %v7164
        %v7197 = vunpack.c.l.b16 %v7165
        %v7198 = vunpack.c.l.b16 %v7166
        %v7199 = vunpack.c.l.b16 %v7167
        %v7200 = vunpack.c.l.b16 %v7168
        %v7201 = vunpack.c.l.b16 %v7169
        %v7202 = vunpack.c.l.b16 %v7170
        %v7203 = vunpack.c.l.b16 %v7171
        %v7204 = vunpack.c.l.b16 %v7172
        %v7205 = vunpack.c.l.b16 %v7173
        %v7206 = vunpack.c.l.b16 %v7174
        %v7207 = vunpack.c.l.b16 %v7175
        %v7208 = vunpack.c.l.b16 %v7176
        %v7209 = vunpack.c.l.b16 %v7177
        %v7210 = vunpack.c.l.b16 %v7178
        %v7211 = vpack.c.b16 %v7196, %v7195
        %v7212 = vpack.c.b16 %v7198, %v7197
        %v7213 = vpack.c.b16 %v7200, %v7199
        %v7214 = vpack.c.b16 %v7202, %v7201
        %v7215 = vpack.c.b16 %v7204, %v7203
        %v7216 = vpack.c.b16 %v7206, %v7205
        %v7217 = vpack.c.b16 %v7208, %v7207
        %v7218 = vpack.c.b16 %v7210, %v7209
        %7227 = vmatprep.subr.bf16.mxu0 0
        %7228 = vmatpush1.bf16.msra.mxu0 %v7211
        %7229 = vmatprep.subr.bf16.mxu0 0
        %7230 = vmatpush1.bf16.msra.mxu0 %v7212
        %7231 = vmatprep.subr.bf16.mxu0 0
        %7232 = vmatpush1.bf16.msra.mxu0 %v7213
        %7233 = vmatprep.subr.bf16.mxu0 0
        %7234 = vmatpush1.bf16.msra.mxu0 %v7214
        %7235 = vmatprep.subr.bf16.mxu0 0
        %7236 = vmatpush1.bf16.msra.mxu0 %v7215
        %7237 = vmatprep.subr.bf16.mxu0 0
        %7238 = vmatpush1.bf16.msra.mxu0 %v7216
        %7239 = vmatprep.subr.bf16.mxu0 0
        %7240 = vmatpush1.bf16.msra.mxu0 %v7217
        %7241 = vmatprep.subr.bf16.mxu0 0
        %7242 = vmatpush1.bf16.msra.mxu0 %v7218
        %7243 = vmatprep.subr.bf16.mxu0 0
        %7244 = vmatpush1.bf16.msra.mxu0 0
        %7245 = vmatprep.subr.bf16.mxu0 0
        %7246 = vmatpush1.bf16.msra.mxu0 0
        %7247 = vmatprep.subr.bf16.mxu0 0
        %7248 = vmatpush1.bf16.msra.mxu0 0
        %7249 = vmatprep.subr.bf16.mxu0 0
        %7250 = vmatpush1.bf16.msra.mxu0 0
        %7251 = vmatprep.subr.bf16.mxu0 0
        %7252 = vmatpush1.bf16.msra.mxu0 0
        %7253 = vmatprep.subr.bf16.mxu0 0
        %7254 = vmatpush1.bf16.msra.mxu0 0
        %7255 = vmatprep.subr.bf16.mxu0 0
        %7256 = vmatpush1.bf16.msra.mxu0 0
        %7257 = vmatprep.subr.bf16.mxu0 0
        %7258 = vmatpush1.bf16.msra.mxu0 0
        %7259 = vmatprep.mubr.bf16.mxu0 0
        %7260 = vmatmul.mubr.bf16.gmra.mrb[0].mxu0 %v6016
        %v7261 = vpop.f32.mrb[0].mxu0
        %v7262 = vadd.f32 0.0, %v7261
        %v7263 = vpop.f32.mrb[0].mxu0
        %v7264 = vpop.f32.mrb[0].mxu0
        %v7265 = vadd.f32 0.0, %v7264
        %v7266 = vpop.f32.mrb[0].mxu0
        %7267 = vmatprep.mubr.bf16.mxu0 0
        %7268 = vmatmul.mubr.bf16.gmra.mrb[0].mxu0 %v6017
        %v7269 = vpop.f32.mrb[0].mxu0
        %v7270 = vadd.f32 0.0, %v7269
        %v7271 = vpop.f32.mrb[0].mxu0
        %v7272 = vpop.f32.mrb[0].mxu0
        %v7273 = vadd.f32 0.0, %v7272
        %v7274 = vpop.f32.mrb[0].mxu0
        %7275 = vmatprep.mubr.bf16.mxu0 0
        %7276 = vmatmul.mubr.bf16.gmra.mrb[0].mxu0 %v6018
        %v7277 = vpop.f32.mrb[0].mxu0
        %v7278 = vadd.f32 0.0, %v7277
        %v7279 = vpop.f32.mrb[0].mxu0
        %v7280 = vpop.f32.mrb[0].mxu0
        %v7281 = vadd.f32 0.0, %v7280
        %v7282 = vpop.f32.mrb[0].mxu0
        %7283 = vmatprep.mubr.bf16.mxu0 0
        %7284 = vmatmul.mubr.bf16.gmra.mrb[0].mxu0 %v6019
        %v7285 = vpop.f32.mrb[0].mxu0
        %v7286 = vadd.f32 0.0, %v7285
        %v7287 = vpop.f32.mrb[0].mxu0
        %v7288 = vpop.f32.mrb[0].mxu0
        %v7289 = vadd.f32 0.0, %v7288
        %v7290 = vpop.f32.mrb[0].mxu0
        %7291 = vmatprep.mubr.bf16.mxu0 0
        %7292 = vmatmul.mubr.bf16.gmra.mrb[0].mxu0 %v6020
        %v7293 = vpop.f32.mrb[0].mxu0
        %v7294 = vadd.f32 0.0, %v7293
        %v7295 = vpop.f32.mrb[0].mxu0
        %v7296 = vpop.f32.mrb[0].mxu0
        %v7297 = vadd.f32 0.0, %v7296
        %v7298 = vpop.f32.mrb[0].mxu0
        %7299 = vmatprep.mubr.bf16.mxu0 0
        %7300 = vmatmul.mubr.bf16.gmra.mrb[0].mxu0 %v6021
        %v7301 = vpop.f32.mrb[0].mxu0
        %v7302 = vadd.f32 0.0, %v7301
        %v7303 = vpop.f32.mrb[0].mxu0
        %v7304 = vpop.f32.mrb[0].mxu0
        %v7305 = vadd.f32 0.0, %v7304
        %v7306 = vpop.f32.mrb[0].mxu0
        %7307 = vmatprep.mubr.bf16.mxu0 0
        %7308 = vmatmul.mubr.bf16.gmra.mrb[0].mxu0 %v6022
        %v7309 = vpop.f32.mrb[0].mxu0
        %v7310 = vadd.f32 0.0, %v7309
        %v7311 = vpop.f32.mrb[0].mxu0
        %v7312 = vpop.f32.mrb[0].mxu0
        %v7313 = vadd.f32 0.0, %v7312
        %v7314 = vpop.f32.mrb[0].mxu0
        %7315 = vmatprep.mubr.bf16.mxu0 0
        %7316 = vmatmul.mubr.bf16.gmra.mrb[0].mxu0 %v6023
        %v7317 = vpop.f32.mrb[0].mxu0
        %v7318 = vadd.f32 0.0, %v7317
        %v7319 = vpop.f32.mrb[0].mxu0
        %v7320 = vpop.f32.mrb[0].mxu0
        %v7321 = vadd.f32 0.0, %v7320
        %v7322 = vpop.f32.mrb[0].mxu0
        %7323 = vmatprep.mubr.bf16.mxu0 0
        %7324 = vmatmul.mubr.bf16.gmra.mrb[0].mxu0 %v6024
        %v7325 = vpop.f32.mrb[0].mxu0
        %v7326 = vadd.f32 0.0, %v7325
        %v7327 = vpop.f32.mrb[0].mxu0
        %v7328 = vpop.f32.mrb[0].mxu0
        %v7329 = vadd.f32 0.0, %v7328
        %v7330 = vpop.f32.mrb[0].mxu0
        %7331 = vmatprep.mubr.bf16.mxu0 0
        %7332 = vmatmul.mubr.bf16.gmra.mrb[0].mxu0 %v6025
        %v7333 = vpop.f32.mrb[0].mxu0
        %v7334 = vadd.f32 0.0, %v7333
        %v7335 = vpop.f32.mrb[0].mxu0
        %v7336 = vpop.f32.mrb[0].mxu0
        %v7337 = vadd.f32 0.0, %v7336
        %v7338 = vpop.f32.mrb[0].mxu0
        %7339 = vmatprep.mubr.bf16.mxu0 0
        %7340 = vmatmul.mubr.bf16.gmra.mrb[0].mxu0 %v6026
        %v7341 = vpop.f32.mrb[0].mxu0
        %v7342 = vadd.f32 0.0, %v7341
        %v7343 = vpop.f32.mrb[0].mxu0
        %v7344 = vpop.f32.mrb[0].mxu0
        %v7345 = vadd.f32 0.0, %v7344
        %v7346 = vpop.f32.mrb[0].mxu0
        %7347 = vmatprep.mubr.bf16.mxu0 0
        %7348 = vmatmul.mubr.bf16.gmra.mrb[0].mxu0 %v6027
        %v7349 = vpop.f32.mrb[0].mxu0
        %v7350 = vadd.f32 0.0, %v7349
        %v7351 = vpop.f32.mrb[0].mxu0
        %v7352 = vpop.f32.mrb[0].mxu0
        %v7353 = vadd.f32 0.0, %v7352
        %v7354 = vpop.f32.mrb[0].mxu0
        %7355 = vmatprep.mubr.bf16.mxu0 0
        %7356 = vmatmul.mubr.bf16.gmra.mrb[0].mxu0 %v6028
        %v7357 = vpop.f32.mrb[0].mxu0
        %v7358 = vadd.f32 0.0, %v7357
        %v7359 = vpop.f32.mrb[0].mxu0
        %v7360 = vpop.f32.mrb[0].mxu0
        %v7361 = vadd.f32 0.0, %v7360
        %v7362 = vpop.f32.mrb[0].mxu0
        %7363 = vmatprep.mubr.bf16.mxu0 0
        %7364 = vmatmul.mubr.bf16.gmra.mrb[0].mxu0 %v6029
        %v7365 = vpop.f32.mrb[0].mxu0
        %v7366 = vadd.f32 0.0, %v7365
        %v7367 = vpop.f32.mrb[0].mxu0
        %v7368 = vpop.f32.mrb[0].mxu0
        %v7369 = vadd.f32 0.0, %v7368
        %v7370 = vpop.f32.mrb[0].mxu0
        %7371 = vmatprep.mubr.bf16.mxu0 0
        %7372 = vmatmul.mubr.bf16.gmra.mrb[0].mxu0 %v6030
        %v7373 = vpop.f32.mrb[0].mxu0
        %v7374 = vadd.f32 0.0, %v7373
        %v7375 = vpop.f32.mrb[0].mxu0
        %v7376 = vpop.f32.mrb[0].mxu0
        %v7377 = vadd.f32 0.0, %v7376
        %v7378 = vpop.f32.mrb[0].mxu0
        %7379 = vmatprep.mubr.bf16.mxu0 0
        %7380 = vmatmul.mubr.bf16.gmra.mrb[0].mxu0 %v6031
        %v7381 = vpop.f32.mrb[0].mxu0
        %v7382 = vadd.f32 0.0, %v7381
        %v7383 = vpop.f32.mrb[0].mxu0
        %v7384 = vpop.f32.mrb[0].mxu0
        %v7385 = vadd.f32 0.0, %v7384
        %v7386 = vpop.f32.mrb[0].mxu0
        %7387 = vdwg.mxu0
        %v7388 = vadd.f32 %v7130, %v7262
        %v7389 = vadd.f32 %v7131, %v7265
        %v7390 = vadd.f32 %v7132, %v7270
        %v7391 = vadd.f32 %v7133, %v7273
        %v7392 = vadd.f32 %v7134, %v7278
        %v7393 = vadd.f32 %v7135, %v7281
        %v7394 = vadd.f32 %v7136, %v7286
        %v7395 = vadd.f32 %v7137, %v7289
        %v7396 = vadd.f32 %v7138, %v7294
        %v7397 = vadd.f32 %v7139, %v7297
        %v7398 = vadd.f32 %v7140, %v7302
        %v7399 = vadd.f32 %v7141, %v7305
        %v7400 = vadd.f32 %v7142, %v7310
        %v7401 = vadd.f32 %v7143, %v7313
        %v7402 = vadd.f32 %v7144, %v7318
        %v7403 = vadd.f32 %v7145, %v7321
        %v7404 = vadd.f32 %v7146, %v7326
        %v7405 = vadd.f32 %v7147, %v7329
        %v7406 = vadd.f32 %v7148, %v7334
        %v7407 = vadd.f32 %v7149, %v7337
        %v7408 = vadd.f32 %v7150, %v7342
        %v7409 = vadd.f32 %v7151, %v7345
        %v7410 = vadd.f32 %v7152, %v7350
        %v7411 = vadd.f32 %v7153, %v7353
        %v7412 = vadd.f32 %v7154, %v7358
        %v7413 = vadd.f32 %v7155, %v7361
        %v7414 = vadd.f32 %v7156, %v7366
        %v7415 = vadd.f32 %v7157, %v7369
        %v7416 = vadd.f32 %v7158, %v7374
        %v7417 = vadd.f32 %v7159, %v7377
        %v7418 = vadd.f32 %v7160, %v7382
        %v7419 = vadd.f32 %v7161, %v7385
        %s7420 = scalar_lea.vmem [#allocation5], 448
        %v7421 = vld [vmem:[%s7420] sm:$0xf]
        %v7422 = vld [vmem:[%s7420 + $0x4] sm:$0xf]
        %v7423 = vld [vmem:[%s7420 + $0x8] sm:$0xf]
        %v7424 = vld [vmem:[%s7420 + $0xc] sm:$0xf]
        %v7425 = vld [vmem:[%s7420 + $0x10] sm:$0xf]
        %v7426 = vld [vmem:[%s7420 + $0x14] sm:$0xf]
        %v7427 = vld [vmem:[%s7420 + $0x18] sm:$0xf]
        %v7428 = vld [vmem:[%s7420 + $0x1c] sm:$0xf]
        %v7429 = vld [vmem:[%s7420 + $0x20] sm:$0xf]
        %v7430 = vld [vmem:[%s7420 + $0x24] sm:$0xf]
        %v7431 = vld [vmem:[%s7420 + $0x28] sm:$0xf]
        %v7432 = vld [vmem:[%s7420 + $0x2c] sm:$0xf]
        %v7433 = vld [vmem:[%s7420 + $0x30] sm:$0xf]
        %v7434 = vld [vmem:[%s7420 + $0x34] sm:$0xf]
        %v7435 = vld [vmem:[%s7420 + $0x38] sm:$0xf]
        %v7436 = vld [vmem:[%s7420 + $0x3c] sm:$0xf]
        %v7453 = vunpack.c.l.b16 %v7421
        %v7454 = vunpack.c.l.b16 %v7422
        %v7455 = vunpack.c.l.b16 %v7423
        %v7456 = vunpack.c.l.b16 %v7424
        %v7457 = vunpack.c.l.b16 %v7425
        %v7458 = vunpack.c.l.b16 %v7426
        %v7459 = vunpack.c.l.b16 %v7427
        %v7460 = vunpack.c.l.b16 %v7428
        %v7461 = vunpack.c.l.b16 %v7429
        %v7462 = vunpack.c.l.b16 %v7430
        %v7463 = vunpack.c.l.b16 %v7431
        %v7464 = vunpack.c.l.b16 %v7432
        %v7465 = vunpack.c.l.b16 %v7433
        %v7466 = vunpack.c.l.b16 %v7434
        %v7467 = vunpack.c.l.b16 %v7435
        %v7468 = vunpack.c.l.b16 %v7436
        %v7469 = vpack.c.b16 %v7454, %v7453
        %v7470 = vpack.c.b16 %v7456, %v7455
        %v7471 = vpack.c.b16 %v7458, %v7457
        %v7472 = vpack.c.b16 %v7460, %v7459
        %v7473 = vpack.c.b16 %v7462, %v7461
        %v7474 = vpack.c.b16 %v7464, %v7463
        %v7475 = vpack.c.b16 %v7466, %v7465
        %v7476 = vpack.c.b16 %v7468, %v7467
        %7485 = vmatprep.subr.bf16.mxu0 0
        %7486 = vmatpush1.bf16.msra.mxu0 %v7469
        %7487 = vmatprep.subr.bf16.mxu0 0
        %7488 = vmatpush1.bf16.msra.mxu0 %v7470
        %7489 = vmatprep.subr.bf16.mxu0 0
        %7490 = vmatpush1.bf16.msra.mxu0 %v7471
        %7491 = vmatprep.subr.bf16.mxu0 0
        %7492 = vmatpush1.bf16.msra.mxu0 %v7472
        %7493 = vmatprep.subr.bf16.mxu0 0
        %7494 = vmatpush1.bf16.msra.mxu0 %v7473
        %7495 = vmatprep.subr.bf16.mxu0 0
        %7496 = vmatpush1.bf16.msra.mxu0 %v7474
        %7497 = vmatprep.subr.bf16.mxu0 0
        %7498 = vmatpush1.bf16.msra.mxu0 %v7475
        %7499 = vmatprep.subr.bf16.mxu0 0
        %7500 = vmatpush1.bf16.msra.mxu0 %v7476
        %7501 = vmatprep.subr.bf16.mxu0 0
        %7502 = vmatpush1.bf16.msra.mxu0 0
        %7503 = vmatprep.subr.bf16.mxu0 0
        %7504 = vmatpush1.bf16.msra.mxu0 0
        %7505 = vmatprep.subr.bf16.mxu0 0
        %7506 = vmatpush1.bf16.msra.mxu0 0
        %7507 = vmatprep.subr.bf16.mxu0 0
        %7508 = vmatpush1.bf16.msra.mxu0 0
        %7509 = vmatprep.subr.bf16.mxu0 0
        %7510 = vmatpush1.bf16.msra.mxu0 0
        %7511 = vmatprep.subr.bf16.mxu0 0
        %7512 = vmatpush1.bf16.msra.mxu0 0
        %7513 = vmatprep.subr.bf16.mxu0 0
        %7514 = vmatpush1.bf16.msra.mxu0 0
        %7515 = vmatprep.subr.bf16.mxu0 0
        %7516 = vmatpush1.bf16.msra.mxu0 0
        %7517 = vmatprep.mubr.bf16.mxu0 0
        %7518 = vmatmul.mubr.bf16.gmra.mrb[0].mxu0 %v6017
        %v7519 = vpop.f32.mrb[0].mxu0
        %v7520 = vadd.f32 0.0, %v7519
        %v7521 = vpop.f32.mrb[0].mxu0
        %v7522 = vpop.f32.mrb[0].mxu0
        %v7523 = vadd.f32 0.0, %v7522
        %v7524 = vpop.f32.mrb[0].mxu0
        %7525 = vmatprep.mubr.bf16.mxu0 0
        %7526 = vmatmul.mubr.bf16.gmra.mrb[0].mxu0 %v6018
        %v7527 = vpop.f32.mrb[0].mxu0
        %v7528 = vadd.f32 0.0, %v7527
        %v7529 = vpop.f32.mrb[0].mxu0
        %v7530 = vpop.f32.mrb[0].mxu0
        %v7531 = vadd.f32 0.0, %v7530
        %v7532 = vpop.f32.mrb[0].mxu0
        %7533 = vmatprep.mubr.bf16.mxu0 0
        %7534 = vmatmul.mubr.bf16.gmra.mrb[0].mxu0 %v6019
        %v7535 = vpop.f32.mrb[0].mxu0
        %v7536 = vadd.f32 0.0, %v7535
        %v7537 = vpop.f32.mrb[0].mxu0
        %v7538 = vpop.f32.mrb[0].mxu0
        %v7539 = vadd.f32 0.0, %v7538
        %v7540 = vpop.f32.mrb[0].mxu0
        %7541 = vmatprep.mubr.bf16.mxu0 0
        %7542 = vmatmul.mubr.bf16.gmra.mrb[0].mxu0 %v6020
        %v7543 = vpop.f32.mrb[0].mxu0
        %v7544 = vadd.f32 0.0, %v7543
        %v7545 = vpop.f32.mrb[0].mxu0
        %v7546 = vpop.f32.mrb[0].mxu0
        %v7547 = vadd.f32 0.0, %v7546
        %v7548 = vpop.f32.mrb[0].mxu0
        %7549 = vmatprep.mubr.bf16.mxu0 0
        %7550 = vmatmul.mubr.bf16.gmra.mrb[0].mxu0 %v6021
        %v7551 = vpop.f32.mrb[0].mxu0
        %v7552 = vadd.f32 0.0, %v7551
        %v7553 = vpop.f32.mrb[0].mxu0
        %v7554 = vpop.f32.mrb[0].mxu0
        %v7555 = vadd.f32 0.0, %v7554
        %v7556 = vpop.f32.mrb[0].mxu0
        %7557 = vmatprep.mubr.bf16.mxu0 0
        %7558 = vmatmul.mubr.bf16.gmra.mrb[0].mxu0 %v6022
        %v7559 = vpop.f32.mrb[0].mxu0
        %v7560 = vadd.f32 0.0, %v7559
        %v7561 = vpop.f32.mrb[0].mxu0
        %v7562 = vpop.f32.mrb[0].mxu0
        %v7563 = vadd.f32 0.0, %v7562
        %v7564 = vpop.f32.mrb[0].mxu0
        %7565 = vmatprep.mubr.bf16.mxu0 0
        %7566 = vmatmul.mubr.bf16.gmra.mrb[0].mxu0 %v6023
        %v7567 = vpop.f32.mrb[0].mxu0
        %v7568 = vadd.f32 0.0, %v7567
        %v7569 = vpop.f32.mrb[0].mxu0
        %v7570 = vpop.f32.mrb[0].mxu0
        %v7571 = vadd.f32 0.0, %v7570
        %v7572 = vpop.f32.mrb[0].mxu0
        %7573 = vmatprep.mubr.bf16.mxu0 0
        %7574 = vmatmul.mubr.bf16.gmra.mrb[0].mxu0 %v6024
        %v7575 = vpop.f32.mrb[0].mxu0
        %v7576 = vadd.f32 0.0, %v7575
        %v7577 = vpop.f32.mrb[0].mxu0
        %v7578 = vpop.f32.mrb[0].mxu0
        %v7579 = vadd.f32 0.0, %v7578
        %v7580 = vpop.f32.mrb[0].mxu0
        %7581 = vmatprep.mubr.bf16.mxu0 0
        %7582 = vmatmul.mubr.bf16.gmra.mrb[0].mxu0 %v6025
        %v7583 = vpop.f32.mrb[0].mxu0
        %v7584 = vadd.f32 0.0, %v7583
        %v7585 = vpop.f32.mrb[0].mxu0
        %v7586 = vpop.f32.mrb[0].mxu0
        %v7587 = vadd.f32 0.0, %v7586
        %v7588 = vpop.f32.mrb[0].mxu0
        %7589 = vmatprep.mubr.bf16.mxu0 0
        %7590 = vmatmul.mubr.bf16.gmra.mrb[0].mxu0 %v6026
        %v7591 = vpop.f32.mrb[0].mxu0
        %v7592 = vadd.f32 0.0, %v7591
        %v7593 = vpop.f32.mrb[0].mxu0
        %v7594 = vpop.f32.mrb[0].mxu0
        %v7595 = vadd.f32 0.0, %v7594
        %v7596 = vpop.f32.mrb[0].mxu0
        %7597 = vmatprep.mubr.bf16.mxu0 0
        %7598 = vmatmul.mubr.bf16.gmra.mrb[0].mxu0 %v6027
        %v7599 = vpop.f32.mrb[0].mxu0
        %v7600 = vadd.f32 0.0, %v7599
        %v7601 = vpop.f32.mrb[0].mxu0
        %v7602 = vpop.f32.mrb[0].mxu0
        %v7603 = vadd.f32 0.0, %v7602
        %v7604 = vpop.f32.mrb[0].mxu0
        %7605 = vmatprep.mubr.bf16.mxu0 0
        %7606 = vmatmul.mubr.bf16.gmra.mrb[0].mxu0 %v6028
        %v7607 = vpop.f32.mrb[0].mxu0
        %v7608 = vadd.f32 0.0, %v7607
        %v7609 = vpop.f32.mrb[0].mxu0
        %v7610 = vpop.f32.mrb[0].mxu0
        %v7611 = vadd.f32 0.0, %v7610
        %v7612 = vpop.f32.mrb[0].mxu0
        %7613 = vmatprep.mubr.bf16.mxu0 0
        %7614 = vmatmul.mubr.bf16.gmra.mrb[0].mxu0 %v6029
        %v7615 = vpop.f32.mrb[0].mxu0
        %v7616 = vadd.f32 0.0, %v7615
        %v7617 = vpop.f32.mrb[0].mxu0
        %v7618 = vpop.f32.mrb[0].mxu0
        %v7619 = vadd.f32 0.0, %v7618
        %v7620 = vpop.f32.mrb[0].mxu0
        %7621 = vmatprep.mubr.bf16.mxu0 0
        %7622 = vmatmul.mubr.bf16.gmra.mrb[0].mxu0 %v6030
        %v7623 = vpop.f32.mrb[0].mxu0
        %v7624 = vadd.f32 0.0, %v7623
        %v7625 = vpop.f32.mrb[0].mxu0
        %v7626 = vpop.f32.mrb[0].mxu0
        %v7627 = vadd.f32 0.0, %v7626
        %v7628 = vpop.f32.mrb[0].mxu0
        %7629 = vmatprep.mubr.bf16.mxu0 0
        %7630 = vmatmul.mubr.bf16.gmra.mrb[0].mxu0 %v6031
        %v7631 = vpop.f32.mrb[0].mxu0
        %v7632 = vadd.f32 0.0, %v7631
        %v7633 = vpop.f32.mrb[0].mxu0
        %v7634 = vpop.f32.mrb[0].mxu0
        %v7635 = vadd.f32 0.0, %v7634
        %v7636 = vpop.f32.mrb[0].mxu0
        %7637 = vmatprep.mubr.bf16.mxu0 0
        %7638 = vmatmul.mubr.bf16.gmra.mrb[0].mxu0 %v6032
        %v7639 = vpop.f32.mrb[0].mxu0
        %v7640 = vadd.f32 0.0, %v7639
        %v7641 = vpop.f32.mrb[0].mxu0
        %v7642 = vpop.f32.mrb[0].mxu0
        %v7643 = vadd.f32 0.0, %v7642
        %v7644 = vpop.f32.mrb[0].mxu0
        %7645 = vdwg.mxu0
        %v7646 = vadd.f32 %v7388, %v7520
        %v7647 = vadd.f32 %v7389, %v7523
        %v7648 = vadd.f32 %v7390, %v7528
        %v7649 = vadd.f32 %v7391, %v7531
        %v7650 = vadd.f32 %v7392, %v7536
        %v7651 = vadd.f32 %v7393, %v7539
        %v7652 = vadd.f32 %v7394, %v7544
        %v7653 = vadd.f32 %v7395, %v7547
        %v7654 = vadd.f32 %v7396, %v7552
        %v7655 = vadd.f32 %v7397, %v7555
        %v7656 = vadd.f32 %v7398, %v7560
        %v7657 = vadd.f32 %v7399, %v7563
        %v7658 = vadd.f32 %v7400, %v7568
        %v7659 = vadd.f32 %v7401, %v7571
        %v7660 = vadd.f32 %v7402, %v7576
        %v7661 = vadd.f32 %v7403, %v7579
        %v7662 = vadd.f32 %v7404, %v7584
        %v7663 = vadd.f32 %v7405, %v7587
        %v7664 = vadd.f32 %v7406, %v7592
        %v7665 = vadd.f32 %v7407, %v7595
        %v7666 = vadd.f32 %v7408, %v7600
        %v7667 = vadd.f32 %v7409, %v7603
        %v7668 = vadd.f32 %v7410, %v7608
        %v7669 = vadd.f32 %v7411, %v7611
        %v7670 = vadd.f32 %v7412, %v7616
        %v7671 = vadd.f32 %v7413, %v7619
        %v7672 = vadd.f32 %v7414, %v7624
        %v7673 = vadd.f32 %v7415, %v7627
        %v7674 = vadd.f32 %v7416, %v7632
        %v7675 = vadd.f32 %v7417, %v7635
        %v7676 = vadd.f32 %v7418, %v7640
        %v7677 = vadd.f32 %v7419, %v7643
        %v7678 = vrot.slane %v6037, 1
        %v7679 = vor.u32 %v6034, %v7678
        %v7680 = vrot.slane %v6044, 1
        %v7681 = vor.u32 %v6041, %v7680
        %v7682 = vrot.slane %v6051, 1
        %v7683 = vor.u32 %v6048, %v7682
        %v7684 = vrot.slane %v6058, 1
        %v7685 = vor.u32 %v6055, %v7684
        %v7686 = vrot.slane %v6065, 1
        %v7687 = vor.u32 %v6062, %v7686
        %v7688 = vrot.slane %v6072, 1
        %v7689 = vor.u32 %v6069, %v7688
        %v7690 = vrot.slane %v6079, 1
        %v7691 = vor.u32 %v6076, %v7690
        %v7692 = vrot.slane %v6086, 1
        %v7693 = vor.u32 %v6083, %v7692
        %v7694 = vrot.slane %v6093, 1
        %v7695 = vor.u32 %v6090, %v7694
        %v7696 = vrot.slane %v6100, 1
        %v7697 = vor.u32 %v6097, %v7696
        %v7698 = vrot.slane %v6107, 1
        %v7699 = vor.u32 %v6104, %v7698
        %v7700 = vrot.slane %v6114, 1
        %v7701 = vor.u32 %v6111, %v7700
        %v7702 = vrot.slane %v6121, 1
        %v7703 = vor.u32 %v6118, %v7702
        %v7704 = vrot.slane %v6128, 1
        %v7705 = vor.u32 %v6125, %v7704
        %v7706 = vrot.slane %v6135, 1
        %v7707 = vor.u32 %v6132, %v7706
        %v7708 = vrot.slane %v6142, 1
        %v7709 = vor.u32 %v6139, %v7708
        %v7710 = vrot.slane %v6149, 1
        %v7711 = vor.u32 %v6146, %v7710
        %v7712 = vrot.slane %v6156, 1
        %v7713 = vor.u32 %v6153, %v7712
        %v7732 = vsel %vm2313, %v7679, 0
        %v7733 = vsel %vm2313, %v7681, 0
        %v7734 = vsel %vm2313, %v7683, 0
        %v7735 = vsel %vm2313, %v7685, 0
        %v7736 = vsel %vm2313, %v7687, 0
        %v7737 = vsel %vm2313, %v7689, 0
        %v7738 = vsel %vm2313, %v7691, 0
        %v7739 = vsel %vm2313, %v7693, 0
        %v7740 = vsel %vm2313, %v7695, 0
        %v7741 = vsel %vm2313, %v7697, 0
        %v7742 = vsel %vm2313, %v7699, 0
        %v7743 = vsel %vm2313, %v7701, 0
        %v7744 = vsel %vm2313, %v7703, 0
        %v7745 = vsel %vm2313, %v7705, 0
        %v7746 = vsel %vm2313, %v7707, 0
        %v7747 = vsel %vm2313, %v7709, 0
        %v7748 = vsel %vm2313, %v7711, 0
        %v7749 = vsel %vm2313, %v7713, 0
        %s7750 = scalar_lea.vmem [#allocation5], 128
        %v7751 = vld [vmem:[%s7750] sm:$0xf]
        %v7752 = vld [vmem:[%s7750 + $0x4] sm:$0xf]
        %v7753 = vld [vmem:[%s7750 + $0x8] sm:$0xf]
        %v7754 = vld [vmem:[%s7750 + $0xc] sm:$0xf]
        %v7755 = vld [vmem:[%s7750 + $0x10] sm:$0xf]
        %v7756 = vld [vmem:[%s7750 + $0x14] sm:$0xf]
        %v7757 = vld [vmem:[%s7750 + $0x18] sm:$0xf]
        %v7758 = vld [vmem:[%s7750 + $0x1c] sm:$0xf]
        %v7759 = vld [vmem:[%s7750 + $0x20] sm:$0xf]
        %v7760 = vld [vmem:[%s7750 + $0x24] sm:$0xf]
        %v7761 = vld [vmem:[%s7750 + $0x28] sm:$0xf]
        %v7762 = vld [vmem:[%s7750 + $0x2c] sm:$0xf]
        %v7763 = vld [vmem:[%s7750 + $0x30] sm:$0xf]
        %v7764 = vld [vmem:[%s7750 + $0x34] sm:$0xf]
        %v7765 = vld [vmem:[%s7750 + $0x38] sm:$0xf]
        %v7766 = vld [vmem:[%s7750 + $0x3c] sm:$0xf]
        %v7783 = vunpack.c.l.b16 %v7751
        %v7784 = vunpack.c.l.b16 %v7752
        %v7785 = vunpack.c.l.b16 %v7753
        %v7786 = vunpack.c.l.b16 %v7754
        %v7787 = vunpack.c.l.b16 %v7755
        %v7788 = vunpack.c.l.b16 %v7756
        %v7789 = vunpack.c.l.b16 %v7757
        %v7790 = vunpack.c.l.b16 %v7758
        %v7791 = vunpack.c.l.b16 %v7759
        %v7792 = vunpack.c.l.b16 %v7760
        %v7793 = vunpack.c.l.b16 %v7761
        %v7794 = vunpack.c.l.b16 %v7762
        %v7795 = vunpack.c.l.b16 %v7763
        %v7796 = vunpack.c.l.b16 %v7764
        %v7797 = vunpack.c.l.b16 %v7765
        %v7798 = vunpack.c.l.b16 %v7766
        %v7799 = vpack.c.b16 %v7784, %v7783
        %v7800 = vpack.c.b16 %v7786, %v7785
        %v7801 = vpack.c.b16 %v7788, %v7787
        %v7802 = vpack.c.b16 %v7790, %v7789
        %v7803 = vpack.c.b16 %v7792, %v7791
        %v7804 = vpack.c.b16 %v7794, %v7793
        %v7805 = vpack.c.b16 %v7796, %v7795
        %v7806 = vpack.c.b16 %v7798, %v7797
        %7815 = vmatprep.subr.bf16.mxu0 0
        %7816 = vmatpush1.bf16.msra.mxu0 %v7799
        %7817 = vmatprep.subr.bf16.mxu0 0
        %7818 = vmatpush1.bf16.msra.mxu0 %v7800
        %7819 = vmatprep.subr.bf16.mxu0 0
        %7820 = vmatpush1.bf16.msra.mxu0 %v7801
        %7821 = vmatprep.subr.bf16.mxu0 0
        %7822 = vmatpush1.bf16.msra.mxu0 %v7802
        %7823 = vmatprep.subr.bf16.mxu0 0
        %7824 = vmatpush1.bf16.msra.mxu0 %v7803
        %7825 = vmatprep.subr.bf16.mxu0 0
        %7826 = vmatpush1.bf16.msra.mxu0 %v7804
        %7827 = vmatprep.subr.bf16.mxu0 0
        %7828 = vmatpush1.bf16.msra.mxu0 %v7805
        %7829 = vmatprep.subr.bf16.mxu0 0
        %7830 = vmatpush1.bf16.msra.mxu0 %v7806
        %7831 = vmatprep.subr.bf16.mxu0 0
        %7832 = vmatpush1.bf16.msra.mxu0 0
        %7833 = vmatprep.subr.bf16.mxu0 0
        %7834 = vmatpush1.bf16.msra.mxu0 0
        %7835 = vmatprep.subr.bf16.mxu0 0
        %7836 = vmatpush1.bf16.msra.mxu0 0
        %7837 = vmatprep.subr.bf16.mxu0 0
        %7838 = vmatpush1.bf16.msra.mxu0 0
        %7839 = vmatprep.subr.bf16.mxu0 0
        %7840 = vmatpush1.bf16.msra.mxu0 0
        %7841 = vmatprep.subr.bf16.mxu0 0
        %7842 = vmatpush1.bf16.msra.mxu0 0
        %7843 = vmatprep.subr.bf16.mxu0 0
        %7844 = vmatpush1.bf16.msra.mxu0 0
        %7845 = vmatprep.subr.bf16.mxu0 0
        %7846 = vmatpush1.bf16.msra.mxu0 0
        %7847 = vmatprep.mubr.bf16.mxu0 0
        %7848 = vmatmul.mubr.bf16.gmra.mrb[0].mxu0 %v7732
        %v7849 = vpop.f32.mrb[0].mxu0
        %v7850 = vadd.f32 0.0, %v7849
        %v7851 = vpop.f32.mrb[0].mxu0
        %v7852 = vpop.f32.mrb[0].mxu0
        %v7853 = vadd.f32 0.0, %v7852
        %v7854 = vpop.f32.mrb[0].mxu0
        %7855 = vmatprep.mubr.bf16.mxu0 0
        %7856 = vmatmul.mubr.bf16.gmra.mrb[0].mxu0 %v7733
        %v7857 = vpop.f32.mrb[0].mxu0
        %v7858 = vadd.f32 0.0, %v7857
        %v7859 = vpop.f32.mrb[0].mxu0
        %v7860 = vpop.f32.mrb[0].mxu0
        %v7861 = vadd.f32 0.0, %v7860
        %v7862 = vpop.f32.mrb[0].mxu0
        %7863 = vmatprep.mubr.bf16.mxu0 0
        %7864 = vmatmul.mubr.bf16.gmra.mrb[0].mxu0 %v7734
        %v7865 = vpop.f32.mrb[0].mxu0
        %v7866 = vadd.f32 0.0, %v7865
        %v7867 = vpop.f32.mrb[0].mxu0
        %v7868 = vpop.f32.mrb[0].mxu0
        %v7869 = vadd.f32 0.0, %v7868
        %v7870 = vpop.f32.mrb[0].mxu0
        %7871 = vmatprep.mubr.bf16.mxu0 0
        %7872 = vmatmul.mubr.bf16.gmra.mrb[0].mxu0 %v7735
        %v7873 = vpop.f32.mrb[0].mxu0
        %v7874 = vadd.f32 0.0, %v7873
        %v7875 = vpop.f32.mrb[0].mxu0
        %v7876 = vpop.f32.mrb[0].mxu0
        %v7877 = vadd.f32 0.0, %v7876
        %v7878 = vpop.f32.mrb[0].mxu0
        %7879 = vmatprep.mubr.bf16.mxu0 0
        %7880 = vmatmul.mubr.bf16.gmra.mrb[0].mxu0 %v7736
        %v7881 = vpop.f32.mrb[0].mxu0
        %v7882 = vadd.f32 0.0, %v7881
        %v7883 = vpop.f32.mrb[0].mxu0
        %v7884 = vpop.f32.mrb[0].mxu0
        %v7885 = vadd.f32 0.0, %v7884
        %v7886 = vpop.f32.mrb[0].mxu0
        %7887 = vmatprep.mubr.bf16.mxu0 0
        %7888 = vmatmul.mubr.bf16.gmra.mrb[0].mxu0 %v7737
        %v7889 = vpop.f32.mrb[0].mxu0
        %v7890 = vadd.f32 0.0, %v7889
        %v7891 = vpop.f32.mrb[0].mxu0
        %v7892 = vpop.f32.mrb[0].mxu0
        %v7893 = vadd.f32 0.0, %v7892
        %v7894 = vpop.f32.mrb[0].mxu0
        %7895 = vmatprep.mubr.bf16.mxu0 0
        %7896 = vmatmul.mubr.bf16.gmra.mrb[0].mxu0 %v7738
        %v7897 = vpop.f32.mrb[0].mxu0
        %v7898 = vadd.f32 0.0, %v7897
        %v7899 = vpop.f32.mrb[0].mxu0
        %v7900 = vpop.f32.mrb[0].mxu0
        %v7901 = vadd.f32 0.0, %v7900
        %v7902 = vpop.f32.mrb[0].mxu0
        %7903 = vmatprep.mubr.bf16.mxu0 0
        %7904 = vmatmul.mubr.bf16.gmra.mrb[0].mxu0 %v7739
        %v7905 = vpop.f32.mrb[0].mxu0
        %v7906 = vadd.f32 0.0, %v7905
        %v7907 = vpop.f32.mrb[0].mxu0
        %v7908 = vpop.f32.mrb[0].mxu0
        %v7909 = vadd.f32 0.0, %v7908
        %v7910 = vpop.f32.mrb[0].mxu0
        %7911 = vmatprep.mubr.bf16.mxu0 0
        %7912 = vmatmul.mubr.bf16.gmra.mrb[0].mxu0 %v7740
        %v7913 = vpop.f32.mrb[0].mxu0
        %v7914 = vadd.f32 0.0, %v7913
        %v7915 = vpop.f32.mrb[0].mxu0
        %v7916 = vpop.f32.mrb[0].mxu0
        %v7917 = vadd.f32 0.0, %v7916
        %v7918 = vpop.f32.mrb[0].mxu0
        %7919 = vmatprep.mubr.bf16.mxu0 0
        %7920 = vmatmul.mubr.bf16.gmra.mrb[0].mxu0 %v7741
        %v7921 = vpop.f32.mrb[0].mxu0
        %v7922 = vadd.f32 0.0, %v7921
        %v7923 = vpop.f32.mrb[0].mxu0
        %v7924 = vpop.f32.mrb[0].mxu0
        %v7925 = vadd.f32 0.0, %v7924
        %v7926 = vpop.f32.mrb[0].mxu0
        %7927 = vmatprep.mubr.bf16.mxu0 0
        %7928 = vmatmul.mubr.bf16.gmra.mrb[0].mxu0 %v7742
        %v7929 = vpop.f32.mrb[0].mxu0
        %v7930 = vadd.f32 0.0, %v7929
        %v7931 = vpop.f32.mrb[0].mxu0
        %v7932 = vpop.f32.mrb[0].mxu0
        %v7933 = vadd.f32 0.0, %v7932
        %v7934 = vpop.f32.mrb[0].mxu0
        %7935 = vmatprep.mubr.bf16.mxu0 0
        %7936 = vmatmul.mubr.bf16.gmra.mrb[0].mxu0 %v7743
        %v7937 = vpop.f32.mrb[0].mxu0
        %v7938 = vadd.f32 0.0, %v7937
        %v7939 = vpop.f32.mrb[0].mxu0
        %v7940 = vpop.f32.mrb[0].mxu0
        %v7941 = vadd.f32 0.0, %v7940
        %v7942 = vpop.f32.mrb[0].mxu0
        %7943 = vmatprep.mubr.bf16.mxu0 0
        %7944 = vmatmul.mubr.bf16.gmra.mrb[0].mxu0 %v7744
        %v7945 = vpop.f32.mrb[0].mxu0
        %v7946 = vadd.f32 0.0, %v7945
        %v7947 = vpop.f32.mrb[0].mxu0
        %v7948 = vpop.f32.mrb[0].mxu0
        %v7949 = vadd.f32 0.0, %v7948
        %v7950 = vpop.f32.mrb[0].mxu0
        %7951 = vmatprep.mubr.bf16.mxu0 0
        %7952 = vmatmul.mubr.bf16.gmra.mrb[0].mxu0 %v7745
        %v7953 = vpop.f32.mrb[0].mxu0
        %v7954 = vadd.f32 0.0, %v7953
        %v7955 = vpop.f32.mrb[0].mxu0
        %v7956 = vpop.f32.mrb[0].mxu0
        %v7957 = vadd.f32 0.0, %v7956
        %v7958 = vpop.f32.mrb[0].mxu0
        %7959 = vmatprep.mubr.bf16.mxu0 0
        %7960 = vmatmul.mubr.bf16.gmra.mrb[0].mxu0 %v7746
        %v7961 = vpop.f32.mrb[0].mxu0
        %v7962 = vadd.f32 0.0, %v7961
        %v7963 = vpop.f32.mrb[0].mxu0
        %v7964 = vpop.f32.mrb[0].mxu0
        %v7965 = vadd.f32 0.0, %v7964
        %v7966 = vpop.f32.mrb[0].mxu0
        %7967 = vmatprep.mubr.bf16.mxu0 0
        %7968 = vmatmul.mubr.bf16.gmra.mrb[0].mxu0 %v7747
        %v7969 = vpop.f32.mrb[0].mxu0
        %v7970 = vadd.f32 0.0, %v7969
        %v7971 = vpop.f32.mrb[0].mxu0
        %v7972 = vpop.f32.mrb[0].mxu0
        %v7973 = vadd.f32 0.0, %v7972
        %v7974 = vpop.f32.mrb[0].mxu0
        %7975 = vdwg.mxu0
        %v7976 = vadd.f32 %v7646, %v7850
        %v7977 = vadd.f32 %v7647, %v7853
        %v7978 = vadd.f32 %v7648, %v7858
        %v7979 = vadd.f32 %v7649, %v7861
        %v7980 = vadd.f32 %v7650, %v7866
        %v7981 = vadd.f32 %v7651, %v7869
        %v7982 = vadd.f32 %v7652, %v7874
        %v7983 = vadd.f32 %v7653, %v7877
        %v7984 = vadd.f32 %v7654, %v7882
        %v7985 = vadd.f32 %v7655, %v7885
        %v7986 = vadd.f32 %v7656, %v7890
        %v7987 = vadd.f32 %v7657, %v7893
        %v7988 = vadd.f32 %v7658, %v7898
        %v7989 = vadd.f32 %v7659, %v7901
        %v7990 = vadd.f32 %v7660, %v7906
        %v7991 = vadd.f32 %v7661, %v7909
        %v7992 = vadd.f32 %v7662, %v7914
        %v7993 = vadd.f32 %v7663, %v7917
        %v7994 = vadd.f32 %v7664, %v7922
        %v7995 = vadd.f32 %v7665, %v7925
        %v7996 = vadd.f32 %v7666, %v7930
        %v7997 = vadd.f32 %v7667, %v7933
        %v7998 = vadd.f32 %v7668, %v7938
        %v7999 = vadd.f32 %v7669, %v7941
        %v8000 = vadd.f32 %v7670, %v7946
        %v8001 = vadd.f32 %v7671, %v7949
        %v8002 = vadd.f32 %v7672, %v7954
        %v8003 = vadd.f32 %v7673, %v7957
        %v8004 = vadd.f32 %v7674, %v7962
        %v8005 = vadd.f32 %v7675, %v7965
        %v8006 = vadd.f32 %v7676, %v7970
        %v8007 = vadd.f32 %v7677, %v7973
        %s8008 = scalar_lea.vmem [#allocation5], 320
        %v8009 = vld [vmem:[%s8008] sm:$0xf]
        %v8010 = vld [vmem:[%s8008 + $0x4] sm:$0xf]
        %v8011 = vld [vmem:[%s8008 + $0x8] sm:$0xf]
        %v8012 = vld [vmem:[%s8008 + $0xc] sm:$0xf]
        %v8013 = vld [vmem:[%s8008 + $0x10] sm:$0xf]
        %v8014 = vld [vmem:[%s8008 + $0x14] sm:$0xf]
        %v8015 = vld [vmem:[%s8008 + $0x18] sm:$0xf]
        %v8016 = vld [vmem:[%s8008 + $0x1c] sm:$0xf]
        %v8017 = vld [vmem:[%s8008 + $0x20] sm:$0xf]
        %v8018 = vld [vmem:[%s8008 + $0x24] sm:$0xf]
        %v8019 = vld [vmem:[%s8008 + $0x28] sm:$0xf]
        %v8020 = vld [vmem:[%s8008 + $0x2c] sm:$0xf]
        %v8021 = vld [vmem:[%s8008 + $0x30] sm:$0xf]
        %v8022 = vld [vmem:[%s8008 + $0x34] sm:$0xf]
        %v8023 = vld [vmem:[%s8008 + $0x38] sm:$0xf]
        %v8024 = vld [vmem:[%s8008 + $0x3c] sm:$0xf]
        %v8041 = vunpack.c.l.b16 %v8009
        %v8042 = vunpack.c.l.b16 %v8010
        %v8043 = vunpack.c.l.b16 %v8011
        %v8044 = vunpack.c.l.b16 %v8012
        %v8045 = vunpack.c.l.b16 %v8013
        %v8046 = vunpack.c.l.b16 %v8014
        %v8047 = vunpack.c.l.b16 %v8015
        %v8048 = vunpack.c.l.b16 %v8016
        %v8049 = vunpack.c.l.b16 %v8017
        %v8050 = vunpack.c.l.b16 %v8018
        %v8051 = vunpack.c.l.b16 %v8019
        %v8052 = vunpack.c.l.b16 %v8020
        %v8053 = vunpack.c.l.b16 %v8021
        %v8054 = vunpack.c.l.b16 %v8022
        %v8055 = vunpack.c.l.b16 %v8023
        %v8056 = vunpack.c.l.b16 %v8024
        %v8057 = vpack.c.b16 %v8042, %v8041
        %v8058 = vpack.c.b16 %v8044, %v8043
        %v8059 = vpack.c.b16 %v8046, %v8045
        %v8060 = vpack.c.b16 %v8048, %v8047
        %v8061 = vpack.c.b16 %v8050, %v8049
        %v8062 = vpack.c.b16 %v8052, %v8051
        %v8063 = vpack.c.b16 %v8054, %v8053
        %v8064 = vpack.c.b16 %v8056, %v8055
        %8073 = vmatprep.subr.bf16.mxu0 0
        %8074 = vmatpush1.bf16.msra.mxu0 %v8057
        %8075 = vmatprep.subr.bf16.mxu0 0
        %8076 = vmatpush1.bf16.msra.mxu0 %v8058
        %8077 = vmatprep.subr.bf16.mxu0 0
        %8078 = vmatpush1.bf16.msra.mxu0 %v8059
        %8079 = vmatprep.subr.bf16.mxu0 0
        %8080 = vmatpush1.bf16.msra.mxu0 %v8060
        %8081 = vmatprep.subr.bf16.mxu0 0
        %8082 = vmatpush1.bf16.msra.mxu0 %v8061
        %8083 = vmatprep.subr.bf16.mxu0 0
        %8084 = vmatpush1.bf16.msra.mxu0 %v8062
        %8085 = vmatprep.subr.bf16.mxu0 0
        %8086 = vmatpush1.bf16.msra.mxu0 %v8063
        %8087 = vmatprep.subr.bf16.mxu0 0
        %8088 = vmatpush1.bf16.msra.mxu0 %v8064
        %8089 = vmatprep.subr.bf16.mxu0 0
        %8090 = vmatpush1.bf16.msra.mxu0 0
        %8091 = vmatprep.subr.bf16.mxu0 0
        %8092 = vmatpush1.bf16.msra.mxu0 0
        %8093 = vmatprep.subr.bf16.mxu0 0
        %8094 = vmatpush1.bf16.msra.mxu0 0
        %8095 = vmatprep.subr.bf16.mxu0 0
        %8096 = vmatpush1.bf16.msra.mxu0 0
        %8097 = vmatprep.subr.bf16.mxu0 0
        %8098 = vmatpush1.bf16.msra.mxu0 0
        %8099 = vmatprep.subr.bf16.mxu0 0
        %8100 = vmatpush1.bf16.msra.mxu0 0
        %8101 = vmatprep.subr.bf16.mxu0 0
        %8102 = vmatpush1.bf16.msra.mxu0 0
        %8103 = vmatprep.subr.bf16.mxu0 0
        %8104 = vmatpush1.bf16.msra.mxu0 0
        %8105 = vmatprep.mubr.bf16.mxu0 0
        %8106 = vmatmul.mubr.bf16.gmra.mrb[0].mxu0 %v7733
        %v8107 = vpop.f32.mrb[0].mxu0
        %v8108 = vadd.f32 0.0, %v8107
        %v8109 = vpop.f32.mrb[0].mxu0
        %v8110 = vpop.f32.mrb[0].mxu0
        %v8111 = vadd.f32 0.0, %v8110
        %v8112 = vpop.f32.mrb[0].mxu0
        %8113 = vmatprep.mubr.bf16.mxu0 0
        %8114 = vmatmul.mubr.bf16.gmra.mrb[0].mxu0 %v7734
        %v8115 = vpop.f32.mrb[0].mxu0
        %v8116 = vadd.f32 0.0, %v8115
        %v8117 = vpop.f32.mrb[0].mxu0
        %v8118 = vpop.f32.mrb[0].mxu0
        %v8119 = vadd.f32 0.0, %v8118
        %v8120 = vpop.f32.mrb[0].mxu0
        %8121 = vmatprep.mubr.bf16.mxu0 0
        %8122 = vmatmul.mubr.bf16.gmra.mrb[0].mxu0 %v7735
        %v8123 = vpop.f32.mrb[0].mxu0
        %v8124 = vadd.f32 0.0, %v8123
        %v8125 = vpop.f32.mrb[0].mxu0
        %v8126 = vpop.f32.mrb[0].mxu0
        %v8127 = vadd.f32 0.0, %v8126
        %v8128 = vpop.f32.mrb[0].mxu0
        %8129 = vmatprep.mubr.bf16.mxu0 0
        %8130 = vmatmul.mubr.bf16.gmra.mrb[0].mxu0 %v7736
        %v8131 = vpop.f32.mrb[0].mxu0
        %v8132 = vadd.f32 0.0, %v8131
        %v8133 = vpop.f32.mrb[0].mxu0
        %v8134 = vpop.f32.mrb[0].mxu0
        %v8135 = vadd.f32 0.0, %v8134
        %v8136 = vpop.f32.mrb[0].mxu0
        %8137 = vmatprep.mubr.bf16.mxu0 0
        %8138 = vmatmul.mubr.bf16.gmra.mrb[0].mxu0 %v7737
        %v8139 = vpop.f32.mrb[0].mxu0
        %v8140 = vadd.f32 0.0, %v8139
        %v8141 = vpop.f32.mrb[0].mxu0
        %v8142 = vpop.f32.mrb[0].mxu0
        %v8143 = vadd.f32 0.0, %v8142
        %v8144 = vpop.f32.mrb[0].mxu0
        %8145 = vmatprep.mubr.bf16.mxu0 0
        %8146 = vmatmul.mubr.bf16.gmra.mrb[0].mxu0 %v7738
        %v8147 = vpop.f32.mrb[0].mxu0
        %v8148 = vadd.f32 0.0, %v8147
        %v8149 = vpop.f32.mrb[0].mxu0
        %v8150 = vpop.f32.mrb[0].mxu0
        %v8151 = vadd.f32 0.0, %v8150
        %v8152 = vpop.f32.mrb[0].mxu0
        %8153 = vmatprep.mubr.bf16.mxu0 0
        %8154 = vmatmul.mubr.bf16.gmra.mrb[0].mxu0 %v7739
        %v8155 = vpop.f32.mrb[0].mxu0
        %v8156 = vadd.f32 0.0, %v8155
        %v8157 = vpop.f32.mrb[0].mxu0
        %v8158 = vpop.f32.mrb[0].mxu0
        %v8159 = vadd.f32 0.0, %v8158
        %v8160 = vpop.f32.mrb[0].mxu0
        %8161 = vmatprep.mubr.bf16.mxu0 0
        %8162 = vmatmul.mubr.bf16.gmra.mrb[0].mxu0 %v7740
        %v8163 = vpop.f32.mrb[0].mxu0
        %v8164 = vadd.f32 0.0, %v8163
        %v8165 = vpop.f32.mrb[0].mxu0
        %v8166 = vpop.f32.mrb[0].mxu0
        %v8167 = vadd.f32 0.0, %v8166
        %v8168 = vpop.f32.mrb[0].mxu0
        %8169 = vmatprep.mubr.bf16.mxu0 0
        %8170 = vmatmul.mubr.bf16.gmra.mrb[0].mxu0 %v7741
        %v8171 = vpop.f32.mrb[0].mxu0
        %v8172 = vadd.f32 0.0, %v8171
        %v8173 = vpop.f32.mrb[0].mxu0
        %v8174 = vpop.f32.mrb[0].mxu0
        %v8175 = vadd.f32 0.0, %v8174
        %v8176 = vpop.f32.mrb[0].mxu0
        %8177 = vmatprep.mubr.bf16.mxu0 0
        %8178 = vmatmul.mubr.bf16.gmra.mrb[0].mxu0 %v7742
        %v8179 = vpop.f32.mrb[0].mxu0
        %v8180 = vadd.f32 0.0, %v8179
        %v8181 = vpop.f32.mrb[0].mxu0
        %v8182 = vpop.f32.mrb[0].mxu0
        %v8183 = vadd.f32 0.0, %v8182
        %v8184 = vpop.f32.mrb[0].mxu0
        %8185 = vmatprep.mubr.bf16.mxu0 0
        %8186 = vmatmul.mubr.bf16.gmra.mrb[0].mxu0 %v7743
        %v8187 = vpop.f32.mrb[0].mxu0
        %v8188 = vadd.f32 0.0, %v8187
        %v8189 = vpop.f32.mrb[0].mxu0
        %v8190 = vpop.f32.mrb[0].mxu0
        %v8191 = vadd.f32 0.0, %v8190
        %v8192 = vpop.f32.mrb[0].mxu0
        %8193 = vmatprep.mubr.bf16.mxu0 0
        %8194 = vmatmul.mubr.bf16.gmra.mrb[0].mxu0 %v7744
        %v8195 = vpop.f32.mrb[0].mxu0
        %v8196 = vadd.f32 0.0, %v8195
        %v8197 = vpop.f32.mrb[0].mxu0
        %v8198 = vpop.f32.mrb[0].mxu0
        %v8199 = vadd.f32 0.0, %v8198
        %v8200 = vpop.f32.mrb[0].mxu0
        %8201 = vmatprep.mubr.bf16.mxu0 0
        %8202 = vmatmul.mubr.bf16.gmra.mrb[0].mxu0 %v7745
        %v8203 = vpop.f32.mrb[0].mxu0
        %v8204 = vadd.f32 0.0, %v8203
        %v8205 = vpop.f32.mrb[0].mxu0
        %v8206 = vpop.f32.mrb[0].mxu0
        %v8207 = vadd.f32 0.0, %v8206
        %v8208 = vpop.f32.mrb[0].mxu0
        %8209 = vmatprep.mubr.bf16.mxu0 0
        %8210 = vmatmul.mubr.bf16.gmra.mrb[0].mxu0 %v7746
        %v8211 = vpop.f32.mrb[0].mxu0
        %v8212 = vadd.f32 0.0, %v8211
        %v8213 = vpop.f32.mrb[0].mxu0
        %v8214 = vpop.f32.mrb[0].mxu0
        %v8215 = vadd.f32 0.0, %v8214
        %v8216 = vpop.f32.mrb[0].mxu0
        %8217 = vmatprep.mubr.bf16.mxu0 0
        %8218 = vmatmul.mubr.bf16.gmra.mrb[0].mxu0 %v7747
        %v8219 = vpop.f32.mrb[0].mxu0
        %v8220 = vadd.f32 0.0, %v8219
        %v8221 = vpop.f32.mrb[0].mxu0
        %v8222 = vpop.f32.mrb[0].mxu0
        %v8223 = vadd.f32 0.0, %v8222
        %v8224 = vpop.f32.mrb[0].mxu0
        %8225 = vmatprep.mubr.bf16.mxu0 0
        %8226 = vmatmul.mubr.bf16.gmra.mrb[0].mxu0 %v7748
        %v8227 = vpop.f32.mrb[0].mxu0
        %v8228 = vadd.f32 0.0, %v8227
        %v8229 = vpop.f32.mrb[0].mxu0
        %v8230 = vpop.f32.mrb[0].mxu0
        %v8231 = vadd.f32 0.0, %v8230
        %v8232 = vpop.f32.mrb[0].mxu0
        %8233 = vdwg.mxu0
        %v8234 = vadd.f32 %v7976, %v8108
        %v8235 = vadd.f32 %v7977, %v8111
        %v8236 = vadd.f32 %v7978, %v8116
        %v8237 = vadd.f32 %v7979, %v8119
        %v8238 = vadd.f32 %v7980, %v8124
        %v8239 = vadd.f32 %v7981, %v8127
        %v8240 = vadd.f32 %v7982, %v8132
        %v8241 = vadd.f32 %v7983, %v8135
        %v8242 = vadd.f32 %v7984, %v8140
        %v8243 = vadd.f32 %v7985, %v8143
        %v8244 = vadd.f32 %v7986, %v8148
        %v8245 = vadd.f32 %v7987, %v8151
        %v8246 = vadd.f32 %v7988, %v8156
        %v8247 = vadd.f32 %v7989, %v8159
        %v8248 = vadd.f32 %v7990, %v8164
        %v8249 = vadd.f32 %v7991, %v8167
        %v8250 = vadd.f32 %v7992, %v8172
        %v8251 = vadd.f32 %v7993, %v8175
        %v8252 = vadd.f32 %v7994, %v8180
        %v8253 = vadd.f32 %v7995, %v8183
        %v8254 = vadd.f32 %v7996, %v8188
        %v8255 = vadd.f32 %v7997, %v8191
        %v8256 = vadd.f32 %v7998, %v8196
        %v8257 = vadd.f32 %v7999, %v8199
        %v8258 = vadd.f32 %v8000, %v8204
        %v8259 = vadd.f32 %v8001, %v8207
        %v8260 = vadd.f32 %v8002, %v8212
        %v8261 = vadd.f32 %v8003, %v8215
        %v8262 = vadd.f32 %v8004, %v8220
        %v8263 = vadd.f32 %v8005, %v8223
        %v8264 = vadd.f32 %v8006, %v8228
        %v8265 = vadd.f32 %v8007, %v8231
        %s8266 = scalar_lea.vmem [#allocation5], 512
        %v8267 = vld [vmem:[%s8266] sm:$0xf]
        %v8268 = vld [vmem:[%s8266 + $0x4] sm:$0xf]
        %v8269 = vld [vmem:[%s8266 + $0x8] sm:$0xf]
        %v8270 = vld [vmem:[%s8266 + $0xc] sm:$0xf]
        %v8271 = vld [vmem:[%s8266 + $0x10] sm:$0xf]
        %v8272 = vld [vmem:[%s8266 + $0x14] sm:$0xf]
        %v8273 = vld [vmem:[%s8266 + $0x18] sm:$0xf]
        %v8274 = vld [vmem:[%s8266 + $0x1c] sm:$0xf]
        %v8275 = vld [vmem:[%s8266 + $0x20] sm:$0xf]
        %v8276 = vld [vmem:[%s8266 + $0x24] sm:$0xf]
        %v8277 = vld [vmem:[%s8266 + $0x28] sm:$0xf]
        %v8278 = vld [vmem:[%s8266 + $0x2c] sm:$0xf]
        %v8279 = vld [vmem:[%s8266 + $0x30] sm:$0xf]
        %v8280 = vld [vmem:[%s8266 + $0x34] sm:$0xf]
        %v8281 = vld [vmem:[%s8266 + $0x38] sm:$0xf]
        %v8282 = vld [vmem:[%s8266 + $0x3c] sm:$0xf]
        %v8299 = vunpack.c.l.b16 %v8267
        %v8300 = vunpack.c.l.b16 %v8268
        %v8301 = vunpack.c.l.b16 %v8269
        %v8302 = vunpack.c.l.b16 %v8270
        %v8303 = vunpack.c.l.b16 %v8271
        %v8304 = vunpack.c.l.b16 %v8272
        %v8305 = vunpack.c.l.b16 %v8273
        %v8306 = vunpack.c.l.b16 %v8274
        %v8307 = vunpack.c.l.b16 %v8275
        %v8308 = vunpack.c.l.b16 %v8276
        %v8309 = vunpack.c.l.b16 %v8277
        %v8310 = vunpack.c.l.b16 %v8278
        %v8311 = vunpack.c.l.b16 %v8279
        %v8312 = vunpack.c.l.b16 %v8280
        %v8313 = vunpack.c.l.b16 %v8281
        %v8314 = vunpack.c.l.b16 %v8282
        %v8315 = vpack.c.b16 %v8300, %v8299
        %v8316 = vpack.c.b16 %v8302, %v8301
        %v8317 = vpack.c.b16 %v8304, %v8303
        %v8318 = vpack.c.b16 %v8306, %v8305
        %v8319 = vpack.c.b16 %v8308, %v8307
        %v8320 = vpack.c.b16 %v8310, %v8309
        %v8321 = vpack.c.b16 %v8312, %v8311
        %v8322 = vpack.c.b16 %v8314, %v8313
        %8331 = vmatprep.subr.bf16.mxu0 0
        %8332 = vmatpush1.bf16.msra.mxu0 %v8315
        %8333 = vmatprep.subr.bf16.mxu0 0
        %8334 = vmatpush1.bf16.msra.mxu0 %v8316
        %8335 = vmatprep.subr.bf16.mxu0 0
        %8336 = vmatpush1.bf16.msra.mxu0 %v8317
        %8337 = vmatprep.subr.bf16.mxu0 0
        %8338 = vmatpush1.bf16.msra.mxu0 %v8318
        %8339 = vmatprep.subr.bf16.mxu0 0
        %8340 = vmatpush1.bf16.msra.mxu0 %v8319
        %8341 = vmatprep.subr.bf16.mxu0 0
        %8342 = vmatpush1.bf16.msra.mxu0 %v8320
        %8343 = vmatprep.subr.bf16.mxu0 0
        %8344 = vmatpush1.bf16.msra.mxu0 %v8321
        %8345 = vmatprep.subr.bf16.mxu0 0
        %8346 = vmatpush1.bf16.msra.mxu0 %v8322
        %8347 = vmatprep.subr.bf16.mxu0 0
        %8348 = vmatpush1.bf16.msra.mxu0 0
        %8349 = vmatprep.subr.bf16.mxu0 0
        %8350 = vmatpush1.bf16.msra.mxu0 0
        %8351 = vmatprep.subr.bf16.mxu0 0
        %8352 = vmatpush1.bf16.msra.mxu0 0
        %8353 = vmatprep.subr.bf16.mxu0 0
        %8354 = vmatpush1.bf16.msra.mxu0 0
        %8355 = vmatprep.subr.bf16.mxu0 0
        %8356 = vmatpush1.bf16.msra.mxu0 0
        %8357 = vmatprep.subr.bf16.mxu0 0
        %8358 = vmatpush1.bf16.msra.mxu0 0
        %8359 = vmatprep.subr.bf16.mxu0 0
        %8360 = vmatpush1.bf16.msra.mxu0 0
        %8361 = vmatprep.subr.bf16.mxu0 0
        %8362 = vmatpush1.bf16.msra.mxu0 0
        %8363 = vmatprep.mubr.bf16.mxu0 0
        %8364 = vmatmul.mubr.bf16.gmra.mrb[0].mxu0 %v7734
        %v8365 = vpop.f32.mrb[0].mxu0
        %v8366 = vadd.f32 0.0, %v8365
        %v8367 = vpop.f32.mrb[0].mxu0
        %v8368 = vpop.f32.mrb[0].mxu0
        %v8369 = vadd.f32 0.0, %v8368
        %v8370 = vpop.f32.mrb[0].mxu0
        %8371 = vmatprep.mubr.bf16.mxu0 0
        %8372 = vmatmul.mubr.bf16.gmra.mrb[0].mxu0 %v7735
        %v8373 = vpop.f32.mrb[0].mxu0
        %v8374 = vadd.f32 0.0, %v8373
        %v8375 = vpop.f32.mrb[0].mxu0
        %v8376 = vpop.f32.mrb[0].mxu0
        %v8377 = vadd.f32 0.0, %v8376
        %v8378 = vpop.f32.mrb[0].mxu0
        %8379 = vmatprep.mubr.bf16.mxu0 0
        %8380 = vmatmul.mubr.bf16.gmra.mrb[0].mxu0 %v7736
        %v8381 = vpop.f32.mrb[0].mxu0
        %v8382 = vadd.f32 0.0, %v8381
        %v8383 = vpop.f32.mrb[0].mxu0
        %v8384 = vpop.f32.mrb[0].mxu0
        %v8385 = vadd.f32 0.0, %v8384
        %v8386 = vpop.f32.mrb[0].mxu0
        %8387 = vmatprep.mubr.bf16.mxu0 0
        %8388 = vmatmul.mubr.bf16.gmra.mrb[0].mxu0 %v7737
        %v8389 = vpop.f32.mrb[0].mxu0
        %v8390 = vadd.f32 0.0, %v8389
        %v8391 = vpop.f32.mrb[0].mxu0
        %v8392 = vpop.f32.mrb[0].mxu0
        %v8393 = vadd.f32 0.0, %v8392
        %v8394 = vpop.f32.mrb[0].mxu0
        %8395 = vmatprep.mubr.bf16.mxu0 0
        %8396 = vmatmul.mubr.bf16.gmra.mrb[0].mxu0 %v7738
        %v8397 = vpop.f32.mrb[0].mxu0
        %v8398 = vadd.f32 0.0, %v8397
        %v8399 = vpop.f32.mrb[0].mxu0
        %v8400 = vpop.f32.mrb[0].mxu0
        %v8401 = vadd.f32 0.0, %v8400
        %v8402 = vpop.f32.mrb[0].mxu0
        %8403 = vmatprep.mubr.bf16.mxu0 0
        %8404 = vmatmul.mubr.bf16.gmra.mrb[0].mxu0 %v7739
        %v8405 = vpop.f32.mrb[0].mxu0
        %v8406 = vadd.f32 0.0, %v8405
        %v8407 = vpop.f32.mrb[0].mxu0
        %v8408 = vpop.f32.mrb[0].mxu0
        %v8409 = vadd.f32 0.0, %v8408
        %v8410 = vpop.f32.mrb[0].mxu0
        %8411 = vmatprep.mubr.bf16.mxu0 0
        %8412 = vmatmul.mubr.bf16.gmra.mrb[0].mxu0 %v7740
        %v8413 = vpop.f32.mrb[0].mxu0
        %v8414 = vadd.f32 0.0, %v8413
        %v8415 = vpop.f32.mrb[0].mxu0
        %v8416 = vpop.f32.mrb[0].mxu0
        %v8417 = vadd.f32 0.0, %v8416
        %v8418 = vpop.f32.mrb[0].mxu0
        %8419 = vmatprep.mubr.bf16.mxu0 0
        %8420 = vmatmul.mubr.bf16.gmra.mrb[0].mxu0 %v7741
        %v8421 = vpop.f32.mrb[0].mxu0
        %v8422 = vadd.f32 0.0, %v8421
        %v8423 = vpop.f32.mrb[0].mxu0
        %v8424 = vpop.f32.mrb[0].mxu0
        %v8425 = vadd.f32 0.0, %v8424
        %v8426 = vpop.f32.mrb[0].mxu0
        %8427 = vmatprep.mubr.bf16.mxu0 0
        %8428 = vmatmul.mubr.bf16.gmra.mrb[0].mxu0 %v7742
        %v8429 = vpop.f32.mrb[0].mxu0
        %v8430 = vadd.f32 0.0, %v8429
        %v8431 = vpop.f32.mrb[0].mxu0
        %v8432 = vpop.f32.mrb[0].mxu0
        %v8433 = vadd.f32 0.0, %v8432
        %v8434 = vpop.f32.mrb[0].mxu0
        %8435 = vmatprep.mubr.bf16.mxu0 0
        %8436 = vmatmul.mubr.bf16.gmra.mrb[0].mxu0 %v7743
        %v8437 = vpop.f32.mrb[0].mxu0
        %v8438 = vadd.f32 0.0, %v8437
        %v8439 = vpop.f32.mrb[0].mxu0
        %v8440 = vpop.f32.mrb[0].mxu0
        %v8441 = vadd.f32 0.0, %v8440
        %v8442 = vpop.f32.mrb[0].mxu0
        %8443 = vmatprep.mubr.bf16.mxu0 0
        %8444 = vmatmul.mubr.bf16.gmra.mrb[0].mxu0 %v7744
        %v8445 = vpop.f32.mrb[0].mxu0
        %v8446 = vadd.f32 0.0, %v8445
        %v8447 = vpop.f32.mrb[0].mxu0
        %v8448 = vpop.f32.mrb[0].mxu0
        %v8449 = vadd.f32 0.0, %v8448
        %v8450 = vpop.f32.mrb[0].mxu0
        %8451 = vmatprep.mubr.bf16.mxu0 0
        %8452 = vmatmul.mubr.bf16.gmra.mrb[0].mxu0 %v7745
        %v8453 = vpop.f32.mrb[0].mxu0
        %v8454 = vadd.f32 0.0, %v8453
        %v8455 = vpop.f32.mrb[0].mxu0
        %v8456 = vpop.f32.mrb[0].mxu0
        %v8457 = vadd.f32 0.0, %v8456
        %v8458 = vpop.f32.mrb[0].mxu0
        %8459 = vmatprep.mubr.bf16.mxu0 0
        %8460 = vmatmul.mubr.bf16.gmra.mrb[0].mxu0 %v7746
        %v8461 = vpop.f32.mrb[0].mxu0
        %v8462 = vadd.f32 0.0, %v8461
        %v8463 = vpop.f32.mrb[0].mxu0
        %v8464 = vpop.f32.mrb[0].mxu0
        %v8465 = vadd.f32 0.0, %v8464
        %v8466 = vpop.f32.mrb[0].mxu0
        %8467 = vmatprep.mubr.bf16.mxu0 0
        %8468 = vmatmul.mubr.bf16.gmra.mrb[0].mxu0 %v7747
        %v8469 = vpop.f32.mrb[0].mxu0
        %v8470 = vadd.f32 0.0, %v8469
        %v8471 = vpop.f32.mrb[0].mxu0
        %v8472 = vpop.f32.mrb[0].mxu0
        %v8473 = vadd.f32 0.0, %v8472
        %v8474 = vpop.f32.mrb[0].mxu0
        %8475 = vmatprep.mubr.bf16.mxu0 0
        %8476 = vmatmul.mubr.bf16.gmra.mrb[0].mxu0 %v7748
        %v8477 = vpop.f32.mrb[0].mxu0
        %v8478 = vadd.f32 0.0, %v8477
        %v8479 = vpop.f32.mrb[0].mxu0
        %v8480 = vpop.f32.mrb[0].mxu0
        %v8481 = vadd.f32 0.0, %v8480
        %v8482 = vpop.f32.mrb[0].mxu0
        %8483 = vmatprep.mubr.bf16.mxu0 0
        %8484 = vmatmul.mubr.bf16.gmra.mrb[0].mxu0 %v7749
        %v8485 = vpop.f32.mrb[0].mxu0
        %v8486 = vadd.f32 0.0, %v8485
        %v8487 = vpop.f32.mrb[0].mxu0
        %v8488 = vpop.f32.mrb[0].mxu0
        %v8489 = vadd.f32 0.0, %v8488
        %v8490 = vpop.f32.mrb[0].mxu0
        %8491 = vdwg.mxu0
        %v8492 = vadd.f32 %v8234, %v8366
        %v8493 = vadd.f32 %v8235, %v8369
        %v8494 = vadd.f32 %v8236, %v8374
        %v8495 = vadd.f32 %v8237, %v8377
        %v8496 = vadd.f32 %v8238, %v8382
        %v8497 = vadd.f32 %v8239, %v8385
        %v8498 = vadd.f32 %v8240, %v8390
        %v8499 = vadd.f32 %v8241, %v8393
        %v8500 = vadd.f32 %v8242, %v8398
        %v8501 = vadd.f32 %v8243, %v8401
        %v8502 = vadd.f32 %v8244, %v8406
        %v8503 = vadd.f32 %v8245, %v8409
        %v8504 = vadd.f32 %v8246, %v8414
        %v8505 = vadd.f32 %v8247, %v8417
        %v8506 = vadd.f32 %v8248, %v8422
        %v8507 = vadd.f32 %v8249, %v8425
        %v8508 = vadd.f32 %v8250, %v8430
        %v8509 = vadd.f32 %v8251, %v8433
        %v8510 = vadd.f32 %v8252, %v8438
        %v8511 = vadd.f32 %v8253, %v8441
        %v8512 = vadd.f32 %v8254, %v8446
        %v8513 = vadd.f32 %v8255, %v8449
        %v8514 = vadd.f32 %v8256, %v8454
        %v8515 = vadd.f32 %v8257, %v8457
        %v8516 = vadd.f32 %v8258, %v8462
        %v8517 = vadd.f32 %v8259, %v8465
        %v8518 = vadd.f32 %v8260, %v8470
        %v8519 = vadd.f32 %v8261, %v8473
        %v8520 = vadd.f32 %v8262, %v8478
        %v8521 = vadd.f32 %v8263, %v8481
        %v8522 = vadd.f32 %v8264, %v8486
        %v8523 = vadd.f32 %v8265, %v8489
        %v8524 = vld [vmem:[%s6] sm:$0x1]
        %v8526 = vlaneseq
        %v8527 = vshrl.u32 %v8526, 7
        %v8528 = vsub.s32 0, %v8527
        %v8529 = vrot.slane %v8524, %v8528
        %v8531 = vadd.f32 %v8492, %v8529
        %v8532 = vadd.f32 %v8493, %v8529
        %v8533 = vadd.f32 %v8494, %v8529
        %v8534 = vadd.f32 %v8495, %v8529
        %v8535 = vadd.f32 %v8496, %v8529
        %v8536 = vadd.f32 %v8497, %v8529
        %v8537 = vadd.f32 %v8498, %v8529
        %v8538 = vadd.f32 %v8499, %v8529
        %v8539 = vadd.f32 %v8500, %v8529
        %v8540 = vadd.f32 %v8501, %v8529
        %v8541 = vadd.f32 %v8502, %v8529
        %v8542 = vadd.f32 %v8503, %v8529
        %v8543 = vadd.f32 %v8504, %v8529
        %v8544 = vadd.f32 %v8505, %v8529
        %v8545 = vadd.f32 %v8506, %v8529
        %v8546 = vadd.f32 %v8507, %v8529
        %v8547 = vadd.f32 %v8508, %v8529
        %v8548 = vadd.f32 %v8509, %v8529
        %v8549 = vadd.f32 %v8510, %v8529
        %v8550 = vadd.f32 %v8511, %v8529
        %v8551 = vadd.f32 %v8512, %v8529
        %v8552 = vadd.f32 %v8513, %v8529
        %v8553 = vadd.f32 %v8514, %v8529
        %v8554 = vadd.f32 %v8515, %v8529
        %v8555 = vadd.f32 %v8516, %v8529
        %v8556 = vadd.f32 %v8517, %v8529
        %v8557 = vadd.f32 %v8518, %v8529
        %v8558 = vadd.f32 %v8519, %v8529
        %v8559 = vadd.f32 %v8520, %v8529
        %v8560 = vadd.f32 %v8521, %v8529
        %v8561 = vadd.f32 %v8522, %v8529
        %v8562 = vadd.f32 %v8523, %v8529
        %v8563 = vadd.f32 %v8531, 3.0
        %v8564 = vadd.f32 %v8532, 3.0
        %v8565 = vadd.f32 %v8533, 3.0
        %v8566 = vadd.f32 %v8534, 3.0
        %v8567 = vadd.f32 %v8535, 3.0
        %v8568 = vadd.f32 %v8536, 3.0
        %v8569 = vadd.f32 %v8537, 3.0
        %v8570 = vadd.f32 %v8538, 3.0
        %v8571 = vadd.f32 %v8539, 3.0
        %v8572 = vadd.f32 %v8540, 3.0
        %v8573 = vadd.f32 %v8541, 3.0
        %v8574 = vadd.f32 %v8542, 3.0
        %v8575 = vadd.f32 %v8543, 3.0
        %v8576 = vadd.f32 %v8544, 3.0
        %v8577 = vadd.f32 %v8545, 3.0
        %v8578 = vadd.f32 %v8546, 3.0
        %v8579 = vadd.f32 %v8547, 3.0
        %v8580 = vadd.f32 %v8548, 3.0
        %v8581 = vadd.f32 %v8549, 3.0
        %v8582 = vadd.f32 %v8550, 3.0
        %v8583 = vadd.f32 %v8551, 3.0
        %v8584 = vadd.f32 %v8552, 3.0
        %v8585 = vadd.f32 %v8553, 3.0
        %v8586 = vadd.f32 %v8554, 3.0
        %v8587 = vadd.f32 %v8555, 3.0
        %v8588 = vadd.f32 %v8556, 3.0
        %v8589 = vadd.f32 %v8557, 3.0
        %v8590 = vadd.f32 %v8558, 3.0
        %v8591 = vadd.f32 %v8559, 3.0
        %v8592 = vadd.f32 %v8560, 3.0
        %v8593 = vadd.f32 %v8561, 3.0
        %v8594 = vadd.f32 %v8562, 3.0
        %v8595 = vmax.f32 %v8563, 0.0
        %v8596 = vmax.f32 %v8564, 0.0
        %v8597 = vmax.f32 %v8565, 0.0
        %v8598 = vmax.f32 %v8566, 0.0
        %v8599 = vmax.f32 %v8567, 0.0
        %v8600 = vmax.f32 %v8568, 0.0
        %v8601 = vmax.f32 %v8569, 0.0
        %v8602 = vmax.f32 %v8570, 0.0
        %v8603 = vmax.f32 %v8571, 0.0
        %v8604 = vmax.f32 %v8572, 0.0
        %v8605 = vmax.f32 %v8573, 0.0
        %v8606 = vmax.f32 %v8574, 0.0
        %v8607 = vmax.f32 %v8575, 0.0
        %v8608 = vmax.f32 %v8576, 0.0
        %v8609 = vmax.f32 %v8577, 0.0
        %v8610 = vmax.f32 %v8578, 0.0
        %v8611 = vmax.f32 %v8579, 0.0
        %v8612 = vmax.f32 %v8580, 0.0
        %v8613 = vmax.f32 %v8581, 0.0
        %v8614 = vmax.f32 %v8582, 0.0
        %v8615 = vmax.f32 %v8583, 0.0
        %v8616 = vmax.f32 %v8584, 0.0
        %v8617 = vmax.f32 %v8585, 0.0
        %v8618 = vmax.f32 %v8586, 0.0
        %v8619 = vmax.f32 %v8587, 0.0
        %v8620 = vmax.f32 %v8588, 0.0
        %v8621 = vmax.f32 %v8589, 0.0
        %v8622 = vmax.f32 %v8590, 0.0
        %v8623 = vmax.f32 %v8591, 0.0
        %v8624 = vmax.f32 %v8592, 0.0
        %v8625 = vmax.f32 %v8593, 0.0
        %v8626 = vmax.f32 %v8594, 0.0
        %v8627 = vmin.f32 %v8595, 6.0
        %v8628 = vmin.f32 %v8596, 6.0
        %v8629 = vmin.f32 %v8597, 6.0
        %v8630 = vmin.f32 %v8598, 6.0
        %v8631 = vmin.f32 %v8599, 6.0
        %v8632 = vmin.f32 %v8600, 6.0
        %v8633 = vmin.f32 %v8601, 6.0
        %v8634 = vmin.f32 %v8602, 6.0
        %v8635 = vmin.f32 %v8603, 6.0
        %v8636 = vmin.f32 %v8604, 6.0
        %v8637 = vmin.f32 %v8605, 6.0
        %v8638 = vmin.f32 %v8606, 6.0
        %v8639 = vmin.f32 %v8607, 6.0
        %v8640 = vmin.f32 %v8608, 6.0
        %v8641 = vmin.f32 %v8609, 6.0
        %v8642 = vmin.f32 %v8610, 6.0
        %v8643 = vmin.f32 %v8611, 6.0
        %v8644 = vmin.f32 %v8612, 6.0
        %v8645 = vmin.f32 %v8613, 6.0
        %v8646 = vmin.f32 %v8614, 6.0
        %v8647 = vmin.f32 %v8615, 6.0
        %v8648 = vmin.f32 %v8616, 6.0
        %v8649 = vmin.f32 %v8617, 6.0
        %v8650 = vmin.f32 %v8618, 6.0
        %v8651 = vmin.f32 %v8619, 6.0
        %v8652 = vmin.f32 %v8620, 6.0
        %v8653 = vmin.f32 %v8621, 6.0
        %v8654 = vmin.f32 %v8622, 6.0
        %v8655 = vmin.f32 %v8623, 6.0
        %v8656 = vmin.f32 %v8624, 6.0
        %v8657 = vmin.f32 %v8625, 6.0
        %v8658 = vmin.f32 %v8626, 6.0
        %v8659 = vmul.f32 %v8531, %v8627
        %v8660 = vmul.f32 %v8532, %v8628
        %v8661 = vmul.f32 %v8533, %v8629
        %v8662 = vmul.f32 %v8534, %v8630
        %v8663 = vmul.f32 %v8535, %v8631
        %v8664 = vmul.f32 %v8536, %v8632
        %v8665 = vmul.f32 %v8537, %v8633
        %v8666 = vmul.f32 %v8538, %v8634
        %v8667 = vmul.f32 %v8539, %v8635
        %v8668 = vmul.f32 %v8540, %v8636
        %v8669 = vmul.f32 %v8541, %v8637
        %v8670 = vmul.f32 %v8542, %v8638
        %v8671 = vmul.f32 %v8543, %v8639
        %v8672 = vmul.f32 %v8544, %v8640
        %v8673 = vmul.f32 %v8545, %v8641
        %v8674 = vmul.f32 %v8546, %v8642
        %v8675 = vmul.f32 %v8547, %v8643
        %v8676 = vmul.f32 %v8548, %v8644
        %v8677 = vmul.f32 %v8549, %v8645
        %v8678 = vmul.f32 %v8550, %v8646
        %v8679 = vmul.f32 %v8551, %v8647
        %v8680 = vmul.f32 %v8552, %v8648
        %v8681 = vmul.f32 %v8553, %v8649
        %v8682 = vmul.f32 %v8554, %v8650
        %v8683 = vmul.f32 %v8555, %v8651
        %v8684 = vmul.f32 %v8556, %v8652
        %v8685 = vmul.f32 %v8557, %v8653
        %v8686 = vmul.f32 %v8558, %v8654
        %v8687 = vmul.f32 %v8559, %v8655
        %v8688 = vmul.f32 %v8560, %v8656
        %v8689 = vmul.f32 %v8561, %v8657
        %v8690 = vmul.f32 %v8562, %v8658
        %v8691 = vmul.f32 %v8659, 0.16666667
        %v8692 = vmul.f32 %v8660, 0.16666667
        %v8693 = vmul.f32 %v8661, 0.16666667
        %v8694 = vmul.f32 %v8662, 0.16666667
        %v8695 = vmul.f32 %v8663, 0.16666667
        %v8696 = vmul.f32 %v8664, 0.16666667
        %v8697 = vmul.f32 %v8665, 0.16666667
        %v8698 = vmul.f32 %v8666, 0.16666667
        %v8699 = vmul.f32 %v8667, 0.16666667
        %v8700 = vmul.f32 %v8668, 0.16666667
        %v8701 = vmul.f32 %v8669, 0.16666667
        %v8702 = vmul.f32 %v8670, 0.16666667
        %v8703 = vmul.f32 %v8671, 0.16666667
        %v8704 = vmul.f32 %v8672, 0.16666667
        %v8705 = vmul.f32 %v8673, 0.16666667
        %v8706 = vmul.f32 %v8674, 0.16666667
        %v8707 = vmul.f32 %v8675, 0.16666667
        %v8708 = vmul.f32 %v8676, 0.16666667
        %v8709 = vmul.f32 %v8677, 0.16666667
        %v8710 = vmul.f32 %v8678, 0.16666667
        %v8711 = vmul.f32 %v8679, 0.16666667
        %v8712 = vmul.f32 %v8680, 0.16666667
        %v8713 = vmul.f32 %v8681, 0.16666667
        %v8714 = vmul.f32 %v8682, 0.16666667
        %v8715 = vmul.f32 %v8683, 0.16666667
        %v8716 = vmul.f32 %v8684, 0.16666667
        %v8717 = vmul.f32 %v8685, 0.16666667
        %v8718 = vmul.f32 %v8686, 0.16666667
        %v8719 = vmul.f32 %v8687, 0.16666667
        %v8720 = vmul.f32 %v8688, 0.16666667
        %v8721 = vmul.f32 %v8689, 0.16666667
        %v8722 = vmul.f32 %v8690, 0.16666667
        %8723 = vxpose.xlu0.b32.start [1/16] %v8691, 128
        %8724 = vxpose.xlu0.b32.cont [2/16] %v8692, 128
        %8725 = vxpose.xlu0.b32.cont [3/16] %v8693, 128
        %8726 = vxpose.xlu0.b32.cont [4/16] %v8694, 128
        %8727 = vxpose.xlu0.b32.cont [5/16] %v8695, 128
        %8728 = vxpose.xlu0.b32.cont [6/16] %v8696, 128
        %8729 = vxpose.xlu0.b32.cont [7/16] %v8697, 128
        %8730 = vxpose.xlu0.b32.cont [8/16] %v8698, 128
        %8731 = vxpose.xlu0.b32.cont [9/16] %v8699, 128
        %8732 = vxpose.xlu0.b32.cont [10/16] %v8700, 128
        %8733 = vxpose.xlu0.b32.cont [11/16] %v8701, 128
        %8734 = vxpose.xlu0.b32.cont [12/16] %v8702, 128
        %8735 = vxpose.xlu0.b32.cont [13/16] %v8703, 128
        %8736 = vxpose.xlu0.b32.cont [14/16] %v8704, 128
        %8737 = vxpose.xlu0.b32.cont [15/16] %v8705, 128
        %8738 = vxpose.xlu0.b32.end [16/16] %v8706, 128
        %v8739 = vpop.trf.xlu0
        %v8740 = vpop.trf.xlu0
        %v8741 = vpop.trf.xlu0
        %v8742 = vpop.trf.xlu0
        %v8743 = vpop.trf.xlu0
        %v8744 = vpop.trf.xlu0
        %v8745 = vpop.trf.xlu0
        %v8746 = vpop.trf.xlu0
        %v8747 = vpop.trf.xlu0
        %v8748 = vpop.trf.xlu0
        %v8749 = vpop.trf.xlu0
        %v8750 = vpop.trf.xlu0
        %v8751 = vpop.trf.xlu0
        %v8752 = vpop.trf.xlu0
        %v8753 = vpop.trf.xlu0
        %v8754 = vpop.trf.xlu0
        %8755 = vxpose.xlu0.b32.start [1/16] %v8707, 128
        %8756 = vxpose.xlu0.b32.cont [2/16] %v8708, 128
        %8757 = vxpose.xlu0.b32.cont [3/16] %v8709, 128
        %8758 = vxpose.xlu0.b32.cont [4/16] %v8710, 128
        %8759 = vxpose.xlu0.b32.cont [5/16] %v8711, 128
        %8760 = vxpose.xlu0.b32.cont [6/16] %v8712, 128
        %8761 = vxpose.xlu0.b32.cont [7/16] %v8713, 128
        %8762 = vxpose.xlu0.b32.cont [8/16] %v8714, 128
        %8763 = vxpose.xlu0.b32.cont [9/16] %v8715, 128
        %8764 = vxpose.xlu0.b32.cont [10/16] %v8716, 128
        %8765 = vxpose.xlu0.b32.cont [11/16] %v8717, 128
        %8766 = vxpose.xlu0.b32.cont [12/16] %v8718, 128
        %8767 = vxpose.xlu0.b32.cont [13/16] %v8719, 128
        %8768 = vxpose.xlu0.b32.cont [14/16] %v8720, 128
        %8769 = vxpose.xlu0.b32.cont [15/16] %v8721, 128
        %8770 = vxpose.xlu0.b32.end [16/16] %v8722, 128
        %v8771 = vpop.trf.xlu0
        %v8772 = vpop.trf.xlu0
        %v8773 = vpop.trf.xlu0
        %v8774 = vpop.trf.xlu0
        %v8775 = vpop.trf.xlu0
        %v8776 = vpop.trf.xlu0
        %v8777 = vpop.trf.xlu0
        %v8778 = vpop.trf.xlu0
        %v8779 = vpop.trf.xlu0
        %v8780 = vpop.trf.xlu0
        %v8781 = vpop.trf.xlu0
        %v8782 = vpop.trf.xlu0
        %v8783 = vpop.trf.xlu0
        %v8784 = vpop.trf.xlu0
        %v8785 = vpop.trf.xlu0
        %v8786 = vpop.trf.xlu0
        %8787 = vst [vmem:[%s436] sm:$0xff] %v8739
        %8788 = vst [vmem:[%s436 + $0x8] sm:$0xff] %v8771
        %8789 = vst [vmem:[%s436 + $0x10] sm:$0xff] %v8740
        %8790 = vst [vmem:[%s436 + $0x18] sm:$0xff] %v8772
        %v8791 = vpack.c.bf16 %v8692, %v8691
        %v8792 = vpack.c.bf16 %v8694, %v8693
        %v8793 = vpack.c.bf16 %v8696, %v8695
        %v8794 = vpack.c.bf16 %v8698, %v8697
        %v8795 = vpack.c.bf16 %v8700, %v8699
        %v8796 = vpack.c.bf16 %v8702, %v8701
        %v8797 = vpack.c.bf16 %v8704, %v8703
        %v8798 = vpack.c.bf16 %v8706, %v8705
        %v8799 = vpack.c.bf16 %v8708, %v8707
        %v8800 = vpack.c.bf16 %v8710, %v8709
        %v8801 = vpack.c.bf16 %v8712, %v8711
        %v8802 = vpack.c.bf16 %v8714, %v8713
        %v8803 = vpack.c.bf16 %v8716, %v8715
        %v8804 = vpack.c.bf16 %v8718, %v8717
        %v8805 = vpack.c.bf16 %v8720, %v8719
        %v8806 = vpack.c.bf16 %v8722, %v8721
        %8807 = vst [vmem:[%s574] sm:$0xff] %v8791
        %8808 = vst [vmem:[%s574 + $0x8] sm:$0xff] %v8792
        %8809 = vst [vmem:[%s574 + $0x10] sm:$0xff] %v8793
        %8810 = vst [vmem:[%s574 + $0x18] sm:$0xff] %v8794
        %8811 = vst [vmem:[%s574 + $0x20] sm:$0xff] %v8795
        %8812 = vst [vmem:[%s574 + $0x28] sm:$0xff] %v8796
        %8813 = vst [vmem:[%s574 + $0x30] sm:$0xff] %v8797
        %8814 = vst [vmem:[%s574 + $0x38] sm:$0xff] %v8798
        %8815 = vst [vmem:[%s574 + $0x40] sm:$0xff] %v8799
        %8816 = vst [vmem:[%s574 + $0x48] sm:$0xff] %v8800
        %8817 = vst [vmem:[%s574 + $0x50] sm:$0xff] %v8801
        %8818 = vst [vmem:[%s574 + $0x58] sm:$0xff] %v8802
        %8819 = vst [vmem:[%s574 + $0x60] sm:$0xff] %v8803
        %8820 = vst [vmem:[%s574 + $0x68] sm:$0xff] %v8804
        %8821 = vst [vmem:[%s574 + $0x70] sm:$0xff] %v8805
        %8822 = vst [vmem:[%s574 + $0x78] sm:$0xff] %v8806
        %v8823 = vld [vmem:[#allocation2 + $0x8] sm:$0xff]
        %v8824 = vld [vmem:[#allocation2 + $0x10] sm:$0xff]
        %v8825 = vld [vmem:[#allocation2 + $0x18] sm:$0xff]
        %v8826 = vld [vmem:[#allocation2 + $0x20] sm:$0xff]
        %v8827 = vld [vmem:[#allocation2 + $0x28] sm:$0xff]
        %v8828 = vld [vmem:[#allocation2 + $0x30] sm:$0xff]
        %v8829 = vld [vmem:[#allocation2 + $0x38] sm:$0xff]
        %v8830 = vld [vmem:[#allocation2 + $0x40] sm:$0xff]
        %v8831 = vld [vmem:[#allocation2 + $0x48] sm:$0xff]
        %v8832 = vld [vmem:[#allocation2 + $0x50] sm:$0xff]
        %v8833 = vld [vmem:[#allocation2 + $0x58] sm:$0xff]
        %v8834 = vld [vmem:[#allocation2 + $0x60] sm:$0xff]
        %v8835 = vld [vmem:[#allocation2 + $0x68] sm:$0xff]
        %v8836 = vld [vmem:[#allocation2 + $0x70] sm:$0xff]
        %v8837 = vld [vmem:[#allocation2 + $0x78] sm:$0xff]
        %v8838 = vld [vmem:[#allocation2 + $0x80] sm:$0xff]
        %v8839 = vld [vmem:[%s7] sm:$0xf]
        %v8840 = vld [vmem:[%s7 + $0x4] sm:$0xf]
        %v8841 = vld [vmem:[%s7 + $0x8] sm:$0xf]
        %v8842 = vld [vmem:[%s7 + $0xc] sm:$0xf]
        %v8843 = vld [vmem:[%s7 + $0x10] sm:$0xf]
        %v8844 = vld [vmem:[%s7 + $0x14] sm:$0xf]
        %v8845 = vld [vmem:[%s7 + $0x18] sm:$0xf]
        %v8846 = vld [vmem:[%s7 + $0x1c] sm:$0xf]
        %v8847 = vld [vmem:[%s7 + $0x20] sm:$0xf]
        %v8848 = vld [vmem:[%s7 + $0x24] sm:$0xf]
        %v8849 = vld [vmem:[%s7 + $0x28] sm:$0xf]
        %v8850 = vld [vmem:[%s7 + $0x2c] sm:$0xf]
        %v8851 = vld [vmem:[%s7 + $0x30] sm:$0xf]
        %v8852 = vld [vmem:[%s7 + $0x34] sm:$0xf]
        %v8853 = vld [vmem:[%s7 + $0x38] sm:$0xf]
        %v8854 = vld [vmem:[%s7 + $0x3c] sm:$0xf]
        %v8855 = vld [vmem:[%s8] sm:$0x1]
        %v8857 = vlaneseq
        %v8858 = vshrl.u32 %v8857, 7
        %v8859 = vsub.s32 0, %v8858
        %v8860 = vrot.slane %v8855, %v8859
        %v8878 = vunpack.c.l.b16 %v8839
        %v8879 = vunpack.c.l.b16 %v8840
        %v8880 = vunpack.c.l.b16 %v8841
        %v8881 = vunpack.c.l.b16 %v8842
        %v8882 = vunpack.c.l.b16 %v8843
        %v8883 = vunpack.c.l.b16 %v8844
        %v8884 = vunpack.c.l.b16 %v8845
        %v8885 = vunpack.c.l.b16 %v8846
        %v8886 = vunpack.c.l.b16 %v8847
        %v8887 = vunpack.c.l.b16 %v8848
        %v8888 = vunpack.c.l.b16 %v8849
        %v8889 = vunpack.c.l.b16 %v8850
        %v8890 = vunpack.c.l.b16 %v8851
        %v8891 = vunpack.c.l.b16 %v8852
        %v8892 = vunpack.c.l.b16 %v8853
        %v8893 = vunpack.c.l.b16 %v8854
        %v8894 = vpack.c.b16 %v8879, %v8878
        %v8895 = vpack.c.b16 %v8881, %v8880
        %v8896 = vpack.c.b16 %v8883, %v8882
        %v8897 = vpack.c.b16 %v8885, %v8884
        %v8898 = vpack.c.b16 %v8887, %v8886
        %v8899 = vpack.c.b16 %v8889, %v8888
        %v8900 = vpack.c.b16 %v8891, %v8890
        %v8901 = vpack.c.b16 %v8893, %v8892
        %8910 = vmatprep.subr.bf16.mxu0 0
        %8911 = vmatpush1.bf16.msra.mxu0 %v8894
        %8912 = vmatprep.subr.bf16.mxu0 0
        %8913 = vmatpush1.bf16.msra.mxu0 %v8895
        %8914 = vmatprep.subr.bf16.mxu0 0
        %8915 = vmatpush1.bf16.msra.mxu0 %v8896
        %8916 = vmatprep.subr.bf16.mxu0 0
        %8917 = vmatpush1.bf16.msra.mxu0 %v8897
        %8918 = vmatprep.subr.bf16.mxu0 0
        %8919 = vmatpush1.bf16.msra.mxu0 %v8898
        %8920 = vmatprep.subr.bf16.mxu0 0
        %8921 = vmatpush1.bf16.msra.mxu0 %v8899
        %8922 = vmatprep.subr.bf16.mxu0 0
        %8923 = vmatpush1.bf16.msra.mxu0 %v8900
        %8924 = vmatprep.subr.bf16.mxu0 0
        %8925 = vmatpush1.bf16.msra.mxu0 %v8901
        %8926 = vmatprep.subr.bf16.mxu0 0
        %8927 = vmatpush1.bf16.msra.mxu0 0
        %8928 = vmatprep.subr.bf16.mxu0 0
        %8929 = vmatpush1.bf16.msra.mxu0 0
        %8930 = vmatprep.subr.bf16.mxu0 0
        %8931 = vmatpush1.bf16.msra.mxu0 0
        %8932 = vmatprep.subr.bf16.mxu0 0
        %8933 = vmatpush1.bf16.msra.mxu0 0
        %8934 = vmatprep.subr.bf16.mxu0 0
        %8935 = vmatpush1.bf16.msra.mxu0 0
        %8936 = vmatprep.subr.bf16.mxu0 0
        %8937 = vmatpush1.bf16.msra.mxu0 0
        %8938 = vmatprep.subr.bf16.mxu0 0
        %8939 = vmatpush1.bf16.msra.mxu0 0
        %8940 = vmatprep.subr.bf16.mxu0 0
        %8941 = vmatpush1.bf16.msra.mxu0 0
        %8942 = vmatprep.mubr.bf16.mxu0 0
        %8943 = vmatmul.mubr.bf16.gmra.mrb[0].mxu0 %v8823
        %v8944 = vpop.f32.mrb[0].mxu0
        %v8945 = vadd.f32 %v8860, %v8944
        %v8946 = vpop.f32.mrb[0].mxu0
        %v8947 = vpop.f32.mrb[0].mxu0
        %v8948 = vadd.f32 %v8860, %v8947
        %v8949 = vpop.f32.mrb[0].mxu0
        %8950 = vmatprep.mubr.bf16.mxu0 0
        %8951 = vmatmul.mubr.bf16.gmra.mrb[0].mxu0 %v8824
        %v8952 = vpop.f32.mrb[0].mxu0
        %v8953 = vadd.f32 %v8860, %v8952
        %v8954 = vpop.f32.mrb[0].mxu0
        %v8955 = vpop.f32.mrb[0].mxu0
        %v8956 = vadd.f32 %v8860, %v8955
        %v8957 = vpop.f32.mrb[0].mxu0
        %8958 = vmatprep.mubr.bf16.mxu0 0
        %8959 = vmatmul.mubr.bf16.gmra.mrb[0].mxu0 %v8825
        %v8960 = vpop.f32.mrb[0].mxu0
        %v8961 = vadd.f32 %v8860, %v8960
        %v8962 = vpop.f32.mrb[0].mxu0
        %v8963 = vpop.f32.mrb[0].mxu0
        %v8964 = vadd.f32 %v8860, %v8963
        %v8965 = vpop.f32.mrb[0].mxu0
        %8966 = vmatprep.mubr.bf16.mxu0 0
        %8967 = vmatmul.mubr.bf16.gmra.mrb[0].mxu0 %v8826
        %v8968 = vpop.f32.mrb[0].mxu0
        %v8969 = vadd.f32 %v8860, %v8968
        %v8970 = vpop.f32.mrb[0].mxu0
        %v8971 = vpop.f32.mrb[0].mxu0
        %v8972 = vadd.f32 %v8860, %v8971
        %v8973 = vpop.f32.mrb[0].mxu0
        %8974 = vmatprep.mubr.bf16.mxu0 0
        %8975 = vmatmul.mubr.bf16.gmra.mrb[0].mxu0 %v8827
        %v8976 = vpop.f32.mrb[0].mxu0
        %v8977 = vadd.f32 %v8860, %v8976
        %v8978 = vpop.f32.mrb[0].mxu0
        %v8979 = vpop.f32.mrb[0].mxu0
        %v8980 = vadd.f32 %v8860, %v8979
        %v8981 = vpop.f32.mrb[0].mxu0
        %8982 = vmatprep.mubr.bf16.mxu0 0
        %8983 = vmatmul.mubr.bf16.gmra.mrb[0].mxu0 %v8828
        %v8984 = vpop.f32.mrb[0].mxu0
        %v8985 = vadd.f32 %v8860, %v8984
        %v8986 = vpop.f32.mrb[0].mxu0
        %v8987 = vpop.f32.mrb[0].mxu0
        %v8988 = vadd.f32 %v8860, %v8987
        %v8989 = vpop.f32.mrb[0].mxu0
        %8990 = vmatprep.mubr.bf16.mxu0 0
        %8991 = vmatmul.mubr.bf16.gmra.mrb[0].mxu0 %v8829
        %v8992 = vpop.f32.mrb[0].mxu0
        %v8993 = vadd.f32 %v8860, %v8992
        %v8994 = vpop.f32.mrb[0].mxu0
        %v8995 = vpop.f32.mrb[0].mxu0
        %v8996 = vadd.f32 %v8860, %v8995
        %v8997 = vpop.f32.mrb[0].mxu0
        %8998 = vmatprep.mubr.bf16.mxu0 0
        %8999 = vmatmul.mubr.bf16.gmra.mrb[0].mxu0 %v8830
        %v9000 = vpop.f32.mrb[0].mxu0
        %v9001 = vadd.f32 %v8860, %v9000
        %v9002 = vpop.f32.mrb[0].mxu0
        %v9003 = vpop.f32.mrb[0].mxu0
        %v9004 = vadd.f32 %v8860, %v9003
        %v9005 = vpop.f32.mrb[0].mxu0
        %9006 = vmatprep.mubr.bf16.mxu0 0
        %9007 = vmatmul.mubr.bf16.gmra.mrb[0].mxu0 %v8831
        %v9008 = vpop.f32.mrb[0].mxu0
        %v9009 = vadd.f32 %v8860, %v9008
        %v9010 = vpop.f32.mrb[0].mxu0
        %v9011 = vpop.f32.mrb[0].mxu0
        %v9012 = vadd.f32 %v8860, %v9011
        %v9013 = vpop.f32.mrb[0].mxu0
        %9014 = vmatprep.mubr.bf16.mxu0 0
        %9015 = vmatmul.mubr.bf16.gmra.mrb[0].mxu0 %v8832
        %v9016 = vpop.f32.mrb[0].mxu0
        %v9017 = vadd.f32 %v8860, %v9016
        %v9018 = vpop.f32.mrb[0].mxu0
        %v9019 = vpop.f32.mrb[0].mxu0
        %v9020 = vadd.f32 %v8860, %v9019
        %v9021 = vpop.f32.mrb[0].mxu0
        %9022 = vmatprep.mubr.bf16.mxu0 0
        %9023 = vmatmul.mubr.bf16.gmra.mrb[0].mxu0 %v8833
        %v9024 = vpop.f32.mrb[0].mxu0
        %v9025 = vadd.f32 %v8860, %v9024
        %v9026 = vpop.f32.mrb[0].mxu0
        %v9027 = vpop.f32.mrb[0].mxu0
        %v9028 = vadd.f32 %v8860, %v9027
        %v9029 = vpop.f32.mrb[0].mxu0
        %9030 = vmatprep.mubr.bf16.mxu0 0
        %9031 = vmatmul.mubr.bf16.gmra.mrb[0].mxu0 %v8834
        %v9032 = vpop.f32.mrb[0].mxu0
        %v9033 = vadd.f32 %v8860, %v9032
        %v9034 = vpop.f32.mrb[0].mxu0
        %v9035 = vpop.f32.mrb[0].mxu0
        %v9036 = vadd.f32 %v8860, %v9035
        %v9037 = vpop.f32.mrb[0].mxu0
        %9038 = vmatprep.mubr.bf16.mxu0 0
        %9039 = vmatmul.mubr.bf16.gmra.mrb[0].mxu0 %v8835
        %v9040 = vpop.f32.mrb[0].mxu0
        %v9041 = vadd.f32 %v8860, %v9040
        %v9042 = vpop.f32.mrb[0].mxu0
        %v9043 = vpop.f32.mrb[0].mxu0
        %v9044 = vadd.f32 %v8860, %v9043
        %v9045 = vpop.f32.mrb[0].mxu0
        %9046 = vmatprep.mubr.bf16.mxu0 0
        %9047 = vmatmul.mubr.bf16.gmra.mrb[0].mxu0 %v8836
        %v9048 = vpop.f32.mrb[0].mxu0
        %v9049 = vadd.f32 %v8860, %v9048
        %v9050 = vpop.f32.mrb[0].mxu0
        %v9051 = vpop.f32.mrb[0].mxu0
        %v9052 = vadd.f32 %v8860, %v9051
        %v9053 = vpop.f32.mrb[0].mxu0
        %9054 = vmatprep.mubr.bf16.mxu0 0
        %9055 = vmatmul.mubr.bf16.gmra.mrb[0].mxu0 %v8837
        %v9056 = vpop.f32.mrb[0].mxu0
        %v9057 = vadd.f32 %v8860, %v9056
        %v9058 = vpop.f32.mrb[0].mxu0
        %v9059 = vpop.f32.mrb[0].mxu0
        %v9060 = vadd.f32 %v8860, %v9059
        %v9061 = vpop.f32.mrb[0].mxu0
        %9062 = vmatprep.mubr.bf16.mxu0 0
        %9063 = vmatmul.mubr.bf16.gmra.mrb[0].mxu0 %v8838
        %v9064 = vpop.f32.mrb[0].mxu0
        %v9065 = vadd.f32 %v8860, %v9064
        %v9066 = vpop.f32.mrb[0].mxu0
        %v9067 = vpop.f32.mrb[0].mxu0
        %v9068 = vadd.f32 %v8860, %v9067
        %v9069 = vpop.f32.mrb[0].mxu0
        %9070 = vdwg.mxu0
        %v9071 = vadd.f32 %v8945, 3.0
        %v9072 = vadd.f32 %v8948, 3.0
        %v9073 = vadd.f32 %v8953, 3.0
        %v9074 = vadd.f32 %v8956, 3.0
        %v9075 = vadd.f32 %v8961, 3.0
        %v9076 = vadd.f32 %v8964, 3.0
        %v9077 = vadd.f32 %v8969, 3.0
        %v9078 = vadd.f32 %v8972, 3.0
        %v9079 = vadd.f32 %v8977, 3.0
        %v9080 = vadd.f32 %v8980, 3.0
        %v9081 = vadd.f32 %v8985, 3.0
        %v9082 = vadd.f32 %v8988, 3.0
        %v9083 = vadd.f32 %v8993, 3.0
        %v9084 = vadd.f32 %v8996, 3.0
        %v9085 = vadd.f32 %v9001, 3.0
        %v9086 = vadd.f32 %v9004, 3.0
        %v9087 = vadd.f32 %v9009, 3.0
        %v9088 = vadd.f32 %v9012, 3.0
        %v9089 = vadd.f32 %v9017, 3.0
        %v9090 = vadd.f32 %v9020, 3.0
        %v9091 = vadd.f32 %v9025, 3.0
        %v9092 = vadd.f32 %v9028, 3.0
        %v9093 = vadd.f32 %v9033, 3.0
        %v9094 = vadd.f32 %v9036, 3.0
        %v9095 = vadd.f32 %v9041, 3.0
        %v9096 = vadd.f32 %v9044, 3.0
        %v9097 = vadd.f32 %v9049, 3.0
        %v9098 = vadd.f32 %v9052, 3.0
        %v9099 = vadd.f32 %v9057, 3.0
        %v9100 = vadd.f32 %v9060, 3.0
        %v9101 = vadd.f32 %v9065, 3.0
        %v9102 = vadd.f32 %v9068, 3.0
        %v9103 = vmax.f32 %v9071, 0.0
        %v9104 = vmax.f32 %v9072, 0.0
        %v9105 = vmax.f32 %v9073, 0.0
        %v9106 = vmax.f32 %v9074, 0.0
        %v9107 = vmax.f32 %v9075, 0.0
        %v9108 = vmax.f32 %v9076, 0.0
        %v9109 = vmax.f32 %v9077, 0.0
        %v9110 = vmax.f32 %v9078, 0.0
        %v9111 = vmax.f32 %v9079, 0.0
        %v9112 = vmax.f32 %v9080, 0.0
        %v9113 = vmax.f32 %v9081, 0.0
        %v9114 = vmax.f32 %v9082, 0.0
        %v9115 = vmax.f32 %v9083, 0.0
        %v9116 = vmax.f32 %v9084, 0.0
        %v9117 = vmax.f32 %v9085, 0.0
        %v9118 = vmax.f32 %v9086, 0.0
        %v9119 = vmax.f32 %v9087, 0.0
        %v9120 = vmax.f32 %v9088, 0.0
        %v9121 = vmax.f32 %v9089, 0.0
        %v9122 = vmax.f32 %v9090, 0.0
        %v9123 = vmax.f32 %v9091, 0.0
        %v9124 = vmax.f32 %v9092, 0.0
        %v9125 = vmax.f32 %v9093, 0.0
        %v9126 = vmax.f32 %v9094, 0.0
        %v9127 = vmax.f32 %v9095, 0.0
        %v9128 = vmax.f32 %v9096, 0.0
        %v9129 = vmax.f32 %v9097, 0.0
        %v9130 = vmax.f32 %v9098, 0.0
        %v9131 = vmax.f32 %v9099, 0.0
        %v9132 = vmax.f32 %v9100, 0.0
        %v9133 = vmax.f32 %v9101, 0.0
        %v9134 = vmax.f32 %v9102, 0.0
        %v9135 = vmin.f32 %v9103, 6.0
        %v9136 = vmin.f32 %v9104, 6.0
        %v9137 = vmin.f32 %v9105, 6.0
        %v9138 = vmin.f32 %v9106, 6.0
        %v9139 = vmin.f32 %v9107, 6.0
        %v9140 = vmin.f32 %v9108, 6.0
        %v9141 = vmin.f32 %v9109, 6.0
        %v9142 = vmin.f32 %v9110, 6.0
        %v9143 = vmin.f32 %v9111, 6.0
        %v9144 = vmin.f32 %v9112, 6.0
        %v9145 = vmin.f32 %v9113, 6.0
        %v9146 = vmin.f32 %v9114, 6.0
        %v9147 = vmin.f32 %v9115, 6.0
        %v9148 = vmin.f32 %v9116, 6.0
        %v9149 = vmin.f32 %v9117, 6.0
        %v9150 = vmin.f32 %v9118, 6.0
        %v9151 = vmin.f32 %v9119, 6.0
        %v9152 = vmin.f32 %v9120, 6.0
        %v9153 = vmin.f32 %v9121, 6.0
        %v9154 = vmin.f32 %v9122, 6.0
        %v9155 = vmin.f32 %v9123, 6.0
        %v9156 = vmin.f32 %v9124, 6.0
        %v9157 = vmin.f32 %v9125, 6.0
        %v9158 = vmin.f32 %v9126, 6.0
        %v9159 = vmin.f32 %v9127, 6.0
        %v9160 = vmin.f32 %v9128, 6.0
        %v9161 = vmin.f32 %v9129, 6.0
        %v9162 = vmin.f32 %v9130, 6.0
        %v9163 = vmin.f32 %v9131, 6.0
        %v9164 = vmin.f32 %v9132, 6.0
        %v9165 = vmin.f32 %v9133, 6.0
        %v9166 = vmin.f32 %v9134, 6.0
        %v9167 = vmul.f32 %v8945, %v9135
        %v9168 = vmul.f32 %v8948, %v9136
        %v9169 = vmul.f32 %v8953, %v9137
        %v9170 = vmul.f32 %v8956, %v9138
        %v9171 = vmul.f32 %v8961, %v9139
        %v9172 = vmul.f32 %v8964, %v9140
        %v9173 = vmul.f32 %v8969, %v9141
        %v9174 = vmul.f32 %v8972, %v9142
        %v9175 = vmul.f32 %v8977, %v9143
        %v9176 = vmul.f32 %v8980, %v9144
        %v9177 = vmul.f32 %v8985, %v9145
        %v9178 = vmul.f32 %v8988, %v9146
        %v9179 = vmul.f32 %v8993, %v9147
        %v9180 = vmul.f32 %v8996, %v9148
        %v9181 = vmul.f32 %v9001, %v9149
        %v9182 = vmul.f32 %v9004, %v9150
        %v9183 = vmul.f32 %v9009, %v9151
        %v9184 = vmul.f32 %v9012, %v9152
        %v9185 = vmul.f32 %v9017, %v9153
        %v9186 = vmul.f32 %v9020, %v9154
        %v9187 = vmul.f32 %v9025, %v9155
        %v9188 = vmul.f32 %v9028, %v9156
        %v9189 = vmul.f32 %v9033, %v9157
        %v9190 = vmul.f32 %v9036, %v9158
        %v9191 = vmul.f32 %v9041, %v9159
        %v9192 = vmul.f32 %v9044, %v9160
        %v9193 = vmul.f32 %v9049, %v9161
        %v9194 = vmul.f32 %v9052, %v9162
        %v9195 = vmul.f32 %v9057, %v9163
        %v9196 = vmul.f32 %v9060, %v9164
        %v9197 = vmul.f32 %v9065, %v9165
        %v9198 = vmul.f32 %v9068, %v9166
        %v9199 = vmul.f32 %v9167, 0.16666667
        %v9200 = vmul.f32 %v9168, 0.16666667
        %v9201 = vmul.f32 %v9169, 0.16666667
        %v9202 = vmul.f32 %v9170, 0.16666667
        %v9203 = vmul.f32 %v9171, 0.16666667
        %v9204 = vmul.f32 %v9172, 0.16666667
        %v9205 = vmul.f32 %v9173, 0.16666667
        %v9206 = vmul.f32 %v9174, 0.16666667
        %v9207 = vmul.f32 %v9175, 0.16666667
        %v9208 = vmul.f32 %v9176, 0.16666667
        %v9209 = vmul.f32 %v9177, 0.16666667
        %v9210 = vmul.f32 %v9178, 0.16666667
        %v9211 = vmul.f32 %v9179, 0.16666667
        %v9212 = vmul.f32 %v9180, 0.16666667
        %v9213 = vmul.f32 %v9181, 0.16666667
        %v9214 = vmul.f32 %v9182, 0.16666667
        %v9215 = vmul.f32 %v9183, 0.16666667
        %v9216 = vmul.f32 %v9184, 0.16666667
        %v9217 = vmul.f32 %v9185, 0.16666667
        %v9218 = vmul.f32 %v9186, 0.16666667
        %v9219 = vmul.f32 %v9187, 0.16666667
        %v9220 = vmul.f32 %v9188, 0.16666667
        %v9221 = vmul.f32 %v9189, 0.16666667
        %v9222 = vmul.f32 %v9190, 0.16666667
        %v9223 = vmul.f32 %v9191, 0.16666667
        %v9224 = vmul.f32 %v9192, 0.16666667
        %v9225 = vmul.f32 %v9193, 0.16666667
        %v9226 = vmul.f32 %v9194, 0.16666667
        %v9227 = vmul.f32 %v9195, 0.16666667
        %v9228 = vmul.f32 %v9196, 0.16666667
        %v9229 = vmul.f32 %v9197, 0.16666667
        %v9230 = vmul.f32 %v9198, 0.16666667
        %9231 = vxpose.xlu0.b32.start [1/16] %v9199, 128
        %9232 = vxpose.xlu0.b32.cont [2/16] %v9200, 128
        %9233 = vxpose.xlu0.b32.cont [3/16] %v9201, 128
        %9234 = vxpose.xlu0.b32.cont [4/16] %v9202, 128
        %9235 = vxpose.xlu0.b32.cont [5/16] %v9203, 128
        %9236 = vxpose.xlu0.b32.cont [6/16] %v9204, 128
        %9237 = vxpose.xlu0.b32.cont [7/16] %v9205, 128
        %9238 = vxpose.xlu0.b32.cont [8/16] %v9206, 128
        %9239 = vxpose.xlu0.b32.cont [9/16] %v9207, 128
        %9240 = vxpose.xlu0.b32.cont [10/16] %v9208, 128
        %9241 = vxpose.xlu0.b32.cont [11/16] %v9209, 128
        %9242 = vxpose.xlu0.b32.cont [12/16] %v9210, 128
        %9243 = vxpose.xlu0.b32.cont [13/16] %v9211, 128
        %9244 = vxpose.xlu0.b32.cont [14/16] %v9212, 128
        %9245 = vxpose.xlu0.b32.cont [15/16] %v9213, 128
        %9246 = vxpose.xlu0.b32.end [16/16] %v9214, 128
        %v9247 = vpop.trf.xlu0
        %v9248 = vpop.trf.xlu0
        %v9249 = vpop.trf.xlu0
        %v9250 = vpop.trf.xlu0
        %v9251 = vpop.trf.xlu0
        %v9252 = vpop.trf.xlu0
        %v9253 = vpop.trf.xlu0
        %v9254 = vpop.trf.xlu0
        %v9255 = vpop.trf.xlu0
        %v9256 = vpop.trf.xlu0
        %v9257 = vpop.trf.xlu0
        %v9258 = vpop.trf.xlu0
        %v9259 = vpop.trf.xlu0
        %v9260 = vpop.trf.xlu0
        %v9261 = vpop.trf.xlu0
        %v9262 = vpop.trf.xlu0
        %9263 = vxpose.xlu0.b32.start [1/16] %v9215, 128
        %9264 = vxpose.xlu0.b32.cont [2/16] %v9216, 128
        %9265 = vxpose.xlu0.b32.cont [3/16] %v9217, 128
        %9266 = vxpose.xlu0.b32.cont [4/16] %v9218, 128
        %9267 = vxpose.xlu0.b32.cont [5/16] %v9219, 128
        %9268 = vxpose.xlu0.b32.cont [6/16] %v9220, 128
        %9269 = vxpose.xlu0.b32.cont [7/16] %v9221, 128
        %9270 = vxpose.xlu0.b32.cont [8/16] %v9222, 128
        %9271 = vxpose.xlu0.b32.cont [9/16] %v9223, 128
        %9272 = vxpose.xlu0.b32.cont [10/16] %v9224, 128
        %9273 = vxpose.xlu0.b32.cont [11/16] %v9225, 128
        %9274 = vxpose.xlu0.b32.cont [12/16] %v9226, 128
        %9275 = vxpose.xlu0.b32.cont [13/16] %v9227, 128
        %9276 = vxpose.xlu0.b32.cont [14/16] %v9228, 128
        %9277 = vxpose.xlu0.b32.cont [15/16] %v9229, 128
        %9278 = vxpose.xlu0.b32.end [16/16] %v9230, 128
        %v9279 = vpop.trf.xlu0
        %v9280 = vpop.trf.xlu0
        %v9281 = vpop.trf.xlu0
        %v9282 = vpop.trf.xlu0
        %v9283 = vpop.trf.xlu0
        %v9284 = vpop.trf.xlu0
        %v9285 = vpop.trf.xlu0
        %v9286 = vpop.trf.xlu0
        %v9287 = vpop.trf.xlu0
        %v9288 = vpop.trf.xlu0
        %v9289 = vpop.trf.xlu0
        %v9290 = vpop.trf.xlu0
        %v9291 = vpop.trf.xlu0
        %v9292 = vpop.trf.xlu0
        %v9293 = vpop.trf.xlu0
        %v9294 = vpop.trf.xlu0
        %9295 = vst [vmem:[%s441] sm:$0xff] %v9247
        %9296 = vst [vmem:[%s441 + $0x8] sm:$0xff] %v9279
        %9297 = vst [vmem:[%s441 + $0x10] sm:$0xff] %v9248
        %9298 = vst [vmem:[%s441 + $0x18] sm:$0xff] %v9280
        %9299 = vst [vmem:[%s441 + $0x20] sm:$0xff] %v9249
        %9300 = vst [vmem:[%s441 + $0x28] sm:$0xff] %v9281
        %9301 = vst [vmem:[%s441 + $0x30] sm:$0xff] %v9250
        %9302 = vst [vmem:[%s441 + $0x38] sm:$0xff] %v9282
        %p9303 = scmp.lt.s32.totalorder %s25, 1
        %s9304 = scalar_select %p9303, %s25, 1
        %s9305 = smul.addr %s9304, 2
        %s9306 = smul.addr %s9305, 8
        %s9307 = scalar_lea.vmem %s9, %s9306
        %p9308 = scmp.lt.s32.totalorder %s25, 1
        %s9309 = scalar_select %p9308, %s25, 1
        %s9310 = smul.addr %s9309, 4
        %s9311 = smul.addr %s9310, 8
        %s9312 = scalar_lea.vmem %s10, %s9311
        %p9313 = scmp.lt.s32.totalorder %s25, 1
        %s9314 = scalar_select %p9313, %s25, 1
        %s9315 = smul.addr %s9314, 8
        %s9316 = smul.addr %s9315, 8
        %s9317 = scalar_lea.vmem %s11, %s9316
        // Predicated region
        $region65: #{forward.1} parent=55 // pred_check
          %p9318 = pneg %p237
        $region66: #{forward.1} parent=55 // pred_check_branch
          %9320 = sbr.rel (%p9318) target = $region68
        $region67: #{forward.1} parent=55 // pred_region
          _
        $region68: #{forward.1} parent=55 // pred_fallthru
          _
        // Predicated region
        $region69: #{forward.1} parent=55 // pred_check
          %p9321 = pneg %p263
        $region70: #{forward.1} parent=55 // pred_check_branch
          %9323 = sbr.rel (%p9321) target = $region72
        $region71: #{forward.1} parent=55 // pred_region
          _
        $region72: #{forward.1} parent=55 // pred_fallthru
          _
        // Predicated region
        $region73: #{forward.1} parent=55 // pred_check
          %p9324 = pneg %p289
        $region74: #{forward.1} parent=55 // pred_check_branch
          %9326 = sbr.rel (%p9324) target = $region76
        $region75: #{forward.1} parent=55 // pred_region
          _
        $region76: #{forward.1} parent=55 // pred_fallthru
          _
      $region56: #{forward.1} parent=5 // pred_fallthru
        _
      %p9327 = scmp.le.s32.totalorder 2, %s20
      // Predicated region
      $region77: #{forward.1} parent=5 // pred_check
        %p9328 = pneg %p9327
      $region78: #{forward.1} parent=5 // pred_check_branch
        %9330 = sbr.rel (%p9328) target = $region80
      $region79: #{forward.1} parent=5 // pred_region
        %s9331 = ssub.s32 %s20, 2
        // Predicated region
        $region81: #{forward.1} parent=79 // pred_check
          %p9332 = pneg %p243
        $region82: #{forward.1} parent=79 // pred_check_branch
          %9334 = sbr.rel (%p9332) target = $region84
        $region83: #{forward.1} parent=79 // pred_region
          %p9335 = scmp.lt.s32.totalorder %s26, 1
          %s9336 = scalar_select %p9335, %s26, 1
          %s9337 = smul.addr %s9336, 2
          %s9338 = smul.addr %s9337, 8
          %s9339 = scalar_lea.vmem %s9, %s9338
        $region84: #{forward.1} parent=79 // pred_fallthru
          _
        // Predicated region
        $region85: #{forward.1} parent=79 // pred_check
          %p9340 = pneg %p269
        $region86: #{forward.1} parent=79 // pred_check_branch
          %9342 = sbr.rel (%p9340) target = $region88
        $region87: #{forward.1} parent=79 // pred_region
          %p9343 = scmp.lt.s32.totalorder %s26, 1
          %s9344 = scalar_select %p9343, %s26, 1
          %s9345 = smul.addr %s9344, 4
          %s9346 = smul.addr %s9345, 8
          %s9347 = scalar_lea.vmem %s10, %s9346
        $region88: #{forward.1} parent=79 // pred_fallthru
          _
        // Predicated region
        $region89: #{forward.1} parent=79 // pred_check
          %p9348 = pneg %p295
        $region90: #{forward.1} parent=79 // pred_check_branch
          %9350 = sbr.rel (%p9348) target = $region92
        $region91: #{forward.1} parent=79 // pred_region
          %p9351 = scmp.lt.s32.totalorder %s26, 1
          %s9352 = scalar_select %p9351, %s26, 1
          %s9353 = smul.addr %s9352, 8
          %s9354 = smul.addr %s9353, 8
          %s9355 = scalar_lea.vmem %s11, %s9354
        $region92: #{forward.1} parent=79 // pred_fallthru
          _
      $region80: #{forward.1} parent=5 // pred_fallthru
        _
    $region6: #{forward.1} parent=1 // loop_footer
      %s24 = sadd.s32 1, %s20
    $region7: #{forward.1} parent=1 // loop_footer_branch
      %19 = sbr.rel target = $region3
    $region8: #{forward.1} parent=1 // loop_exit
      _
    %9356 = vsyncpa [#allocation4], 1
    %s9357 = scalar_lea.sflag [#allocation4], 1
    %9358 = vsyncpa %s9357, 1
    %9359 = vsyncpa [#allocation6], 1

</llo_original>
